<compile_context>
chip_gen: v5e
topology: v5e:2x2
jax: 0.10.0
libtpu: 0.0.40
codegen_flags: <defaults>
</compile_context>

<pallas_src>
import jax
import jax.numpy as jnp
from jax.experimental import pallas as pl
from jax.experimental.pallas import tpu as pltpu

EPS = 1e-3


def _fused_add_conv_bn_kernel(xa_ref, xb_ref, w_ref, gamma_ref, beta_ref, o_ref):
    # xa_ref, xb_ref : (Cin, P)    f32   residual inputs
    # w_ref          : (Cout, Cin) f32   1x1-conv weight
    # gamma/beta     : (Cout, 1)   f32
    # o_ref          : (Cout, P)   f32 (or caller-chosen dtype)
    x = xa_ref[...] + xb_ref[...]                        # f32 residual add (VPU)
    s = jnp.dot(w_ref[...].astype(jnp.bfloat16),         # single bf16 cast per MXU operand
                x.astype(jnp.bfloat16),
                preferred_element_type=jnp.float32)      # (Cout, P), f32 accumulate

    p = s.shape[1]
    inv_p = 1.0 / p
    # Single-pass per-channel batch statistics over N*H*W (lane reduce -> XLU).
    # NOTE: E[s^2] - mean^2 is fine for P=196 with f32 accumulation; revisit if
    #       reused with much larger spatial extents / large-mean activations.
    ssum = jnp.sum(s, axis=1, keepdims=True)
    sqsum = jnp.sum(s * s, axis=1, keepdims=True)
    mean = ssum * inv_p
    var = sqsum * inv_p - mean * mean                    # biased (training-mode BN)
    inv = jax.lax.rsqrt(var + EPS)
    scale = inv * gamma_ref[...]                         # (Cout, 1)
    shift = beta_ref[...] - mean * scale
    o_ref[...] = (s * scale + shift).astype(o_ref.dtype)


def fused_add_conv_bn(x398, x383, weight, gamma, beta, *, out_dtype=jnp.float32):
    """x398, x383: (N, Cin, H, W).  weight: (Cout, Cin, 1, 1).  Returns NCHW."""
    n, cin, h, w = x398.shape
    cout = weight.shape[0]
    p = n * h * w

    # Transpose-free (Cin, N*H*W) layout.  For N == 1 this is a pure reshape.
    def to_cp(x):
        x = x.astype(jnp.float32)
        if n == 1:
            return x.reshape(cin, p)
        return jnp.moveaxis(x, 1, 0).reshape(cin, p)     # fallback for N > 1

    xa = to_cp(x398)
    xb = to_cp(x383)
    wm = weight.reshape(cout, cin).astype(jnp.float32)   # bf16 cast happens in-kernel
    g = gamma.reshape(cout, 1).astype(jnp.float32)
    b = beta.reshape(cout, 1).astype(jnp.float32)

    vmem = pl.BlockSpec(memory_space=pltpu.MemorySpace.VMEM)

    # Single kernel invocation: whole problem fits easily in VMEM (~2 MiB),
    # so no grid / tiling / pipelining machinery is needed.
    out_cp = pl.pallas_call(
        _fused_add_conv_bn_kernel,
        out_shape=jax.ShapeDtypeStruct((cout, p), out_dtype),
        in_specs=[vmem, vmem, vmem, vmem, vmem],
        out_specs=vmem,
        compiler_params=pltpu.CompilerParams(
            vmem_limit_bytes=32 * 1024 * 1024,
        ),
    )(xa, xb, wm, g, b)

    # (Cout, N*H*W) -> (N, Cout, H, W): pure reshape when N == 1.
    if n == 1:
        return out_cp.reshape(1, cout, h, w)
    return jnp.moveaxis(out_cp.reshape(cout, n, h, w), 0, 1)


def _reference_bf16_matmul(x398, x383, weight, gamma, beta):
    """Same algorithm as the kernel: f32 add, bf16 MXU operands, f32 BN math."""
    x = (x398 + x383).astype(jnp.float32)
    wmat = weight.reshape(weight.shape[0], weight.shape[1])
    y = jnp.einsum("nchw,oc->nohw",
                   x.astype(jnp.bfloat16), wmat.astype(jnp.bfloat16),
                   preferred_element_type=jnp.float32)
    mean = jnp.mean(y, axis=(0, 2, 3), keepdims=True)
    var = jnp.mean((y - mean) ** 2, axis=(0, 2, 3), keepdims=True)
    return (y - mean) / jnp.sqrt(var + EPS) * gamma.reshape(1, -1, 1, 1) \
        + beta.reshape(1, -1, 1, 1)


def _reference_f32(x398, x383, weight, gamma, beta):
    """Pure-f32 reference (matches the PyTorch module's arithmetic)."""
    x = (x398 + x383).astype(jnp.float32)
    wmat = weight.reshape(weight.shape[0], weight.shape[1])
    y = jnp.einsum("nchw,oc->nohw", x, wmat)
    mean = jnp.mean(y, axis=(0, 2, 3), keepdims=True)
    var = jnp.mean((y - mean) ** 2, axis=(0, 2, 3), keepdims=True)
    return (y - mean) / jnp.sqrt(var + EPS) * gamma.reshape(1, -1, 1, 1) \
        + beta.reshape(1, -1, 1, 1)


if __name__ == "__main__":
    key = jax.random.PRNGKey(0)
    k1, k2, k3 = jax.random.split(key, 3)

    N, CIN, H, W = 1, 160, 14, 14
    COUT = 960

    x398 = jax.random.normal(k1, (N, CIN, H, W), dtype=jnp.float32)
    x383 = jax.random.normal(k2, (N, CIN, H, W), dtype=jnp.float32)

    # Deterministic synthetic parameters (shapes match the PyTorch module).
    fan_in = CIN  # 1x1 kernel
    bound = (1.0 / fan_in) ** 0.5
    weight = jax.random.uniform(k3, (COUT, CIN, 1, 1), dtype=jnp.float32,
                                minval=-bound, maxval=bound)
    gamma = jnp.ones((COUT,), dtype=jnp.float32)   # BatchNorm affine init
    beta = jnp.zeros((COUT,), dtype=jnp.float32)

    out = fused_add_conv_bn(x398, x383, weight, gamma, beta)
    out = jax.block_until_ready(out)
    assert out.shape == (N, COUT, H, W), out.shape
    assert out.dtype == jnp.float32, out.dtype

    # Tight check against a reference using the same bf16-matmul algorithm.
    ref_tight = _reference_bf16_matmul(x398, x383, weight, gamma, beta)
    assert jnp.allclose(out, ref_tight, atol=2e-3, rtol=2e-3), \
        float(jnp.max(jnp.abs(out - ref_tight)))

    # Looser check against the pure-f32 reference (bf16 MXU operand rounding).
    ref_f32 = _reference_f32(x398, x383, weight, gamma, beta)
    assert jnp.allclose(out, ref_f32, atol=2e-2, rtol=2e-2), \
        float(jnp.max(jnp.abs(out - ref_f32)))

    print("KERNEL_OK")
</pallas_src>

<mosaic_0001>
module attributes {stable_mosaic.version = 11 : i64} {
  func.func @_fused_add_conv_bn_kernel(%arg0: memref<160x196xf32, #tpu.memory_space<vmem>>, %arg1: memref<160x196xf32, #tpu.memory_space<vmem>>, %arg2: memref<960x160xf32, #tpu.memory_space<vmem>>, %arg3: memref<960x1xf32, #tpu.memory_space<vmem>>, %arg4: memref<960x1xf32, #tpu.memory_space<vmem>>, %arg5: memref<960x196xf32, #tpu.memory_space<vmem>>) attributes {dimension_semantics = [], scalar_prefetch = 0 : i64, scratch_operands = 0 : i64, tpu.core_type = #tpu.core_type<tc>} {
    %c0 = arith.constant 0 : index
    %c0_0 = arith.constant 0 : index
    %0 = vector.load %arg0[%c0, %c0_0] : memref<160x196xf32, #tpu.memory_space<vmem>>, vector<160x196xf32>
    %c0_1 = arith.constant 0 : index
    %c0_2 = arith.constant 0 : index
    %1 = vector.load %arg1[%c0_1, %c0_2] : memref<160x196xf32, #tpu.memory_space<vmem>>, vector<160x196xf32>
    %2 = arith.addf %0, %1 : vector<160x196xf32>
    %c0_3 = arith.constant 0 : index
    %c0_4 = arith.constant 0 : index
    %3 = vector.load %arg2[%c0_3, %c0_4] : memref<960x160xf32, #tpu.memory_space<vmem>>, vector<960x160xf32>
    %4 = arith.truncf %3 : vector<960x160xf32> to vector<960x160xbf16>
    %5 = arith.truncf %2 : vector<160x196xf32> to vector<160x196xbf16>
    %cst = arith.constant dense<0.000000e+00> : vector<960x196xf32>
    %6 = tpu.matmul %4, %5, %cst {dimension_numbers = #tpu.dot_dimension_numbers<[1], [0], [0], [1], [0, 0, 1, 1], [], []>} : vector<960x160xbf16>, vector<160x196xbf16>, vector<960x196xf32> -> vector<960x196xf32>
    %cst_5 = arith.constant dense<0.000000e+00> : vector<960xf32>
    %7 = vector.multi_reduction <add>, %6, %cst_5 [1] : vector<960x196xf32> to vector<960xf32>
    %8 = vector.shape_cast %7 : vector<960xf32> to vector<960x1xf32>
    %9 = arith.mulf %6, %6 : vector<960x196xf32>
    %cst_6 = arith.constant dense<0.000000e+00> : vector<960xf32>
    %10 = vector.multi_reduction <add>, %9, %cst_6 [1] : vector<960x196xf32> to vector<960xf32>
    %11 = vector.shape_cast %10 : vector<960xf32> to vector<960x1xf32>
    %cst_7 = arith.constant 0.00510204071 : f32
    %12 = vector.broadcast %cst_7 : f32 to vector<960x1xf32>
    %13 = arith.mulf %8, %12 : vector<960x1xf32>
    %cst_8 = arith.constant 0.00510204071 : f32
    %14 = vector.broadcast %cst_8 : f32 to vector<960x1xf32>
    %15 = arith.mulf %11, %14 : vector<960x1xf32>
    %16 = arith.mulf %13, %13 : vector<960x1xf32>
    %17 = arith.subf %15, %16 : vector<960x1xf32>
    %cst_9 = arith.constant 1.000000e-03 : f32
    %18 = vector.broadcast %cst_9 : f32 to vector<960x1xf32>
    %19 = arith.addf %17, %18 : vector<960x1xf32>
    %20 = math.rsqrt %19 : vector<960x1xf32>
    %c0_10 = arith.constant 0 : index
    %c0_11 = arith.constant 0 : index
    %21 = vector.load %arg3[%c0_10, %c0_11] : memref<960x1xf32, #tpu.memory_space<vmem>>, vector<960x1xf32>
    %22 = arith.mulf %20, %21 : vector<960x1xf32>
    %c0_12 = arith.constant 0 : index
    %c0_13 = arith.constant 0 : index
    %23 = vector.load %arg4[%c0_12, %c0_13] : memref<960x1xf32, #tpu.memory_space<vmem>>, vector<960x1xf32>
    %24 = arith.mulf %13, %22 : vector<960x1xf32>
    %25 = arith.subf %23, %24 : vector<960x1xf32>
    %26 = vector.broadcast %22 : vector<960x1xf32> to vector<960x196xf32>
    %27 = arith.mulf %6, %26 : vector<960x196xf32>
    %28 = vector.broadcast %25 : vector<960x1xf32> to vector<960x196xf32>
    %29 = arith.addf %27, %28 : vector<960x196xf32>
    %c0_14 = arith.constant 0 : index
    %c0_15 = arith.constant 0 : index
    %30 = vector.load %arg5[%c0_14, %c0_15] : memref<960x196xf32, #tpu.memory_space<vmem>>, vector<960x196xf32>
    tpu.vector_store %arg5[%c0_14, %c0_15], %29 {strides = array<i32>} : memref<960x196xf32, #tpu.memory_space<vmem>>, vector<960x196xf32>,
    return
  }
}

</mosaic_0001>

<llo_original>
// kernel: tpu_custom_call.1
$region0: #{tpu_custom_call.1}
  #allocation0 [shape = 'u32[]', space=smem, size = 0x4, offset = 0x4, fixed_abs, tag = 'smem constant byte address 0x4 - core index']
  #allocation1 [shape = 'u32[72,128]{1,0:T(1,128)}', space=vmem, size = 0x9000, scoped, tag = 'internal scratch']
  %s0 = inlined_call_operand.vmem [shape: f32[160,196], index: 0, kind: input, shape index: {}]
  %s1 = inlined_call_operand.vmem [shape: f32[160,196], index: 1, kind: input, shape index: {}]
  %s2 = inlined_call_operand.vmem [shape: f32[960,160], index: 2, kind: input, shape index: {}]
  %s3 = inlined_call_operand.vmem [shape: f32[960,1], index: 3, kind: input, shape index: {}]
  %s4 = inlined_call_operand.vmem [shape: f32[960,1], index: 4, kind: input, shape index: {}]
  %s5 = inlined_call_operand.vmem [shape: f32[960,196], index: 5, kind: output, shape index: {}]
  %s6 = sld [smem:[#allocation0]]
  $region30: #{tpu_custom_call.1} parent=0
    _
  %s8 = ssub.s32 1, %s6
  %s9 = scalar_select 0, %s8, %s6
  // Predicated region
  $region2: #{tpu_custom_call.1} parent=0 // pred_check
    _
  $region3: #{tpu_custom_call.1} parent=0 // pred_check_branch
    %11 = sbr.rel (0) target = $region5
  $region4: #{tpu_custom_call.1} parent=0 // pred_region
    _
  $region5: #{tpu_custom_call.1} parent=0 // pred_fallthru
    _
  // Predicated region
  $region6: #{tpu_custom_call.1} parent=0 // pred_check
    _
  $region7: #{tpu_custom_call.1} parent=0 // pred_check_branch
    %13 = sbr.rel (0) target = $region9
  $region8: #{tpu_custom_call.1} parent=0 // pred_region
    _
  $region9: #{tpu_custom_call.1} parent=0 // pred_fallthru
    _
  // Predicated region
  $region10: #{tpu_custom_call.1} parent=0 // pred_check
    _
  $region11: #{tpu_custom_call.1} parent=0 // pred_check_branch
    %15 = sbr.rel (0) target = $region13
  $region12: #{tpu_custom_call.1} parent=0 // pred_region
    _
  $region13: #{tpu_custom_call.1} parent=0 // pred_fallthru
    _
  // Predicated region
  $region14: #{tpu_custom_call.1} parent=0 // pred_check
    _
  $region15: #{tpu_custom_call.1} parent=0 // pred_check_branch
    %17 = sbr.rel (0) target = $region17
  $region16: #{tpu_custom_call.1} parent=0 // pred_region
    _
  $region17: #{tpu_custom_call.1} parent=0 // pred_fallthru
    _
  // Predicated region
  $region18: #{tpu_custom_call.1} parent=0 // pred_check
    _
  $region19: #{tpu_custom_call.1} parent=0 // pred_check_branch
    %19 = sbr.rel (0) target = $region21
  $region20: #{tpu_custom_call.1} parent=0 // pred_region
    _
  $region21: #{tpu_custom_call.1} parent=0 // pred_fallthru
    _
  %v21 = vld [vmem:[%s0] sm:$0xff]
  %v22 = vld [vmem:[%s0 + $0x8] sm:$0xff]
  %v23 = vld [vmem:[%s0 + $0x10] sm:$0xff]
  %v24 = vld [vmem:[%s0 + $0x18] sm:$0xff]
  %v25 = vld [vmem:[%s0 + $0x20] sm:$0xff]
  %v26 = vld [vmem:[%s0 + $0x28] sm:$0xff]
  %v27 = vld [vmem:[%s0 + $0x30] sm:$0xff]
  %v28 = vld [vmem:[%s0 + $0x38] sm:$0xff]
  %v29 = vld [vmem:[%s0 + $0x40] sm:$0xff]
  %v30 = vld [vmem:[%s0 + $0x48] sm:$0xff]
  %v31 = vld [vmem:[%s0 + $0x50] sm:$0xff]
  %v32 = vld [vmem:[%s0 + $0x58] sm:$0xff]
  %v33 = vld [vmem:[%s0 + $0x60] sm:$0xff]
  %v34 = vld [vmem:[%s0 + $0x68] sm:$0xff]
  %v35 = vld [vmem:[%s0 + $0x70] sm:$0xff]
  %v36 = vld [vmem:[%s0 + $0x78] sm:$0xff]
  %v37 = vld [vmem:[%s0 + $0x80] sm:$0xff]
  %v38 = vld [vmem:[%s0 + $0x88] sm:$0xff]
  %v39 = vld [vmem:[%s0 + $0x90] sm:$0xff]
  %v40 = vld [vmem:[%s0 + $0x98] sm:$0xff]
  %v41 = vld [vmem:[%s0 + $0xa0] sm:$0xff]
  %v42 = vld [vmem:[%s0 + $0xa8] sm:$0xff]
  %v43 = vld [vmem:[%s0 + $0xb0] sm:$0xff]
  %v44 = vld [vmem:[%s0 + $0xb8] sm:$0xff]
  %v45 = vld [vmem:[%s0 + $0xc0] sm:$0xff]
  %v46 = vld [vmem:[%s0 + $0xc8] sm:$0xff]
  %v47 = vld [vmem:[%s0 + $0xd0] sm:$0xff]
  %v48 = vld [vmem:[%s0 + $0xd8] sm:$0xff]
  %v49 = vld [vmem:[%s0 + $0xe0] sm:$0xff]
  %v50 = vld [vmem:[%s0 + $0xe8] sm:$0xff]
  %v51 = vld [vmem:[%s0 + $0xf0] sm:$0xff]
  %v52 = vld [vmem:[%s0 + $0xf8] sm:$0xff]
  %v53 = vld [vmem:[%s0 + $0x100] sm:$0xff]
  %v54 = vld [vmem:[%s0 + $0x108] sm:$0xff]
  %v55 = vld [vmem:[%s0 + $0x110] sm:$0xff]
  %v56 = vld [vmem:[%s0 + $0x118] sm:$0xff]
  %v57 = vld [vmem:[%s0 + $0x120] sm:$0xff]
  %v58 = vld [vmem:[%s0 + $0x128] sm:$0xff]
  %v59 = vld [vmem:[%s0 + $0x130] sm:$0xff]
  %v60 = vld [vmem:[%s0 + $0x138] sm:$0xff]
  %v61 = vld [vmem:[%s1] sm:$0xff]
  %v62 = vld [vmem:[%s1 + $0x8] sm:$0xff]
  %v63 = vld [vmem:[%s1 + $0x10] sm:$0xff]
  %v64 = vld [vmem:[%s1 + $0x18] sm:$0xff]
  %v65 = vld [vmem:[%s1 + $0x20] sm:$0xff]
  %v66 = vld [vmem:[%s1 + $0x28] sm:$0xff]
  %v67 = vld [vmem:[%s1 + $0x30] sm:$0xff]
  %v68 = vld [vmem:[%s1 + $0x38] sm:$0xff]
  %v69 = vld [vmem:[%s1 + $0x40] sm:$0xff]
  %v70 = vld [vmem:[%s1 + $0x48] sm:$0xff]
  %v71 = vld [vmem:[%s1 + $0x50] sm:$0xff]
  %v72 = vld [vmem:[%s1 + $0x58] sm:$0xff]
  %v73 = vld [vmem:[%s1 + $0x60] sm:$0xff]
  %v74 = vld [vmem:[%s1 + $0x68] sm:$0xff]
  %v75 = vld [vmem:[%s1 + $0x70] sm:$0xff]
  %v76 = vld [vmem:[%s1 + $0x78] sm:$0xff]
  %v77 = vld [vmem:[%s1 + $0x80] sm:$0xff]
  %v78 = vld [vmem:[%s1 + $0x88] sm:$0xff]
  %v79 = vld [vmem:[%s1 + $0x90] sm:$0xff]
  %v80 = vld [vmem:[%s1 + $0x98] sm:$0xff]
  %v81 = vld [vmem:[%s1 + $0xa0] sm:$0xff]
  %v82 = vld [vmem:[%s1 + $0xa8] sm:$0xff]
  %v83 = vld [vmem:[%s1 + $0xb0] sm:$0xff]
  %v84 = vld [vmem:[%s1 + $0xb8] sm:$0xff]
  %v85 = vld [vmem:[%s1 + $0xc0] sm:$0xff]
  %v86 = vld [vmem:[%s1 + $0xc8] sm:$0xff]
  %v87 = vld [vmem:[%s1 + $0xd0] sm:$0xff]
  %v88 = vld [vmem:[%s1 + $0xd8] sm:$0xff]
  %v89 = vld [vmem:[%s1 + $0xe0] sm:$0xff]
  %v90 = vld [vmem:[%s1 + $0xe8] sm:$0xff]
  %v91 = vld [vmem:[%s1 + $0xf0] sm:$0xff]
  %v92 = vld [vmem:[%s1 + $0xf8] sm:$0xff]
  %v93 = vld [vmem:[%s1 + $0x100] sm:$0xff]
  %v94 = vld [vmem:[%s1 + $0x108] sm:$0xff]
  %v95 = vld [vmem:[%s1 + $0x110] sm:$0xff]
  %v96 = vld [vmem:[%s1 + $0x118] sm:$0xff]
  %v97 = vld [vmem:[%s1 + $0x120] sm:$0xff]
  %v98 = vld [vmem:[%s1 + $0x128] sm:$0xff]
  %v99 = vld [vmem:[%s1 + $0x130] sm:$0xff]
  %v100 = vld [vmem:[%s1 + $0x138] sm:$0xff]
  %v101 = vadd.f32 %v21, %v61
  %v102 = vadd.f32 %v22, %v62
  %v103 = vadd.f32 %v23, %v63
  %v104 = vadd.f32 %v24, %v64
  %v105 = vadd.f32 %v25, %v65
  %v106 = vadd.f32 %v26, %v66
  %v107 = vadd.f32 %v27, %v67
  %v108 = vadd.f32 %v28, %v68
  %v109 = vadd.f32 %v29, %v69
  %v110 = vadd.f32 %v30, %v70
  %v111 = vadd.f32 %v31, %v71
  %v112 = vadd.f32 %v32, %v72
  %v113 = vadd.f32 %v33, %v73
  %v114 = vadd.f32 %v34, %v74
  %v115 = vadd.f32 %v35, %v75
  %v116 = vadd.f32 %v36, %v76
  %v117 = vadd.f32 %v37, %v77
  %v118 = vadd.f32 %v38, %v78
  %v119 = vadd.f32 %v39, %v79
  %v120 = vadd.f32 %v40, %v80
  %v121 = vadd.f32 %v41, %v81
  %v122 = vadd.f32 %v42, %v82
  %v123 = vadd.f32 %v43, %v83
  %v124 = vadd.f32 %v44, %v84
  %v125 = vadd.f32 %v45, %v85
  %v126 = vadd.f32 %v46, %v86
  %v127 = vadd.f32 %v47, %v87
  %v128 = vadd.f32 %v48, %v88
  %v129 = vadd.f32 %v49, %v89
  %v130 = vadd.f32 %v50, %v90
  %v131 = vadd.f32 %v51, %v91
  %v132 = vadd.f32 %v52, %v92
  %v133 = vadd.f32 %v53, %v93
  %v134 = vadd.f32 %v54, %v94
  %v135 = vadd.f32 %v55, %v95
  %v136 = vadd.f32 %v56, %v96
  %v137 = vadd.f32 %v57, %v97
  %v138 = vadd.f32 %v58, %v98
  %v139 = vadd.f32 %v59, %v99
  %v140 = vadd.f32 %v60, %v100
  %v141 = vld [vmem:[%s2] sm:$0xff]
  %v142 = vld [vmem:[%s2 + $0x8] sm:$0xff]
  %v143 = vld [vmem:[%s2 + $0x10] sm:$0xff]
  %v144 = vld [vmem:[%s2 + $0x18] sm:$0xff]
  %v145 = vld [vmem:[%s2 + $0x20] sm:$0xff]
  %v146 = vld [vmem:[%s2 + $0x28] sm:$0xff]
  %v147 = vld [vmem:[%s2 + $0x30] sm:$0xff]
  %v148 = vld [vmem:[%s2 + $0x38] sm:$0xff]
  %v149 = vld [vmem:[%s2 + $0x40] sm:$0xff]
  %v150 = vld [vmem:[%s2 + $0x48] sm:$0xff]
  %v151 = vld [vmem:[%s2 + $0x50] sm:$0xff]
  %v152 = vld [vmem:[%s2 + $0x58] sm:$0xff]
  %v153 = vld [vmem:[%s2 + $0x60] sm:$0xff]
  %v154 = vld [vmem:[%s2 + $0x68] sm:$0xff]
  %v155 = vld [vmem:[%s2 + $0x70] sm:$0xff]
  %v156 = vld [vmem:[%s2 + $0x78] sm:$0xff]
  %v157 = vld [vmem:[%s2 + $0x80] sm:$0xff]
  %v158 = vld [vmem:[%s2 + $0x88] sm:$0xff]
  %v159 = vld [vmem:[%s2 + $0x90] sm:$0xff]
  %v160 = vld [vmem:[%s2 + $0x98] sm:$0xff]
  %v161 = vld [vmem:[%s2 + $0xa0] sm:$0xff]
  %v162 = vld [vmem:[%s2 + $0xa8] sm:$0xff]
  %v163 = vld [vmem:[%s2 + $0xb0] sm:$0xff]
  %v164 = vld [vmem:[%s2 + $0xb8] sm:$0xff]
  %v165 = vld [vmem:[%s2 + $0xc0] sm:$0xff]
  %v166 = vld [vmem:[%s2 + $0xc8] sm:$0xff]
  %v167 = vld [vmem:[%s2 + $0xd0] sm:$0xff]
  %v168 = vld [vmem:[%s2 + $0xd8] sm:$0xff]
  %v169 = vld [vmem:[%s2 + $0xe0] sm:$0xff]
  %v170 = vld [vmem:[%s2 + $0xe8] sm:$0xff]
  %v171 = vld [vmem:[%s2 + $0xf0] sm:$0xff]
  %v172 = vld [vmem:[%s2 + $0xf8] sm:$0xff]
  %v173 = vld [vmem:[%s2 + $0x100] sm:$0xff]
  %v174 = vld [vmem:[%s2 + $0x108] sm:$0xff]
  %v175 = vld [vmem:[%s2 + $0x110] sm:$0xff]
  %v176 = vld [vmem:[%s2 + $0x118] sm:$0xff]
  %v177 = vld [vmem:[%s2 + $0x120] sm:$0xff]
  %v178 = vld [vmem:[%s2 + $0x128] sm:$0xff]
  %v179 = vld [vmem:[%s2 + $0x130] sm:$0xff]
  %v180 = vld [vmem:[%s2 + $0x138] sm:$0xff]
  %v181 = vld [vmem:[%s2 + $0x140] sm:$0xff]
  %v182 = vld [vmem:[%s2 + $0x148] sm:$0xff]
  %v183 = vld [vmem:[%s2 + $0x150] sm:$0xff]
  %v184 = vld [vmem:[%s2 + $0x158] sm:$0xff]
  %v185 = vld [vmem:[%s2 + $0x160] sm:$0xff]
  %v186 = vld [vmem:[%s2 + $0x168] sm:$0xff]
  %v187 = vld [vmem:[%s2 + $0x170] sm:$0xff]
  %v188 = vld [vmem:[%s2 + $0x178] sm:$0xff]
  %v189 = vld [vmem:[%s2 + $0x180] sm:$0xff]
  %v190 = vld [vmem:[%s2 + $0x188] sm:$0xff]
  %v191 = vld [vmem:[%s2 + $0x190] sm:$0xff]
  %v192 = vld [vmem:[%s2 + $0x198] sm:$0xff]
  %v193 = vld [vmem:[%s2 + $0x1a0] sm:$0xff]
  %v194 = vld [vmem:[%s2 + $0x1a8] sm:$0xff]
  %v195 = vld [vmem:[%s2 + $0x1b0] sm:$0xff]
  %v196 = vld [vmem:[%s2 + $0x1b8] sm:$0xff]
  %v197 = vld [vmem:[%s2 + $0x1c0] sm:$0xff]
  %v198 = vld [vmem:[%s2 + $0x1c8] sm:$0xff]
  %v199 = vld [vmem:[%s2 + $0x1d0] sm:$0xff]
  %v200 = vld [vmem:[%s2 + $0x1d8] sm:$0xff]
  %v201 = vld [vmem:[%s2 + $0x1e0] sm:$0xff]
  %v202 = vld [vmem:[%s2 + $0x1e8] sm:$0xff]
  %v203 = vld [vmem:[%s2 + $0x1f0] sm:$0xff]
  %v204 = vld [vmem:[%s2 + $0x1f8] sm:$0xff]
  %v205 = vld [vmem:[%s2 + $0x200] sm:$0xff]
  %v206 = vld [vmem:[%s2 + $0x208] sm:$0xff]
  %v207 = vld [vmem:[%s2 + $0x210] sm:$0xff]
  %v208 = vld [vmem:[%s2 + $0x218] sm:$0xff]
  %v209 = vld [vmem:[%s2 + $0x220] sm:$0xff]
  %v210 = vld [vmem:[%s2 + $0x228] sm:$0xff]
  %v211 = vld [vmem:[%s2 + $0x230] sm:$0xff]
  %v212 = vld [vmem:[%s2 + $0x238] sm:$0xff]
  %v213 = vld [vmem:[%s2 + $0x240] sm:$0xff]
  %v214 = vld [vmem:[%s2 + $0x248] sm:$0xff]
  %v215 = vld [vmem:[%s2 + $0x250] sm:$0xff]
  %v216 = vld [vmem:[%s2 + $0x258] sm:$0xff]
  %v217 = vld [vmem:[%s2 + $0x260] sm:$0xff]
  %v218 = vld [vmem:[%s2 + $0x268] sm:$0xff]
  %v219 = vld [vmem:[%s2 + $0x270] sm:$0xff]
  %v220 = vld [vmem:[%s2 + $0x278] sm:$0xff]
  %v221 = vld [vmem:[%s2 + $0x280] sm:$0xff]
  %v222 = vld [vmem:[%s2 + $0x288] sm:$0xff]
  %v223 = vld [vmem:[%s2 + $0x290] sm:$0xff]
  %v224 = vld [vmem:[%s2 + $0x298] sm:$0xff]
  %v225 = vld [vmem:[%s2 + $0x2a0] sm:$0xff]
  %v226 = vld [vmem:[%s2 + $0x2a8] sm:$0xff]
  %v227 = vld [vmem:[%s2 + $0x2b0] sm:$0xff]
  %v228 = vld [vmem:[%s2 + $0x2b8] sm:$0xff]
  %v229 = vld [vmem:[%s2 + $0x2c0] sm:$0xff]
  %v230 = vld [vmem:[%s2 + $0x2c8] sm:$0xff]
  %v231 = vld [vmem:[%s2 + $0x2d0] sm:$0xff]
  %v232 = vld [vmem:[%s2 + $0x2d8] sm:$0xff]
  %v233 = vld [vmem:[%s2 + $0x2e0] sm:$0xff]
  %v234 = vld [vmem:[%s2 + $0x2e8] sm:$0xff]
  %v235 = vld [vmem:[%s2 + $0x2f0] sm:$0xff]
  %v236 = vld [vmem:[%s2 + $0x2f8] sm:$0xff]
  %v237 = vld [vmem:[%s2 + $0x300] sm:$0xff]
  %v238 = vld [vmem:[%s2 + $0x308] sm:$0xff]
  %v239 = vld [vmem:[%s2 + $0x310] sm:$0xff]
  %v240 = vld [vmem:[%s2 + $0x318] sm:$0xff]
  %v241 = vld [vmem:[%s2 + $0x320] sm:$0xff]
  %v242 = vld [vmem:[%s2 + $0x328] sm:$0xff]
  %v243 = vld [vmem:[%s2 + $0x330] sm:$0xff]
  %v244 = vld [vmem:[%s2 + $0x338] sm:$0xff]
  %v245 = vld [vmem:[%s2 + $0x340] sm:$0xff]
  %v246 = vld [vmem:[%s2 + $0x348] sm:$0xff]
  %v247 = vld [vmem:[%s2 + $0x350] sm:$0xff]
  %v248 = vld [vmem:[%s2 + $0x358] sm:$0xff]
  %v249 = vld [vmem:[%s2 + $0x360] sm:$0xff]
  %v250 = vld [vmem:[%s2 + $0x368] sm:$0xff]
  %v251 = vld [vmem:[%s2 + $0x370] sm:$0xff]
  %v252 = vld [vmem:[%s2 + $0x378] sm:$0xff]
  %v253 = vld [vmem:[%s2 + $0x380] sm:$0xff]
  %v254 = vld [vmem:[%s2 + $0x388] sm:$0xff]
  %v255 = vld [vmem:[%s2 + $0x390] sm:$0xff]
  %v256 = vld [vmem:[%s2 + $0x398] sm:$0xff]
  %v257 = vld [vmem:[%s2 + $0x3a0] sm:$0xff]
  %v258 = vld [vmem:[%s2 + $0x3a8] sm:$0xff]
  %v259 = vld [vmem:[%s2 + $0x3b0] sm:$0xff]
  %v260 = vld [vmem:[%s2 + $0x3b8] sm:$0xff]
  %v261 = vld [vmem:[%s2 + $0x3c0] sm:$0xff]
  %v262 = vld [vmem:[%s2 + $0x3c8] sm:$0xff]
  %v263 = vld [vmem:[%s2 + $0x3d0] sm:$0xff]
  %v264 = vld [vmem:[%s2 + $0x3d8] sm:$0xff]
  %v265 = vld [vmem:[%s2 + $0x3e0] sm:$0xff]
  %v266 = vld [vmem:[%s2 + $0x3e8] sm:$0xff]
  %v267 = vld [vmem:[%s2 + $0x3f0] sm:$0xff]
  %v268 = vld [vmem:[%s2 + $0x3f8] sm:$0xff]
  %v269 = vld [vmem:[%s2 + $0x400] sm:$0xff]
  %v270 = vld [vmem:[%s2 + $0x408] sm:$0xff]
  %v271 = vld [vmem:[%s2 + $0x410] sm:$0xff]
  %v272 = vld [vmem:[%s2 + $0x418] sm:$0xff]
  %v273 = vld [vmem:[%s2 + $0x420] sm:$0xff]
  %v274 = vld [vmem:[%s2 + $0x428] sm:$0xff]
  %v275 = vld [vmem:[%s2 + $0x430] sm:$0xff]
  %v276 = vld [vmem:[%s2 + $0x438] sm:$0xff]
  %v277 = vld [vmem:[%s2 + $0x440] sm:$0xff]
  %v278 = vld [vmem:[%s2 + $0x448] sm:$0xff]
  %v279 = vld [vmem:[%s2 + $0x450] sm:$0xff]
  %v280 = vld [vmem:[%s2 + $0x458] sm:$0xff]
  %v281 = vld [vmem:[%s2 + $0x460] sm:$0xff]
  %v282 = vld [vmem:[%s2 + $0x468] sm:$0xff]
  %v283 = vld [vmem:[%s2 + $0x470] sm:$0xff]
  %v284 = vld [vmem:[%s2 + $0x478] sm:$0xff]
  %v285 = vld [vmem:[%s2 + $0x480] sm:$0xff]
  %v286 = vld [vmem:[%s2 + $0x488] sm:$0xff]
  %v287 = vld [vmem:[%s2 + $0x490] sm:$0xff]
  %v288 = vld [vmem:[%s2 + $0x498] sm:$0xff]
  %v289 = vld [vmem:[%s2 + $0x4a0] sm:$0xff]
  %v290 = vld [vmem:[%s2 + $0x4a8] sm:$0xff]
  %v291 = vld [vmem:[%s2 + $0x4b0] sm:$0xff]
  %v292 = vld [vmem:[%s2 + $0x4b8] sm:$0xff]
  %v293 = vld [vmem:[%s2 + $0x4c0] sm:$0xff]
  %v294 = vld [vmem:[%s2 + $0x4c8] sm:$0xff]
  %v295 = vld [vmem:[%s2 + $0x4d0] sm:$0xff]
  %v296 = vld [vmem:[%s2 + $0x4d8] sm:$0xff]
  %v297 = vld [vmem:[%s2 + $0x4e0] sm:$0xff]
  %v298 = vld [vmem:[%s2 + $0x4e8] sm:$0xff]
  %v299 = vld [vmem:[%s2 + $0x4f0] sm:$0xff]
  %v300 = vld [vmem:[%s2 + $0x4f8] sm:$0xff]
  %v301 = vld [vmem:[%s2 + $0x500] sm:$0xff]
  %v302 = vld [vmem:[%s2 + $0x508] sm:$0xff]
  %v303 = vld [vmem:[%s2 + $0x510] sm:$0xff]
  %v304 = vld [vmem:[%s2 + $0x518] sm:$0xff]
  %v305 = vld [vmem:[%s2 + $0x520] sm:$0xff]
  %v306 = vld [vmem:[%s2 + $0x528] sm:$0xff]
  %v307 = vld [vmem:[%s2 + $0x530] sm:$0xff]
  %v308 = vld [vmem:[%s2 + $0x538] sm:$0xff]
  %v309 = vld [vmem:[%s2 + $0x540] sm:$0xff]
  %v310 = vld [vmem:[%s2 + $0x548] sm:$0xff]
  %v311 = vld [vmem:[%s2 + $0x550] sm:$0xff]
  %v312 = vld [vmem:[%s2 + $0x558] sm:$0xff]
  %v313 = vld [vmem:[%s2 + $0x560] sm:$0xff]
  %v314 = vld [vmem:[%s2 + $0x568] sm:$0xff]
  %v315 = vld [vmem:[%s2 + $0x570] sm:$0xff]
  %v316 = vld [vmem:[%s2 + $0x578] sm:$0xff]
  %v317 = vld [vmem:[%s2 + $0x580] sm:$0xff]
  %v318 = vld [vmem:[%s2 + $0x588] sm:$0xff]
  %v319 = vld [vmem:[%s2 + $0x590] sm:$0xff]
  %v320 = vld [vmem:[%s2 + $0x598] sm:$0xff]
  %v321 = vld [vmem:[%s2 + $0x5a0] sm:$0xff]
  %v322 = vld [vmem:[%s2 + $0x5a8] sm:$0xff]
  %v323 = vld [vmem:[%s2 + $0x5b0] sm:$0xff]
  %v324 = vld [vmem:[%s2 + $0x5b8] sm:$0xff]
  %v325 = vld [vmem:[%s2 + $0x5c0] sm:$0xff]
  %v326 = vld [vmem:[%s2 + $0x5c8] sm:$0xff]
  %v327 = vld [vmem:[%s2 + $0x5d0] sm:$0xff]
  %v328 = vld [vmem:[%s2 + $0x5d8] sm:$0xff]
  %v329 = vld [vmem:[%s2 + $0x5e0] sm:$0xff]
  %v330 = vld [vmem:[%s2 + $0x5e8] sm:$0xff]
  %v331 = vld [vmem:[%s2 + $0x5f0] sm:$0xff]
  %v332 = vld [vmem:[%s2 + $0x5f8] sm:$0xff]
  %v333 = vld [vmem:[%s2 + $0x600] sm:$0xff]
  %v334 = vld [vmem:[%s2 + $0x608] sm:$0xff]
  %v335 = vld [vmem:[%s2 + $0x610] sm:$0xff]
  %v336 = vld [vmem:[%s2 + $0x618] sm:$0xff]
  %v337 = vld [vmem:[%s2 + $0x620] sm:$0xff]
  %v338 = vld [vmem:[%s2 + $0x628] sm:$0xff]
  %v339 = vld [vmem:[%s2 + $0x630] sm:$0xff]
  %v340 = vld [vmem:[%s2 + $0x638] sm:$0xff]
  %v341 = vld [vmem:[%s2 + $0x640] sm:$0xff]
  %v342 = vld [vmem:[%s2 + $0x648] sm:$0xff]
  %v343 = vld [vmem:[%s2 + $0x650] sm:$0xff]
  %v344 = vld [vmem:[%s2 + $0x658] sm:$0xff]
  %v345 = vld [vmem:[%s2 + $0x660] sm:$0xff]
  %v346 = vld [vmem:[%s2 + $0x668] sm:$0xff]
  %v347 = vld [vmem:[%s2 + $0x670] sm:$0xff]
  %v348 = vld [vmem:[%s2 + $0x678] sm:$0xff]
  %v349 = vld [vmem:[%s2 + $0x680] sm:$0xff]
  %v350 = vld [vmem:[%s2 + $0x688] sm:$0xff]
  %v351 = vld [vmem:[%s2 + $0x690] sm:$0xff]
  %v352 = vld [vmem:[%s2 + $0x698] sm:$0xff]
  %v353 = vld [vmem:[%s2 + $0x6a0] sm:$0xff]
  %v354 = vld [vmem:[%s2 + $0x6a8] sm:$0xff]
  %v355 = vld [vmem:[%s2 + $0x6b0] sm:$0xff]
  %v356 = vld [vmem:[%s2 + $0x6b8] sm:$0xff]
  %v357 = vld [vmem:[%s2 + $0x6c0] sm:$0xff]
  %v358 = vld [vmem:[%s2 + $0x6c8] sm:$0xff]
  %v359 = vld [vmem:[%s2 + $0x6d0] sm:$0xff]
  %v360 = vld [vmem:[%s2 + $0x6d8] sm:$0xff]
  %v361 = vld [vmem:[%s2 + $0x6e0] sm:$0xff]
  %v362 = vld [vmem:[%s2 + $0x6e8] sm:$0xff]
  %v363 = vld [vmem:[%s2 + $0x6f0] sm:$0xff]
  %v364 = vld [vmem:[%s2 + $0x6f8] sm:$0xff]
  %v365 = vld [vmem:[%s2 + $0x700] sm:$0xff]
  %v366 = vld [vmem:[%s2 + $0x708] sm:$0xff]
  %v367 = vld [vmem:[%s2 + $0x710] sm:$0xff]
  %v368 = vld [vmem:[%s2 + $0x718] sm:$0xff]
  %v369 = vld [vmem:[%s2 + $0x720] sm:$0xff]
  %v370 = vld [vmem:[%s2 + $0x728] sm:$0xff]
  %v371 = vld [vmem:[%s2 + $0x730] sm:$0xff]
  %v372 = vld [vmem:[%s2 + $0x738] sm:$0xff]
  %v373 = vld [vmem:[%s2 + $0x740] sm:$0xff]
  %v374 = vld [vmem:[%s2 + $0x748] sm:$0xff]
  %v375 = vld [vmem:[%s2 + $0x750] sm:$0xff]
  %v376 = vld [vmem:[%s2 + $0x758] sm:$0xff]
  %v377 = vld [vmem:[%s2 + $0x760] sm:$0xff]
  %v378 = vld [vmem:[%s2 + $0x768] sm:$0xff]
  %v379 = vld [vmem:[%s2 + $0x770] sm:$0xff]
  %v380 = vld [vmem:[%s2 + $0x778] sm:$0xff]
  %v381 = vpack.c.bf16 %v143, %v141
  %v382 = vpack.c.bf16 %v144, %v142
  %v383 = vpack.c.bf16 %v147, %v145
  %v384 = vpack.c.bf16 %v148, %v146
  %v385 = vpack.c.bf16 %v151, %v149
  %v386 = vpack.c.bf16 %v152, %v150
  %v387 = vpack.c.bf16 %v155, %v153
  %v388 = vpack.c.bf16 %v156, %v154
  %v389 = vpack.c.bf16 %v159, %v157
  %v390 = vpack.c.bf16 %v160, %v158
  %v391 = vpack.c.bf16 %v163, %v161
  %v392 = vpack.c.bf16 %v164, %v162
  %v393 = vpack.c.bf16 %v167, %v165
  %v394 = vpack.c.bf16 %v168, %v166
  %v395 = vpack.c.bf16 %v171, %v169
  %v396 = vpack.c.bf16 %v172, %v170
  %v397 = vpack.c.bf16 %v175, %v173
  %v398 = vpack.c.bf16 %v176, %v174
  %v399 = vpack.c.bf16 %v179, %v177
  %v400 = vpack.c.bf16 %v180, %v178
  %v401 = vpack.c.bf16 %v183, %v181
  %v402 = vpack.c.bf16 %v184, %v182
  %v403 = vpack.c.bf16 %v187, %v185
  %v404 = vpack.c.bf16 %v188, %v186
  %v405 = vpack.c.bf16 %v191, %v189
  %v406 = vpack.c.bf16 %v192, %v190
  %v407 = vpack.c.bf16 %v195, %v193
  %v408 = vpack.c.bf16 %v196, %v194
  %v409 = vpack.c.bf16 %v199, %v197
  %v410 = vpack.c.bf16 %v200, %v198
  %v411 = vpack.c.bf16 %v203, %v201
  %v412 = vpack.c.bf16 %v204, %v202
  %v413 = vpack.c.bf16 %v207, %v205
  %v414 = vpack.c.bf16 %v208, %v206
  %v415 = vpack.c.bf16 %v211, %v209
  %v416 = vpack.c.bf16 %v212, %v210
  %v417 = vpack.c.bf16 %v215, %v213
  %v418 = vpack.c.bf16 %v216, %v214
  %v419 = vpack.c.bf16 %v219, %v217
  %v420 = vpack.c.bf16 %v220, %v218
  %v421 = vpack.c.bf16 %v223, %v221
  %v422 = vpack.c.bf16 %v224, %v222
  %v423 = vpack.c.bf16 %v227, %v225
  %v424 = vpack.c.bf16 %v228, %v226
  %v425 = vpack.c.bf16 %v231, %v229
  %v426 = vpack.c.bf16 %v232, %v230
  %v427 = vpack.c.bf16 %v235, %v233
  %v428 = vpack.c.bf16 %v236, %v234
  %v429 = vpack.c.bf16 %v239, %v237
  %v430 = vpack.c.bf16 %v240, %v238
  %v431 = vpack.c.bf16 %v243, %v241
  %v432 = vpack.c.bf16 %v244, %v242
  %v433 = vpack.c.bf16 %v247, %v245
  %v434 = vpack.c.bf16 %v248, %v246
  %v435 = vpack.c.bf16 %v251, %v249
  %v436 = vpack.c.bf16 %v252, %v250
  %v437 = vpack.c.bf16 %v255, %v253
  %v438 = vpack.c.bf16 %v256, %v254
  %v439 = vpack.c.bf16 %v259, %v257
  %v440 = vpack.c.bf16 %v260, %v258
  %v441 = vpack.c.bf16 %v263, %v261
  %v442 = vpack.c.bf16 %v264, %v262
  %v443 = vpack.c.bf16 %v267, %v265
  %v444 = vpack.c.bf16 %v268, %v266
  %v445 = vpack.c.bf16 %v271, %v269
  %v446 = vpack.c.bf16 %v272, %v270
  %v447 = vpack.c.bf16 %v275, %v273
  %v448 = vpack.c.bf16 %v276, %v274
  %v449 = vpack.c.bf16 %v279, %v277
  %v450 = vpack.c.bf16 %v280, %v278
  %v451 = vpack.c.bf16 %v283, %v281
  %v452 = vpack.c.bf16 %v284, %v282
  %v453 = vpack.c.bf16 %v287, %v285
  %v454 = vpack.c.bf16 %v288, %v286
  %v455 = vpack.c.bf16 %v291, %v289
  %v456 = vpack.c.bf16 %v292, %v290
  %v457 = vpack.c.bf16 %v295, %v293
  %v458 = vpack.c.bf16 %v296, %v294
  %v459 = vpack.c.bf16 %v299, %v297
  %v460 = vpack.c.bf16 %v300, %v298
  %v461 = vpack.c.bf16 %v303, %v301
  %v462 = vpack.c.bf16 %v304, %v302
  %v463 = vpack.c.bf16 %v307, %v305
  %v464 = vpack.c.bf16 %v308, %v306
  %v465 = vpack.c.bf16 %v311, %v309
  %v466 = vpack.c.bf16 %v312, %v310
  %v467 = vpack.c.bf16 %v315, %v313
  %v468 = vpack.c.bf16 %v316, %v314
  %v469 = vpack.c.bf16 %v319, %v317
  %v470 = vpack.c.bf16 %v320, %v318
  %v471 = vpack.c.bf16 %v323, %v321
  %v472 = vpack.c.bf16 %v324, %v322
  %v473 = vpack.c.bf16 %v327, %v325
  %v474 = vpack.c.bf16 %v328, %v326
  %v475 = vpack.c.bf16 %v331, %v329
  %v476 = vpack.c.bf16 %v332, %v330
  %v477 = vpack.c.bf16 %v335, %v333
  %v478 = vpack.c.bf16 %v336, %v334
  %v479 = vpack.c.bf16 %v339, %v337
  %v480 = vpack.c.bf16 %v340, %v338
  %v481 = vpack.c.bf16 %v343, %v341
  %v482 = vpack.c.bf16 %v344, %v342
  %v483 = vpack.c.bf16 %v347, %v345
  %v484 = vpack.c.bf16 %v348, %v346
  %v485 = vpack.c.bf16 %v351, %v349
  %v486 = vpack.c.bf16 %v352, %v350
  %v487 = vpack.c.bf16 %v355, %v353
  %v488 = vpack.c.bf16 %v356, %v354
  %v489 = vpack.c.bf16 %v359, %v357
  %v490 = vpack.c.bf16 %v360, %v358
  %v491 = vpack.c.bf16 %v363, %v361
  %v492 = vpack.c.bf16 %v364, %v362
  %v493 = vpack.c.bf16 %v367, %v365
  %v494 = vpack.c.bf16 %v368, %v366
  %v495 = vpack.c.bf16 %v371, %v369
  %v496 = vpack.c.bf16 %v372, %v370
  %v497 = vpack.c.bf16 %v375, %v373
  %v498 = vpack.c.bf16 %v376, %v374
  %v499 = vpack.c.bf16 %v379, %v377
  %v500 = vpack.c.bf16 %v380, %v378
  %v501 = vpack.c.bf16 %v103, %v101
  %v502 = vpack.c.bf16 %v104, %v102
  %v503 = vpack.c.bf16 %v107, %v105
  %v504 = vpack.c.bf16 %v108, %v106
  %v505 = vpack.c.bf16 %v111, %v109
  %v506 = vpack.c.bf16 %v112, %v110
  %v507 = vpack.c.bf16 %v115, %v113
  %v508 = vpack.c.bf16 %v116, %v114
  %v509 = vpack.c.bf16 %v119, %v117
  %v510 = vpack.c.bf16 %v120, %v118
  %v511 = vpack.c.bf16 %v123, %v121
  %v512 = vpack.c.bf16 %v124, %v122
  %v513 = vpack.c.bf16 %v127, %v125
  %v514 = vpack.c.bf16 %v128, %v126
  %v515 = vpack.c.bf16 %v131, %v129
  %v516 = vpack.c.bf16 %v132, %v130
  %v517 = vpack.c.bf16 %v135, %v133
  %v518 = vpack.c.bf16 %v136, %v134
  %v519 = vpack.c.bf16 %v139, %v137
  %v520 = vpack.c.bf16 %v140, %v138
  %vm521 = vcmask 261120
  %v523 = vsel %vm521, %v382, 0
  %v526 = vsel %vm521, %v384, 0
  %v529 = vsel %vm521, %v386, 0
  %v532 = vsel %vm521, %v388, 0
  %v535 = vsel %vm521, %v390, 0
  %v538 = vsel %vm521, %v392, 0
  %v541 = vsel %vm521, %v394, 0
  %v544 = vsel %vm521, %v396, 0
  %v547 = vsel %vm521, %v398, 0
  %v550 = vsel %vm521, %v400, 0
  %v553 = vsel %vm521, %v402, 0
  %v556 = vsel %vm521, %v404, 0
  %v559 = vsel %vm521, %v406, 0
  %v562 = vsel %vm521, %v408, 0
  %v565 = vsel %vm521, %v410, 0
  %v568 = vsel %vm521, %v412, 0
  %v571 = vsel %vm521, %v414, 0
  %v574 = vsel %vm521, %v416, 0
  %v577 = vsel %vm521, %v418, 0
  %v580 = vsel %vm521, %v420, 0
  %v583 = vsel %vm521, %v422, 0
  %v586 = vsel %vm521, %v424, 0
  %v589 = vsel %vm521, %v426, 0
  %v592 = vsel %vm521, %v428, 0
  %v595 = vsel %vm521, %v430, 0
  %v598 = vsel %vm521, %v432, 0
  %v601 = vsel %vm521, %v434, 0
  %v604 = vsel %vm521, %v436, 0
  %v607 = vsel %vm521, %v438, 0
  %v610 = vsel %vm521, %v440, 0
  %v613 = vsel %vm521, %v442, 0
  %v616 = vsel %vm521, %v444, 0
  %v619 = vsel %vm521, %v446, 0
  %v622 = vsel %vm521, %v448, 0
  %v625 = vsel %vm521, %v450, 0
  %v628 = vsel %vm521, %v452, 0
  %v631 = vsel %vm521, %v454, 0
  %v634 = vsel %vm521, %v456, 0
  %v637 = vsel %vm521, %v458, 0
  %v640 = vsel %vm521, %v460, 0
  %v643 = vsel %vm521, %v462, 0
  %v646 = vsel %vm521, %v464, 0
  %v649 = vsel %vm521, %v466, 0
  %v652 = vsel %vm521, %v468, 0
  %v655 = vsel %vm521, %v470, 0
  %v658 = vsel %vm521, %v472, 0
  %v661 = vsel %vm521, %v474, 0
  %v664 = vsel %vm521, %v476, 0
  %v667 = vsel %vm521, %v478, 0
  %v670 = vsel %vm521, %v480, 0
  %v673 = vsel %vm521, %v482, 0
  %v676 = vsel %vm521, %v484, 0
  %v679 = vsel %vm521, %v486, 0
  %v682 = vsel %vm521, %v488, 0
  %v685 = vsel %vm521, %v490, 0
  %v688 = vsel %vm521, %v492, 0
  %v691 = vsel %vm521, %v494, 0
  %v694 = vsel %vm521, %v496, 0
  %v697 = vsel %vm521, %v498, 0
  %v700 = vsel %vm521, %v500, 0
  %702 = vmatpush.bf16.msra.mxu0 %v515
  %703 = vmatpush.bf16.msra.mxu0 %v513
  %704 = vmatpush.bf16.msra.mxu0 %v511
  %705 = vmatpush.bf16.msra.mxu0 %v509
  %706 = vmatpush.bf16.msra.mxu0 %v507
  %707 = vmatpush.bf16.msra.mxu0 %v505
  %708 = vmatpush.bf16.msra.mxu0 %v503
  %709 = vmatpush.bf16.msra.mxu0 %v501
  %710 = vmatmul.bf16.gmra.mxu0 %v381
  %v711 = vpop.f32.mrf.mxu0
  %v712 = vadd.f32 0.0, %v711
  %v713 = vpop.f32.mrf.mxu0
  %v714 = vadd.f32 0.0, %v713
  %715 = vmatmul.bf16.gmra.mxu0 %v383
  %v716 = vpop.f32.mrf.mxu0
  %v717 = vadd.f32 0.0, %v716
  %v718 = vpop.f32.mrf.mxu0
  %v719 = vadd.f32 0.0, %v718
  %720 = vmatmul.bf16.gmra.mxu0 %v385
  %v721 = vpop.f32.mrf.mxu0
  %v722 = vadd.f32 0.0, %v721
  %v723 = vpop.f32.mrf.mxu0
  %v724 = vadd.f32 0.0, %v723
  %725 = vmatmul.bf16.gmra.mxu0 %v387
  %v726 = vpop.f32.mrf.mxu0
  %v727 = vadd.f32 0.0, %v726
  %v728 = vpop.f32.mrf.mxu0
  %v729 = vadd.f32 0.0, %v728
  %730 = vmatmul.bf16.gmra.mxu0 %v389
  %v731 = vpop.f32.mrf.mxu0
  %v732 = vadd.f32 0.0, %v731
  %v733 = vpop.f32.mrf.mxu0
  %v734 = vadd.f32 0.0, %v733
  %735 = vmatmul.bf16.gmra.mxu0 %v391
  %v736 = vpop.f32.mrf.mxu0
  %v737 = vadd.f32 0.0, %v736
  %v738 = vpop.f32.mrf.mxu0
  %v739 = vadd.f32 0.0, %v738
  %740 = vmatmul.bf16.gmra.mxu0 %v393
  %v741 = vpop.f32.mrf.mxu0
  %v742 = vadd.f32 0.0, %v741
  %v743 = vpop.f32.mrf.mxu0
  %v744 = vadd.f32 0.0, %v743
  %745 = vmatmul.bf16.gmra.mxu0 %v395
  %v746 = vpop.f32.mrf.mxu0
  %v747 = vadd.f32 0.0, %v746
  %v748 = vpop.f32.mrf.mxu0
  %v749 = vadd.f32 0.0, %v748
  %750 = vmatmul.bf16.gmra.mxu0 %v397
  %v751 = vpop.f32.mrf.mxu0
  %v752 = vadd.f32 0.0, %v751
  %v753 = vpop.f32.mrf.mxu0
  %v754 = vadd.f32 0.0, %v753
  %755 = vmatmul.bf16.gmra.mxu0 %v399
  %v756 = vpop.f32.mrf.mxu0
  %v757 = vadd.f32 0.0, %v756
  %v758 = vpop.f32.mrf.mxu0
  %v759 = vadd.f32 0.0, %v758
  %760 = vmatmul.bf16.gmra.mxu0 %v401
  %v761 = vpop.f32.mrf.mxu0
  %v762 = vadd.f32 0.0, %v761
  %v763 = vpop.f32.mrf.mxu0
  %v764 = vadd.f32 0.0, %v763
  %765 = vmatmul.bf16.gmra.mxu0 %v403
  %v766 = vpop.f32.mrf.mxu0
  %v767 = vadd.f32 0.0, %v766
  %v768 = vpop.f32.mrf.mxu0
  %v769 = vadd.f32 0.0, %v768
  %770 = vmatmul.bf16.gmra.mxu0 %v405
  %v771 = vpop.f32.mrf.mxu0
  %v772 = vadd.f32 0.0, %v771
  %v773 = vpop.f32.mrf.mxu0
  %v774 = vadd.f32 0.0, %v773
  %775 = vmatmul.bf16.gmra.mxu0 %v407
  %v776 = vpop.f32.mrf.mxu0
  %v777 = vadd.f32 0.0, %v776
  %v778 = vpop.f32.mrf.mxu0
  %v779 = vadd.f32 0.0, %v778
  %780 = vmatmul.bf16.gmra.mxu0 %v409
  %v781 = vpop.f32.mrf.mxu0
  %v782 = vadd.f32 0.0, %v781
  %v783 = vpop.f32.mrf.mxu0
  %v784 = vadd.f32 0.0, %v783
  %785 = vmatmul.bf16.gmra.mxu0 %v411
  %v786 = vpop.f32.mrf.mxu0
  %v787 = vadd.f32 0.0, %v786
  %v788 = vpop.f32.mrf.mxu0
  %v789 = vadd.f32 0.0, %v788
  %790 = vmatmul.bf16.gmra.mxu0 %v413
  %v791 = vpop.f32.mrf.mxu0
  %v792 = vadd.f32 0.0, %v791
  %v793 = vpop.f32.mrf.mxu0
  %v794 = vadd.f32 0.0, %v793
  %795 = vmatmul.bf16.gmra.mxu0 %v415
  %v796 = vpop.f32.mrf.mxu0
  %v797 = vadd.f32 0.0, %v796
  %v798 = vpop.f32.mrf.mxu0
  %v799 = vadd.f32 0.0, %v798
  %800 = vmatmul.bf16.gmra.mxu0 %v417
  %v801 = vpop.f32.mrf.mxu0
  %v802 = vadd.f32 0.0, %v801
  %v803 = vpop.f32.mrf.mxu0
  %v804 = vadd.f32 0.0, %v803
  %805 = vmatmul.bf16.gmra.mxu0 %v419
  %v806 = vpop.f32.mrf.mxu0
  %v807 = vadd.f32 0.0, %v806
  %v808 = vpop.f32.mrf.mxu0
  %v809 = vadd.f32 0.0, %v808
  %810 = vmatmul.bf16.gmra.mxu0 %v421
  %v811 = vpop.f32.mrf.mxu0
  %v812 = vadd.f32 0.0, %v811
  %v813 = vpop.f32.mrf.mxu0
  %v814 = vadd.f32 0.0, %v813
  %815 = vmatmul.bf16.gmra.mxu0 %v423
  %v816 = vpop.f32.mrf.mxu0
  %v817 = vadd.f32 0.0, %v816
  %v818 = vpop.f32.mrf.mxu0
  %v819 = vadd.f32 0.0, %v818
  %820 = vmatmul.bf16.gmra.mxu0 %v425
  %v821 = vpop.f32.mrf.mxu0
  %v822 = vadd.f32 0.0, %v821
  %v823 = vpop.f32.mrf.mxu0
  %v824 = vadd.f32 0.0, %v823
  %825 = vmatmul.bf16.gmra.mxu0 %v427
  %v826 = vpop.f32.mrf.mxu0
  %v827 = vadd.f32 0.0, %v826
  %v828 = vpop.f32.mrf.mxu0
  %v829 = vadd.f32 0.0, %v828
  %830 = vmatmul.bf16.gmra.mxu0 %v429
  %v831 = vpop.f32.mrf.mxu0
  %v832 = vadd.f32 0.0, %v831
  %v833 = vpop.f32.mrf.mxu0
  %v834 = vadd.f32 0.0, %v833
  %835 = vmatmul.bf16.gmra.mxu0 %v431
  %v836 = vpop.f32.mrf.mxu0
  %v837 = vadd.f32 0.0, %v836
  %v838 = vpop.f32.mrf.mxu0
  %v839 = vadd.f32 0.0, %v838
  %840 = vmatmul.bf16.gmra.mxu0 %v433
  %v841 = vpop.f32.mrf.mxu0
  %v842 = vadd.f32 0.0, %v841
  %v843 = vpop.f32.mrf.mxu0
  %v844 = vadd.f32 0.0, %v843
  %845 = vmatmul.bf16.gmra.mxu0 %v435
  %v846 = vpop.f32.mrf.mxu0
  %v847 = vadd.f32 0.0, %v846
  %v848 = vpop.f32.mrf.mxu0
  %v849 = vadd.f32 0.0, %v848
  %850 = vmatmul.bf16.gmra.mxu0 %v437
  %v851 = vpop.f32.mrf.mxu0
  %v852 = vadd.f32 0.0, %v851
  %v853 = vpop.f32.mrf.mxu0
  %v854 = vadd.f32 0.0, %v853
  %855 = vmatmul.bf16.gmra.mxu0 %v439
  %v856 = vpop.f32.mrf.mxu0
  %v857 = vadd.f32 0.0, %v856
  %v858 = vpop.f32.mrf.mxu0
  %v859 = vadd.f32 0.0, %v858
  %860 = vmatmul.bf16.gmra.mxu0 %v441
  %v861 = vpop.f32.mrf.mxu0
  %v862 = vadd.f32 0.0, %v861
  %v863 = vpop.f32.mrf.mxu0
  %v864 = vadd.f32 0.0, %v863
  %865 = vmatmul.bf16.gmra.mxu0 %v443
  %v866 = vpop.f32.mrf.mxu0
  %v867 = vadd.f32 0.0, %v866
  %v868 = vpop.f32.mrf.mxu0
  %v869 = vadd.f32 0.0, %v868
  %870 = vmatmul.bf16.gmra.mxu0 %v445
  %v871 = vpop.f32.mrf.mxu0
  %v872 = vadd.f32 0.0, %v871
  %v873 = vpop.f32.mrf.mxu0
  %v874 = vadd.f32 0.0, %v873
  %875 = vmatmul.bf16.gmra.mxu0 %v447
  %v876 = vpop.f32.mrf.mxu0
  %v877 = vadd.f32 0.0, %v876
  %v878 = vpop.f32.mrf.mxu0
  %v879 = vadd.f32 0.0, %v878
  %880 = vmatmul.bf16.gmra.mxu0 %v449
  %v881 = vpop.f32.mrf.mxu0
  %v882 = vadd.f32 0.0, %v881
  %v883 = vpop.f32.mrf.mxu0
  %v884 = vadd.f32 0.0, %v883
  %885 = vmatmul.bf16.gmra.mxu0 %v451
  %v886 = vpop.f32.mrf.mxu0
  %v887 = vadd.f32 0.0, %v886
  %v888 = vpop.f32.mrf.mxu0
  %v889 = vadd.f32 0.0, %v888
  %890 = vmatmul.bf16.gmra.mxu0 %v453
  %v891 = vpop.f32.mrf.mxu0
  %v892 = vadd.f32 0.0, %v891
  %v893 = vpop.f32.mrf.mxu0
  %v894 = vadd.f32 0.0, %v893
  %895 = vmatmul.bf16.gmra.mxu0 %v455
  %v896 = vpop.f32.mrf.mxu0
  %v897 = vadd.f32 0.0, %v896
  %v898 = vpop.f32.mrf.mxu0
  %v899 = vadd.f32 0.0, %v898
  %900 = vmatmul.bf16.gmra.mxu0 %v457
  %v901 = vpop.f32.mrf.mxu0
  %v902 = vadd.f32 0.0, %v901
  %v903 = vpop.f32.mrf.mxu0
  %v904 = vadd.f32 0.0, %v903
  %905 = vmatmul.bf16.gmra.mxu0 %v459
  %v906 = vpop.f32.mrf.mxu0
  %v907 = vadd.f32 0.0, %v906
  %v908 = vpop.f32.mrf.mxu0
  %v909 = vadd.f32 0.0, %v908
  %910 = vmatmul.bf16.gmra.mxu0 %v461
  %v911 = vpop.f32.mrf.mxu0
  %v912 = vadd.f32 0.0, %v911
  %v913 = vpop.f32.mrf.mxu0
  %v914 = vadd.f32 0.0, %v913
  %915 = vmatmul.bf16.gmra.mxu0 %v463
  %v916 = vpop.f32.mrf.mxu0
  %v917 = vadd.f32 0.0, %v916
  %v918 = vpop.f32.mrf.mxu0
  %v919 = vadd.f32 0.0, %v918
  %920 = vmatmul.bf16.gmra.mxu0 %v465
  %v921 = vpop.f32.mrf.mxu0
  %v922 = vadd.f32 0.0, %v921
  %v923 = vpop.f32.mrf.mxu0
  %v924 = vadd.f32 0.0, %v923
  %925 = vmatmul.bf16.gmra.mxu0 %v467
  %v926 = vpop.f32.mrf.mxu0
  %v927 = vadd.f32 0.0, %v926
  %v928 = vpop.f32.mrf.mxu0
  %v929 = vadd.f32 0.0, %v928
  %930 = vmatmul.bf16.gmra.mxu0 %v469
  %v931 = vpop.f32.mrf.mxu0
  %v932 = vadd.f32 0.0, %v931
  %v933 = vpop.f32.mrf.mxu0
  %v934 = vadd.f32 0.0, %v933
  %935 = vmatmul.bf16.gmra.mxu0 %v471
  %v936 = vpop.f32.mrf.mxu0
  %v937 = vadd.f32 0.0, %v936
  %v938 = vpop.f32.mrf.mxu0
  %v939 = vadd.f32 0.0, %v938
  %940 = vmatmul.bf16.gmra.mxu0 %v473
  %v941 = vpop.f32.mrf.mxu0
  %v942 = vadd.f32 0.0, %v941
  %v943 = vpop.f32.mrf.mxu0
  %v944 = vadd.f32 0.0, %v943
  %945 = vmatmul.bf16.gmra.mxu0 %v475
  %v946 = vpop.f32.mrf.mxu0
  %v947 = vadd.f32 0.0, %v946
  %v948 = vpop.f32.mrf.mxu0
  %v949 = vadd.f32 0.0, %v948
  %950 = vmatmul.bf16.gmra.mxu0 %v477
  %v951 = vpop.f32.mrf.mxu0
  %v952 = vadd.f32 0.0, %v951
  %v953 = vpop.f32.mrf.mxu0
  %v954 = vadd.f32 0.0, %v953
  %955 = vmatmul.bf16.gmra.mxu0 %v479
  %v956 = vpop.f32.mrf.mxu0
  %v957 = vadd.f32 0.0, %v956
  %v958 = vpop.f32.mrf.mxu0
  %v959 = vadd.f32 0.0, %v958
  %960 = vmatmul.bf16.gmra.mxu0 %v481
  %v961 = vpop.f32.mrf.mxu0
  %v962 = vadd.f32 0.0, %v961
  %v963 = vpop.f32.mrf.mxu0
  %v964 = vadd.f32 0.0, %v963
  %965 = vmatmul.bf16.gmra.mxu0 %v483
  %v966 = vpop.f32.mrf.mxu0
  %v967 = vadd.f32 0.0, %v966
  %v968 = vpop.f32.mrf.mxu0
  %v969 = vadd.f32 0.0, %v968
  %970 = vmatmul.bf16.gmra.mxu0 %v485
  %v971 = vpop.f32.mrf.mxu0
  %v972 = vadd.f32 0.0, %v971
  %v973 = vpop.f32.mrf.mxu0
  %v974 = vadd.f32 0.0, %v973
  %975 = vmatmul.bf16.gmra.mxu0 %v487
  %v976 = vpop.f32.mrf.mxu0
  %v977 = vadd.f32 0.0, %v976
  %v978 = vpop.f32.mrf.mxu0
  %v979 = vadd.f32 0.0, %v978
  %980 = vmatmul.bf16.gmra.mxu0 %v489
  %v981 = vpop.f32.mrf.mxu0
  %v982 = vadd.f32 0.0, %v981
  %v983 = vpop.f32.mrf.mxu0
  %v984 = vadd.f32 0.0, %v983
  %985 = vmatmul.bf16.gmra.mxu0 %v491
  %v986 = vpop.f32.mrf.mxu0
  %v987 = vadd.f32 0.0, %v986
  %v988 = vpop.f32.mrf.mxu0
  %v989 = vadd.f32 0.0, %v988
  %990 = vmatmul.bf16.gmra.mxu0 %v493
  %v991 = vpop.f32.mrf.mxu0
  %v992 = vadd.f32 0.0, %v991
  %v993 = vpop.f32.mrf.mxu0
  %v994 = vadd.f32 0.0, %v993
  %995 = vmatmul.bf16.gmra.mxu0 %v495
  %v996 = vpop.f32.mrf.mxu0
  %v997 = vadd.f32 0.0, %v996
  %v998 = vpop.f32.mrf.mxu0
  %v999 = vadd.f32 0.0, %v998
  %1000 = vmatmul.bf16.gmra.mxu0 %v497
  %v1001 = vpop.f32.mrf.mxu0
  %v1002 = vadd.f32 0.0, %v1001
  %v1003 = vpop.f32.mrf.mxu0
  %v1004 = vadd.f32 0.0, %v1003
  %1005 = vmatmul.bf16.gmra.mxu0 %v499
  %v1006 = vpop.f32.mrf.mxu0
  %v1007 = vadd.f32 0.0, %v1006
  %v1008 = vpop.f32.mrf.mxu0
  %v1009 = vadd.f32 0.0, %v1008
  %1010 = vdwg.mxu0
  %1011 = vmatpush.bf16.msra.mxu0 0
  %1012 = vmatpush.bf16.msra.mxu0 0
  %1013 = vmatpush.bf16.msra.mxu0 0
  %1014 = vmatpush.bf16.msra.mxu0 0
  %1015 = vmatpush.bf16.msra.mxu0 0
  %1016 = vmatpush.bf16.msra.mxu0 0
  %1017 = vmatpush.bf16.msra.mxu0 %v519
  %1018 = vmatpush.bf16.msra.mxu0 %v517
  %1019 = vmatmul.bf16.gmra.mxu0 %v523
  %v1020 = vpop.f32.mrf.mxu0
  %v1021 = vadd.f32 %v712, %v1020
  %v1022 = vpop.f32.mrf.mxu0
  %v1023 = vadd.f32 %v714, %v1022
  %1024 = vmatmul.bf16.gmra.mxu0 %v526
  %v1025 = vpop.f32.mrf.mxu0
  %v1026 = vadd.f32 %v717, %v1025
  %v1027 = vpop.f32.mrf.mxu0
  %v1028 = vadd.f32 %v719, %v1027
  %1029 = vmatmul.bf16.gmra.mxu0 %v529
  %v1030 = vpop.f32.mrf.mxu0
  %v1031 = vadd.f32 %v722, %v1030
  %v1032 = vpop.f32.mrf.mxu0
  %v1033 = vadd.f32 %v724, %v1032
  %1034 = vmatmul.bf16.gmra.mxu0 %v532
  %v1035 = vpop.f32.mrf.mxu0
  %v1036 = vadd.f32 %v727, %v1035
  %v1037 = vpop.f32.mrf.mxu0
  %v1038 = vadd.f32 %v729, %v1037
  %1039 = vmatmul.bf16.gmra.mxu0 %v535
  %v1040 = vpop.f32.mrf.mxu0
  %v1041 = vadd.f32 %v732, %v1040
  %v1042 = vpop.f32.mrf.mxu0
  %v1043 = vadd.f32 %v734, %v1042
  %1044 = vmatmul.bf16.gmra.mxu0 %v538
  %v1045 = vpop.f32.mrf.mxu0
  %v1046 = vadd.f32 %v737, %v1045
  %v1047 = vpop.f32.mrf.mxu0
  %v1048 = vadd.f32 %v739, %v1047
  %1049 = vmatmul.bf16.gmra.mxu0 %v541
  %v1050 = vpop.f32.mrf.mxu0
  %v1051 = vadd.f32 %v742, %v1050
  %v1052 = vpop.f32.mrf.mxu0
  %v1053 = vadd.f32 %v744, %v1052
  %1054 = vmatmul.bf16.gmra.mxu0 %v544
  %v1055 = vpop.f32.mrf.mxu0
  %v1056 = vadd.f32 %v747, %v1055
  %v1057 = vpop.f32.mrf.mxu0
  %v1058 = vadd.f32 %v749, %v1057
  %1059 = vmatmul.bf16.gmra.mxu0 %v547
  %v1060 = vpop.f32.mrf.mxu0
  %v1061 = vadd.f32 %v752, %v1060
  %v1062 = vpop.f32.mrf.mxu0
  %v1063 = vadd.f32 %v754, %v1062
  %1064 = vmatmul.bf16.gmra.mxu0 %v550
  %v1065 = vpop.f32.mrf.mxu0
  %v1066 = vadd.f32 %v757, %v1065
  %v1067 = vpop.f32.mrf.mxu0
  %v1068 = vadd.f32 %v759, %v1067
  %1069 = vmatmul.bf16.gmra.mxu0 %v553
  %v1070 = vpop.f32.mrf.mxu0
  %v1071 = vadd.f32 %v762, %v1070
  %v1072 = vpop.f32.mrf.mxu0
  %v1073 = vadd.f32 %v764, %v1072
  %1074 = vmatmul.bf16.gmra.mxu0 %v556
  %v1075 = vpop.f32.mrf.mxu0
  %v1076 = vadd.f32 %v767, %v1075
  %v1077 = vpop.f32.mrf.mxu0
  %v1078 = vadd.f32 %v769, %v1077
  %1079 = vmatmul.bf16.gmra.mxu0 %v559
  %v1080 = vpop.f32.mrf.mxu0
  %v1081 = vadd.f32 %v772, %v1080
  %v1082 = vpop.f32.mrf.mxu0
  %v1083 = vadd.f32 %v774, %v1082
  %1084 = vmatmul.bf16.gmra.mxu0 %v562
  %v1085 = vpop.f32.mrf.mxu0
  %v1086 = vadd.f32 %v777, %v1085
  %v1087 = vpop.f32.mrf.mxu0
  %v1088 = vadd.f32 %v779, %v1087
  %1089 = vmatmul.bf16.gmra.mxu0 %v565
  %v1090 = vpop.f32.mrf.mxu0
  %v1091 = vadd.f32 %v782, %v1090
  %v1092 = vpop.f32.mrf.mxu0
  %v1093 = vadd.f32 %v784, %v1092
  %1094 = vmatmul.bf16.gmra.mxu0 %v568
  %v1095 = vpop.f32.mrf.mxu0
  %v1096 = vadd.f32 %v787, %v1095
  %v1097 = vpop.f32.mrf.mxu0
  %v1098 = vadd.f32 %v789, %v1097
  %1099 = vmatmul.bf16.gmra.mxu0 %v571
  %v1100 = vpop.f32.mrf.mxu0
  %v1101 = vadd.f32 %v792, %v1100
  %v1102 = vpop.f32.mrf.mxu0
  %v1103 = vadd.f32 %v794, %v1102
  %1104 = vmatmul.bf16.gmra.mxu0 %v574
  %v1105 = vpop.f32.mrf.mxu0
  %v1106 = vadd.f32 %v797, %v1105
  %v1107 = vpop.f32.mrf.mxu0
  %v1108 = vadd.f32 %v799, %v1107
  %1109 = vmatmul.bf16.gmra.mxu0 %v577
  %v1110 = vpop.f32.mrf.mxu0
  %v1111 = vadd.f32 %v802, %v1110
  %v1112 = vpop.f32.mrf.mxu0
  %v1113 = vadd.f32 %v804, %v1112
  %1114 = vmatmul.bf16.gmra.mxu0 %v580
  %v1115 = vpop.f32.mrf.mxu0
  %v1116 = vadd.f32 %v807, %v1115
  %v1117 = vpop.f32.mrf.mxu0
  %v1118 = vadd.f32 %v809, %v1117
  %1119 = vmatmul.bf16.gmra.mxu0 %v583
  %v1120 = vpop.f32.mrf.mxu0
  %v1121 = vadd.f32 %v812, %v1120
  %v1122 = vpop.f32.mrf.mxu0
  %v1123 = vadd.f32 %v814, %v1122
  %1124 = vmatmul.bf16.gmra.mxu0 %v586
  %v1125 = vpop.f32.mrf.mxu0
  %v1126 = vadd.f32 %v817, %v1125
  %v1127 = vpop.f32.mrf.mxu0
  %v1128 = vadd.f32 %v819, %v1127
  %1129 = vmatmul.bf16.gmra.mxu0 %v589
  %v1130 = vpop.f32.mrf.mxu0
  %v1131 = vadd.f32 %v822, %v1130
  %v1132 = vpop.f32.mrf.mxu0
  %v1133 = vadd.f32 %v824, %v1132
  %1134 = vmatmul.bf16.gmra.mxu0 %v592
  %v1135 = vpop.f32.mrf.mxu0
  %v1136 = vadd.f32 %v827, %v1135
  %v1137 = vpop.f32.mrf.mxu0
  %v1138 = vadd.f32 %v829, %v1137
  %1139 = vmatmul.bf16.gmra.mxu0 %v595
  %v1140 = vpop.f32.mrf.mxu0
  %v1141 = vadd.f32 %v832, %v1140
  %v1142 = vpop.f32.mrf.mxu0
  %v1143 = vadd.f32 %v834, %v1142
  %1144 = vmatmul.bf16.gmra.mxu0 %v598
  %v1145 = vpop.f32.mrf.mxu0
  %v1146 = vadd.f32 %v837, %v1145
  %v1147 = vpop.f32.mrf.mxu0
  %v1148 = vadd.f32 %v839, %v1147
  %1149 = vmatmul.bf16.gmra.mxu0 %v601
  %v1150 = vpop.f32.mrf.mxu0
  %v1151 = vadd.f32 %v842, %v1150
  %v1152 = vpop.f32.mrf.mxu0
  %v1153 = vadd.f32 %v844, %v1152
  %1154 = vmatmul.bf16.gmra.mxu0 %v604
  %v1155 = vpop.f32.mrf.mxu0
  %v1156 = vadd.f32 %v847, %v1155
  %v1157 = vpop.f32.mrf.mxu0
  %v1158 = vadd.f32 %v849, %v1157
  %1159 = vmatmul.bf16.gmra.mxu0 %v607
  %v1160 = vpop.f32.mrf.mxu0
  %v1161 = vadd.f32 %v852, %v1160
  %v1162 = vpop.f32.mrf.mxu0
  %v1163 = vadd.f32 %v854, %v1162
  %1164 = vmatmul.bf16.gmra.mxu0 %v610
  %v1165 = vpop.f32.mrf.mxu0
  %v1166 = vadd.f32 %v857, %v1165
  %v1167 = vpop.f32.mrf.mxu0
  %v1168 = vadd.f32 %v859, %v1167
  %1169 = vmatmul.bf16.gmra.mxu0 %v613
  %v1170 = vpop.f32.mrf.mxu0
  %v1171 = vadd.f32 %v862, %v1170
  %v1172 = vpop.f32.mrf.mxu0
  %v1173 = vadd.f32 %v864, %v1172
  %1174 = vmatmul.bf16.gmra.mxu0 %v616
  %v1175 = vpop.f32.mrf.mxu0
  %v1176 = vadd.f32 %v867, %v1175
  %v1177 = vpop.f32.mrf.mxu0
  %v1178 = vadd.f32 %v869, %v1177
  %1179 = vmatmul.bf16.gmra.mxu0 %v619
  %v1180 = vpop.f32.mrf.mxu0
  %v1181 = vadd.f32 %v872, %v1180
  %v1182 = vpop.f32.mrf.mxu0
  %v1183 = vadd.f32 %v874, %v1182
  %1184 = vmatmul.bf16.gmra.mxu0 %v622
  %v1185 = vpop.f32.mrf.mxu0
  %v1186 = vadd.f32 %v877, %v1185
  %v1187 = vpop.f32.mrf.mxu0
  %v1188 = vadd.f32 %v879, %v1187
  %1189 = vmatmul.bf16.gmra.mxu0 %v625
  %v1190 = vpop.f32.mrf.mxu0
  %v1191 = vadd.f32 %v882, %v1190
  %v1192 = vpop.f32.mrf.mxu0
  %v1193 = vadd.f32 %v884, %v1192
  %1194 = vmatmul.bf16.gmra.mxu0 %v628
  %v1195 = vpop.f32.mrf.mxu0
  %v1196 = vadd.f32 %v887, %v1195
  %v1197 = vpop.f32.mrf.mxu0
  %v1198 = vadd.f32 %v889, %v1197
  %1199 = vmatmul.bf16.gmra.mxu0 %v631
  %v1200 = vpop.f32.mrf.mxu0
  %v1201 = vadd.f32 %v892, %v1200
  %v1202 = vpop.f32.mrf.mxu0
  %v1203 = vadd.f32 %v894, %v1202
  %1204 = vmatmul.bf16.gmra.mxu0 %v634
  %v1205 = vpop.f32.mrf.mxu0
  %v1206 = vadd.f32 %v897, %v1205
  %v1207 = vpop.f32.mrf.mxu0
  %v1208 = vadd.f32 %v899, %v1207
  %1209 = vmatmul.bf16.gmra.mxu0 %v637
  %v1210 = vpop.f32.mrf.mxu0
  %v1211 = vadd.f32 %v902, %v1210
  %v1212 = vpop.f32.mrf.mxu0
  %v1213 = vadd.f32 %v904, %v1212
  %1214 = vmatmul.bf16.gmra.mxu0 %v640
  %v1215 = vpop.f32.mrf.mxu0
  %v1216 = vadd.f32 %v907, %v1215
  %v1217 = vpop.f32.mrf.mxu0
  %v1218 = vadd.f32 %v909, %v1217
  %1219 = vmatmul.bf16.gmra.mxu0 %v643
  %v1220 = vpop.f32.mrf.mxu0
  %v1221 = vadd.f32 %v912, %v1220
  %v1222 = vpop.f32.mrf.mxu0
  %v1223 = vadd.f32 %v914, %v1222
  %1224 = vmatmul.bf16.gmra.mxu0 %v646
  %v1225 = vpop.f32.mrf.mxu0
  %v1226 = vadd.f32 %v917, %v1225
  %v1227 = vpop.f32.mrf.mxu0
  %v1228 = vadd.f32 %v919, %v1227
  %1229 = vmatmul.bf16.gmra.mxu0 %v649
  %v1230 = vpop.f32.mrf.mxu0
  %v1231 = vadd.f32 %v922, %v1230
  %v1232 = vpop.f32.mrf.mxu0
  %v1233 = vadd.f32 %v924, %v1232
  %1234 = vmatmul.bf16.gmra.mxu0 %v652
  %v1235 = vpop.f32.mrf.mxu0
  %v1236 = vadd.f32 %v927, %v1235
  %v1237 = vpop.f32.mrf.mxu0
  %v1238 = vadd.f32 %v929, %v1237
  %1239 = vmatmul.bf16.gmra.mxu0 %v655
  %v1240 = vpop.f32.mrf.mxu0
  %v1241 = vadd.f32 %v932, %v1240
  %v1242 = vpop.f32.mrf.mxu0
  %v1243 = vadd.f32 %v934, %v1242
  %1244 = vmatmul.bf16.gmra.mxu0 %v658
  %v1245 = vpop.f32.mrf.mxu0
  %v1246 = vadd.f32 %v937, %v1245
  %v1247 = vpop.f32.mrf.mxu0
  %v1248 = vadd.f32 %v939, %v1247
  %1249 = vmatmul.bf16.gmra.mxu0 %v661
  %v1250 = vpop.f32.mrf.mxu0
  %v1251 = vadd.f32 %v942, %v1250
  %v1252 = vpop.f32.mrf.mxu0
  %v1253 = vadd.f32 %v944, %v1252
  %1254 = vmatmul.bf16.gmra.mxu0 %v664
  %v1255 = vpop.f32.mrf.mxu0
  %v1256 = vadd.f32 %v947, %v1255
  %v1257 = vpop.f32.mrf.mxu0
  %v1258 = vadd.f32 %v949, %v1257
  %1259 = vmatmul.bf16.gmra.mxu0 %v667
  %v1260 = vpop.f32.mrf.mxu0
  %v1261 = vadd.f32 %v952, %v1260
  %v1262 = vpop.f32.mrf.mxu0
  %v1263 = vadd.f32 %v954, %v1262
  %1264 = vmatmul.bf16.gmra.mxu0 %v670
  %v1265 = vpop.f32.mrf.mxu0
  %v1266 = vadd.f32 %v957, %v1265
  %v1267 = vpop.f32.mrf.mxu0
  %v1268 = vadd.f32 %v959, %v1267
  %1269 = vmatmul.bf16.gmra.mxu0 %v673
  %v1270 = vpop.f32.mrf.mxu0
  %v1271 = vadd.f32 %v962, %v1270
  %v1272 = vpop.f32.mrf.mxu0
  %v1273 = vadd.f32 %v964, %v1272
  %1274 = vmatmul.bf16.gmra.mxu0 %v676
  %v1275 = vpop.f32.mrf.mxu0
  %v1276 = vadd.f32 %v967, %v1275
  %v1277 = vpop.f32.mrf.mxu0
  %v1278 = vadd.f32 %v969, %v1277
  %1279 = vmatmul.bf16.gmra.mxu0 %v679
  %v1280 = vpop.f32.mrf.mxu0
  %v1281 = vadd.f32 %v972, %v1280
  %v1282 = vpop.f32.mrf.mxu0
  %v1283 = vadd.f32 %v974, %v1282
  %1284 = vmatmul.bf16.gmra.mxu0 %v682
  %v1285 = vpop.f32.mrf.mxu0
  %v1286 = vadd.f32 %v977, %v1285
  %v1287 = vpop.f32.mrf.mxu0
  %v1288 = vadd.f32 %v979, %v1287
  %1289 = vmatmul.bf16.gmra.mxu0 %v685
  %v1290 = vpop.f32.mrf.mxu0
  %v1291 = vadd.f32 %v982, %v1290
  %v1292 = vpop.f32.mrf.mxu0
  %v1293 = vadd.f32 %v984, %v1292
  %1294 = vmatmul.bf16.gmra.mxu0 %v688
  %v1295 = vpop.f32.mrf.mxu0
  %v1296 = vadd.f32 %v987, %v1295
  %v1297 = vpop.f32.mrf.mxu0
  %v1298 = vadd.f32 %v989, %v1297
  %1299 = vmatmul.bf16.gmra.mxu0 %v691
  %v1300 = vpop.f32.mrf.mxu0
  %v1301 = vadd.f32 %v992, %v1300
  %v1302 = vpop.f32.mrf.mxu0
  %v1303 = vadd.f32 %v994, %v1302
  %1304 = vmatmul.bf16.gmra.mxu0 %v694
  %v1305 = vpop.f32.mrf.mxu0
  %v1306 = vadd.f32 %v997, %v1305
  %v1307 = vpop.f32.mrf.mxu0
  %v1308 = vadd.f32 %v999, %v1307
  %1309 = vmatmul.bf16.gmra.mxu0 %v697
  %v1310 = vpop.f32.mrf.mxu0
  %v1311 = vadd.f32 %v1002, %v1310
  %v1312 = vpop.f32.mrf.mxu0
  %v1313 = vadd.f32 %v1004, %v1312
  %1314 = vmatmul.bf16.gmra.mxu0 %v700
  %v1315 = vpop.f32.mrf.mxu0
  %v1316 = vadd.f32 %v1007, %v1315
  %v1317 = vpop.f32.mrf.mxu0
  %v1318 = vadd.f32 %v1009, %v1317
  %1319 = vdwg.mxu0
  %1320 = vmatpush.bf16.msra.mxu0 %v516
  %1321 = vmatpush.bf16.msra.mxu0 %v514
  %1322 = vmatpush.bf16.msra.mxu0 %v512
  %1323 = vmatpush.bf16.msra.mxu0 %v510
  %1324 = vmatpush.bf16.msra.mxu0 %v508
  %1325 = vmatpush.bf16.msra.mxu0 %v506
  %1326 = vmatpush.bf16.msra.mxu0 %v504
  %1327 = vmatpush.bf16.msra.mxu0 %v502
  %1328 = vmatmul.bf16.gmra.mxu0 %v381
  %v1329 = vpop.f32.mrf.mxu0
  %v1330 = vadd.f32 0.0, %v1329
  %v1331 = vpop.f32.mrf.mxu0
  %v1332 = vadd.f32 0.0, %v1331
  %1333 = vmatmul.bf16.gmra.mxu0 %v383
  %v1334 = vpop.f32.mrf.mxu0
  %v1335 = vadd.f32 0.0, %v1334
  %v1336 = vpop.f32.mrf.mxu0
  %v1337 = vadd.f32 0.0, %v1336
  %1338 = vmatmul.bf16.gmra.mxu0 %v385
  %v1339 = vpop.f32.mrf.mxu0
  %v1340 = vadd.f32 0.0, %v1339
  %v1341 = vpop.f32.mrf.mxu0
  %v1342 = vadd.f32 0.0, %v1341
  %1343 = vmatmul.bf16.gmra.mxu0 %v387
  %v1344 = vpop.f32.mrf.mxu0
  %v1345 = vadd.f32 0.0, %v1344
  %v1346 = vpop.f32.mrf.mxu0
  %v1347 = vadd.f32 0.0, %v1346
  %1348 = vmatmul.bf16.gmra.mxu0 %v389
  %v1349 = vpop.f32.mrf.mxu0
  %v1350 = vadd.f32 0.0, %v1349
  %v1351 = vpop.f32.mrf.mxu0
  %v1352 = vadd.f32 0.0, %v1351
  %1353 = vmatmul.bf16.gmra.mxu0 %v391
  %v1354 = vpop.f32.mrf.mxu0
  %v1355 = vadd.f32 0.0, %v1354
  %v1356 = vpop.f32.mrf.mxu0
  %v1357 = vadd.f32 0.0, %v1356
  %1358 = vmatmul.bf16.gmra.mxu0 %v393
  %v1359 = vpop.f32.mrf.mxu0
  %v1360 = vadd.f32 0.0, %v1359
  %v1361 = vpop.f32.mrf.mxu0
  %v1362 = vadd.f32 0.0, %v1361
  %1363 = vmatmul.bf16.gmra.mxu0 %v395
  %v1364 = vpop.f32.mrf.mxu0
  %v1365 = vadd.f32 0.0, %v1364
  %v1366 = vpop.f32.mrf.mxu0
  %v1367 = vadd.f32 0.0, %v1366
  %1368 = vmatmul.bf16.gmra.mxu0 %v397
  %v1369 = vpop.f32.mrf.mxu0
  %v1370 = vadd.f32 0.0, %v1369
  %v1371 = vpop.f32.mrf.mxu0
  %v1372 = vadd.f32 0.0, %v1371
  %1373 = vmatmul.bf16.gmra.mxu0 %v399
  %v1374 = vpop.f32.mrf.mxu0
  %v1375 = vadd.f32 0.0, %v1374
  %v1376 = vpop.f32.mrf.mxu0
  %v1377 = vadd.f32 0.0, %v1376
  %1378 = vmatmul.bf16.gmra.mxu0 %v401
  %v1379 = vpop.f32.mrf.mxu0
  %v1380 = vadd.f32 0.0, %v1379
  %v1381 = vpop.f32.mrf.mxu0
  %v1382 = vadd.f32 0.0, %v1381
  %1383 = vmatmul.bf16.gmra.mxu0 %v403
  %v1384 = vpop.f32.mrf.mxu0
  %v1385 = vadd.f32 0.0, %v1384
  %v1386 = vpop.f32.mrf.mxu0
  %v1387 = vadd.f32 0.0, %v1386
  %1388 = vmatmul.bf16.gmra.mxu0 %v405
  %v1389 = vpop.f32.mrf.mxu0
  %v1390 = vadd.f32 0.0, %v1389
  %v1391 = vpop.f32.mrf.mxu0
  %v1392 = vadd.f32 0.0, %v1391
  %1393 = vmatmul.bf16.gmra.mxu0 %v407
  %v1394 = vpop.f32.mrf.mxu0
  %v1395 = vadd.f32 0.0, %v1394
  %v1396 = vpop.f32.mrf.mxu0
  %v1397 = vadd.f32 0.0, %v1396
  %1398 = vmatmul.bf16.gmra.mxu0 %v409
  %v1399 = vpop.f32.mrf.mxu0
  %v1400 = vadd.f32 0.0, %v1399
  %v1401 = vpop.f32.mrf.mxu0
  %v1402 = vadd.f32 0.0, %v1401
  %1403 = vmatmul.bf16.gmra.mxu0 %v411
  %v1404 = vpop.f32.mrf.mxu0
  %v1405 = vadd.f32 0.0, %v1404
  %v1406 = vpop.f32.mrf.mxu0
  %v1407 = vadd.f32 0.0, %v1406
  %1408 = vmatmul.bf16.gmra.mxu0 %v413
  %v1409 = vpop.f32.mrf.mxu0
  %v1410 = vadd.f32 0.0, %v1409
  %v1411 = vpop.f32.mrf.mxu0
  %v1412 = vadd.f32 0.0, %v1411
  %1413 = vmatmul.bf16.gmra.mxu0 %v415
  %v1414 = vpop.f32.mrf.mxu0
  %v1415 = vadd.f32 0.0, %v1414
  %v1416 = vpop.f32.mrf.mxu0
  %v1417 = vadd.f32 0.0, %v1416
  %1418 = vmatmul.bf16.gmra.mxu0 %v417
  %v1419 = vpop.f32.mrf.mxu0
  %v1420 = vadd.f32 0.0, %v1419
  %v1421 = vpop.f32.mrf.mxu0
  %v1422 = vadd.f32 0.0, %v1421
  %1423 = vmatmul.bf16.gmra.mxu0 %v419
  %v1424 = vpop.f32.mrf.mxu0
  %v1425 = vadd.f32 0.0, %v1424
  %v1426 = vpop.f32.mrf.mxu0
  %v1427 = vadd.f32 0.0, %v1426
  %1428 = vmatmul.bf16.gmra.mxu0 %v421
  %v1429 = vpop.f32.mrf.mxu0
  %v1430 = vadd.f32 0.0, %v1429
  %v1431 = vpop.f32.mrf.mxu0
  %v1432 = vadd.f32 0.0, %v1431
  %1433 = vmatmul.bf16.gmra.mxu0 %v423
  %v1434 = vpop.f32.mrf.mxu0
  %v1435 = vadd.f32 0.0, %v1434
  %v1436 = vpop.f32.mrf.mxu0
  %v1437 = vadd.f32 0.0, %v1436
  %1438 = vmatmul.bf16.gmra.mxu0 %v425
  %v1439 = vpop.f32.mrf.mxu0
  %v1440 = vadd.f32 0.0, %v1439
  %v1441 = vpop.f32.mrf.mxu0
  %v1442 = vadd.f32 0.0, %v1441
  %1443 = vmatmul.bf16.gmra.mxu0 %v427
  %v1444 = vpop.f32.mrf.mxu0
  %v1445 = vadd.f32 0.0, %v1444
  %v1446 = vpop.f32.mrf.mxu0
  %v1447 = vadd.f32 0.0, %v1446
  %1448 = vmatmul.bf16.gmra.mxu0 %v429
  %v1449 = vpop.f32.mrf.mxu0
  %v1450 = vadd.f32 0.0, %v1449
  %v1451 = vpop.f32.mrf.mxu0
  %v1452 = vadd.f32 0.0, %v1451
  %1453 = vmatmul.bf16.gmra.mxu0 %v431
  %v1454 = vpop.f32.mrf.mxu0
  %v1455 = vadd.f32 0.0, %v1454
  %v1456 = vpop.f32.mrf.mxu0
  %v1457 = vadd.f32 0.0, %v1456
  %1458 = vmatmul.bf16.gmra.mxu0 %v433
  %v1459 = vpop.f32.mrf.mxu0
  %v1460 = vadd.f32 0.0, %v1459
  %v1461 = vpop.f32.mrf.mxu0
  %v1462 = vadd.f32 0.0, %v1461
  %1463 = vmatmul.bf16.gmra.mxu0 %v435
  %v1464 = vpop.f32.mrf.mxu0
  %v1465 = vadd.f32 0.0, %v1464
  %v1466 = vpop.f32.mrf.mxu0
  %v1467 = vadd.f32 0.0, %v1466
  %1468 = vmatmul.bf16.gmra.mxu0 %v437
  %v1469 = vpop.f32.mrf.mxu0
  %v1470 = vadd.f32 0.0, %v1469
  %v1471 = vpop.f32.mrf.mxu0
  %v1472 = vadd.f32 0.0, %v1471
  %1473 = vmatmul.bf16.gmra.mxu0 %v439
  %v1474 = vpop.f32.mrf.mxu0
  %v1475 = vadd.f32 0.0, %v1474
  %v1476 = vpop.f32.mrf.mxu0
  %v1477 = vadd.f32 0.0, %v1476
  %1478 = vmatmul.bf16.gmra.mxu0 %v441
  %v1479 = vpop.f32.mrf.mxu0
  %v1480 = vadd.f32 0.0, %v1479
  %v1481 = vpop.f32.mrf.mxu0
  %v1482 = vadd.f32 0.0, %v1481
  %1483 = vmatmul.bf16.gmra.mxu0 %v443
  %v1484 = vpop.f32.mrf.mxu0
  %v1485 = vadd.f32 0.0, %v1484
  %v1486 = vpop.f32.mrf.mxu0
  %v1487 = vadd.f32 0.0, %v1486
  %1488 = vmatmul.bf16.gmra.mxu0 %v445
  %v1489 = vpop.f32.mrf.mxu0
  %v1490 = vadd.f32 0.0, %v1489
  %v1491 = vpop.f32.mrf.mxu0
  %v1492 = vadd.f32 0.0, %v1491
  %1493 = vmatmul.bf16.gmra.mxu0 %v447
  %v1494 = vpop.f32.mrf.mxu0
  %v1495 = vadd.f32 0.0, %v1494
  %v1496 = vpop.f32.mrf.mxu0
  %v1497 = vadd.f32 0.0, %v1496
  %1498 = vmatmul.bf16.gmra.mxu0 %v449
  %v1499 = vpop.f32.mrf.mxu0
  %v1500 = vadd.f32 0.0, %v1499
  %v1501 = vpop.f32.mrf.mxu0
  %v1502 = vadd.f32 0.0, %v1501
  %1503 = vmatmul.bf16.gmra.mxu0 %v451
  %v1504 = vpop.f32.mrf.mxu0
  %v1505 = vadd.f32 0.0, %v1504
  %v1506 = vpop.f32.mrf.mxu0
  %v1507 = vadd.f32 0.0, %v1506
  %1508 = vmatmul.bf16.gmra.mxu0 %v453
  %v1509 = vpop.f32.mrf.mxu0
  %v1510 = vadd.f32 0.0, %v1509
  %v1511 = vpop.f32.mrf.mxu0
  %v1512 = vadd.f32 0.0, %v1511
  %1513 = vmatmul.bf16.gmra.mxu0 %v455
  %v1514 = vpop.f32.mrf.mxu0
  %v1515 = vadd.f32 0.0, %v1514
  %v1516 = vpop.f32.mrf.mxu0
  %v1517 = vadd.f32 0.0, %v1516
  %1518 = vmatmul.bf16.gmra.mxu0 %v457
  %v1519 = vpop.f32.mrf.mxu0
  %v1520 = vadd.f32 0.0, %v1519
  %v1521 = vpop.f32.mrf.mxu0
  %v1522 = vadd.f32 0.0, %v1521
  %1523 = vmatmul.bf16.gmra.mxu0 %v459
  %v1524 = vpop.f32.mrf.mxu0
  %v1525 = vadd.f32 0.0, %v1524
  %v1526 = vpop.f32.mrf.mxu0
  %v1527 = vadd.f32 0.0, %v1526
  %1528 = vmatmul.bf16.gmra.mxu0 %v461
  %v1529 = vpop.f32.mrf.mxu0
  %v1530 = vadd.f32 0.0, %v1529
  %v1531 = vpop.f32.mrf.mxu0
  %v1532 = vadd.f32 0.0, %v1531
  %1533 = vmatmul.bf16.gmra.mxu0 %v463
  %v1534 = vpop.f32.mrf.mxu0
  %v1535 = vadd.f32 0.0, %v1534
  %v1536 = vpop.f32.mrf.mxu0
  %v1537 = vadd.f32 0.0, %v1536
  %1538 = vmatmul.bf16.gmra.mxu0 %v465
  %v1539 = vpop.f32.mrf.mxu0
  %v1540 = vadd.f32 0.0, %v1539
  %v1541 = vpop.f32.mrf.mxu0
  %v1542 = vadd.f32 0.0, %v1541
  %1543 = vmatmul.bf16.gmra.mxu0 %v467
  %v1544 = vpop.f32.mrf.mxu0
  %v1545 = vadd.f32 0.0, %v1544
  %v1546 = vpop.f32.mrf.mxu0
  %v1547 = vadd.f32 0.0, %v1546
  %1548 = vmatmul.bf16.gmra.mxu0 %v469
  %v1549 = vpop.f32.mrf.mxu0
  %v1550 = vadd.f32 0.0, %v1549
  %v1551 = vpop.f32.mrf.mxu0
  %v1552 = vadd.f32 0.0, %v1551
  %1553 = vmatmul.bf16.gmra.mxu0 %v471
  %v1554 = vpop.f32.mrf.mxu0
  %v1555 = vadd.f32 0.0, %v1554
  %v1556 = vpop.f32.mrf.mxu0
  %v1557 = vadd.f32 0.0, %v1556
  %1558 = vmatmul.bf16.gmra.mxu0 %v473
  %v1559 = vpop.f32.mrf.mxu0
  %v1560 = vadd.f32 0.0, %v1559
  %v1561 = vpop.f32.mrf.mxu0
  %v1562 = vadd.f32 0.0, %v1561
  %1563 = vmatmul.bf16.gmra.mxu0 %v475
  %v1564 = vpop.f32.mrf.mxu0
  %v1565 = vadd.f32 0.0, %v1564
  %v1566 = vpop.f32.mrf.mxu0
  %v1567 = vadd.f32 0.0, %v1566
  %1568 = vmatmul.bf16.gmra.mxu0 %v477
  %v1569 = vpop.f32.mrf.mxu0
  %v1570 = vadd.f32 0.0, %v1569
  %v1571 = vpop.f32.mrf.mxu0
  %v1572 = vadd.f32 0.0, %v1571
  %1573 = vmatmul.bf16.gmra.mxu0 %v479
  %v1574 = vpop.f32.mrf.mxu0
  %v1575 = vadd.f32 0.0, %v1574
  %v1576 = vpop.f32.mrf.mxu0
  %v1577 = vadd.f32 0.0, %v1576
  %1578 = vmatmul.bf16.gmra.mxu0 %v481
  %v1579 = vpop.f32.mrf.mxu0
  %v1580 = vadd.f32 0.0, %v1579
  %v1581 = vpop.f32.mrf.mxu0
  %v1582 = vadd.f32 0.0, %v1581
  %1583 = vmatmul.bf16.gmra.mxu0 %v483
  %v1584 = vpop.f32.mrf.mxu0
  %v1585 = vadd.f32 0.0, %v1584
  %v1586 = vpop.f32.mrf.mxu0
  %v1587 = vadd.f32 0.0, %v1586
  %1588 = vmatmul.bf16.gmra.mxu0 %v485
  %v1589 = vpop.f32.mrf.mxu0
  %v1590 = vadd.f32 0.0, %v1589
  %v1591 = vpop.f32.mrf.mxu0
  %v1592 = vadd.f32 0.0, %v1591
  %1593 = vmatmul.bf16.gmra.mxu0 %v487
  %v1594 = vpop.f32.mrf.mxu0
  %v1595 = vadd.f32 0.0, %v1594
  %v1596 = vpop.f32.mrf.mxu0
  %v1597 = vadd.f32 0.0, %v1596
  %1598 = vmatmul.bf16.gmra.mxu0 %v489
  %v1599 = vpop.f32.mrf.mxu0
  %v1600 = vadd.f32 0.0, %v1599
  %v1601 = vpop.f32.mrf.mxu0
  %v1602 = vadd.f32 0.0, %v1601
  %1603 = vmatmul.bf16.gmra.mxu0 %v491
  %v1604 = vpop.f32.mrf.mxu0
  %v1605 = vadd.f32 0.0, %v1604
  %v1606 = vpop.f32.mrf.mxu0
  %v1607 = vadd.f32 0.0, %v1606
  %1608 = vmatmul.bf16.gmra.mxu0 %v493
  %v1609 = vpop.f32.mrf.mxu0
  %v1610 = vadd.f32 0.0, %v1609
  %v1611 = vpop.f32.mrf.mxu0
  %v1612 = vadd.f32 0.0, %v1611
  %1613 = vmatmul.bf16.gmra.mxu0 %v495
  %v1614 = vpop.f32.mrf.mxu0
  %v1615 = vadd.f32 0.0, %v1614
  %v1616 = vpop.f32.mrf.mxu0
  %v1617 = vadd.f32 0.0, %v1616
  %1618 = vmatmul.bf16.gmra.mxu0 %v497
  %v1619 = vpop.f32.mrf.mxu0
  %v1620 = vadd.f32 0.0, %v1619
  %v1621 = vpop.f32.mrf.mxu0
  %v1622 = vadd.f32 0.0, %v1621
  %1623 = vmatmul.bf16.gmra.mxu0 %v499
  %v1624 = vpop.f32.mrf.mxu0
  %v1625 = vadd.f32 0.0, %v1624
  %v1626 = vpop.f32.mrf.mxu0
  %v1627 = vadd.f32 0.0, %v1626
  %1628 = vdwg.mxu0
  %1629 = vmatpush.bf16.msra.mxu0 0
  %1630 = vmatpush.bf16.msra.mxu0 0
  %1631 = vmatpush.bf16.msra.mxu0 0
  %1632 = vmatpush.bf16.msra.mxu0 0
  %1633 = vmatpush.bf16.msra.mxu0 0
  %1634 = vmatpush.bf16.msra.mxu0 0
  %1635 = vmatpush.bf16.msra.mxu0 %v520
  %1636 = vmatpush.bf16.msra.mxu0 %v518
  %1637 = vmatmul.bf16.gmra.mxu0 %v523
  %v1638 = vpop.f32.mrf.mxu0
  %v1639 = vadd.f32 %v1330, %v1638
  %v1640 = vpop.f32.mrf.mxu0
  %v1641 = vadd.f32 %v1332, %v1640
  %1642 = vmatmul.bf16.gmra.mxu0 %v526
  %v1643 = vpop.f32.mrf.mxu0
  %v1644 = vadd.f32 %v1335, %v1643
  %v1645 = vpop.f32.mrf.mxu0
  %v1646 = vadd.f32 %v1337, %v1645
  %1647 = vmatmul.bf16.gmra.mxu0 %v529
  %v1648 = vpop.f32.mrf.mxu0
  %v1649 = vadd.f32 %v1340, %v1648
  %v1650 = vpop.f32.mrf.mxu0
  %v1651 = vadd.f32 %v1342, %v1650
  %1652 = vmatmul.bf16.gmra.mxu0 %v532
  %v1653 = vpop.f32.mrf.mxu0
  %v1654 = vadd.f32 %v1345, %v1653
  %v1655 = vpop.f32.mrf.mxu0
  %v1656 = vadd.f32 %v1347, %v1655
  %1657 = vmatmul.bf16.gmra.mxu0 %v535
  %v1658 = vpop.f32.mrf.mxu0
  %v1659 = vadd.f32 %v1350, %v1658
  %v1660 = vpop.f32.mrf.mxu0
  %v1661 = vadd.f32 %v1352, %v1660
  %1662 = vmatmul.bf16.gmra.mxu0 %v538
  %v1663 = vpop.f32.mrf.mxu0
  %v1664 = vadd.f32 %v1355, %v1663
  %v1665 = vpop.f32.mrf.mxu0
  %v1666 = vadd.f32 %v1357, %v1665
  %1667 = vmatmul.bf16.gmra.mxu0 %v541
  %v1668 = vpop.f32.mrf.mxu0
  %v1669 = vadd.f32 %v1360, %v1668
  %v1670 = vpop.f32.mrf.mxu0
  %v1671 = vadd.f32 %v1362, %v1670
  %1672 = vmatmul.bf16.gmra.mxu0 %v544
  %v1673 = vpop.f32.mrf.mxu0
  %v1674 = vadd.f32 %v1365, %v1673
  %v1675 = vpop.f32.mrf.mxu0
  %v1676 = vadd.f32 %v1367, %v1675
  %1677 = vmatmul.bf16.gmra.mxu0 %v547
  %v1678 = vpop.f32.mrf.mxu0
  %v1679 = vadd.f32 %v1370, %v1678
  %v1680 = vpop.f32.mrf.mxu0
  %v1681 = vadd.f32 %v1372, %v1680
  %1682 = vmatmul.bf16.gmra.mxu0 %v550
  %v1683 = vpop.f32.mrf.mxu0
  %v1684 = vadd.f32 %v1375, %v1683
  %v1685 = vpop.f32.mrf.mxu0
  %v1686 = vadd.f32 %v1377, %v1685
  %1687 = vmatmul.bf16.gmra.mxu0 %v553
  %v1688 = vpop.f32.mrf.mxu0
  %v1689 = vadd.f32 %v1380, %v1688
  %v1690 = vpop.f32.mrf.mxu0
  %v1691 = vadd.f32 %v1382, %v1690
  %1692 = vmatmul.bf16.gmra.mxu0 %v556
  %v1693 = vpop.f32.mrf.mxu0
  %v1694 = vadd.f32 %v1385, %v1693
  %v1695 = vpop.f32.mrf.mxu0
  %v1696 = vadd.f32 %v1387, %v1695
  %1697 = vmatmul.bf16.gmra.mxu0 %v559
  %v1698 = vpop.f32.mrf.mxu0
  %v1699 = vadd.f32 %v1390, %v1698
  %v1700 = vpop.f32.mrf.mxu0
  %v1701 = vadd.f32 %v1392, %v1700
  %1702 = vmatmul.bf16.gmra.mxu0 %v562
  %v1703 = vpop.f32.mrf.mxu0
  %v1704 = vadd.f32 %v1395, %v1703
  %v1705 = vpop.f32.mrf.mxu0
  %v1706 = vadd.f32 %v1397, %v1705
  %1707 = vmatmul.bf16.gmra.mxu0 %v565
  %v1708 = vpop.f32.mrf.mxu0
  %v1709 = vadd.f32 %v1400, %v1708
  %v1710 = vpop.f32.mrf.mxu0
  %v1711 = vadd.f32 %v1402, %v1710
  %1712 = vmatmul.bf16.gmra.mxu0 %v568
  %v1713 = vpop.f32.mrf.mxu0
  %v1714 = vadd.f32 %v1405, %v1713
  %v1715 = vpop.f32.mrf.mxu0
  %v1716 = vadd.f32 %v1407, %v1715
  %1717 = vmatmul.bf16.gmra.mxu0 %v571
  %v1718 = vpop.f32.mrf.mxu0
  %v1719 = vadd.f32 %v1410, %v1718
  %v1720 = vpop.f32.mrf.mxu0
  %v1721 = vadd.f32 %v1412, %v1720
  %1722 = vmatmul.bf16.gmra.mxu0 %v574
  %v1723 = vpop.f32.mrf.mxu0
  %v1724 = vadd.f32 %v1415, %v1723
  %v1725 = vpop.f32.mrf.mxu0
  %v1726 = vadd.f32 %v1417, %v1725
  %1727 = vmatmul.bf16.gmra.mxu0 %v577
  %v1728 = vpop.f32.mrf.mxu0
  %v1729 = vadd.f32 %v1420, %v1728
  %v1730 = vpop.f32.mrf.mxu0
  %v1731 = vadd.f32 %v1422, %v1730
  %1732 = vmatmul.bf16.gmra.mxu0 %v580
  %v1733 = vpop.f32.mrf.mxu0
  %v1734 = vadd.f32 %v1425, %v1733
  %v1735 = vpop.f32.mrf.mxu0
  %v1736 = vadd.f32 %v1427, %v1735
  %1737 = vmatmul.bf16.gmra.mxu0 %v583
  %v1738 = vpop.f32.mrf.mxu0
  %v1739 = vadd.f32 %v1430, %v1738
  %v1740 = vpop.f32.mrf.mxu0
  %v1741 = vadd.f32 %v1432, %v1740
  %1742 = vmatmul.bf16.gmra.mxu0 %v586
  %v1743 = vpop.f32.mrf.mxu0
  %v1744 = vadd.f32 %v1435, %v1743
  %v1745 = vpop.f32.mrf.mxu0
  %v1746 = vadd.f32 %v1437, %v1745
  %1747 = vmatmul.bf16.gmra.mxu0 %v589
  %v1748 = vpop.f32.mrf.mxu0
  %v1749 = vadd.f32 %v1440, %v1748
  %v1750 = vpop.f32.mrf.mxu0
  %v1751 = vadd.f32 %v1442, %v1750
  %1752 = vmatmul.bf16.gmra.mxu0 %v592
  %v1753 = vpop.f32.mrf.mxu0
  %v1754 = vadd.f32 %v1445, %v1753
  %v1755 = vpop.f32.mrf.mxu0
  %v1756 = vadd.f32 %v1447, %v1755
  %1757 = vmatmul.bf16.gmra.mxu0 %v595
  %v1758 = vpop.f32.mrf.mxu0
  %v1759 = vadd.f32 %v1450, %v1758
  %v1760 = vpop.f32.mrf.mxu0
  %v1761 = vadd.f32 %v1452, %v1760
  %1762 = vmatmul.bf16.gmra.mxu0 %v598
  %v1763 = vpop.f32.mrf.mxu0
  %v1764 = vadd.f32 %v1455, %v1763
  %v1765 = vpop.f32.mrf.mxu0
  %v1766 = vadd.f32 %v1457, %v1765
  %1767 = vmatmul.bf16.gmra.mxu0 %v601
  %v1768 = vpop.f32.mrf.mxu0
  %v1769 = vadd.f32 %v1460, %v1768
  %v1770 = vpop.f32.mrf.mxu0
  %v1771 = vadd.f32 %v1462, %v1770
  %1772 = vmatmul.bf16.gmra.mxu0 %v604
  %v1773 = vpop.f32.mrf.mxu0
  %v1774 = vadd.f32 %v1465, %v1773
  %v1775 = vpop.f32.mrf.mxu0
  %v1776 = vadd.f32 %v1467, %v1775
  %1777 = vmatmul.bf16.gmra.mxu0 %v607
  %v1778 = vpop.f32.mrf.mxu0
  %v1779 = vadd.f32 %v1470, %v1778
  %v1780 = vpop.f32.mrf.mxu0
  %v1781 = vadd.f32 %v1472, %v1780
  %1782 = vmatmul.bf16.gmra.mxu0 %v610
  %v1783 = vpop.f32.mrf.mxu0
  %v1784 = vadd.f32 %v1475, %v1783
  %v1785 = vpop.f32.mrf.mxu0
  %v1786 = vadd.f32 %v1477, %v1785
  %1787 = vmatmul.bf16.gmra.mxu0 %v613
  %v1788 = vpop.f32.mrf.mxu0
  %v1789 = vadd.f32 %v1480, %v1788
  %v1790 = vpop.f32.mrf.mxu0
  %v1791 = vadd.f32 %v1482, %v1790
  %1792 = vmatmul.bf16.gmra.mxu0 %v616
  %v1793 = vpop.f32.mrf.mxu0
  %v1794 = vadd.f32 %v1485, %v1793
  %v1795 = vpop.f32.mrf.mxu0
  %v1796 = vadd.f32 %v1487, %v1795
  %1797 = vmatmul.bf16.gmra.mxu0 %v619
  %v1798 = vpop.f32.mrf.mxu0
  %v1799 = vadd.f32 %v1490, %v1798
  %v1800 = vpop.f32.mrf.mxu0
  %v1801 = vadd.f32 %v1492, %v1800
  %1802 = vmatmul.bf16.gmra.mxu0 %v622
  %v1803 = vpop.f32.mrf.mxu0
  %v1804 = vadd.f32 %v1495, %v1803
  %v1805 = vpop.f32.mrf.mxu0
  %v1806 = vadd.f32 %v1497, %v1805
  %1807 = vmatmul.bf16.gmra.mxu0 %v625
  %v1808 = vpop.f32.mrf.mxu0
  %v1809 = vadd.f32 %v1500, %v1808
  %v1810 = vpop.f32.mrf.mxu0
  %v1811 = vadd.f32 %v1502, %v1810
  %1812 = vmatmul.bf16.gmra.mxu0 %v628
  %v1813 = vpop.f32.mrf.mxu0
  %v1814 = vadd.f32 %v1505, %v1813
  %v1815 = vpop.f32.mrf.mxu0
  %v1816 = vadd.f32 %v1507, %v1815
  %1817 = vmatmul.bf16.gmra.mxu0 %v631
  %v1818 = vpop.f32.mrf.mxu0
  %v1819 = vadd.f32 %v1510, %v1818
  %v1820 = vpop.f32.mrf.mxu0
  %v1821 = vadd.f32 %v1512, %v1820
  %1822 = vmatmul.bf16.gmra.mxu0 %v634
  %v1823 = vpop.f32.mrf.mxu0
  %v1824 = vadd.f32 %v1515, %v1823
  %v1825 = vpop.f32.mrf.mxu0
  %v1826 = vadd.f32 %v1517, %v1825
  %1827 = vmatmul.bf16.gmra.mxu0 %v637
  %v1828 = vpop.f32.mrf.mxu0
  %v1829 = vadd.f32 %v1520, %v1828
  %v1830 = vpop.f32.mrf.mxu0
  %v1831 = vadd.f32 %v1522, %v1830
  %1832 = vmatmul.bf16.gmra.mxu0 %v640
  %v1833 = vpop.f32.mrf.mxu0
  %v1834 = vadd.f32 %v1525, %v1833
  %v1835 = vpop.f32.mrf.mxu0
  %v1836 = vadd.f32 %v1527, %v1835
  %1837 = vmatmul.bf16.gmra.mxu0 %v643
  %v1838 = vpop.f32.mrf.mxu0
  %v1839 = vadd.f32 %v1530, %v1838
  %v1840 = vpop.f32.mrf.mxu0
  %v1841 = vadd.f32 %v1532, %v1840
  %1842 = vmatmul.bf16.gmra.mxu0 %v646
  %v1843 = vpop.f32.mrf.mxu0
  %v1844 = vadd.f32 %v1535, %v1843
  %v1845 = vpop.f32.mrf.mxu0
  %v1846 = vadd.f32 %v1537, %v1845
  %1847 = vmatmul.bf16.gmra.mxu0 %v649
  %v1848 = vpop.f32.mrf.mxu0
  %v1849 = vadd.f32 %v1540, %v1848
  %v1850 = vpop.f32.mrf.mxu0
  %v1851 = vadd.f32 %v1542, %v1850
  %1852 = vmatmul.bf16.gmra.mxu0 %v652
  %v1853 = vpop.f32.mrf.mxu0
  %v1854 = vadd.f32 %v1545, %v1853
  %v1855 = vpop.f32.mrf.mxu0
  %v1856 = vadd.f32 %v1547, %v1855
  %1857 = vmatmul.bf16.gmra.mxu0 %v655
  %v1858 = vpop.f32.mrf.mxu0
  %v1859 = vadd.f32 %v1550, %v1858
  %v1860 = vpop.f32.mrf.mxu0
  %v1861 = vadd.f32 %v1552, %v1860
  %1862 = vmatmul.bf16.gmra.mxu0 %v658
  %v1863 = vpop.f32.mrf.mxu0
  %v1864 = vadd.f32 %v1555, %v1863
  %v1865 = vpop.f32.mrf.mxu0
  %v1866 = vadd.f32 %v1557, %v1865
  %1867 = vmatmul.bf16.gmra.mxu0 %v661
  %v1868 = vpop.f32.mrf.mxu0
  %v1869 = vadd.f32 %v1560, %v1868
  %v1870 = vpop.f32.mrf.mxu0
  %v1871 = vadd.f32 %v1562, %v1870
  %1872 = vmatmul.bf16.gmra.mxu0 %v664
  %v1873 = vpop.f32.mrf.mxu0
  %v1874 = vadd.f32 %v1565, %v1873
  %v1875 = vpop.f32.mrf.mxu0
  %v1876 = vadd.f32 %v1567, %v1875
  %1877 = vmatmul.bf16.gmra.mxu0 %v667
  %v1878 = vpop.f32.mrf.mxu0
  %v1879 = vadd.f32 %v1570, %v1878
  %v1880 = vpop.f32.mrf.mxu0
  %v1881 = vadd.f32 %v1572, %v1880
  %1882 = vmatmul.bf16.gmra.mxu0 %v670
  %v1883 = vpop.f32.mrf.mxu0
  %v1884 = vadd.f32 %v1575, %v1883
  %v1885 = vpop.f32.mrf.mxu0
  %v1886 = vadd.f32 %v1577, %v1885
  %1887 = vmatmul.bf16.gmra.mxu0 %v673
  %v1888 = vpop.f32.mrf.mxu0
  %v1889 = vadd.f32 %v1580, %v1888
  %v1890 = vpop.f32.mrf.mxu0
  %v1891 = vadd.f32 %v1582, %v1890
  %1892 = vmatmul.bf16.gmra.mxu0 %v676
  %v1893 = vpop.f32.mrf.mxu0
  %v1894 = vadd.f32 %v1585, %v1893
  %v1895 = vpop.f32.mrf.mxu0
  %v1896 = vadd.f32 %v1587, %v1895
  %1897 = vmatmul.bf16.gmra.mxu0 %v679
  %v1898 = vpop.f32.mrf.mxu0
  %v1899 = vadd.f32 %v1590, %v1898
  %v1900 = vpop.f32.mrf.mxu0
  %v1901 = vadd.f32 %v1592, %v1900
  %1902 = vmatmul.bf16.gmra.mxu0 %v682
  %v1903 = vpop.f32.mrf.mxu0
  %v1904 = vadd.f32 %v1595, %v1903
  %v1905 = vpop.f32.mrf.mxu0
  %v1906 = vadd.f32 %v1597, %v1905
  %1907 = vmatmul.bf16.gmra.mxu0 %v685
  %v1908 = vpop.f32.mrf.mxu0
  %v1909 = vadd.f32 %v1600, %v1908
  %v1910 = vpop.f32.mrf.mxu0
  %v1911 = vadd.f32 %v1602, %v1910
  %1912 = vmatmul.bf16.gmra.mxu0 %v688
  %v1913 = vpop.f32.mrf.mxu0
  %v1914 = vadd.f32 %v1605, %v1913
  %v1915 = vpop.f32.mrf.mxu0
  %v1916 = vadd.f32 %v1607, %v1915
  %1917 = vmatmul.bf16.gmra.mxu0 %v691
  %v1918 = vpop.f32.mrf.mxu0
  %v1919 = vadd.f32 %v1610, %v1918
  %v1920 = vpop.f32.mrf.mxu0
  %v1921 = vadd.f32 %v1612, %v1920
  %1922 = vmatmul.bf16.gmra.mxu0 %v694
  %v1923 = vpop.f32.mrf.mxu0
  %v1924 = vadd.f32 %v1615, %v1923
  %v1925 = vpop.f32.mrf.mxu0
  %v1926 = vadd.f32 %v1617, %v1925
  %1927 = vmatmul.bf16.gmra.mxu0 %v697
  %v1928 = vpop.f32.mrf.mxu0
  %v1929 = vadd.f32 %v1620, %v1928
  %v1930 = vpop.f32.mrf.mxu0
  %v1931 = vadd.f32 %v1622, %v1930
  %1932 = vmatmul.bf16.gmra.mxu0 %v700
  %v1933 = vpop.f32.mrf.mxu0
  %v1934 = vadd.f32 %v1625, %v1933
  %v1935 = vpop.f32.mrf.mxu0
  %v1936 = vadd.f32 %v1627, %v1935
  %1937 = vdwg.mxu0
  %vm1938 = vcmask 556032
  %v1939 = vsel %vm1938, %v1639, 0.0
  %v1940 = vadd.f32 %v1021, %v1939
  %1941 = vadd.xlane.f32.xlu0 %v1940
  %v1942 = vpop.xlane.xlu0 %1941
  %v1943 = vsel %vm1938, %v1641, 0.0
  %v1944 = vadd.f32 %v1023, %v1943
  %1945 = vadd.xlane.f32.xlu0 %v1944
  %v1946 = vpop.xlane.xlu0 %1945
  %v1947 = vsel %vm1938, %v1644, 0.0
  %v1948 = vadd.f32 %v1026, %v1947
  %1949 = vadd.xlane.f32.xlu0 %v1948
  %v1950 = vpop.xlane.xlu0 %1949
  %v1951 = vsel %vm1938, %v1646, 0.0
  %v1952 = vadd.f32 %v1028, %v1951
  %1953 = vadd.xlane.f32.xlu0 %v1952
  %v1954 = vpop.xlane.xlu0 %1953
  %v1955 = vsel %vm1938, %v1649, 0.0
  %v1956 = vadd.f32 %v1031, %v1955
  %1957 = vadd.xlane.f32.xlu0 %v1956
  %v1958 = vpop.xlane.xlu0 %1957
  %v1959 = vsel %vm1938, %v1651, 0.0
  %v1960 = vadd.f32 %v1033, %v1959
  %1961 = vadd.xlane.f32.xlu0 %v1960
  %v1962 = vpop.xlane.xlu0 %1961
  %v1963 = vsel %vm1938, %v1654, 0.0
  %v1964 = vadd.f32 %v1036, %v1963
  %1965 = vadd.xlane.f32.xlu0 %v1964
  %v1966 = vpop.xlane.xlu0 %1965
  %v1967 = vsel %vm1938, %v1656, 0.0
  %v1968 = vadd.f32 %v1038, %v1967
  %1969 = vadd.xlane.f32.xlu0 %v1968
  %v1970 = vpop.xlane.xlu0 %1969
  %v1971 = vsel %vm1938, %v1659, 0.0
  %v1972 = vadd.f32 %v1041, %v1971
  %1973 = vadd.xlane.f32.xlu0 %v1972
  %v1974 = vpop.xlane.xlu0 %1973
  %v1975 = vsel %vm1938, %v1661, 0.0
  %v1976 = vadd.f32 %v1043, %v1975
  %1977 = vadd.xlane.f32.xlu0 %v1976
  %v1978 = vpop.xlane.xlu0 %1977
  %v1979 = vsel %vm1938, %v1664, 0.0
  %v1980 = vadd.f32 %v1046, %v1979
  %1981 = vadd.xlane.f32.xlu0 %v1980
  %v1982 = vpop.xlane.xlu0 %1981
  %v1983 = vsel %vm1938, %v1666, 0.0
  %v1984 = vadd.f32 %v1048, %v1983
  %1985 = vadd.xlane.f32.xlu0 %v1984
  %v1986 = vpop.xlane.xlu0 %1985
  %v1987 = vsel %vm1938, %v1669, 0.0
  %v1988 = vadd.f32 %v1051, %v1987
  %1989 = vadd.xlane.f32.xlu0 %v1988
  %v1990 = vpop.xlane.xlu0 %1989
  %v1991 = vsel %vm1938, %v1671, 0.0
  %v1992 = vadd.f32 %v1053, %v1991
  %1993 = vadd.xlane.f32.xlu0 %v1992
  %v1994 = vpop.xlane.xlu0 %1993
  %v1995 = vsel %vm1938, %v1674, 0.0
  %v1996 = vadd.f32 %v1056, %v1995
  %1997 = vadd.xlane.f32.xlu0 %v1996
  %v1998 = vpop.xlane.xlu0 %1997
  %v1999 = vsel %vm1938, %v1676, 0.0
  %v2000 = vadd.f32 %v1058, %v1999
  %2001 = vadd.xlane.f32.xlu0 %v2000
  %v2002 = vpop.xlane.xlu0 %2001
  %v2003 = vsel %vm1938, %v1679, 0.0
  %v2004 = vadd.f32 %v1061, %v2003
  %2005 = vadd.xlane.f32.xlu0 %v2004
  %v2006 = vpop.xlane.xlu0 %2005
  %v2007 = vsel %vm1938, %v1681, 0.0
  %v2008 = vadd.f32 %v1063, %v2007
  %2009 = vadd.xlane.f32.xlu0 %v2008
  %v2010 = vpop.xlane.xlu0 %2009
  %v2011 = vsel %vm1938, %v1684, 0.0
  %v2012 = vadd.f32 %v1066, %v2011
  %2013 = vadd.xlane.f32.xlu0 %v2012
  %v2014 = vpop.xlane.xlu0 %2013
  %v2015 = vsel %vm1938, %v1686, 0.0
  %v2016 = vadd.f32 %v1068, %v2015
  %2017 = vadd.xlane.f32.xlu0 %v2016
  %v2018 = vpop.xlane.xlu0 %2017
  %v2019 = vsel %vm1938, %v1689, 0.0
  %v2020 = vadd.f32 %v1071, %v2019
  %2021 = vadd.xlane.f32.xlu0 %v2020
  %v2022 = vpop.xlane.xlu0 %2021
  %v2023 = vsel %vm1938, %v1691, 0.0
  %v2024 = vadd.f32 %v1073, %v2023
  %2025 = vadd.xlane.f32.xlu0 %v2024
  %v2026 = vpop.xlane.xlu0 %2025
  %v2027 = vsel %vm1938, %v1694, 0.0
  %v2028 = vadd.f32 %v1076, %v2027
  %2029 = vadd.xlane.f32.xlu0 %v2028
  %v2030 = vpop.xlane.xlu0 %2029
  %v2031 = vsel %vm1938, %v1696, 0.0
  %v2032 = vadd.f32 %v1078, %v2031
  %2033 = vadd.xlane.f32.xlu0 %v2032
  %v2034 = vpop.xlane.xlu0 %2033
  %v2035 = vsel %vm1938, %v1699, 0.0
  %v2036 = vadd.f32 %v1081, %v2035
  %2037 = vadd.xlane.f32.xlu0 %v2036
  %v2038 = vpop.xlane.xlu0 %2037
  %v2039 = vsel %vm1938, %v1701, 0.0
  %v2040 = vadd.f32 %v1083, %v2039
  %2041 = vadd.xlane.f32.xlu0 %v2040
  %v2042 = vpop.xlane.xlu0 %2041
  %v2043 = vsel %vm1938, %v1704, 0.0
  %v2044 = vadd.f32 %v1086, %v2043
  %2045 = vadd.xlane.f32.xlu0 %v2044
  %v2046 = vpop.xlane.xlu0 %2045
  %v2047 = vsel %vm1938, %v1706, 0.0
  %v2048 = vadd.f32 %v1088, %v2047
  %2049 = vadd.xlane.f32.xlu0 %v2048
  %v2050 = vpop.xlane.xlu0 %2049
  %v2051 = vsel %vm1938, %v1709, 0.0
  %v2052 = vadd.f32 %v1091, %v2051
  %2053 = vadd.xlane.f32.xlu0 %v2052
  %v2054 = vpop.xlane.xlu0 %2053
  %v2055 = vsel %vm1938, %v1711, 0.0
  %v2056 = vadd.f32 %v1093, %v2055
  %2057 = vadd.xlane.f32.xlu0 %v2056
  %v2058 = vpop.xlane.xlu0 %2057
  %v2059 = vsel %vm1938, %v1714, 0.0
  %v2060 = vadd.f32 %v1096, %v2059
  %2061 = vadd.xlane.f32.xlu0 %v2060
  %v2062 = vpop.xlane.xlu0 %2061
  %v2063 = vsel %vm1938, %v1716, 0.0
  %v2064 = vadd.f32 %v1098, %v2063
  %2065 = vadd.xlane.f32.xlu0 %v2064
  %v2066 = vpop.xlane.xlu0 %2065
  %v2067 = vsel %vm1938, %v1719, 0.0
  %v2068 = vadd.f32 %v1101, %v2067
  %2069 = vadd.xlane.f32.xlu0 %v2068
  %v2070 = vpop.xlane.xlu0 %2069
  %v2071 = vsel %vm1938, %v1721, 0.0
  %v2072 = vadd.f32 %v1103, %v2071
  %2073 = vadd.xlane.f32.xlu0 %v2072
  %v2074 = vpop.xlane.xlu0 %2073
  %v2075 = vsel %vm1938, %v1724, 0.0
  %v2076 = vadd.f32 %v1106, %v2075
  %2077 = vadd.xlane.f32.xlu0 %v2076
  %v2078 = vpop.xlane.xlu0 %2077
  %v2079 = vsel %vm1938, %v1726, 0.0
  %v2080 = vadd.f32 %v1108, %v2079
  %2081 = vadd.xlane.f32.xlu0 %v2080
  %v2082 = vpop.xlane.xlu0 %2081
  %v2083 = vsel %vm1938, %v1729, 0.0
  %v2084 = vadd.f32 %v1111, %v2083
  %2085 = vadd.xlane.f32.xlu0 %v2084
  %v2086 = vpop.xlane.xlu0 %2085
  %v2087 = vsel %vm1938, %v1731, 0.0
  %v2088 = vadd.f32 %v1113, %v2087
  %2089 = vadd.xlane.f32.xlu0 %v2088
  %v2090 = vpop.xlane.xlu0 %2089
  %v2091 = vsel %vm1938, %v1734, 0.0
  %v2092 = vadd.f32 %v1116, %v2091
  %2093 = vadd.xlane.f32.xlu0 %v2092
  %v2094 = vpop.xlane.xlu0 %2093
  %v2095 = vsel %vm1938, %v1736, 0.0
  %v2096 = vadd.f32 %v1118, %v2095
  %2097 = vadd.xlane.f32.xlu0 %v2096
  %v2098 = vpop.xlane.xlu0 %2097
  %v2099 = vsel %vm1938, %v1739, 0.0
  %v2100 = vadd.f32 %v1121, %v2099
  %2101 = vadd.xlane.f32.xlu0 %v2100
  %v2102 = vpop.xlane.xlu0 %2101
  %v2103 = vsel %vm1938, %v1741, 0.0
  %v2104 = vadd.f32 %v1123, %v2103
  %2105 = vadd.xlane.f32.xlu0 %v2104
  %v2106 = vpop.xlane.xlu0 %2105
  %v2107 = vsel %vm1938, %v1744, 0.0
  %v2108 = vadd.f32 %v1126, %v2107
  %2109 = vadd.xlane.f32.xlu0 %v2108
  %v2110 = vpop.xlane.xlu0 %2109
  %v2111 = vsel %vm1938, %v1746, 0.0
  %v2112 = vadd.f32 %v1128, %v2111
  %2113 = vadd.xlane.f32.xlu0 %v2112
  %v2114 = vpop.xlane.xlu0 %2113
  %v2115 = vsel %vm1938, %v1749, 0.0
  %v2116 = vadd.f32 %v1131, %v2115
  %2117 = vadd.xlane.f32.xlu0 %v2116
  %v2118 = vpop.xlane.xlu0 %2117
  %v2119 = vsel %vm1938, %v1751, 0.0
  %v2120 = vadd.f32 %v1133, %v2119
  %2121 = vadd.xlane.f32.xlu0 %v2120
  %v2122 = vpop.xlane.xlu0 %2121
  %v2123 = vsel %vm1938, %v1754, 0.0
  %v2124 = vadd.f32 %v1136, %v2123
  %2125 = vadd.xlane.f32.xlu0 %v2124
  %v2126 = vpop.xlane.xlu0 %2125
  %v2127 = vsel %vm1938, %v1756, 0.0
  %v2128 = vadd.f32 %v1138, %v2127
  %2129 = vadd.xlane.f32.xlu0 %v2128
  %v2130 = vpop.xlane.xlu0 %2129
  %v2131 = vsel %vm1938, %v1759, 0.0
  %v2132 = vadd.f32 %v1141, %v2131
  %2133 = vadd.xlane.f32.xlu0 %v2132
  %v2134 = vpop.xlane.xlu0 %2133
  %v2135 = vsel %vm1938, %v1761, 0.0
  %v2136 = vadd.f32 %v1143, %v2135
  %2137 = vadd.xlane.f32.xlu0 %v2136
  %v2138 = vpop.xlane.xlu0 %2137
  %v2139 = vsel %vm1938, %v1764, 0.0
  %v2140 = vadd.f32 %v1146, %v2139
  %2141 = vadd.xlane.f32.xlu0 %v2140
  %v2142 = vpop.xlane.xlu0 %2141
  %v2143 = vsel %vm1938, %v1766, 0.0
  %v2144 = vadd.f32 %v1148, %v2143
  %2145 = vadd.xlane.f32.xlu0 %v2144
  %v2146 = vpop.xlane.xlu0 %2145
  %v2147 = vsel %vm1938, %v1769, 0.0
  %v2148 = vadd.f32 %v1151, %v2147
  %2149 = vadd.xlane.f32.xlu0 %v2148
  %v2150 = vpop.xlane.xlu0 %2149
  %v2151 = vsel %vm1938, %v1771, 0.0
  %v2152 = vadd.f32 %v1153, %v2151
  %2153 = vadd.xlane.f32.xlu0 %v2152
  %v2154 = vpop.xlane.xlu0 %2153
  %v2155 = vsel %vm1938, %v1774, 0.0
  %v2156 = vadd.f32 %v1156, %v2155
  %2157 = vadd.xlane.f32.xlu0 %v2156
  %v2158 = vpop.xlane.xlu0 %2157
  %v2159 = vsel %vm1938, %v1776, 0.0
  %v2160 = vadd.f32 %v1158, %v2159
  %2161 = vadd.xlane.f32.xlu0 %v2160
  %v2162 = vpop.xlane.xlu0 %2161
  %v2163 = vsel %vm1938, %v1779, 0.0
  %v2164 = vadd.f32 %v1161, %v2163
  %2165 = vadd.xlane.f32.xlu0 %v2164
  %v2166 = vpop.xlane.xlu0 %2165
  %v2167 = vsel %vm1938, %v1781, 0.0
  %v2168 = vadd.f32 %v1163, %v2167
  %2169 = vadd.xlane.f32.xlu0 %v2168
  %v2170 = vpop.xlane.xlu0 %2169
  %v2171 = vsel %vm1938, %v1784, 0.0
  %v2172 = vadd.f32 %v1166, %v2171
  %2173 = vadd.xlane.f32.xlu0 %v2172
  %v2174 = vpop.xlane.xlu0 %2173
  %v2175 = vsel %vm1938, %v1786, 0.0
  %v2176 = vadd.f32 %v1168, %v2175
  %2177 = vadd.xlane.f32.xlu0 %v2176
  %v2178 = vpop.xlane.xlu0 %2177
  %v2179 = vsel %vm1938, %v1789, 0.0
  %v2180 = vadd.f32 %v1171, %v2179
  %2181 = vadd.xlane.f32.xlu0 %v2180
  %v2182 = vpop.xlane.xlu0 %2181
  %v2183 = vsel %vm1938, %v1791, 0.0
  %v2184 = vadd.f32 %v1173, %v2183
  %2185 = vadd.xlane.f32.xlu0 %v2184
  %v2186 = vpop.xlane.xlu0 %2185
  %v2187 = vsel %vm1938, %v1794, 0.0
  %v2188 = vadd.f32 %v1176, %v2187
  %2189 = vadd.xlane.f32.xlu0 %v2188
  %v2190 = vpop.xlane.xlu0 %2189
  %v2191 = vsel %vm1938, %v1796, 0.0
  %v2192 = vadd.f32 %v1178, %v2191
  %2193 = vadd.xlane.f32.xlu0 %v2192
  %v2194 = vpop.xlane.xlu0 %2193
  %v2195 = vsel %vm1938, %v1799, 0.0
  %v2196 = vadd.f32 %v1181, %v2195
  %2197 = vadd.xlane.f32.xlu0 %v2196
  %v2198 = vpop.xlane.xlu0 %2197
  %v2199 = vsel %vm1938, %v1801, 0.0
  %v2200 = vadd.f32 %v1183, %v2199
  %2201 = vadd.xlane.f32.xlu0 %v2200
  %v2202 = vpop.xlane.xlu0 %2201
  %v2203 = vsel %vm1938, %v1804, 0.0
  %v2204 = vadd.f32 %v1186, %v2203
  %2205 = vadd.xlane.f32.xlu0 %v2204
  %v2206 = vpop.xlane.xlu0 %2205
  %v2207 = vsel %vm1938, %v1806, 0.0
  %v2208 = vadd.f32 %v1188, %v2207
  %2209 = vadd.xlane.f32.xlu0 %v2208
  %v2210 = vpop.xlane.xlu0 %2209
  %v2211 = vsel %vm1938, %v1809, 0.0
  %v2212 = vadd.f32 %v1191, %v2211
  %2213 = vadd.xlane.f32.xlu0 %v2212
  %v2214 = vpop.xlane.xlu0 %2213
  %v2215 = vsel %vm1938, %v1811, 0.0
  %v2216 = vadd.f32 %v1193, %v2215
  %2217 = vadd.xlane.f32.xlu0 %v2216
  %v2218 = vpop.xlane.xlu0 %2217
  %v2219 = vsel %vm1938, %v1814, 0.0
  %v2220 = vadd.f32 %v1196, %v2219
  %2221 = vadd.xlane.f32.xlu0 %v2220
  %v2222 = vpop.xlane.xlu0 %2221
  %v2223 = vsel %vm1938, %v1816, 0.0
  %v2224 = vadd.f32 %v1198, %v2223
  %2225 = vadd.xlane.f32.xlu0 %v2224
  %v2226 = vpop.xlane.xlu0 %2225
  %v2227 = vsel %vm1938, %v1819, 0.0
  %v2228 = vadd.f32 %v1201, %v2227
  %2229 = vadd.xlane.f32.xlu0 %v2228
  %v2230 = vpop.xlane.xlu0 %2229
  %v2231 = vsel %vm1938, %v1821, 0.0
  %v2232 = vadd.f32 %v1203, %v2231
  %2233 = vadd.xlane.f32.xlu0 %v2232
  %v2234 = vpop.xlane.xlu0 %2233
  %v2235 = vsel %vm1938, %v1824, 0.0
  %v2236 = vadd.f32 %v1206, %v2235
  %2237 = vadd.xlane.f32.xlu0 %v2236
  %v2238 = vpop.xlane.xlu0 %2237
  %v2239 = vsel %vm1938, %v1826, 0.0
  %v2240 = vadd.f32 %v1208, %v2239
  %2241 = vadd.xlane.f32.xlu0 %v2240
  %v2242 = vpop.xlane.xlu0 %2241
  %v2243 = vsel %vm1938, %v1829, 0.0
  %v2244 = vadd.f32 %v1211, %v2243
  %2245 = vadd.xlane.f32.xlu0 %v2244
  %v2246 = vpop.xlane.xlu0 %2245
  %v2247 = vsel %vm1938, %v1831, 0.0
  %v2248 = vadd.f32 %v1213, %v2247
  %2249 = vadd.xlane.f32.xlu0 %v2248
  %v2250 = vpop.xlane.xlu0 %2249
  %v2251 = vsel %vm1938, %v1834, 0.0
  %v2252 = vadd.f32 %v1216, %v2251
  %2253 = vadd.xlane.f32.xlu0 %v2252
  %v2254 = vpop.xlane.xlu0 %2253
  %v2255 = vsel %vm1938, %v1836, 0.0
  %v2256 = vadd.f32 %v1218, %v2255
  %2257 = vadd.xlane.f32.xlu0 %v2256
  %v2258 = vpop.xlane.xlu0 %2257
  %v2259 = vsel %vm1938, %v1839, 0.0
  %v2260 = vadd.f32 %v1221, %v2259
  %2261 = vadd.xlane.f32.xlu0 %v2260
  %v2262 = vpop.xlane.xlu0 %2261
  %v2263 = vsel %vm1938, %v1841, 0.0
  %v2264 = vadd.f32 %v1223, %v2263
  %2265 = vadd.xlane.f32.xlu0 %v2264
  %v2266 = vpop.xlane.xlu0 %2265
  %v2267 = vsel %vm1938, %v1844, 0.0
  %v2268 = vadd.f32 %v1226, %v2267
  %2269 = vadd.xlane.f32.xlu0 %v2268
  %v2270 = vpop.xlane.xlu0 %2269
  %v2271 = vsel %vm1938, %v1846, 0.0
  %v2272 = vadd.f32 %v1228, %v2271
  %2273 = vadd.xlane.f32.xlu0 %v2272
  %v2274 = vpop.xlane.xlu0 %2273
  %v2275 = vsel %vm1938, %v1849, 0.0
  %v2276 = vadd.f32 %v1231, %v2275
  %2277 = vadd.xlane.f32.xlu0 %v2276
  %v2278 = vpop.xlane.xlu0 %2277
  %v2279 = vsel %vm1938, %v1851, 0.0
  %v2280 = vadd.f32 %v1233, %v2279
  %2281 = vadd.xlane.f32.xlu0 %v2280
  %v2282 = vpop.xlane.xlu0 %2281
  %v2283 = vsel %vm1938, %v1854, 0.0
  %v2284 = vadd.f32 %v1236, %v2283
  %2285 = vadd.xlane.f32.xlu0 %v2284
  %v2286 = vpop.xlane.xlu0 %2285
  %v2287 = vsel %vm1938, %v1856, 0.0
  %v2288 = vadd.f32 %v1238, %v2287
  %2289 = vadd.xlane.f32.xlu0 %v2288
  %v2290 = vpop.xlane.xlu0 %2289
  %v2291 = vsel %vm1938, %v1859, 0.0
  %v2292 = vadd.f32 %v1241, %v2291
  %2293 = vadd.xlane.f32.xlu0 %v2292
  %v2294 = vpop.xlane.xlu0 %2293
  %v2295 = vsel %vm1938, %v1861, 0.0
  %v2296 = vadd.f32 %v1243, %v2295
  %2297 = vadd.xlane.f32.xlu0 %v2296
  %v2298 = vpop.xlane.xlu0 %2297
  %v2299 = vsel %vm1938, %v1864, 0.0
  %v2300 = vadd.f32 %v1246, %v2299
  %2301 = vadd.xlane.f32.xlu0 %v2300
  %v2302 = vpop.xlane.xlu0 %2301
  %v2303 = vsel %vm1938, %v1866, 0.0
  %v2304 = vadd.f32 %v1248, %v2303
  %2305 = vadd.xlane.f32.xlu0 %v2304
  %v2306 = vpop.xlane.xlu0 %2305
  %v2307 = vsel %vm1938, %v1869, 0.0
  %v2308 = vadd.f32 %v1251, %v2307
  %2309 = vadd.xlane.f32.xlu0 %v2308
  %v2310 = vpop.xlane.xlu0 %2309
  %v2311 = vsel %vm1938, %v1871, 0.0
  %v2312 = vadd.f32 %v1253, %v2311
  %2313 = vadd.xlane.f32.xlu0 %v2312
  %v2314 = vpop.xlane.xlu0 %2313
  %v2315 = vsel %vm1938, %v1874, 0.0
  %v2316 = vadd.f32 %v1256, %v2315
  %2317 = vadd.xlane.f32.xlu0 %v2316
  %v2318 = vpop.xlane.xlu0 %2317
  %v2319 = vsel %vm1938, %v1876, 0.0
  %v2320 = vadd.f32 %v1258, %v2319
  %2321 = vadd.xlane.f32.xlu0 %v2320
  %v2322 = vpop.xlane.xlu0 %2321
  %v2323 = vsel %vm1938, %v1879, 0.0
  %v2324 = vadd.f32 %v1261, %v2323
  %2325 = vadd.xlane.f32.xlu0 %v2324
  %v2326 = vpop.xlane.xlu0 %2325
  %v2327 = vsel %vm1938, %v1881, 0.0
  %v2328 = vadd.f32 %v1263, %v2327
  %2329 = vadd.xlane.f32.xlu0 %v2328
  %v2330 = vpop.xlane.xlu0 %2329
  %v2331 = vsel %vm1938, %v1884, 0.0
  %v2332 = vadd.f32 %v1266, %v2331
  %2333 = vadd.xlane.f32.xlu0 %v2332
  %v2334 = vpop.xlane.xlu0 %2333
  %v2335 = vsel %vm1938, %v1886, 0.0
  %v2336 = vadd.f32 %v1268, %v2335
  %2337 = vadd.xlane.f32.xlu0 %v2336
  %v2338 = vpop.xlane.xlu0 %2337
  %v2339 = vsel %vm1938, %v1889, 0.0
  %v2340 = vadd.f32 %v1271, %v2339
  %2341 = vadd.xlane.f32.xlu0 %v2340
  %v2342 = vpop.xlane.xlu0 %2341
  %v2343 = vsel %vm1938, %v1891, 0.0
  %v2344 = vadd.f32 %v1273, %v2343
  %2345 = vadd.xlane.f32.xlu0 %v2344
  %v2346 = vpop.xlane.xlu0 %2345
  %v2347 = vsel %vm1938, %v1894, 0.0
  %v2348 = vadd.f32 %v1276, %v2347
  %2349 = vadd.xlane.f32.xlu0 %v2348
  %v2350 = vpop.xlane.xlu0 %2349
  %v2351 = vsel %vm1938, %v1896, 0.0
  %v2352 = vadd.f32 %v1278, %v2351
  %2353 = vadd.xlane.f32.xlu0 %v2352
  %v2354 = vpop.xlane.xlu0 %2353
  %v2355 = vsel %vm1938, %v1899, 0.0
  %v2356 = vadd.f32 %v1281, %v2355
  %2357 = vadd.xlane.f32.xlu0 %v2356
  %v2358 = vpop.xlane.xlu0 %2357
  %v2359 = vsel %vm1938, %v1901, 0.0
  %v2360 = vadd.f32 %v1283, %v2359
  %2361 = vadd.xlane.f32.xlu0 %v2360
  %v2362 = vpop.xlane.xlu0 %2361
  %v2363 = vsel %vm1938, %v1904, 0.0
  %v2364 = vadd.f32 %v1286, %v2363
  %2365 = vadd.xlane.f32.xlu0 %v2364
  %v2366 = vpop.xlane.xlu0 %2365
  %v2367 = vsel %vm1938, %v1906, 0.0
  %v2368 = vadd.f32 %v1288, %v2367
  %2369 = vadd.xlane.f32.xlu0 %v2368
  %v2370 = vpop.xlane.xlu0 %2369
  %v2371 = vsel %vm1938, %v1909, 0.0
  %v2372 = vadd.f32 %v1291, %v2371
  %2373 = vadd.xlane.f32.xlu0 %v2372
  %v2374 = vpop.xlane.xlu0 %2373
  %v2375 = vsel %vm1938, %v1911, 0.0
  %v2376 = vadd.f32 %v1293, %v2375
  %2377 = vadd.xlane.f32.xlu0 %v2376
  %v2378 = vpop.xlane.xlu0 %2377
  %v2379 = vsel %vm1938, %v1914, 0.0
  %v2380 = vadd.f32 %v1296, %v2379
  %2381 = vadd.xlane.f32.xlu0 %v2380
  %v2382 = vpop.xlane.xlu0 %2381
  %v2383 = vsel %vm1938, %v1916, 0.0
  %v2384 = vadd.f32 %v1298, %v2383
  %2385 = vadd.xlane.f32.xlu0 %v2384
  %v2386 = vpop.xlane.xlu0 %2385
  %v2387 = vsel %vm1938, %v1919, 0.0
  %v2388 = vadd.f32 %v1301, %v2387
  %2389 = vadd.xlane.f32.xlu0 %v2388
  %v2390 = vpop.xlane.xlu0 %2389
  %v2391 = vsel %vm1938, %v1921, 0.0
  %v2392 = vadd.f32 %v1303, %v2391
  %2393 = vadd.xlane.f32.xlu0 %v2392
  %v2394 = vpop.xlane.xlu0 %2393
  %v2395 = vsel %vm1938, %v1924, 0.0
  %v2396 = vadd.f32 %v1306, %v2395
  %2397 = vadd.xlane.f32.xlu0 %v2396
  %v2398 = vpop.xlane.xlu0 %2397
  %v2399 = vsel %vm1938, %v1926, 0.0
  %v2400 = vadd.f32 %v1308, %v2399
  %2401 = vadd.xlane.f32.xlu0 %v2400
  %v2402 = vpop.xlane.xlu0 %2401
  %v2403 = vsel %vm1938, %v1929, 0.0
  %v2404 = vadd.f32 %v1311, %v2403
  %2405 = vadd.xlane.f32.xlu0 %v2404
  %v2406 = vpop.xlane.xlu0 %2405
  %v2407 = vsel %vm1938, %v1931, 0.0
  %v2408 = vadd.f32 %v1313, %v2407
  %2409 = vadd.xlane.f32.xlu0 %v2408
  %v2410 = vpop.xlane.xlu0 %2409
  %v2411 = vsel %vm1938, %v1934, 0.0
  %v2412 = vadd.f32 %v1316, %v2411
  %2413 = vadd.xlane.f32.xlu0 %v2412
  %v2414 = vpop.xlane.xlu0 %2413
  %v2415 = vsel %vm1938, %v1936, 0.0
  %v2416 = vadd.f32 %v1318, %v2415
  %2417 = vadd.xlane.f32.xlu0 %v2416
  %v2418 = vpop.xlane.xlu0 %2417
  %v2419 = vmul.f32 %v1021, %v1021
  %v2420 = vmul.f32 %v1639, %v1639
  %v2421 = vmul.f32 %v1023, %v1023
  %v2422 = vmul.f32 %v1641, %v1641
  %v2423 = vmul.f32 %v1026, %v1026
  %v2424 = vmul.f32 %v1644, %v1644
  %v2425 = vmul.f32 %v1028, %v1028
  %v2426 = vmul.f32 %v1646, %v1646
  %v2427 = vmul.f32 %v1031, %v1031
  %v2428 = vmul.f32 %v1649, %v1649
  %v2429 = vmul.f32 %v1033, %v1033
  %v2430 = vmul.f32 %v1651, %v1651
  %v2431 = vmul.f32 %v1036, %v1036
  %v2432 = vmul.f32 %v1654, %v1654
  %v2433 = vmul.f32 %v1038, %v1038
  %v2434 = vmul.f32 %v1656, %v1656
  %v2435 = vmul.f32 %v1041, %v1041
  %v2436 = vmul.f32 %v1659, %v1659
  %v2437 = vmul.f32 %v1043, %v1043
  %v2438 = vmul.f32 %v1661, %v1661
  %v2439 = vmul.f32 %v1046, %v1046
  %v2440 = vmul.f32 %v1664, %v1664
  %v2441 = vmul.f32 %v1048, %v1048
  %v2442 = vmul.f32 %v1666, %v1666
  %v2443 = vmul.f32 %v1051, %v1051
  %v2444 = vmul.f32 %v1669, %v1669
  %v2445 = vmul.f32 %v1053, %v1053
  %v2446 = vmul.f32 %v1671, %v1671
  %v2447 = vmul.f32 %v1056, %v1056
  %v2448 = vmul.f32 %v1674, %v1674
  %v2449 = vmul.f32 %v1058, %v1058
  %v2450 = vmul.f32 %v1676, %v1676
  %v2451 = vmul.f32 %v1061, %v1061
  %v2452 = vmul.f32 %v1679, %v1679
  %v2453 = vmul.f32 %v1063, %v1063
  %v2454 = vmul.f32 %v1681, %v1681
  %v2455 = vmul.f32 %v1066, %v1066
  %v2456 = vmul.f32 %v1684, %v1684
  %v2457 = vmul.f32 %v1068, %v1068
  %v2458 = vmul.f32 %v1686, %v1686
  %v2459 = vmul.f32 %v1071, %v1071
  %v2460 = vmul.f32 %v1689, %v1689
  %v2461 = vmul.f32 %v1073, %v1073
  %v2462 = vmul.f32 %v1691, %v1691
  %v2463 = vmul.f32 %v1076, %v1076
  %v2464 = vmul.f32 %v1694, %v1694
  %v2465 = vmul.f32 %v1078, %v1078
  %v2466 = vmul.f32 %v1696, %v1696
  %v2467 = vmul.f32 %v1081, %v1081
  %v2468 = vmul.f32 %v1699, %v1699
  %v2469 = vmul.f32 %v1083, %v1083
  %v2470 = vmul.f32 %v1701, %v1701
  %v2471 = vmul.f32 %v1086, %v1086
  %v2472 = vmul.f32 %v1704, %v1704
  %v2473 = vmul.f32 %v1088, %v1088
  %v2474 = vmul.f32 %v1706, %v1706
  %v2475 = vmul.f32 %v1091, %v1091
  %v2476 = vmul.f32 %v1709, %v1709
  %v2477 = vmul.f32 %v1093, %v1093
  %v2478 = vmul.f32 %v1711, %v1711
  %v2479 = vmul.f32 %v1096, %v1096
  %v2480 = vmul.f32 %v1714, %v1714
  %v2481 = vmul.f32 %v1098, %v1098
  %v2482 = vmul.f32 %v1716, %v1716
  %v2483 = vmul.f32 %v1101, %v1101
  %v2484 = vmul.f32 %v1719, %v1719
  %v2485 = vmul.f32 %v1103, %v1103
  %v2486 = vmul.f32 %v1721, %v1721
  %v2487 = vmul.f32 %v1106, %v1106
  %v2488 = vmul.f32 %v1724, %v1724
  %v2489 = vmul.f32 %v1108, %v1108
  %v2490 = vmul.f32 %v1726, %v1726
  %v2491 = vmul.f32 %v1111, %v1111
  %v2492 = vmul.f32 %v1729, %v1729
  %v2493 = vmul.f32 %v1113, %v1113
  %v2494 = vmul.f32 %v1731, %v1731
  %v2495 = vmul.f32 %v1116, %v1116
  %v2496 = vmul.f32 %v1734, %v1734
  %v2497 = vmul.f32 %v1118, %v1118
  %v2498 = vmul.f32 %v1736, %v1736
  %v2499 = vmul.f32 %v1121, %v1121
  %v2500 = vmul.f32 %v1739, %v1739
  %v2501 = vmul.f32 %v1123, %v1123
  %v2502 = vmul.f32 %v1741, %v1741
  %v2503 = vmul.f32 %v1126, %v1126
  %v2504 = vmul.f32 %v1744, %v1744
  %v2505 = vmul.f32 %v1128, %v1128
  %v2506 = vmul.f32 %v1746, %v1746
  %v2507 = vmul.f32 %v1131, %v1131
  %v2508 = vmul.f32 %v1749, %v1749
  %v2509 = vmul.f32 %v1133, %v1133
  %v2510 = vmul.f32 %v1751, %v1751
  %v2511 = vmul.f32 %v1136, %v1136
  %v2512 = vmul.f32 %v1754, %v1754
  %v2513 = vmul.f32 %v1138, %v1138
  %v2514 = vmul.f32 %v1756, %v1756
  %v2515 = vmul.f32 %v1141, %v1141
  %v2516 = vmul.f32 %v1759, %v1759
  %v2517 = vmul.f32 %v1143, %v1143
  %v2518 = vmul.f32 %v1761, %v1761
  %v2519 = vmul.f32 %v1146, %v1146
  %v2520 = vmul.f32 %v1764, %v1764
  %v2521 = vmul.f32 %v1148, %v1148
  %v2522 = vmul.f32 %v1766, %v1766
  %v2523 = vmul.f32 %v1151, %v1151
  %v2524 = vmul.f32 %v1769, %v1769
  %v2525 = vmul.f32 %v1153, %v1153
  %v2526 = vmul.f32 %v1771, %v1771
  %v2527 = vmul.f32 %v1156, %v1156
  %v2528 = vmul.f32 %v1774, %v1774
  %v2529 = vmul.f32 %v1158, %v1158
  %v2530 = vmul.f32 %v1776, %v1776
  %v2531 = vmul.f32 %v1161, %v1161
  %v2532 = vmul.f32 %v1779, %v1779
  %v2533 = vmul.f32 %v1163, %v1163
  %v2534 = vmul.f32 %v1781, %v1781
  %v2535 = vmul.f32 %v1166, %v1166
  %v2536 = vmul.f32 %v1784, %v1784
  %v2537 = vmul.f32 %v1168, %v1168
  %v2538 = vmul.f32 %v1786, %v1786
  %v2539 = vmul.f32 %v1171, %v1171
  %v2540 = vmul.f32 %v1789, %v1789
  %v2541 = vmul.f32 %v1173, %v1173
  %v2542 = vmul.f32 %v1791, %v1791
  %v2543 = vmul.f32 %v1176, %v1176
  %v2544 = vmul.f32 %v1794, %v1794
  %v2545 = vmul.f32 %v1178, %v1178
  %v2546 = vmul.f32 %v1796, %v1796
  %v2547 = vmul.f32 %v1181, %v1181
  %v2548 = vmul.f32 %v1799, %v1799
  %v2549 = vmul.f32 %v1183, %v1183
  %v2550 = vmul.f32 %v1801, %v1801
  %v2551 = vmul.f32 %v1186, %v1186
  %v2552 = vmul.f32 %v1804, %v1804
  %v2553 = vmul.f32 %v1188, %v1188
  %v2554 = vmul.f32 %v1806, %v1806
  %v2555 = vmul.f32 %v1191, %v1191
  %v2556 = vmul.f32 %v1809, %v1809
  %v2557 = vmul.f32 %v1193, %v1193
  %v2558 = vmul.f32 %v1811, %v1811
  %v2559 = vmul.f32 %v1196, %v1196
  %v2560 = vmul.f32 %v1814, %v1814
  %v2561 = vmul.f32 %v1198, %v1198
  %v2562 = vmul.f32 %v1816, %v1816
  %v2563 = vmul.f32 %v1201, %v1201
  %v2564 = vmul.f32 %v1819, %v1819
  %v2565 = vmul.f32 %v1203, %v1203
  %v2566 = vmul.f32 %v1821, %v1821
  %v2567 = vmul.f32 %v1206, %v1206
  %v2568 = vmul.f32 %v1824, %v1824
  %v2569 = vmul.f32 %v1208, %v1208
  %v2570 = vmul.f32 %v1826, %v1826
  %v2571 = vmul.f32 %v1211, %v1211
  %v2572 = vmul.f32 %v1829, %v1829
  %v2573 = vmul.f32 %v1213, %v1213
  %v2574 = vmul.f32 %v1831, %v1831
  %v2575 = vmul.f32 %v1216, %v1216
  %v2576 = vmul.f32 %v1834, %v1834
  %v2577 = vmul.f32 %v1218, %v1218
  %v2578 = vmul.f32 %v1836, %v1836
  %v2579 = vmul.f32 %v1221, %v1221
  %v2580 = vmul.f32 %v1839, %v1839
  %v2581 = vmul.f32 %v1223, %v1223
  %v2582 = vmul.f32 %v1841, %v1841
  %v2583 = vmul.f32 %v1226, %v1226
  %v2584 = vmul.f32 %v1844, %v1844
  %v2585 = vmul.f32 %v1228, %v1228
  %v2586 = vmul.f32 %v1846, %v1846
  %v2587 = vmul.f32 %v1231, %v1231
  %v2588 = vmul.f32 %v1849, %v1849
  %v2589 = vmul.f32 %v1233, %v1233
  %v2590 = vmul.f32 %v1851, %v1851
  %v2591 = vmul.f32 %v1236, %v1236
  %v2592 = vmul.f32 %v1854, %v1854
  %v2593 = vmul.f32 %v1238, %v1238
  %v2594 = vmul.f32 %v1856, %v1856
  %v2595 = vmul.f32 %v1241, %v1241
  %v2596 = vmul.f32 %v1859, %v1859
  %v2597 = vmul.f32 %v1243, %v1243
  %v2598 = vmul.f32 %v1861, %v1861
  %v2599 = vmul.f32 %v1246, %v1246
  %v2600 = vmul.f32 %v1864, %v1864
  %v2601 = vmul.f32 %v1248, %v1248
  %v2602 = vmul.f32 %v1866, %v1866
  %v2603 = vmul.f32 %v1251, %v1251
  %v2604 = vmul.f32 %v1869, %v1869
  %v2605 = vmul.f32 %v1253, %v1253
  %v2606 = vmul.f32 %v1871, %v1871
  %v2607 = vmul.f32 %v1256, %v1256
  %v2608 = vmul.f32 %v1874, %v1874
  %v2609 = vmul.f32 %v1258, %v1258
  %v2610 = vmul.f32 %v1876, %v1876
  %v2611 = vmul.f32 %v1261, %v1261
  %v2612 = vmul.f32 %v1879, %v1879
  %v2613 = vmul.f32 %v1263, %v1263
  %v2614 = vmul.f32 %v1881, %v1881
  %v2615 = vmul.f32 %v1266, %v1266
  %v2616 = vmul.f32 %v1884, %v1884
  %v2617 = vmul.f32 %v1268, %v1268
  %v2618 = vmul.f32 %v1886, %v1886
  %v2619 = vmul.f32 %v1271, %v1271
  %v2620 = vmul.f32 %v1889, %v1889
  %v2621 = vmul.f32 %v1273, %v1273
  %v2622 = vmul.f32 %v1891, %v1891
  %v2623 = vmul.f32 %v1276, %v1276
  %v2624 = vmul.f32 %v1894, %v1894
  %v2625 = vmul.f32 %v1278, %v1278
  %v2626 = vmul.f32 %v1896, %v1896
  %v2627 = vmul.f32 %v1281, %v1281
  %v2628 = vmul.f32 %v1899, %v1899
  %v2629 = vmul.f32 %v1283, %v1283
  %v2630 = vmul.f32 %v1901, %v1901
  %v2631 = vmul.f32 %v1286, %v1286
  %v2632 = vmul.f32 %v1904, %v1904
  %v2633 = vmul.f32 %v1288, %v1288
  %v2634 = vmul.f32 %v1906, %v1906
  %v2635 = vmul.f32 %v1291, %v1291
  %v2636 = vmul.f32 %v1909, %v1909
  %v2637 = vmul.f32 %v1293, %v1293
  %v2638 = vmul.f32 %v1911, %v1911
  %v2639 = vmul.f32 %v1296, %v1296
  %v2640 = vmul.f32 %v1914, %v1914
  %v2641 = vmul.f32 %v1298, %v1298
  %v2642 = vmul.f32 %v1916, %v1916
  %v2643 = vmul.f32 %v1301, %v1301
  %v2644 = vmul.f32 %v1919, %v1919
  %v2645 = vmul.f32 %v1303, %v1303
  %v2646 = vmul.f32 %v1921, %v1921
  %v2647 = vmul.f32 %v1306, %v1306
  %v2648 = vmul.f32 %v1924, %v1924
  %v2649 = vmul.f32 %v1308, %v1308
  %v2650 = vmul.f32 %v1926, %v1926
  %v2651 = vmul.f32 %v1311, %v1311
  %v2652 = vmul.f32 %v1929, %v1929
  %v2653 = vmul.f32 %v1313, %v1313
  %v2654 = vmul.f32 %v1931, %v1931
  %v2655 = vmul.f32 %v1316, %v1316
  %v2656 = vmul.f32 %v1934, %v1934
  %v2657 = vmul.f32 %v1318, %v1318
  %v2658 = vmul.f32 %v1936, %v1936
  %v2659 = vsel %vm1938, %v2420, 0.0
  %v2660 = vadd.f32 %v2419, %v2659
  %2661 = vadd.xlane.f32.xlu0 %v2660
  %v2662 = vpop.xlane.xlu0 %2661
  %v2663 = vsel %vm1938, %v2422, 0.0
  %v2664 = vadd.f32 %v2421, %v2663
  %2665 = vadd.xlane.f32.xlu0 %v2664
  %v2666 = vpop.xlane.xlu0 %2665
  %v2667 = vsel %vm1938, %v2424, 0.0
  %v2668 = vadd.f32 %v2423, %v2667
  %2669 = vadd.xlane.f32.xlu0 %v2668
  %v2670 = vpop.xlane.xlu0 %2669
  %v2671 = vsel %vm1938, %v2426, 0.0
  %v2672 = vadd.f32 %v2425, %v2671
  %2673 = vadd.xlane.f32.xlu0 %v2672
  %v2674 = vpop.xlane.xlu0 %2673
  %v2675 = vsel %vm1938, %v2428, 0.0
  %v2676 = vadd.f32 %v2427, %v2675
  %2677 = vadd.xlane.f32.xlu0 %v2676
  %v2678 = vpop.xlane.xlu0 %2677
  %v2679 = vsel %vm1938, %v2430, 0.0
  %v2680 = vadd.f32 %v2429, %v2679
  %2681 = vadd.xlane.f32.xlu0 %v2680
  %v2682 = vpop.xlane.xlu0 %2681
  %v2683 = vsel %vm1938, %v2432, 0.0
  %v2684 = vadd.f32 %v2431, %v2683
  %2685 = vadd.xlane.f32.xlu0 %v2684
  %v2686 = vpop.xlane.xlu0 %2685
  %v2687 = vsel %vm1938, %v2434, 0.0
  %v2688 = vadd.f32 %v2433, %v2687
  %2689 = vadd.xlane.f32.xlu0 %v2688
  %v2690 = vpop.xlane.xlu0 %2689
  %v2691 = vsel %vm1938, %v2436, 0.0
  %v2692 = vadd.f32 %v2435, %v2691
  %2693 = vadd.xlane.f32.xlu0 %v2692
  %v2694 = vpop.xlane.xlu0 %2693
  %v2695 = vsel %vm1938, %v2438, 0.0
  %v2696 = vadd.f32 %v2437, %v2695
  %2697 = vadd.xlane.f32.xlu0 %v2696
  %v2698 = vpop.xlane.xlu0 %2697
  %v2699 = vsel %vm1938, %v2440, 0.0
  %v2700 = vadd.f32 %v2439, %v2699
  %2701 = vadd.xlane.f32.xlu0 %v2700
  %v2702 = vpop.xlane.xlu0 %2701
  %v2703 = vsel %vm1938, %v2442, 0.0
  %v2704 = vadd.f32 %v2441, %v2703
  %2705 = vadd.xlane.f32.xlu0 %v2704
  %v2706 = vpop.xlane.xlu0 %2705
  %v2707 = vsel %vm1938, %v2444, 0.0
  %v2708 = vadd.f32 %v2443, %v2707
  %2709 = vadd.xlane.f32.xlu0 %v2708
  %v2710 = vpop.xlane.xlu0 %2709
  %v2711 = vsel %vm1938, %v2446, 0.0
  %v2712 = vadd.f32 %v2445, %v2711
  %2713 = vadd.xlane.f32.xlu0 %v2712
  %v2714 = vpop.xlane.xlu0 %2713
  %v2715 = vsel %vm1938, %v2448, 0.0
  %v2716 = vadd.f32 %v2447, %v2715
  %2717 = vadd.xlane.f32.xlu0 %v2716
  %v2718 = vpop.xlane.xlu0 %2717
  %v2719 = vsel %vm1938, %v2450, 0.0
  %v2720 = vadd.f32 %v2449, %v2719
  %2721 = vadd.xlane.f32.xlu0 %v2720
  %v2722 = vpop.xlane.xlu0 %2721
  %v2723 = vsel %vm1938, %v2452, 0.0
  %v2724 = vadd.f32 %v2451, %v2723
  %2725 = vadd.xlane.f32.xlu0 %v2724
  %v2726 = vpop.xlane.xlu0 %2725
  %v2727 = vsel %vm1938, %v2454, 0.0
  %v2728 = vadd.f32 %v2453, %v2727
  %2729 = vadd.xlane.f32.xlu0 %v2728
  %v2730 = vpop.xlane.xlu0 %2729
  %v2731 = vsel %vm1938, %v2456, 0.0
  %v2732 = vadd.f32 %v2455, %v2731
  %2733 = vadd.xlane.f32.xlu0 %v2732
  %v2734 = vpop.xlane.xlu0 %2733
  %v2735 = vsel %vm1938, %v2458, 0.0
  %v2736 = vadd.f32 %v2457, %v2735
  %2737 = vadd.xlane.f32.xlu0 %v2736
  %v2738 = vpop.xlane.xlu0 %2737
  %v2739 = vsel %vm1938, %v2460, 0.0
  %v2740 = vadd.f32 %v2459, %v2739
  %2741 = vadd.xlane.f32.xlu0 %v2740
  %v2742 = vpop.xlane.xlu0 %2741
  %v2743 = vsel %vm1938, %v2462, 0.0
  %v2744 = vadd.f32 %v2461, %v2743
  %2745 = vadd.xlane.f32.xlu0 %v2744
  %v2746 = vpop.xlane.xlu0 %2745
  %v2747 = vsel %vm1938, %v2464, 0.0
  %v2748 = vadd.f32 %v2463, %v2747
  %2749 = vadd.xlane.f32.xlu0 %v2748
  %v2750 = vpop.xlane.xlu0 %2749
  %v2751 = vsel %vm1938, %v2466, 0.0
  %v2752 = vadd.f32 %v2465, %v2751
  %2753 = vadd.xlane.f32.xlu0 %v2752
  %v2754 = vpop.xlane.xlu0 %2753
  %v2755 = vsel %vm1938, %v2468, 0.0
  %v2756 = vadd.f32 %v2467, %v2755
  %2757 = vadd.xlane.f32.xlu0 %v2756
  %v2758 = vpop.xlane.xlu0 %2757
  %v2759 = vsel %vm1938, %v2470, 0.0
  %v2760 = vadd.f32 %v2469, %v2759
  %2761 = vadd.xlane.f32.xlu0 %v2760
  %v2762 = vpop.xlane.xlu0 %2761
  %v2763 = vsel %vm1938, %v2472, 0.0
  %v2764 = vadd.f32 %v2471, %v2763
  %2765 = vadd.xlane.f32.xlu0 %v2764
  %v2766 = vpop.xlane.xlu0 %2765
  %v2767 = vsel %vm1938, %v2474, 0.0
  %v2768 = vadd.f32 %v2473, %v2767
  %2769 = vadd.xlane.f32.xlu0 %v2768
  %v2770 = vpop.xlane.xlu0 %2769
  %v2771 = vsel %vm1938, %v2476, 0.0
  %v2772 = vadd.f32 %v2475, %v2771
  %2773 = vadd.xlane.f32.xlu0 %v2772
  %v2774 = vpop.xlane.xlu0 %2773
  %v2775 = vsel %vm1938, %v2478, 0.0
  %v2776 = vadd.f32 %v2477, %v2775
  %2777 = vadd.xlane.f32.xlu0 %v2776
  %v2778 = vpop.xlane.xlu0 %2777
  %v2779 = vsel %vm1938, %v2480, 0.0
  %v2780 = vadd.f32 %v2479, %v2779
  %2781 = vadd.xlane.f32.xlu0 %v2780
  %v2782 = vpop.xlane.xlu0 %2781
  %v2783 = vsel %vm1938, %v2482, 0.0
  %v2784 = vadd.f32 %v2481, %v2783
  %2785 = vadd.xlane.f32.xlu0 %v2784
  %v2786 = vpop.xlane.xlu0 %2785
  %v2787 = vsel %vm1938, %v2484, 0.0
  %v2788 = vadd.f32 %v2483, %v2787
  %2789 = vadd.xlane.f32.xlu0 %v2788
  %v2790 = vpop.xlane.xlu0 %2789
  %v2791 = vsel %vm1938, %v2486, 0.0
  %v2792 = vadd.f32 %v2485, %v2791
  %2793 = vadd.xlane.f32.xlu0 %v2792
  %v2794 = vpop.xlane.xlu0 %2793
  %v2795 = vsel %vm1938, %v2488, 0.0
  %v2796 = vadd.f32 %v2487, %v2795
  %2797 = vadd.xlane.f32.xlu0 %v2796
  %v2798 = vpop.xlane.xlu0 %2797
  %v2799 = vsel %vm1938, %v2490, 0.0
  %v2800 = vadd.f32 %v2489, %v2799
  %2801 = vadd.xlane.f32.xlu0 %v2800
  %v2802 = vpop.xlane.xlu0 %2801
  %v2803 = vsel %vm1938, %v2492, 0.0
  %v2804 = vadd.f32 %v2491, %v2803
  %2805 = vadd.xlane.f32.xlu0 %v2804
  %v2806 = vpop.xlane.xlu0 %2805
  %v2807 = vsel %vm1938, %v2494, 0.0
  %v2808 = vadd.f32 %v2493, %v2807
  %2809 = vadd.xlane.f32.xlu0 %v2808
  %v2810 = vpop.xlane.xlu0 %2809
  %v2811 = vsel %vm1938, %v2496, 0.0
  %v2812 = vadd.f32 %v2495, %v2811
  %2813 = vadd.xlane.f32.xlu0 %v2812
  %v2814 = vpop.xlane.xlu0 %2813
  %v2815 = vsel %vm1938, %v2498, 0.0
  %v2816 = vadd.f32 %v2497, %v2815
  %2817 = vadd.xlane.f32.xlu0 %v2816
  %v2818 = vpop.xlane.xlu0 %2817
  %v2819 = vsel %vm1938, %v2500, 0.0
  %v2820 = vadd.f32 %v2499, %v2819
  %2821 = vadd.xlane.f32.xlu0 %v2820
  %v2822 = vpop.xlane.xlu0 %2821
  %v2823 = vsel %vm1938, %v2502, 0.0
  %v2824 = vadd.f32 %v2501, %v2823
  %2825 = vadd.xlane.f32.xlu0 %v2824
  %v2826 = vpop.xlane.xlu0 %2825
  %v2827 = vsel %vm1938, %v2504, 0.0
  %v2828 = vadd.f32 %v2503, %v2827
  %2829 = vadd.xlane.f32.xlu0 %v2828
  %v2830 = vpop.xlane.xlu0 %2829
  %v2831 = vsel %vm1938, %v2506, 0.0
  %v2832 = vadd.f32 %v2505, %v2831
  %2833 = vadd.xlane.f32.xlu0 %v2832
  %v2834 = vpop.xlane.xlu0 %2833
  %v2835 = vsel %vm1938, %v2508, 0.0
  %v2836 = vadd.f32 %v2507, %v2835
  %2837 = vadd.xlane.f32.xlu0 %v2836
  %v2838 = vpop.xlane.xlu0 %2837
  %v2839 = vsel %vm1938, %v2510, 0.0
  %v2840 = vadd.f32 %v2509, %v2839
  %2841 = vadd.xlane.f32.xlu0 %v2840
  %v2842 = vpop.xlane.xlu0 %2841
  %v2843 = vsel %vm1938, %v2512, 0.0
  %v2844 = vadd.f32 %v2511, %v2843
  %2845 = vadd.xlane.f32.xlu0 %v2844
  %v2846 = vpop.xlane.xlu0 %2845
  %v2847 = vsel %vm1938, %v2514, 0.0
  %v2848 = vadd.f32 %v2513, %v2847
  %2849 = vadd.xlane.f32.xlu0 %v2848
  %v2850 = vpop.xlane.xlu0 %2849
  %v2851 = vsel %vm1938, %v2516, 0.0
  %v2852 = vadd.f32 %v2515, %v2851
  %2853 = vadd.xlane.f32.xlu0 %v2852
  %v2854 = vpop.xlane.xlu0 %2853
  %v2855 = vsel %vm1938, %v2518, 0.0
  %v2856 = vadd.f32 %v2517, %v2855
  %2857 = vadd.xlane.f32.xlu0 %v2856
  %v2858 = vpop.xlane.xlu0 %2857
  %v2859 = vsel %vm1938, %v2520, 0.0
  %v2860 = vadd.f32 %v2519, %v2859
  %2861 = vadd.xlane.f32.xlu0 %v2860
  %v2862 = vpop.xlane.xlu0 %2861
  %v2863 = vsel %vm1938, %v2522, 0.0
  %v2864 = vadd.f32 %v2521, %v2863
  %2865 = vadd.xlane.f32.xlu0 %v2864
  %v2866 = vpop.xlane.xlu0 %2865
  %v2867 = vsel %vm1938, %v2524, 0.0
  %v2868 = vadd.f32 %v2523, %v2867
  %2869 = vadd.xlane.f32.xlu0 %v2868
  %v2870 = vpop.xlane.xlu0 %2869
  %v2871 = vsel %vm1938, %v2526, 0.0
  %v2872 = vadd.f32 %v2525, %v2871
  %2873 = vadd.xlane.f32.xlu0 %v2872
  %v2874 = vpop.xlane.xlu0 %2873
  %v2875 = vsel %vm1938, %v2528, 0.0
  %v2876 = vadd.f32 %v2527, %v2875
  %2877 = vadd.xlane.f32.xlu0 %v2876
  %v2878 = vpop.xlane.xlu0 %2877
  %v2879 = vsel %vm1938, %v2530, 0.0
  %v2880 = vadd.f32 %v2529, %v2879
  %2881 = vadd.xlane.f32.xlu0 %v2880
  %v2882 = vpop.xlane.xlu0 %2881
  %v2883 = vsel %vm1938, %v2532, 0.0
  %v2884 = vadd.f32 %v2531, %v2883
  %2885 = vadd.xlane.f32.xlu0 %v2884
  %v2886 = vpop.xlane.xlu0 %2885
  %v2887 = vsel %vm1938, %v2534, 0.0
  %v2888 = vadd.f32 %v2533, %v2887
  %2889 = vadd.xlane.f32.xlu0 %v2888
  %v2890 = vpop.xlane.xlu0 %2889
  %v2891 = vsel %vm1938, %v2536, 0.0
  %v2892 = vadd.f32 %v2535, %v2891
  %2893 = vadd.xlane.f32.xlu0 %v2892
  %v2894 = vpop.xlane.xlu0 %2893
  %v2895 = vsel %vm1938, %v2538, 0.0
  %v2896 = vadd.f32 %v2537, %v2895
  %2897 = vadd.xlane.f32.xlu0 %v2896
  %v2898 = vpop.xlane.xlu0 %2897
  %v2899 = vsel %vm1938, %v2540, 0.0
  %v2900 = vadd.f32 %v2539, %v2899
  %2901 = vadd.xlane.f32.xlu0 %v2900
  %v2902 = vpop.xlane.xlu0 %2901
  %v2903 = vsel %vm1938, %v2542, 0.0
  %v2904 = vadd.f32 %v2541, %v2903
  %2905 = vadd.xlane.f32.xlu0 %v2904
  %v2906 = vpop.xlane.xlu0 %2905
  %v2907 = vsel %vm1938, %v2544, 0.0
  %v2908 = vadd.f32 %v2543, %v2907
  %2909 = vadd.xlane.f32.xlu0 %v2908
  %v2910 = vpop.xlane.xlu0 %2909
  %v2911 = vsel %vm1938, %v2546, 0.0
  %v2912 = vadd.f32 %v2545, %v2911
  %2913 = vadd.xlane.f32.xlu0 %v2912
  %v2914 = vpop.xlane.xlu0 %2913
  %v2915 = vsel %vm1938, %v2548, 0.0
  %v2916 = vadd.f32 %v2547, %v2915
  %2917 = vadd.xlane.f32.xlu0 %v2916
  %v2918 = vpop.xlane.xlu0 %2917
  %v2919 = vsel %vm1938, %v2550, 0.0
  %v2920 = vadd.f32 %v2549, %v2919
  %2921 = vadd.xlane.f32.xlu0 %v2920
  %v2922 = vpop.xlane.xlu0 %2921
  %v2923 = vsel %vm1938, %v2552, 0.0
  %v2924 = vadd.f32 %v2551, %v2923
  %2925 = vadd.xlane.f32.xlu0 %v2924
  %v2926 = vpop.xlane.xlu0 %2925
  %v2927 = vsel %vm1938, %v2554, 0.0
  %v2928 = vadd.f32 %v2553, %v2927
  %2929 = vadd.xlane.f32.xlu0 %v2928
  %v2930 = vpop.xlane.xlu0 %2929
  %v2931 = vsel %vm1938, %v2556, 0.0
  %v2932 = vadd.f32 %v2555, %v2931
  %2933 = vadd.xlane.f32.xlu0 %v2932
  %v2934 = vpop.xlane.xlu0 %2933
  %v2935 = vsel %vm1938, %v2558, 0.0
  %v2936 = vadd.f32 %v2557, %v2935
  %2937 = vadd.xlane.f32.xlu0 %v2936
  %v2938 = vpop.xlane.xlu0 %2937
  %v2939 = vsel %vm1938, %v2560, 0.0
  %v2940 = vadd.f32 %v2559, %v2939
  %2941 = vadd.xlane.f32.xlu0 %v2940
  %v2942 = vpop.xlane.xlu0 %2941
  %v2943 = vsel %vm1938, %v2562, 0.0
  %v2944 = vadd.f32 %v2561, %v2943
  %2945 = vadd.xlane.f32.xlu0 %v2944
  %v2946 = vpop.xlane.xlu0 %2945
  %v2947 = vsel %vm1938, %v2564, 0.0
  %v2948 = vadd.f32 %v2563, %v2947
  %2949 = vadd.xlane.f32.xlu0 %v2948
  %v2950 = vpop.xlane.xlu0 %2949
  %v2951 = vsel %vm1938, %v2566, 0.0
  %v2952 = vadd.f32 %v2565, %v2951
  %2953 = vadd.xlane.f32.xlu0 %v2952
  %v2954 = vpop.xlane.xlu0 %2953
  %v2955 = vsel %vm1938, %v2568, 0.0
  %v2956 = vadd.f32 %v2567, %v2955
  %2957 = vadd.xlane.f32.xlu0 %v2956
  %v2958 = vpop.xlane.xlu0 %2957
  %v2959 = vsel %vm1938, %v2570, 0.0
  %v2960 = vadd.f32 %v2569, %v2959
  %2961 = vadd.xlane.f32.xlu0 %v2960
  %v2962 = vpop.xlane.xlu0 %2961
  %v2963 = vsel %vm1938, %v2572, 0.0
  %v2964 = vadd.f32 %v2571, %v2963
  %2965 = vadd.xlane.f32.xlu0 %v2964
  %v2966 = vpop.xlane.xlu0 %2965
  %v2967 = vsel %vm1938, %v2574, 0.0
  %v2968 = vadd.f32 %v2573, %v2967
  %2969 = vadd.xlane.f32.xlu0 %v2968
  %v2970 = vpop.xlane.xlu0 %2969
  %v2971 = vsel %vm1938, %v2576, 0.0
  %v2972 = vadd.f32 %v2575, %v2971
  %2973 = vadd.xlane.f32.xlu0 %v2972
  %v2974 = vpop.xlane.xlu0 %2973
  %v2975 = vsel %vm1938, %v2578, 0.0
  %v2976 = vadd.f32 %v2577, %v2975
  %2977 = vadd.xlane.f32.xlu0 %v2976
  %v2978 = vpop.xlane.xlu0 %2977
  %v2979 = vsel %vm1938, %v2580, 0.0
  %v2980 = vadd.f32 %v2579, %v2979
  %2981 = vadd.xlane.f32.xlu0 %v2980
  %v2982 = vpop.xlane.xlu0 %2981
  %v2983 = vsel %vm1938, %v2582, 0.0
  %v2984 = vadd.f32 %v2581, %v2983
  %2985 = vadd.xlane.f32.xlu0 %v2984
  %v2986 = vpop.xlane.xlu0 %2985
  %v2987 = vsel %vm1938, %v2584, 0.0
  %v2988 = vadd.f32 %v2583, %v2987
  %2989 = vadd.xlane.f32.xlu0 %v2988
  %v2990 = vpop.xlane.xlu0 %2989
  %v2991 = vsel %vm1938, %v2586, 0.0
  %v2992 = vadd.f32 %v2585, %v2991
  %2993 = vadd.xlane.f32.xlu0 %v2992
  %v2994 = vpop.xlane.xlu0 %2993
  %v2995 = vsel %vm1938, %v2588, 0.0
  %v2996 = vadd.f32 %v2587, %v2995
  %2997 = vadd.xlane.f32.xlu0 %v2996
  %v2998 = vpop.xlane.xlu0 %2997
  %v2999 = vsel %vm1938, %v2590, 0.0
  %v3000 = vadd.f32 %v2589, %v2999
  %3001 = vadd.xlane.f32.xlu0 %v3000
  %v3002 = vpop.xlane.xlu0 %3001
  %v3003 = vsel %vm1938, %v2592, 0.0
  %v3004 = vadd.f32 %v2591, %v3003
  %3005 = vadd.xlane.f32.xlu0 %v3004
  %v3006 = vpop.xlane.xlu0 %3005
  %v3007 = vsel %vm1938, %v2594, 0.0
  %v3008 = vadd.f32 %v2593, %v3007
  %3009 = vadd.xlane.f32.xlu0 %v3008
  %v3010 = vpop.xlane.xlu0 %3009
  %v3011 = vsel %vm1938, %v2596, 0.0
  %v3012 = vadd.f32 %v2595, %v3011
  %3013 = vadd.xlane.f32.xlu0 %v3012
  %v3014 = vpop.xlane.xlu0 %3013
  %v3015 = vsel %vm1938, %v2598, 0.0
  %v3016 = vadd.f32 %v2597, %v3015
  %3017 = vadd.xlane.f32.xlu0 %v3016
  %v3018 = vpop.xlane.xlu0 %3017
  %v3019 = vsel %vm1938, %v2600, 0.0
  %v3020 = vadd.f32 %v2599, %v3019
  %3021 = vadd.xlane.f32.xlu0 %v3020
  %v3022 = vpop.xlane.xlu0 %3021
  %v3023 = vsel %vm1938, %v2602, 0.0
  %v3024 = vadd.f32 %v2601, %v3023
  %3025 = vadd.xlane.f32.xlu0 %v3024
  %v3026 = vpop.xlane.xlu0 %3025
  %v3027 = vsel %vm1938, %v2604, 0.0
  %v3028 = vadd.f32 %v2603, %v3027
  %3029 = vadd.xlane.f32.xlu0 %v3028
  %v3030 = vpop.xlane.xlu0 %3029
  %v3031 = vsel %vm1938, %v2606, 0.0
  %v3032 = vadd.f32 %v2605, %v3031
  %3033 = vadd.xlane.f32.xlu0 %v3032
  %v3034 = vpop.xlane.xlu0 %3033
  %v3035 = vsel %vm1938, %v2608, 0.0
  %v3036 = vadd.f32 %v2607, %v3035
  %3037 = vadd.xlane.f32.xlu0 %v3036
  %v3038 = vpop.xlane.xlu0 %3037
  %v3039 = vsel %vm1938, %v2610, 0.0
  %v3040 = vadd.f32 %v2609, %v3039
  %3041 = vadd.xlane.f32.xlu0 %v3040
  %v3042 = vpop.xlane.xlu0 %3041
  %v3043 = vsel %vm1938, %v2612, 0.0
  %v3044 = vadd.f32 %v2611, %v3043
  %3045 = vadd.xlane.f32.xlu0 %v3044
  %v3046 = vpop.xlane.xlu0 %3045
  %v3047 = vsel %vm1938, %v2614, 0.0
  %v3048 = vadd.f32 %v2613, %v3047
  %3049 = vadd.xlane.f32.xlu0 %v3048
  %v3050 = vpop.xlane.xlu0 %3049
  %v3051 = vsel %vm1938, %v2616, 0.0
  %v3052 = vadd.f32 %v2615, %v3051
  %3053 = vadd.xlane.f32.xlu0 %v3052
  %v3054 = vpop.xlane.xlu0 %3053
  %v3055 = vsel %vm1938, %v2618, 0.0
  %v3056 = vadd.f32 %v2617, %v3055
  %3057 = vadd.xlane.f32.xlu0 %v3056
  %v3058 = vpop.xlane.xlu0 %3057
  %v3059 = vsel %vm1938, %v2620, 0.0
  %v3060 = vadd.f32 %v2619, %v3059
  %3061 = vadd.xlane.f32.xlu0 %v3060
  %v3062 = vpop.xlane.xlu0 %3061
  %v3063 = vsel %vm1938, %v2622, 0.0
  %v3064 = vadd.f32 %v2621, %v3063
  %3065 = vadd.xlane.f32.xlu0 %v3064
  %v3066 = vpop.xlane.xlu0 %3065
  %v3067 = vsel %vm1938, %v2624, 0.0
  %v3068 = vadd.f32 %v2623, %v3067
  %3069 = vadd.xlane.f32.xlu0 %v3068
  %v3070 = vpop.xlane.xlu0 %3069
  %v3071 = vsel %vm1938, %v2626, 0.0
  %v3072 = vadd.f32 %v2625, %v3071
  %3073 = vadd.xlane.f32.xlu0 %v3072
  %v3074 = vpop.xlane.xlu0 %3073
  %v3075 = vsel %vm1938, %v2628, 0.0
  %v3076 = vadd.f32 %v2627, %v3075
  %3077 = vadd.xlane.f32.xlu0 %v3076
  %v3078 = vpop.xlane.xlu0 %3077
  %v3079 = vsel %vm1938, %v2630, 0.0
  %v3080 = vadd.f32 %v2629, %v3079
  %3081 = vadd.xlane.f32.xlu0 %v3080
  %v3082 = vpop.xlane.xlu0 %3081
  %v3083 = vsel %vm1938, %v2632, 0.0
  %v3084 = vadd.f32 %v2631, %v3083
  %3085 = vadd.xlane.f32.xlu0 %v3084
  %v3086 = vpop.xlane.xlu0 %3085
  %v3087 = vsel %vm1938, %v2634, 0.0
  %v3088 = vadd.f32 %v2633, %v3087
  %3089 = vadd.xlane.f32.xlu0 %v3088
  %v3090 = vpop.xlane.xlu0 %3089
  %v3091 = vsel %vm1938, %v2636, 0.0
  %v3092 = vadd.f32 %v2635, %v3091
  %3093 = vadd.xlane.f32.xlu0 %v3092
  %v3094 = vpop.xlane.xlu0 %3093
  %v3095 = vsel %vm1938, %v2638, 0.0
  %v3096 = vadd.f32 %v2637, %v3095
  %3097 = vadd.xlane.f32.xlu0 %v3096
  %v3098 = vpop.xlane.xlu0 %3097
  %v3099 = vsel %vm1938, %v2640, 0.0
  %v3100 = vadd.f32 %v2639, %v3099
  %3101 = vadd.xlane.f32.xlu0 %v3100
  %v3102 = vpop.xlane.xlu0 %3101
  %v3103 = vsel %vm1938, %v2642, 0.0
  %v3104 = vadd.f32 %v2641, %v3103
  %3105 = vadd.xlane.f32.xlu0 %v3104
  %v3106 = vpop.xlane.xlu0 %3105
  %v3107 = vsel %vm1938, %v2644, 0.0
  %v3108 = vadd.f32 %v2643, %v3107
  %3109 = vadd.xlane.f32.xlu0 %v3108
  %v3110 = vpop.xlane.xlu0 %3109
  %v3111 = vsel %vm1938, %v2646, 0.0
  %v3112 = vadd.f32 %v2645, %v3111
  %3113 = vadd.xlane.f32.xlu0 %v3112
  %v3114 = vpop.xlane.xlu0 %3113
  %v3115 = vsel %vm1938, %v2648, 0.0
  %v3116 = vadd.f32 %v2647, %v3115
  %3117 = vadd.xlane.f32.xlu0 %v3116
  %v3118 = vpop.xlane.xlu0 %3117
  %v3119 = vsel %vm1938, %v2650, 0.0
  %v3120 = vadd.f32 %v2649, %v3119
  %3121 = vadd.xlane.f32.xlu0 %v3120
  %v3122 = vpop.xlane.xlu0 %3121
  %v3123 = vsel %vm1938, %v2652, 0.0
  %v3124 = vadd.f32 %v2651, %v3123
  %3125 = vadd.xlane.f32.xlu0 %v3124
  %v3126 = vpop.xlane.xlu0 %3125
  %v3127 = vsel %vm1938, %v2654, 0.0
  %v3128 = vadd.f32 %v2653, %v3127
  %3129 = vadd.xlane.f32.xlu0 %v3128
  %v3130 = vpop.xlane.xlu0 %3129
  %v3131 = vsel %vm1938, %v2656, 0.0
  %v3132 = vadd.f32 %v2655, %v3131
  %3133 = vadd.xlane.f32.xlu0 %v3132
  %v3134 = vpop.xlane.xlu0 %3133
  %v3135 = vsel %vm1938, %v2658, 0.0
  %v3136 = vadd.f32 %v2657, %v3135
  %3137 = vadd.xlane.f32.xlu0 %v3136
  %v3138 = vpop.xlane.xlu0 %3137
  %v3139 = vmul.f32 %v1942, 0.0051020407
  %v3140 = vmul.f32 %v1946, 0.0051020407
  %v3141 = vmul.f32 %v1950, 0.0051020407
  %v3142 = vmul.f32 %v1954, 0.0051020407
  %v3143 = vmul.f32 %v1958, 0.0051020407
  %v3144 = vmul.f32 %v1962, 0.0051020407
  %v3145 = vmul.f32 %v1966, 0.0051020407
  %v3146 = vmul.f32 %v1970, 0.0051020407
  %v3147 = vmul.f32 %v1974, 0.0051020407
  %v3148 = vmul.f32 %v1978, 0.0051020407
  %v3149 = vmul.f32 %v1982, 0.0051020407
  %v3150 = vmul.f32 %v1986, 0.0051020407
  %v3151 = vmul.f32 %v1990, 0.0051020407
  %v3152 = vmul.f32 %v1994, 0.0051020407
  %v3153 = vmul.f32 %v1998, 0.0051020407
  %v3154 = vmul.f32 %v2002, 0.0051020407
  %v3155 = vmul.f32 %v2006, 0.0051020407
  %v3156 = vmul.f32 %v2010, 0.0051020407
  %v3157 = vmul.f32 %v2014, 0.0051020407
  %v3158 = vmul.f32 %v2018, 0.0051020407
  %v3159 = vmul.f32 %v2022, 0.0051020407
  %v3160 = vmul.f32 %v2026, 0.0051020407
  %v3161 = vmul.f32 %v2030, 0.0051020407
  %v3162 = vmul.f32 %v2034, 0.0051020407
  %v3163 = vmul.f32 %v2038, 0.0051020407
  %v3164 = vmul.f32 %v2042, 0.0051020407
  %v3165 = vmul.f32 %v2046, 0.0051020407
  %v3166 = vmul.f32 %v2050, 0.0051020407
  %v3167 = vmul.f32 %v2054, 0.0051020407
  %v3168 = vmul.f32 %v2058, 0.0051020407
  %v3169 = vmul.f32 %v2062, 0.0051020407
  %v3170 = vmul.f32 %v2066, 0.0051020407
  %v3171 = vmul.f32 %v2070, 0.0051020407
  %v3172 = vmul.f32 %v2074, 0.0051020407
  %v3173 = vmul.f32 %v2078, 0.0051020407
  %v3174 = vmul.f32 %v2082, 0.0051020407
  %v3175 = vmul.f32 %v2086, 0.0051020407
  %v3176 = vmul.f32 %v2090, 0.0051020407
  %v3177 = vmul.f32 %v2094, 0.0051020407
  %v3178 = vmul.f32 %v2098, 0.0051020407
  %v3179 = vmul.f32 %v2102, 0.0051020407
  %v3180 = vmul.f32 %v2106, 0.0051020407
  %v3181 = vmul.f32 %v2110, 0.0051020407
  %v3182 = vmul.f32 %v2114, 0.0051020407
  %v3183 = vmul.f32 %v2118, 0.0051020407
  %v3184 = vmul.f32 %v2122, 0.0051020407
  %v3185 = vmul.f32 %v2126, 0.0051020407
  %v3186 = vmul.f32 %v2130, 0.0051020407
  %v3187 = vmul.f32 %v2134, 0.0051020407
  %v3188 = vmul.f32 %v2138, 0.0051020407
  %v3189 = vmul.f32 %v2142, 0.0051020407
  %v3190 = vmul.f32 %v2146, 0.0051020407
  %v3191 = vmul.f32 %v2150, 0.0051020407
  %v3192 = vmul.f32 %v2154, 0.0051020407
  %v3193 = vmul.f32 %v2158, 0.0051020407
  %v3194 = vmul.f32 %v2162, 0.0051020407
  %v3195 = vmul.f32 %v2166, 0.0051020407
  %v3196 = vmul.f32 %v2170, 0.0051020407
  %v3197 = vmul.f32 %v2174, 0.0051020407
  %v3198 = vmul.f32 %v2178, 0.0051020407
  %v3199 = vmul.f32 %v2182, 0.0051020407
  %v3200 = vmul.f32 %v2186, 0.0051020407
  %v3201 = vmul.f32 %v2190, 0.0051020407
  %v3202 = vmul.f32 %v2194, 0.0051020407
  %v3203 = vmul.f32 %v2198, 0.0051020407
  %v3204 = vmul.f32 %v2202, 0.0051020407
  %v3205 = vmul.f32 %v2206, 0.0051020407
  %v3206 = vmul.f32 %v2210, 0.0051020407
  %v3207 = vmul.f32 %v2214, 0.0051020407
  %v3208 = vmul.f32 %v2218, 0.0051020407
  %v3209 = vmul.f32 %v2222, 0.0051020407
  %v3210 = vmul.f32 %v2226, 0.0051020407
  %v3211 = vmul.f32 %v2230, 0.0051020407
  %v3212 = vmul.f32 %v2234, 0.0051020407
  %v3213 = vmul.f32 %v2238, 0.0051020407
  %v3214 = vmul.f32 %v2242, 0.0051020407
  %v3215 = vmul.f32 %v2246, 0.0051020407
  %v3216 = vmul.f32 %v2250, 0.0051020407
  %v3217 = vmul.f32 %v2254, 0.0051020407
  %v3218 = vmul.f32 %v2258, 0.0051020407
  %v3219 = vmul.f32 %v2262, 0.0051020407
  %v3220 = vmul.f32 %v2266, 0.0051020407
  %v3221 = vmul.f32 %v2270, 0.0051020407
  %v3222 = vmul.f32 %v2274, 0.0051020407
  %v3223 = vmul.f32 %v2278, 0.0051020407
  %v3224 = vmul.f32 %v2282, 0.0051020407
  %v3225 = vmul.f32 %v2286, 0.0051020407
  %v3226 = vmul.f32 %v2290, 0.0051020407
  %v3227 = vmul.f32 %v2294, 0.0051020407
  %v3228 = vmul.f32 %v2298, 0.0051020407
  %v3229 = vmul.f32 %v2302, 0.0051020407
  %v3230 = vmul.f32 %v2306, 0.0051020407
  %v3231 = vmul.f32 %v2310, 0.0051020407
  %v3232 = vmul.f32 %v2314, 0.0051020407
  %v3233 = vmul.f32 %v2318, 0.0051020407
  %v3234 = vmul.f32 %v2322, 0.0051020407
  %v3235 = vmul.f32 %v2326, 0.0051020407
  %v3236 = vmul.f32 %v2330, 0.0051020407
  %v3237 = vmul.f32 %v2334, 0.0051020407
  %v3238 = vmul.f32 %v2338, 0.0051020407
  %v3239 = vmul.f32 %v2342, 0.0051020407
  %v3240 = vmul.f32 %v2346, 0.0051020407
  %v3241 = vmul.f32 %v2350, 0.0051020407
  %v3242 = vmul.f32 %v2354, 0.0051020407
  %v3243 = vmul.f32 %v2358, 0.0051020407
  %v3244 = vmul.f32 %v2362, 0.0051020407
  %v3245 = vmul.f32 %v2366, 0.0051020407
  %v3246 = vmul.f32 %v2370, 0.0051020407
  %v3247 = vmul.f32 %v2374, 0.0051020407
  %v3248 = vmul.f32 %v2378, 0.0051020407
  %v3249 = vmul.f32 %v2382, 0.0051020407
  %v3250 = vmul.f32 %v2386, 0.0051020407
  %v3251 = vmul.f32 %v2390, 0.0051020407
  %v3252 = vmul.f32 %v2394, 0.0051020407
  %v3253 = vmul.f32 %v2398, 0.0051020407
  %v3254 = vmul.f32 %v2402, 0.0051020407
  %v3255 = vmul.f32 %v2406, 0.0051020407
  %v3256 = vmul.f32 %v2410, 0.0051020407
  %v3257 = vmul.f32 %v2414, 0.0051020407
  %v3258 = vmul.f32 %v2418, 0.0051020407
  %v3259 = vmul.f32 %v2662, 0.0051020407
  %v3260 = vmul.f32 %v2666, 0.0051020407
  %v3261 = vmul.f32 %v2670, 0.0051020407
  %v3262 = vmul.f32 %v2674, 0.0051020407
  %v3263 = vmul.f32 %v2678, 0.0051020407
  %v3264 = vmul.f32 %v2682, 0.0051020407
  %v3265 = vmul.f32 %v2686, 0.0051020407
  %v3266 = vmul.f32 %v2690, 0.0051020407
  %v3267 = vmul.f32 %v2694, 0.0051020407
  %v3268 = vmul.f32 %v2698, 0.0051020407
  %v3269 = vmul.f32 %v2702, 0.0051020407
  %v3270 = vmul.f32 %v2706, 0.0051020407
  %v3271 = vmul.f32 %v2710, 0.0051020407
  %v3272 = vmul.f32 %v2714, 0.0051020407
  %v3273 = vmul.f32 %v2718, 0.0051020407
  %v3274 = vmul.f32 %v2722, 0.0051020407
  %v3275 = vmul.f32 %v2726, 0.0051020407
  %v3276 = vmul.f32 %v2730, 0.0051020407
  %v3277 = vmul.f32 %v2734, 0.0051020407
  %v3278 = vmul.f32 %v2738, 0.0051020407
  %v3279 = vmul.f32 %v2742, 0.0051020407
  %v3280 = vmul.f32 %v2746, 0.0051020407
  %v3281 = vmul.f32 %v2750, 0.0051020407
  %v3282 = vmul.f32 %v2754, 0.0051020407
  %v3283 = vmul.f32 %v2758, 0.0051020407
  %v3284 = vmul.f32 %v2762, 0.0051020407
  %v3285 = vmul.f32 %v2766, 0.0051020407
  %v3286 = vmul.f32 %v2770, 0.0051020407
  %v3287 = vmul.f32 %v2774, 0.0051020407
  %v3288 = vmul.f32 %v2778, 0.0051020407
  %v3289 = vmul.f32 %v2782, 0.0051020407
  %v3290 = vmul.f32 %v2786, 0.0051020407
  %v3291 = vmul.f32 %v2790, 0.0051020407
  %v3292 = vmul.f32 %v2794, 0.0051020407
  %v3293 = vmul.f32 %v2798, 0.0051020407
  %v3294 = vmul.f32 %v2802, 0.0051020407
  %v3295 = vmul.f32 %v2806, 0.0051020407
  %v3296 = vmul.f32 %v2810, 0.0051020407
  %v3297 = vmul.f32 %v2814, 0.0051020407
  %v3298 = vmul.f32 %v2818, 0.0051020407
  %v3299 = vmul.f32 %v2822, 0.0051020407
  %v3300 = vmul.f32 %v2826, 0.0051020407
  %v3301 = vmul.f32 %v2830, 0.0051020407
  %v3302 = vmul.f32 %v2834, 0.0051020407
  %v3303 = vmul.f32 %v2838, 0.0051020407
  %v3304 = vmul.f32 %v2842, 0.0051020407
  %v3305 = vmul.f32 %v2846, 0.0051020407
  %v3306 = vmul.f32 %v2850, 0.0051020407
  %v3307 = vmul.f32 %v2854, 0.0051020407
  %v3308 = vmul.f32 %v2858, 0.0051020407
  %v3309 = vmul.f32 %v2862, 0.0051020407
  %v3310 = vmul.f32 %v2866, 0.0051020407
  %v3311 = vmul.f32 %v2870, 0.0051020407
  %v3312 = vmul.f32 %v2874, 0.0051020407
  %v3313 = vmul.f32 %v2878, 0.0051020407
  %v3314 = vmul.f32 %v2882, 0.0051020407
  %v3315 = vmul.f32 %v2886, 0.0051020407
  %v3316 = vmul.f32 %v2890, 0.0051020407
  %v3317 = vmul.f32 %v2894, 0.0051020407
  %v3318 = vmul.f32 %v2898, 0.0051020407
  %v3319 = vmul.f32 %v2902, 0.0051020407
  %v3320 = vmul.f32 %v2906, 0.0051020407
  %v3321 = vmul.f32 %v2910, 0.0051020407
  %v3322 = vmul.f32 %v2914, 0.0051020407
  %v3323 = vmul.f32 %v2918, 0.0051020407
  %v3324 = vmul.f32 %v2922, 0.0051020407
  %v3325 = vmul.f32 %v2926, 0.0051020407
  %v3326 = vmul.f32 %v2930, 0.0051020407
  %v3327 = vmul.f32 %v2934, 0.0051020407
  %v3328 = vmul.f32 %v2938, 0.0051020407
  %v3329 = vmul.f32 %v2942, 0.0051020407
  %v3330 = vmul.f32 %v2946, 0.0051020407
  %v3331 = vmul.f32 %v2950, 0.0051020407
  %v3332 = vmul.f32 %v2954, 0.0051020407
  %v3333 = vmul.f32 %v2958, 0.0051020407
  %v3334 = vmul.f32 %v2962, 0.0051020407
  %v3335 = vmul.f32 %v2966, 0.0051020407
  %v3336 = vmul.f32 %v2970, 0.0051020407
  %v3337 = vmul.f32 %v2974, 0.0051020407
  %v3338 = vmul.f32 %v2978, 0.0051020407
  %v3339 = vmul.f32 %v2982, 0.0051020407
  %v3340 = vmul.f32 %v2986, 0.0051020407
  %v3341 = vmul.f32 %v2990, 0.0051020407
  %v3342 = vmul.f32 %v2994, 0.0051020407
  %v3343 = vmul.f32 %v2998, 0.0051020407
  %v3344 = vmul.f32 %v3002, 0.0051020407
  %v3345 = vmul.f32 %v3006, 0.0051020407
  %v3346 = vmul.f32 %v3010, 0.0051020407
  %v3347 = vmul.f32 %v3014, 0.0051020407
  %v3348 = vmul.f32 %v3018, 0.0051020407
  %v3349 = vmul.f32 %v3022, 0.0051020407
  %v3350 = vmul.f32 %v3026, 0.0051020407
  %v3351 = vmul.f32 %v3030, 0.0051020407
  %v3352 = vmul.f32 %v3034, 0.0051020407
  %v3353 = vmul.f32 %v3038, 0.0051020407
  %v3354 = vmul.f32 %v3042, 0.0051020407
  %v3355 = vmul.f32 %v3046, 0.0051020407
  %v3356 = vmul.f32 %v3050, 0.0051020407
  %v3357 = vmul.f32 %v3054, 0.0051020407
  %v3358 = vmul.f32 %v3058, 0.0051020407
  %v3359 = vmul.f32 %v3062, 0.0051020407
  %v3360 = vmul.f32 %v3066, 0.0051020407
  %v3361 = vmul.f32 %v3070, 0.0051020407
  %v3362 = vmul.f32 %v3074, 0.0051020407
  %v3363 = vmul.f32 %v3078, 0.0051020407
  %v3364 = vmul.f32 %v3082, 0.0051020407
  %v3365 = vmul.f32 %v3086, 0.0051020407
  %v3366 = vmul.f32 %v3090, 0.0051020407
  %v3367 = vmul.f32 %v3094, 0.0051020407
  %v3368 = vmul.f32 %v3098, 0.0051020407
  %v3369 = vmul.f32 %v3102, 0.0051020407
  %v3370 = vmul.f32 %v3106, 0.0051020407
  %v3371 = vmul.f32 %v3110, 0.0051020407
  %v3372 = vmul.f32 %v3114, 0.0051020407
  %v3373 = vmul.f32 %v3118, 0.0051020407
  %v3374 = vmul.f32 %v3122, 0.0051020407
  %v3375 = vmul.f32 %v3126, 0.0051020407
  %v3376 = vmul.f32 %v3130, 0.0051020407
  %v3377 = vmul.f32 %v3134, 0.0051020407
  %v3378 = vmul.f32 %v3138, 0.0051020407
  %v3379 = vmul.f32 %v3139, %v3139
  %v3380 = vmul.f32 %v3140, %v3140
  %v3381 = vmul.f32 %v3141, %v3141
  %v3382 = vmul.f32 %v3142, %v3142
  %v3383 = vmul.f32 %v3143, %v3143
  %v3384 = vmul.f32 %v3144, %v3144
  %v3385 = vmul.f32 %v3145, %v3145
  %v3386 = vmul.f32 %v3146, %v3146
  %v3387 = vmul.f32 %v3147, %v3147
  %v3388 = vmul.f32 %v3148, %v3148
  %v3389 = vmul.f32 %v3149, %v3149
  %v3390 = vmul.f32 %v3150, %v3150
  %v3391 = vmul.f32 %v3151, %v3151
  %v3392 = vmul.f32 %v3152, %v3152
  %v3393 = vmul.f32 %v3153, %v3153
  %v3394 = vmul.f32 %v3154, %v3154
  %v3395 = vmul.f32 %v3155, %v3155
  %v3396 = vmul.f32 %v3156, %v3156
  %v3397 = vmul.f32 %v3157, %v3157
  %v3398 = vmul.f32 %v3158, %v3158
  %v3399 = vmul.f32 %v3159, %v3159
  %v3400 = vmul.f32 %v3160, %v3160
  %v3401 = vmul.f32 %v3161, %v3161
  %v3402 = vmul.f32 %v3162, %v3162
  %v3403 = vmul.f32 %v3163, %v3163
  %v3404 = vmul.f32 %v3164, %v3164
  %v3405 = vmul.f32 %v3165, %v3165
  %v3406 = vmul.f32 %v3166, %v3166
  %v3407 = vmul.f32 %v3167, %v3167
  %v3408 = vmul.f32 %v3168, %v3168
  %v3409 = vmul.f32 %v3169, %v3169
  %v3410 = vmul.f32 %v3170, %v3170
  %v3411 = vmul.f32 %v3171, %v3171
  %v3412 = vmul.f32 %v3172, %v3172
  %v3413 = vmul.f32 %v3173, %v3173
  %v3414 = vmul.f32 %v3174, %v3174
  %v3415 = vmul.f32 %v3175, %v3175
  %v3416 = vmul.f32 %v3176, %v3176
  %v3417 = vmul.f32 %v3177, %v3177
  %v3418 = vmul.f32 %v3178, %v3178
  %v3419 = vmul.f32 %v3179, %v3179
  %v3420 = vmul.f32 %v3180, %v3180
  %v3421 = vmul.f32 %v3181, %v3181
  %v3422 = vmul.f32 %v3182, %v3182
  %v3423 = vmul.f32 %v3183, %v3183
  %v3424 = vmul.f32 %v3184, %v3184
  %v3425 = vmul.f32 %v3185, %v3185
  %v3426 = vmul.f32 %v3186, %v3186
  %v3427 = vmul.f32 %v3187, %v3187
  %v3428 = vmul.f32 %v3188, %v3188
  %v3429 = vmul.f32 %v3189, %v3189
  %v3430 = vmul.f32 %v3190, %v3190
  %v3431 = vmul.f32 %v3191, %v3191
  %v3432 = vmul.f32 %v3192, %v3192
  %v3433 = vmul.f32 %v3193, %v3193
  %v3434 = vmul.f32 %v3194, %v3194
  %v3435 = vmul.f32 %v3195, %v3195
  %v3436 = vmul.f32 %v3196, %v3196
  %v3437 = vmul.f32 %v3197, %v3197
  %v3438 = vmul.f32 %v3198, %v3198
  %v3439 = vmul.f32 %v3199, %v3199
  %v3440 = vmul.f32 %v3200, %v3200
  %v3441 = vmul.f32 %v3201, %v3201
  %v3442 = vmul.f32 %v3202, %v3202
  %v3443 = vmul.f32 %v3203, %v3203
  %v3444 = vmul.f32 %v3204, %v3204
  %v3445 = vmul.f32 %v3205, %v3205
  %v3446 = vmul.f32 %v3206, %v3206
  %v3447 = vmul.f32 %v3207, %v3207
  %v3448 = vmul.f32 %v3208, %v3208
  %v3449 = vmul.f32 %v3209, %v3209
  %v3450 = vmul.f32 %v3210, %v3210
  %v3451 = vmul.f32 %v3211, %v3211
  %v3452 = vmul.f32 %v3212, %v3212
  %v3453 = vmul.f32 %v3213, %v3213
  %v3454 = vmul.f32 %v3214, %v3214
  %v3455 = vmul.f32 %v3215, %v3215
  %v3456 = vmul.f32 %v3216, %v3216
  %v3457 = vmul.f32 %v3217, %v3217
  %v3458 = vmul.f32 %v3218, %v3218
  %v3459 = vmul.f32 %v3219, %v3219
  %v3460 = vmul.f32 %v3220, %v3220
  %v3461 = vmul.f32 %v3221, %v3221
  %v3462 = vmul.f32 %v3222, %v3222
  %v3463 = vmul.f32 %v3223, %v3223
  %v3464 = vmul.f32 %v3224, %v3224
  %v3465 = vmul.f32 %v3225, %v3225
  %v3466 = vmul.f32 %v3226, %v3226
  %v3467 = vmul.f32 %v3227, %v3227
  %v3468 = vmul.f32 %v3228, %v3228
  %v3469 = vmul.f32 %v3229, %v3229
  %v3470 = vmul.f32 %v3230, %v3230
  %v3471 = vmul.f32 %v3231, %v3231
  %v3472 = vmul.f32 %v3232, %v3232
  %v3473 = vmul.f32 %v3233, %v3233
  %v3474 = vmul.f32 %v3234, %v3234
  %v3475 = vmul.f32 %v3235, %v3235
  %v3476 = vmul.f32 %v3236, %v3236
  %v3477 = vmul.f32 %v3237, %v3237
  %v3478 = vmul.f32 %v3238, %v3238
  %v3479 = vmul.f32 %v3239, %v3239
  %v3480 = vmul.f32 %v3240, %v3240
  %v3481 = vmul.f32 %v3241, %v3241
  %v3482 = vmul.f32 %v3242, %v3242
  %v3483 = vmul.f32 %v3243, %v3243
  %v3484 = vmul.f32 %v3244, %v3244
  %v3485 = vmul.f32 %v3245, %v3245
  %v3486 = vmul.f32 %v3246, %v3246
  %v3487 = vmul.f32 %v3247, %v3247
  %v3488 = vmul.f32 %v3248, %v3248
  %v3489 = vmul.f32 %v3249, %v3249
  %v3490 = vmul.f32 %v3250, %v3250
  %v3491 = vmul.f32 %v3251, %v3251
  %v3492 = vmul.f32 %v3252, %v3252
  %v3493 = vmul.f32 %v3253, %v3253
  %v3494 = vmul.f32 %v3254, %v3254
  %v3495 = vmul.f32 %v3255, %v3255
  %v3496 = vmul.f32 %v3256, %v3256
  %v3497 = vmul.f32 %v3257, %v3257
  %v3498 = vmul.f32 %v3258, %v3258
  %v3499 = vsub.f32 %v3259, %v3379
  %v3500 = vsub.f32 %v3260, %v3380
  %v3501 = vsub.f32 %v3261, %v3381
  %v3502 = vsub.f32 %v3262, %v3382
  %v3503 = vsub.f32 %v3263, %v3383
  %v3504 = vsub.f32 %v3264, %v3384
  %v3505 = vsub.f32 %v3265, %v3385
  %v3506 = vsub.f32 %v3266, %v3386
  %v3507 = vsub.f32 %v3267, %v3387
  %v3508 = vsub.f32 %v3268, %v3388
  %v3509 = vsub.f32 %v3269, %v3389
  %v3510 = vsub.f32 %v3270, %v3390
  %v3511 = vsub.f32 %v3271, %v3391
  %v3512 = vsub.f32 %v3272, %v3392
  %v3513 = vsub.f32 %v3273, %v3393
  %v3514 = vsub.f32 %v3274, %v3394
  %v3515 = vsub.f32 %v3275, %v3395
  %v3516 = vsub.f32 %v3276, %v3396
  %v3517 = vsub.f32 %v3277, %v3397
  %v3518 = vsub.f32 %v3278, %v3398
  %v3519 = vsub.f32 %v3279, %v3399
  %v3520 = vsub.f32 %v3280, %v3400
  %v3521 = vsub.f32 %v3281, %v3401
  %v3522 = vsub.f32 %v3282, %v3402
  %v3523 = vsub.f32 %v3283, %v3403
  %v3524 = vsub.f32 %v3284, %v3404
  %v3525 = vsub.f32 %v3285, %v3405
  %v3526 = vsub.f32 %v3286, %v3406
  %v3527 = vsub.f32 %v3287, %v3407
  %v3528 = vsub.f32 %v3288, %v3408
  %v3529 = vsub.f32 %v3289, %v3409
  %v3530 = vsub.f32 %v3290, %v3410
  %v3531 = vsub.f32 %v3291, %v3411
  %v3532 = vsub.f32 %v3292, %v3412
  %v3533 = vsub.f32 %v3293, %v3413
  %v3534 = vsub.f32 %v3294, %v3414
  %v3535 = vsub.f32 %v3295, %v3415
  %v3536 = vsub.f32 %v3296, %v3416
  %v3537 = vsub.f32 %v3297, %v3417
  %v3538 = vsub.f32 %v3298, %v3418
  %v3539 = vsub.f32 %v3299, %v3419
  %v3540 = vsub.f32 %v3300, %v3420
  %v3541 = vsub.f32 %v3301, %v3421
  %v3542 = vsub.f32 %v3302, %v3422
  %v3543 = vsub.f32 %v3303, %v3423
  %v3544 = vsub.f32 %v3304, %v3424
  %v3545 = vsub.f32 %v3305, %v3425
  %v3546 = vsub.f32 %v3306, %v3426
  %v3547 = vsub.f32 %v3307, %v3427
  %v3548 = vsub.f32 %v3308, %v3428
  %v3549 = vsub.f32 %v3309, %v3429
  %v3550 = vsub.f32 %v3310, %v3430
  %v3551 = vsub.f32 %v3311, %v3431
  %v3552 = vsub.f32 %v3312, %v3432
  %v3553 = vsub.f32 %v3313, %v3433
  %v3554 = vsub.f32 %v3314, %v3434
  %v3555 = vsub.f32 %v3315, %v3435
  %v3556 = vsub.f32 %v3316, %v3436
  %v3557 = vsub.f32 %v3317, %v3437
  %v3558 = vsub.f32 %v3318, %v3438
  %v3559 = vsub.f32 %v3319, %v3439
  %v3560 = vsub.f32 %v3320, %v3440
  %v3561 = vsub.f32 %v3321, %v3441
  %v3562 = vsub.f32 %v3322, %v3442
  %v3563 = vsub.f32 %v3323, %v3443
  %v3564 = vsub.f32 %v3324, %v3444
  %v3565 = vsub.f32 %v3325, %v3445
  %v3566 = vsub.f32 %v3326, %v3446
  %v3567 = vsub.f32 %v3327, %v3447
  %v3568 = vsub.f32 %v3328, %v3448
  %v3569 = vsub.f32 %v3329, %v3449
  %v3570 = vsub.f32 %v3330, %v3450
  %v3571 = vsub.f32 %v3331, %v3451
  %v3572 = vsub.f32 %v3332, %v3452
  %v3573 = vsub.f32 %v3333, %v3453
  %v3574 = vsub.f32 %v3334, %v3454
  %v3575 = vsub.f32 %v3335, %v3455
  %v3576 = vsub.f32 %v3336, %v3456
  %v3577 = vsub.f32 %v3337, %v3457
  %v3578 = vsub.f32 %v3338, %v3458
  %v3579 = vsub.f32 %v3339, %v3459
  %v3580 = vsub.f32 %v3340, %v3460
  %v3581 = vsub.f32 %v3341, %v3461
  %v3582 = vsub.f32 %v3342, %v3462
  %v3583 = vsub.f32 %v3343, %v3463
  %v3584 = vsub.f32 %v3344, %v3464
  %v3585 = vsub.f32 %v3345, %v3465
  %v3586 = vsub.f32 %v3346, %v3466
  %v3587 = vsub.f32 %v3347, %v3467
  %v3588 = vsub.f32 %v3348, %v3468
  %v3589 = vsub.f32 %v3349, %v3469
  %v3590 = vsub.f32 %v3350, %v3470
  %v3591 = vsub.f32 %v3351, %v3471
  %v3592 = vsub.f32 %v3352, %v3472
  %v3593 = vsub.f32 %v3353, %v3473
  %v3594 = vsub.f32 %v3354, %v3474
  %v3595 = vsub.f32 %v3355, %v3475
  %v3596 = vsub.f32 %v3356, %v3476
  %v3597 = vsub.f32 %v3357, %v3477
  %v3598 = vsub.f32 %v3358, %v3478
  %v3599 = vsub.f32 %v3359, %v3479
  %v3600 = vsub.f32 %v3360, %v3480
  %v3601 = vsub.f32 %v3361, %v3481
  %v3602 = vsub.f32 %v3362, %v3482
  %v3603 = vsub.f32 %v3363, %v3483
  %v3604 = vsub.f32 %v3364, %v3484
  %v3605 = vsub.f32 %v3365, %v3485
  %v3606 = vsub.f32 %v3366, %v3486
  %v3607 = vsub.f32 %v3367, %v3487
  %v3608 = vsub.f32 %v3368, %v3488
  %v3609 = vsub.f32 %v3369, %v3489
  %v3610 = vsub.f32 %v3370, %v3490
  %v3611 = vsub.f32 %v3371, %v3491
  %v3612 = vsub.f32 %v3372, %v3492
  %v3613 = vsub.f32 %v3373, %v3493
  %v3614 = vsub.f32 %v3374, %v3494
  %v3615 = vsub.f32 %v3375, %v3495
  %v3616 = vsub.f32 %v3376, %v3496
  %v3617 = vsub.f32 %v3377, %v3497
  %v3618 = vsub.f32 %v3378, %v3498
  %v3619 = vadd.f32 %v3499, 0.001
  %v3620 = vadd.f32 %v3500, 0.001
  %v3621 = vadd.f32 %v3501, 0.001
  %v3622 = vadd.f32 %v3502, 0.001
  %v3623 = vadd.f32 %v3503, 0.001
  %v3624 = vadd.f32 %v3504, 0.001
  %v3625 = vadd.f32 %v3505, 0.001
  %v3626 = vadd.f32 %v3506, 0.001
  %v3627 = vadd.f32 %v3507, 0.001
  %v3628 = vadd.f32 %v3508, 0.001
  %v3629 = vadd.f32 %v3509, 0.001
  %v3630 = vadd.f32 %v3510, 0.001
  %v3631 = vadd.f32 %v3511, 0.001
  %v3632 = vadd.f32 %v3512, 0.001
  %v3633 = vadd.f32 %v3513, 0.001
  %v3634 = vadd.f32 %v3514, 0.001
  %v3635 = vadd.f32 %v3515, 0.001
  %v3636 = vadd.f32 %v3516, 0.001
  %v3637 = vadd.f32 %v3517, 0.001
  %v3638 = vadd.f32 %v3518, 0.001
  %v3639 = vadd.f32 %v3519, 0.001
  %v3640 = vadd.f32 %v3520, 0.001
  %v3641 = vadd.f32 %v3521, 0.001
  %v3642 = vadd.f32 %v3522, 0.001
  %v3643 = vadd.f32 %v3523, 0.001
  %v3644 = vadd.f32 %v3524, 0.001
  %v3645 = vadd.f32 %v3525, 0.001
  %v3646 = vadd.f32 %v3526, 0.001
  %v3647 = vadd.f32 %v3527, 0.001
  %v3648 = vadd.f32 %v3528, 0.001
  %v3649 = vadd.f32 %v3529, 0.001
  %v3650 = vadd.f32 %v3530, 0.001
  %v3651 = vadd.f32 %v3531, 0.001
  %v3652 = vadd.f32 %v3532, 0.001
  %v3653 = vadd.f32 %v3533, 0.001
  %v3654 = vadd.f32 %v3534, 0.001
  %v3655 = vadd.f32 %v3535, 0.001
  %v3656 = vadd.f32 %v3536, 0.001
  %v3657 = vadd.f32 %v3537, 0.001
  %v3658 = vadd.f32 %v3538, 0.001
  %v3659 = vadd.f32 %v3539, 0.001
  %v3660 = vadd.f32 %v3540, 0.001
  %v3661 = vadd.f32 %v3541, 0.001
  %v3662 = vadd.f32 %v3542, 0.001
  %v3663 = vadd.f32 %v3543, 0.001
  %v3664 = vadd.f32 %v3544, 0.001
  %v3665 = vadd.f32 %v3545, 0.001
  %v3666 = vadd.f32 %v3546, 0.001
  %v3667 = vadd.f32 %v3547, 0.001
  %v3668 = vadd.f32 %v3548, 0.001
  %v3669 = vadd.f32 %v3549, 0.001
  %v3670 = vadd.f32 %v3550, 0.001
  %v3671 = vadd.f32 %v3551, 0.001
  %v3672 = vadd.f32 %v3552, 0.001
  %v3673 = vadd.f32 %v3553, 0.001
  %v3674 = vadd.f32 %v3554, 0.001
  %v3675 = vadd.f32 %v3555, 0.001
  %v3676 = vadd.f32 %v3556, 0.001
  %v3677 = vadd.f32 %v3557, 0.001
  %v3678 = vadd.f32 %v3558, 0.001
  %v3679 = vadd.f32 %v3559, 0.001
  %v3680 = vadd.f32 %v3560, 0.001
  %v3681 = vadd.f32 %v3561, 0.001
  %v3682 = vadd.f32 %v3562, 0.001
  %v3683 = vadd.f32 %v3563, 0.001
  %v3684 = vadd.f32 %v3564, 0.001
  %v3685 = vadd.f32 %v3565, 0.001
  %v3686 = vadd.f32 %v3566, 0.001
  %v3687 = vadd.f32 %v3567, 0.001
  %v3688 = vadd.f32 %v3568, 0.001
  %v3689 = vadd.f32 %v3569, 0.001
  %v3690 = vadd.f32 %v3570, 0.001
  %v3691 = vadd.f32 %v3571, 0.001
  %v3692 = vadd.f32 %v3572, 0.001
  %v3693 = vadd.f32 %v3573, 0.001
  %v3694 = vadd.f32 %v3574, 0.001
  %v3695 = vadd.f32 %v3575, 0.001
  %v3696 = vadd.f32 %v3576, 0.001
  %v3697 = vadd.f32 %v3577, 0.001
  %v3698 = vadd.f32 %v3578, 0.001
  %v3699 = vadd.f32 %v3579, 0.001
  %v3700 = vadd.f32 %v3580, 0.001
  %v3701 = vadd.f32 %v3581, 0.001
  %v3702 = vadd.f32 %v3582, 0.001
  %v3703 = vadd.f32 %v3583, 0.001
  %v3704 = vadd.f32 %v3584, 0.001
  %v3705 = vadd.f32 %v3585, 0.001
  %v3706 = vadd.f32 %v3586, 0.001
  %v3707 = vadd.f32 %v3587, 0.001
  %v3708 = vadd.f32 %v3588, 0.001
  %v3709 = vadd.f32 %v3589, 0.001
  %v3710 = vadd.f32 %v3590, 0.001
  %v3711 = vadd.f32 %v3591, 0.001
  %v3712 = vadd.f32 %v3592, 0.001
  %v3713 = vadd.f32 %v3593, 0.001
  %v3714 = vadd.f32 %v3594, 0.001
  %v3715 = vadd.f32 %v3595, 0.001
  %v3716 = vadd.f32 %v3596, 0.001
  %v3717 = vadd.f32 %v3597, 0.001
  %v3718 = vadd.f32 %v3598, 0.001
  %v3719 = vadd.f32 %v3599, 0.001
  %v3720 = vadd.f32 %v3600, 0.001
  %v3721 = vadd.f32 %v3601, 0.001
  %v3722 = vadd.f32 %v3602, 0.001
  %v3723 = vadd.f32 %v3603, 0.001
  %v3724 = vadd.f32 %v3604, 0.001
  %v3725 = vadd.f32 %v3605, 0.001
  %v3726 = vadd.f32 %v3606, 0.001
  %v3727 = vadd.f32 %v3607, 0.001
  %v3728 = vadd.f32 %v3608, 0.001
  %v3729 = vadd.f32 %v3609, 0.001
  %v3730 = vadd.f32 %v3610, 0.001
  %v3731 = vadd.f32 %v3611, 0.001
  %v3732 = vadd.f32 %v3612, 0.001
  %v3733 = vadd.f32 %v3613, 0.001
  %v3734 = vadd.f32 %v3614, 0.001
  %v3735 = vadd.f32 %v3615, 0.001
  %v3736 = vadd.f32 %v3616, 0.001
  %v3737 = vadd.f32 %v3617, 0.001
  %v3738 = vadd.f32 %v3618, 0.001
  %v3739 = vrsqrt.pop %v3619
  %v3740 = vmul.f32 %v3739, %v3619
  %v3741 = vmul.f32 %v3740, %v3739
  %v3742 = vmul.f32 0.5, %v3741
  %v3743 = vsub.f32 1.5, %v3742
  %v3744 = vmul.f32 %v3739, %v3743
  %vm3745 = vweird.f32 %v3619
  %vm3746 = vweird.f32 %v3739
  %vm3747 = vmor %vm3745, %vm3746
  %v3748 = vsel %vm3747, %v3739, %v3744
  %v3749 = vrsqrt.pop %v3620
  %v3750 = vmul.f32 %v3749, %v3620
  %v3751 = vmul.f32 %v3750, %v3749
  %v3752 = vmul.f32 0.5, %v3751
  %v3753 = vsub.f32 1.5, %v3752
  %v3754 = vmul.f32 %v3749, %v3753
  %vm3755 = vweird.f32 %v3620
  %vm3756 = vweird.f32 %v3749
  %vm3757 = vmor %vm3755, %vm3756
  %v3758 = vsel %vm3757, %v3749, %v3754
  %v3759 = vrsqrt.pop %v3621
  %v3760 = vmul.f32 %v3759, %v3621
  %v3761 = vmul.f32 %v3760, %v3759
  %v3762 = vmul.f32 0.5, %v3761
  %v3763 = vsub.f32 1.5, %v3762
  %v3764 = vmul.f32 %v3759, %v3763
  %vm3765 = vweird.f32 %v3621
  %vm3766 = vweird.f32 %v3759
  %vm3767 = vmor %vm3765, %vm3766
  %v3768 = vsel %vm3767, %v3759, %v3764
  %v3769 = vrsqrt.pop %v3622
  %v3770 = vmul.f32 %v3769, %v3622
  %v3771 = vmul.f32 %v3770, %v3769
  %v3772 = vmul.f32 0.5, %v3771
  %v3773 = vsub.f32 1.5, %v3772
  %v3774 = vmul.f32 %v3769, %v3773
  %vm3775 = vweird.f32 %v3622
  %vm3776 = vweird.f32 %v3769
  %vm3777 = vmor %vm3775, %vm3776
  %v3778 = vsel %vm3777, %v3769, %v3774
  %v3779 = vrsqrt.pop %v3623
  %v3780 = vmul.f32 %v3779, %v3623
  %v3781 = vmul.f32 %v3780, %v3779
  %v3782 = vmul.f32 0.5, %v3781
  %v3783 = vsub.f32 1.5, %v3782
  %v3784 = vmul.f32 %v3779, %v3783
  %vm3785 = vweird.f32 %v3623
  %vm3786 = vweird.f32 %v3779
  %vm3787 = vmor %vm3785, %vm3786
  %v3788 = vsel %vm3787, %v3779, %v3784
  %v3789 = vrsqrt.pop %v3624
  %v3790 = vmul.f32 %v3789, %v3624
  %v3791 = vmul.f32 %v3790, %v3789
  %v3792 = vmul.f32 0.5, %v3791
  %v3793 = vsub.f32 1.5, %v3792
  %v3794 = vmul.f32 %v3789, %v3793
  %vm3795 = vweird.f32 %v3624
  %vm3796 = vweird.f32 %v3789
  %vm3797 = vmor %vm3795, %vm3796
  %v3798 = vsel %vm3797, %v3789, %v3794
  %v3799 = vrsqrt.pop %v3625
  %v3800 = vmul.f32 %v3799, %v3625
  %v3801 = vmul.f32 %v3800, %v3799
  %v3802 = vmul.f32 0.5, %v3801
  %v3803 = vsub.f32 1.5, %v3802
  %v3804 = vmul.f32 %v3799, %v3803
  %vm3805 = vweird.f32 %v3625
  %vm3806 = vweird.f32 %v3799
  %vm3807 = vmor %vm3805, %vm3806
  %v3808 = vsel %vm3807, %v3799, %v3804
  %v3809 = vrsqrt.pop %v3626
  %v3810 = vmul.f32 %v3809, %v3626
  %v3811 = vmul.f32 %v3810, %v3809
  %v3812 = vmul.f32 0.5, %v3811
  %v3813 = vsub.f32 1.5, %v3812
  %v3814 = vmul.f32 %v3809, %v3813
  %vm3815 = vweird.f32 %v3626
  %vm3816 = vweird.f32 %v3809
  %vm3817 = vmor %vm3815, %vm3816
  %v3818 = vsel %vm3817, %v3809, %v3814
  %v3819 = vrsqrt.pop %v3627
  %v3820 = vmul.f32 %v3819, %v3627
  %v3821 = vmul.f32 %v3820, %v3819
  %v3822 = vmul.f32 0.5, %v3821
  %v3823 = vsub.f32 1.5, %v3822
  %v3824 = vmul.f32 %v3819, %v3823
  %vm3825 = vweird.f32 %v3627
  %vm3826 = vweird.f32 %v3819
  %vm3827 = vmor %vm3825, %vm3826
  %v3828 = vsel %vm3827, %v3819, %v3824
  %v3829 = vrsqrt.pop %v3628
  %v3830 = vmul.f32 %v3829, %v3628
  %v3831 = vmul.f32 %v3830, %v3829
  %v3832 = vmul.f32 0.5, %v3831
  %v3833 = vsub.f32 1.5, %v3832
  %v3834 = vmul.f32 %v3829, %v3833
  %vm3835 = vweird.f32 %v3628
  %vm3836 = vweird.f32 %v3829
  %vm3837 = vmor %vm3835, %vm3836
  %v3838 = vsel %vm3837, %v3829, %v3834
  %v3839 = vrsqrt.pop %v3629
  %v3840 = vmul.f32 %v3839, %v3629
  %v3841 = vmul.f32 %v3840, %v3839
  %v3842 = vmul.f32 0.5, %v3841
  %v3843 = vsub.f32 1.5, %v3842
  %v3844 = vmul.f32 %v3839, %v3843
  %vm3845 = vweird.f32 %v3629
  %vm3846 = vweird.f32 %v3839
  %vm3847 = vmor %vm3845, %vm3846
  %v3848 = vsel %vm3847, %v3839, %v3844
  %v3849 = vrsqrt.pop %v3630
  %v3850 = vmul.f32 %v3849, %v3630
  %v3851 = vmul.f32 %v3850, %v3849
  %v3852 = vmul.f32 0.5, %v3851
  %v3853 = vsub.f32 1.5, %v3852
  %v3854 = vmul.f32 %v3849, %v3853
  %vm3855 = vweird.f32 %v3630
  %vm3856 = vweird.f32 %v3849
  %vm3857 = vmor %vm3855, %vm3856
  %v3858 = vsel %vm3857, %v3849, %v3854
  %v3859 = vrsqrt.pop %v3631
  %v3860 = vmul.f32 %v3859, %v3631
  %v3861 = vmul.f32 %v3860, %v3859
  %v3862 = vmul.f32 0.5, %v3861
  %v3863 = vsub.f32 1.5, %v3862
  %v3864 = vmul.f32 %v3859, %v3863
  %vm3865 = vweird.f32 %v3631
  %vm3866 = vweird.f32 %v3859
  %vm3867 = vmor %vm3865, %vm3866
  %v3868 = vsel %vm3867, %v3859, %v3864
  %v3869 = vrsqrt.pop %v3632
  %v3870 = vmul.f32 %v3869, %v3632
  %v3871 = vmul.f32 %v3870, %v3869
  %v3872 = vmul.f32 0.5, %v3871
  %v3873 = vsub.f32 1.5, %v3872
  %v3874 = vmul.f32 %v3869, %v3873
  %vm3875 = vweird.f32 %v3632
  %vm3876 = vweird.f32 %v3869
  %vm3877 = vmor %vm3875, %vm3876
  %v3878 = vsel %vm3877, %v3869, %v3874
  %v3879 = vrsqrt.pop %v3633
  %v3880 = vmul.f32 %v3879, %v3633
  %v3881 = vmul.f32 %v3880, %v3879
  %v3882 = vmul.f32 0.5, %v3881
  %v3883 = vsub.f32 1.5, %v3882
  %v3884 = vmul.f32 %v3879, %v3883
  %vm3885 = vweird.f32 %v3633
  %vm3886 = vweird.f32 %v3879
  %vm3887 = vmor %vm3885, %vm3886
  %v3888 = vsel %vm3887, %v3879, %v3884
  %v3889 = vrsqrt.pop %v3634
  %v3890 = vmul.f32 %v3889, %v3634
  %v3891 = vmul.f32 %v3890, %v3889
  %v3892 = vmul.f32 0.5, %v3891
  %v3893 = vsub.f32 1.5, %v3892
  %v3894 = vmul.f32 %v3889, %v3893
  %vm3895 = vweird.f32 %v3634
  %vm3896 = vweird.f32 %v3889
  %vm3897 = vmor %vm3895, %vm3896
  %v3898 = vsel %vm3897, %v3889, %v3894
  %v3899 = vrsqrt.pop %v3635
  %v3900 = vmul.f32 %v3899, %v3635
  %v3901 = vmul.f32 %v3900, %v3899
  %v3902 = vmul.f32 0.5, %v3901
  %v3903 = vsub.f32 1.5, %v3902
  %v3904 = vmul.f32 %v3899, %v3903
  %vm3905 = vweird.f32 %v3635
  %vm3906 = vweird.f32 %v3899
  %vm3907 = vmor %vm3905, %vm3906
  %v3908 = vsel %vm3907, %v3899, %v3904
  %v3909 = vrsqrt.pop %v3636
  %v3910 = vmul.f32 %v3909, %v3636
  %v3911 = vmul.f32 %v3910, %v3909
  %v3912 = vmul.f32 0.5, %v3911
  %v3913 = vsub.f32 1.5, %v3912
  %v3914 = vmul.f32 %v3909, %v3913
  %vm3915 = vweird.f32 %v3636
  %vm3916 = vweird.f32 %v3909
  %vm3917 = vmor %vm3915, %vm3916
  %v3918 = vsel %vm3917, %v3909, %v3914
  %v3919 = vrsqrt.pop %v3637
  %v3920 = vmul.f32 %v3919, %v3637
  %v3921 = vmul.f32 %v3920, %v3919
  %v3922 = vmul.f32 0.5, %v3921
  %v3923 = vsub.f32 1.5, %v3922
  %v3924 = vmul.f32 %v3919, %v3923
  %vm3925 = vweird.f32 %v3637
  %vm3926 = vweird.f32 %v3919
  %vm3927 = vmor %vm3925, %vm3926
  %v3928 = vsel %vm3927, %v3919, %v3924
  %v3929 = vrsqrt.pop %v3638
  %v3930 = vmul.f32 %v3929, %v3638
  %v3931 = vmul.f32 %v3930, %v3929
  %v3932 = vmul.f32 0.5, %v3931
  %v3933 = vsub.f32 1.5, %v3932
  %v3934 = vmul.f32 %v3929, %v3933
  %vm3935 = vweird.f32 %v3638
  %vm3936 = vweird.f32 %v3929
  %vm3937 = vmor %vm3935, %vm3936
  %v3938 = vsel %vm3937, %v3929, %v3934
  %v3939 = vrsqrt.pop %v3639
  %v3940 = vmul.f32 %v3939, %v3639
  %v3941 = vmul.f32 %v3940, %v3939
  %v3942 = vmul.f32 0.5, %v3941
  %v3943 = vsub.f32 1.5, %v3942
  %v3944 = vmul.f32 %v3939, %v3943
  %vm3945 = vweird.f32 %v3639
  %vm3946 = vweird.f32 %v3939
  %vm3947 = vmor %vm3945, %vm3946
  %v3948 = vsel %vm3947, %v3939, %v3944
  %v3949 = vrsqrt.pop %v3640
  %v3950 = vmul.f32 %v3949, %v3640
  %v3951 = vmul.f32 %v3950, %v3949
  %v3952 = vmul.f32 0.5, %v3951
  %v3953 = vsub.f32 1.5, %v3952
  %v3954 = vmul.f32 %v3949, %v3953
  %vm3955 = vweird.f32 %v3640
  %vm3956 = vweird.f32 %v3949
  %vm3957 = vmor %vm3955, %vm3956
  %v3958 = vsel %vm3957, %v3949, %v3954
  %v3959 = vrsqrt.pop %v3641
  %v3960 = vmul.f32 %v3959, %v3641
  %v3961 = vmul.f32 %v3960, %v3959
  %v3962 = vmul.f32 0.5, %v3961
  %v3963 = vsub.f32 1.5, %v3962
  %v3964 = vmul.f32 %v3959, %v3963
  %vm3965 = vweird.f32 %v3641
  %vm3966 = vweird.f32 %v3959
  %vm3967 = vmor %vm3965, %vm3966
  %v3968 = vsel %vm3967, %v3959, %v3964
  %v3969 = vrsqrt.pop %v3642
  %v3970 = vmul.f32 %v3969, %v3642
  %v3971 = vmul.f32 %v3970, %v3969
  %v3972 = vmul.f32 0.5, %v3971
  %v3973 = vsub.f32 1.5, %v3972
  %v3974 = vmul.f32 %v3969, %v3973
  %vm3975 = vweird.f32 %v3642
  %vm3976 = vweird.f32 %v3969
  %vm3977 = vmor %vm3975, %vm3976
  %v3978 = vsel %vm3977, %v3969, %v3974
  %v3979 = vrsqrt.pop %v3643
  %v3980 = vmul.f32 %v3979, %v3643
  %v3981 = vmul.f32 %v3980, %v3979
  %v3982 = vmul.f32 0.5, %v3981
  %v3983 = vsub.f32 1.5, %v3982
  %v3984 = vmul.f32 %v3979, %v3983
  %vm3985 = vweird.f32 %v3643
  %vm3986 = vweird.f32 %v3979
  %vm3987 = vmor %vm3985, %vm3986
  %v3988 = vsel %vm3987, %v3979, %v3984
  %v3989 = vrsqrt.pop %v3644
  %v3990 = vmul.f32 %v3989, %v3644
  %v3991 = vmul.f32 %v3990, %v3989
  %v3992 = vmul.f32 0.5, %v3991
  %v3993 = vsub.f32 1.5, %v3992
  %v3994 = vmul.f32 %v3989, %v3993
  %vm3995 = vweird.f32 %v3644
  %vm3996 = vweird.f32 %v3989
  %vm3997 = vmor %vm3995, %vm3996
  %v3998 = vsel %vm3997, %v3989, %v3994
  %v3999 = vrsqrt.pop %v3645
  %v4000 = vmul.f32 %v3999, %v3645
  %v4001 = vmul.f32 %v4000, %v3999
  %v4002 = vmul.f32 0.5, %v4001
  %v4003 = vsub.f32 1.5, %v4002
  %v4004 = vmul.f32 %v3999, %v4003
  %vm4005 = vweird.f32 %v3645
  %vm4006 = vweird.f32 %v3999
  %vm4007 = vmor %vm4005, %vm4006
  %v4008 = vsel %vm4007, %v3999, %v4004
  %v4009 = vrsqrt.pop %v3646
  %v4010 = vmul.f32 %v4009, %v3646
  %v4011 = vmul.f32 %v4010, %v4009
  %v4012 = vmul.f32 0.5, %v4011
  %v4013 = vsub.f32 1.5, %v4012
  %v4014 = vmul.f32 %v4009, %v4013
  %vm4015 = vweird.f32 %v3646
  %vm4016 = vweird.f32 %v4009
  %vm4017 = vmor %vm4015, %vm4016
  %v4018 = vsel %vm4017, %v4009, %v4014
  %v4019 = vrsqrt.pop %v3647
  %v4020 = vmul.f32 %v4019, %v3647
  %v4021 = vmul.f32 %v4020, %v4019
  %v4022 = vmul.f32 0.5, %v4021
  %v4023 = vsub.f32 1.5, %v4022
  %v4024 = vmul.f32 %v4019, %v4023
  %vm4025 = vweird.f32 %v3647
  %vm4026 = vweird.f32 %v4019
  %vm4027 = vmor %vm4025, %vm4026
  %v4028 = vsel %vm4027, %v4019, %v4024
  %v4029 = vrsqrt.pop %v3648
  %v4030 = vmul.f32 %v4029, %v3648
  %v4031 = vmul.f32 %v4030, %v4029
  %v4032 = vmul.f32 0.5, %v4031
  %v4033 = vsub.f32 1.5, %v4032
  %v4034 = vmul.f32 %v4029, %v4033
  %vm4035 = vweird.f32 %v3648
  %vm4036 = vweird.f32 %v4029
  %vm4037 = vmor %vm4035, %vm4036
  %v4038 = vsel %vm4037, %v4029, %v4034
  %v4039 = vrsqrt.pop %v3649
  %v4040 = vmul.f32 %v4039, %v3649
  %v4041 = vmul.f32 %v4040, %v4039
  %v4042 = vmul.f32 0.5, %v4041
  %v4043 = vsub.f32 1.5, %v4042
  %v4044 = vmul.f32 %v4039, %v4043
  %vm4045 = vweird.f32 %v3649
  %vm4046 = vweird.f32 %v4039
  %vm4047 = vmor %vm4045, %vm4046
  %v4048 = vsel %vm4047, %v4039, %v4044
  %v4049 = vrsqrt.pop %v3650
  %v4050 = vmul.f32 %v4049, %v3650
  %v4051 = vmul.f32 %v4050, %v4049
  %v4052 = vmul.f32 0.5, %v4051
  %v4053 = vsub.f32 1.5, %v4052
  %v4054 = vmul.f32 %v4049, %v4053
  %vm4055 = vweird.f32 %v3650
  %vm4056 = vweird.f32 %v4049
  %vm4057 = vmor %vm4055, %vm4056
  %v4058 = vsel %vm4057, %v4049, %v4054
  %v4059 = vrsqrt.pop %v3651
  %v4060 = vmul.f32 %v4059, %v3651
  %v4061 = vmul.f32 %v4060, %v4059
  %v4062 = vmul.f32 0.5, %v4061
  %v4063 = vsub.f32 1.5, %v4062
  %v4064 = vmul.f32 %v4059, %v4063
  %vm4065 = vweird.f32 %v3651
  %vm4066 = vweird.f32 %v4059
  %vm4067 = vmor %vm4065, %vm4066
  %v4068 = vsel %vm4067, %v4059, %v4064
  %v4069 = vrsqrt.pop %v3652
  %v4070 = vmul.f32 %v4069, %v3652
  %v4071 = vmul.f32 %v4070, %v4069
  %v4072 = vmul.f32 0.5, %v4071
  %v4073 = vsub.f32 1.5, %v4072
  %v4074 = vmul.f32 %v4069, %v4073
  %vm4075 = vweird.f32 %v3652
  %vm4076 = vweird.f32 %v4069
  %vm4077 = vmor %vm4075, %vm4076
  %v4078 = vsel %vm4077, %v4069, %v4074
  %v4079 = vrsqrt.pop %v3653
  %v4080 = vmul.f32 %v4079, %v3653
  %v4081 = vmul.f32 %v4080, %v4079
  %v4082 = vmul.f32 0.5, %v4081
  %v4083 = vsub.f32 1.5, %v4082
  %v4084 = vmul.f32 %v4079, %v4083
  %vm4085 = vweird.f32 %v3653
  %vm4086 = vweird.f32 %v4079
  %vm4087 = vmor %vm4085, %vm4086
  %v4088 = vsel %vm4087, %v4079, %v4084
  %v4089 = vrsqrt.pop %v3654
  %v4090 = vmul.f32 %v4089, %v3654
  %v4091 = vmul.f32 %v4090, %v4089
  %v4092 = vmul.f32 0.5, %v4091
  %v4093 = vsub.f32 1.5, %v4092
  %v4094 = vmul.f32 %v4089, %v4093
  %vm4095 = vweird.f32 %v3654
  %vm4096 = vweird.f32 %v4089
  %vm4097 = vmor %vm4095, %vm4096
  %v4098 = vsel %vm4097, %v4089, %v4094
  %v4099 = vrsqrt.pop %v3655
  %v4100 = vmul.f32 %v4099, %v3655
  %v4101 = vmul.f32 %v4100, %v4099
  %v4102 = vmul.f32 0.5, %v4101
  %v4103 = vsub.f32 1.5, %v4102
  %v4104 = vmul.f32 %v4099, %v4103
  %vm4105 = vweird.f32 %v3655
  %vm4106 = vweird.f32 %v4099
  %vm4107 = vmor %vm4105, %vm4106
  %v4108 = vsel %vm4107, %v4099, %v4104
  %v4109 = vrsqrt.pop %v3656
  %v4110 = vmul.f32 %v4109, %v3656
  %v4111 = vmul.f32 %v4110, %v4109
  %v4112 = vmul.f32 0.5, %v4111
  %v4113 = vsub.f32 1.5, %v4112
  %v4114 = vmul.f32 %v4109, %v4113
  %vm4115 = vweird.f32 %v3656
  %vm4116 = vweird.f32 %v4109
  %vm4117 = vmor %vm4115, %vm4116
  %v4118 = vsel %vm4117, %v4109, %v4114
  %v4119 = vrsqrt.pop %v3657
  %v4120 = vmul.f32 %v4119, %v3657
  %v4121 = vmul.f32 %v4120, %v4119
  %v4122 = vmul.f32 0.5, %v4121
  %v4123 = vsub.f32 1.5, %v4122
  %v4124 = vmul.f32 %v4119, %v4123
  %vm4125 = vweird.f32 %v3657
  %vm4126 = vweird.f32 %v4119
  %vm4127 = vmor %vm4125, %vm4126
  %v4128 = vsel %vm4127, %v4119, %v4124
  %v4129 = vrsqrt.pop %v3658
  %v4130 = vmul.f32 %v4129, %v3658
  %v4131 = vmul.f32 %v4130, %v4129
  %v4132 = vmul.f32 0.5, %v4131
  %v4133 = vsub.f32 1.5, %v4132
  %v4134 = vmul.f32 %v4129, %v4133
  %vm4135 = vweird.f32 %v3658
  %vm4136 = vweird.f32 %v4129
  %vm4137 = vmor %vm4135, %vm4136
  %v4138 = vsel %vm4137, %v4129, %v4134
  %v4139 = vrsqrt.pop %v3659
  %v4140 = vmul.f32 %v4139, %v3659
  %v4141 = vmul.f32 %v4140, %v4139
  %v4142 = vmul.f32 0.5, %v4141
  %v4143 = vsub.f32 1.5, %v4142
  %v4144 = vmul.f32 %v4139, %v4143
  %vm4145 = vweird.f32 %v3659
  %vm4146 = vweird.f32 %v4139
  %vm4147 = vmor %vm4145, %vm4146
  %v4148 = vsel %vm4147, %v4139, %v4144
  %v4149 = vrsqrt.pop %v3660
  %v4150 = vmul.f32 %v4149, %v3660
  %v4151 = vmul.f32 %v4150, %v4149
  %v4152 = vmul.f32 0.5, %v4151
  %v4153 = vsub.f32 1.5, %v4152
  %v4154 = vmul.f32 %v4149, %v4153
  %vm4155 = vweird.f32 %v3660
  %vm4156 = vweird.f32 %v4149
  %vm4157 = vmor %vm4155, %vm4156
  %v4158 = vsel %vm4157, %v4149, %v4154
  %v4159 = vrsqrt.pop %v3661
  %v4160 = vmul.f32 %v4159, %v3661
  %v4161 = vmul.f32 %v4160, %v4159
  %v4162 = vmul.f32 0.5, %v4161
  %v4163 = vsub.f32 1.5, %v4162
  %v4164 = vmul.f32 %v4159, %v4163
  %vm4165 = vweird.f32 %v3661
  %vm4166 = vweird.f32 %v4159
  %vm4167 = vmor %vm4165, %vm4166
  %v4168 = vsel %vm4167, %v4159, %v4164
  %v4169 = vrsqrt.pop %v3662
  %v4170 = vmul.f32 %v4169, %v3662
  %v4171 = vmul.f32 %v4170, %v4169
  %v4172 = vmul.f32 0.5, %v4171
  %v4173 = vsub.f32 1.5, %v4172
  %v4174 = vmul.f32 %v4169, %v4173
  %vm4175 = vweird.f32 %v3662
  %vm4176 = vweird.f32 %v4169
  %vm4177 = vmor %vm4175, %vm4176
  %v4178 = vsel %vm4177, %v4169, %v4174
  %v4179 = vrsqrt.pop %v3663
  %v4180 = vmul.f32 %v4179, %v3663
  %v4181 = vmul.f32 %v4180, %v4179
  %v4182 = vmul.f32 0.5, %v4181
  %v4183 = vsub.f32 1.5, %v4182
  %v4184 = vmul.f32 %v4179, %v4183
  %vm4185 = vweird.f32 %v3663
  %vm4186 = vweird.f32 %v4179
  %vm4187 = vmor %vm4185, %vm4186
  %v4188 = vsel %vm4187, %v4179, %v4184
  %v4189 = vrsqrt.pop %v3664
  %v4190 = vmul.f32 %v4189, %v3664
  %v4191 = vmul.f32 %v4190, %v4189
  %v4192 = vmul.f32 0.5, %v4191
  %v4193 = vsub.f32 1.5, %v4192
  %v4194 = vmul.f32 %v4189, %v4193
  %vm4195 = vweird.f32 %v3664
  %vm4196 = vweird.f32 %v4189
  %vm4197 = vmor %vm4195, %vm4196
  %v4198 = vsel %vm4197, %v4189, %v4194
  %v4199 = vrsqrt.pop %v3665
  %v4200 = vmul.f32 %v4199, %v3665
  %v4201 = vmul.f32 %v4200, %v4199
  %v4202 = vmul.f32 0.5, %v4201
  %v4203 = vsub.f32 1.5, %v4202
  %v4204 = vmul.f32 %v4199, %v4203
  %vm4205 = vweird.f32 %v3665
  %vm4206 = vweird.f32 %v4199
  %vm4207 = vmor %vm4205, %vm4206
  %v4208 = vsel %vm4207, %v4199, %v4204
  %v4209 = vrsqrt.pop %v3666
  %v4210 = vmul.f32 %v4209, %v3666
  %v4211 = vmul.f32 %v4210, %v4209
  %v4212 = vmul.f32 0.5, %v4211
  %v4213 = vsub.f32 1.5, %v4212
  %v4214 = vmul.f32 %v4209, %v4213
  %vm4215 = vweird.f32 %v3666
  %vm4216 = vweird.f32 %v4209
  %vm4217 = vmor %vm4215, %vm4216
  %v4218 = vsel %vm4217, %v4209, %v4214
  %v4219 = vrsqrt.pop %v3667
  %v4220 = vmul.f32 %v4219, %v3667
  %v4221 = vmul.f32 %v4220, %v4219
  %v4222 = vmul.f32 0.5, %v4221
  %v4223 = vsub.f32 1.5, %v4222
  %v4224 = vmul.f32 %v4219, %v4223
  %vm4225 = vweird.f32 %v3667
  %vm4226 = vweird.f32 %v4219
  %vm4227 = vmor %vm4225, %vm4226
  %v4228 = vsel %vm4227, %v4219, %v4224
  %v4229 = vrsqrt.pop %v3668
  %v4230 = vmul.f32 %v4229, %v3668
  %v4231 = vmul.f32 %v4230, %v4229
  %v4232 = vmul.f32 0.5, %v4231
  %v4233 = vsub.f32 1.5, %v4232
  %v4234 = vmul.f32 %v4229, %v4233
  %vm4235 = vweird.f32 %v3668
  %vm4236 = vweird.f32 %v4229
  %vm4237 = vmor %vm4235, %vm4236
  %v4238 = vsel %vm4237, %v4229, %v4234
  %v4239 = vrsqrt.pop %v3669
  %v4240 = vmul.f32 %v4239, %v3669
  %v4241 = vmul.f32 %v4240, %v4239
  %v4242 = vmul.f32 0.5, %v4241
  %v4243 = vsub.f32 1.5, %v4242
  %v4244 = vmul.f32 %v4239, %v4243
  %vm4245 = vweird.f32 %v3669
  %vm4246 = vweird.f32 %v4239
  %vm4247 = vmor %vm4245, %vm4246
  %v4248 = vsel %vm4247, %v4239, %v4244
  %v4249 = vrsqrt.pop %v3670
  %v4250 = vmul.f32 %v4249, %v3670
  %v4251 = vmul.f32 %v4250, %v4249
  %v4252 = vmul.f32 0.5, %v4251
  %v4253 = vsub.f32 1.5, %v4252
  %v4254 = vmul.f32 %v4249, %v4253
  %vm4255 = vweird.f32 %v3670
  %vm4256 = vweird.f32 %v4249
  %vm4257 = vmor %vm4255, %vm4256
  %v4258 = vsel %vm4257, %v4249, %v4254
  %v4259 = vrsqrt.pop %v3671
  %v4260 = vmul.f32 %v4259, %v3671
  %v4261 = vmul.f32 %v4260, %v4259
  %v4262 = vmul.f32 0.5, %v4261
  %v4263 = vsub.f32 1.5, %v4262
  %v4264 = vmul.f32 %v4259, %v4263
  %vm4265 = vweird.f32 %v3671
  %vm4266 = vweird.f32 %v4259
  %vm4267 = vmor %vm4265, %vm4266
  %v4268 = vsel %vm4267, %v4259, %v4264
  %v4269 = vrsqrt.pop %v3672
  %v4270 = vmul.f32 %v4269, %v3672
  %v4271 = vmul.f32 %v4270, %v4269
  %v4272 = vmul.f32 0.5, %v4271
  %v4273 = vsub.f32 1.5, %v4272
  %v4274 = vmul.f32 %v4269, %v4273
  %vm4275 = vweird.f32 %v3672
  %vm4276 = vweird.f32 %v4269
  %vm4277 = vmor %vm4275, %vm4276
  %v4278 = vsel %vm4277, %v4269, %v4274
  %v4279 = vrsqrt.pop %v3673
  %v4280 = vmul.f32 %v4279, %v3673
  %v4281 = vmul.f32 %v4280, %v4279
  %v4282 = vmul.f32 0.5, %v4281
  %v4283 = vsub.f32 1.5, %v4282
  %v4284 = vmul.f32 %v4279, %v4283
  %vm4285 = vweird.f32 %v3673
  %vm4286 = vweird.f32 %v4279
  %vm4287 = vmor %vm4285, %vm4286
  %v4288 = vsel %vm4287, %v4279, %v4284
  %v4289 = vrsqrt.pop %v3674
  %v4290 = vmul.f32 %v4289, %v3674
  %v4291 = vmul.f32 %v4290, %v4289
  %v4292 = vmul.f32 0.5, %v4291
  %v4293 = vsub.f32 1.5, %v4292
  %v4294 = vmul.f32 %v4289, %v4293
  %vm4295 = vweird.f32 %v3674
  %vm4296 = vweird.f32 %v4289
  %vm4297 = vmor %vm4295, %vm4296
  %v4298 = vsel %vm4297, %v4289, %v4294
  %v4299 = vrsqrt.pop %v3675
  %v4300 = vmul.f32 %v4299, %v3675
  %v4301 = vmul.f32 %v4300, %v4299
  %v4302 = vmul.f32 0.5, %v4301
  %v4303 = vsub.f32 1.5, %v4302
  %v4304 = vmul.f32 %v4299, %v4303
  %vm4305 = vweird.f32 %v3675
  %vm4306 = vweird.f32 %v4299
  %vm4307 = vmor %vm4305, %vm4306
  %v4308 = vsel %vm4307, %v4299, %v4304
  %v4309 = vrsqrt.pop %v3676
  %v4310 = vmul.f32 %v4309, %v3676
  %v4311 = vmul.f32 %v4310, %v4309
  %v4312 = vmul.f32 0.5, %v4311
  %v4313 = vsub.f32 1.5, %v4312
  %v4314 = vmul.f32 %v4309, %v4313
  %vm4315 = vweird.f32 %v3676
  %vm4316 = vweird.f32 %v4309
  %vm4317 = vmor %vm4315, %vm4316
  %v4318 = vsel %vm4317, %v4309, %v4314
  %v4319 = vrsqrt.pop %v3677
  %v4320 = vmul.f32 %v4319, %v3677
  %v4321 = vmul.f32 %v4320, %v4319
  %v4322 = vmul.f32 0.5, %v4321
  %v4323 = vsub.f32 1.5, %v4322
  %v4324 = vmul.f32 %v4319, %v4323
  %vm4325 = vweird.f32 %v3677
  %vm4326 = vweird.f32 %v4319
  %vm4327 = vmor %vm4325, %vm4326
  %v4328 = vsel %vm4327, %v4319, %v4324
  %v4329 = vrsqrt.pop %v3678
  %v4330 = vmul.f32 %v4329, %v3678
  %v4331 = vmul.f32 %v4330, %v4329
  %v4332 = vmul.f32 0.5, %v4331
  %v4333 = vsub.f32 1.5, %v4332
  %v4334 = vmul.f32 %v4329, %v4333
  %vm4335 = vweird.f32 %v3678
  %vm4336 = vweird.f32 %v4329
  %vm4337 = vmor %vm4335, %vm4336
  %v4338 = vsel %vm4337, %v4329, %v4334
  %v4339 = vrsqrt.pop %v3679
  %v4340 = vmul.f32 %v4339, %v3679
  %v4341 = vmul.f32 %v4340, %v4339
  %v4342 = vmul.f32 0.5, %v4341
  %v4343 = vsub.f32 1.5, %v4342
  %v4344 = vmul.f32 %v4339, %v4343
  %vm4345 = vweird.f32 %v3679
  %vm4346 = vweird.f32 %v4339
  %vm4347 = vmor %vm4345, %vm4346
  %v4348 = vsel %vm4347, %v4339, %v4344
  %v4349 = vrsqrt.pop %v3680
  %v4350 = vmul.f32 %v4349, %v3680
  %v4351 = vmul.f32 %v4350, %v4349
  %v4352 = vmul.f32 0.5, %v4351
  %v4353 = vsub.f32 1.5, %v4352
  %v4354 = vmul.f32 %v4349, %v4353
  %vm4355 = vweird.f32 %v3680
  %vm4356 = vweird.f32 %v4349
  %vm4357 = vmor %vm4355, %vm4356
  %v4358 = vsel %vm4357, %v4349, %v4354
  %v4359 = vrsqrt.pop %v3681
  %v4360 = vmul.f32 %v4359, %v3681
  %v4361 = vmul.f32 %v4360, %v4359
  %v4362 = vmul.f32 0.5, %v4361
  %v4363 = vsub.f32 1.5, %v4362
  %v4364 = vmul.f32 %v4359, %v4363
  %vm4365 = vweird.f32 %v3681
  %vm4366 = vweird.f32 %v4359
  %vm4367 = vmor %vm4365, %vm4366
  %v4368 = vsel %vm4367, %v4359, %v4364
  %v4369 = vrsqrt.pop %v3682
  %v4370 = vmul.f32 %v4369, %v3682
  %v4371 = vmul.f32 %v4370, %v4369
  %v4372 = vmul.f32 0.5, %v4371
  %v4373 = vsub.f32 1.5, %v4372
  %v4374 = vmul.f32 %v4369, %v4373
  %vm4375 = vweird.f32 %v3682
  %vm4376 = vweird.f32 %v4369
  %vm4377 = vmor %vm4375, %vm4376
  %v4378 = vsel %vm4377, %v4369, %v4374
  %v4379 = vrsqrt.pop %v3683
  %v4380 = vmul.f32 %v4379, %v3683
  %v4381 = vmul.f32 %v4380, %v4379
  %v4382 = vmul.f32 0.5, %v4381
  %v4383 = vsub.f32 1.5, %v4382
  %v4384 = vmul.f32 %v4379, %v4383
  %vm4385 = vweird.f32 %v3683
  %vm4386 = vweird.f32 %v4379
  %vm4387 = vmor %vm4385, %vm4386
  %v4388 = vsel %vm4387, %v4379, %v4384
  %v4389 = vrsqrt.pop %v3684
  %v4390 = vmul.f32 %v4389, %v3684
  %v4391 = vmul.f32 %v4390, %v4389
  %v4392 = vmul.f32 0.5, %v4391
  %v4393 = vsub.f32 1.5, %v4392
  %v4394 = vmul.f32 %v4389, %v4393
  %vm4395 = vweird.f32 %v3684
  %vm4396 = vweird.f32 %v4389
  %vm4397 = vmor %vm4395, %vm4396
  %v4398 = vsel %vm4397, %v4389, %v4394
  %v4399 = vrsqrt.pop %v3685
  %v4400 = vmul.f32 %v4399, %v3685
  %v4401 = vmul.f32 %v4400, %v4399
  %v4402 = vmul.f32 0.5, %v4401
  %v4403 = vsub.f32 1.5, %v4402
  %v4404 = vmul.f32 %v4399, %v4403
  %vm4405 = vweird.f32 %v3685
  %vm4406 = vweird.f32 %v4399
  %vm4407 = vmor %vm4405, %vm4406
  %v4408 = vsel %vm4407, %v4399, %v4404
  %v4409 = vrsqrt.pop %v3686
  %v4410 = vmul.f32 %v4409, %v3686
  %v4411 = vmul.f32 %v4410, %v4409
  %v4412 = vmul.f32 0.5, %v4411
  %v4413 = vsub.f32 1.5, %v4412
  %v4414 = vmul.f32 %v4409, %v4413
  %vm4415 = vweird.f32 %v3686
  %vm4416 = vweird.f32 %v4409
  %vm4417 = vmor %vm4415, %vm4416
  %v4418 = vsel %vm4417, %v4409, %v4414
  %v4419 = vrsqrt.pop %v3687
  %v4420 = vmul.f32 %v4419, %v3687
  %v4421 = vmul.f32 %v4420, %v4419
  %v4422 = vmul.f32 0.5, %v4421
  %v4423 = vsub.f32 1.5, %v4422
  %v4424 = vmul.f32 %v4419, %v4423
  %vm4425 = vweird.f32 %v3687
  %vm4426 = vweird.f32 %v4419
  %vm4427 = vmor %vm4425, %vm4426
  %v4428 = vsel %vm4427, %v4419, %v4424
  %v4429 = vrsqrt.pop %v3688
  %v4430 = vmul.f32 %v4429, %v3688
  %v4431 = vmul.f32 %v4430, %v4429
  %v4432 = vmul.f32 0.5, %v4431
  %v4433 = vsub.f32 1.5, %v4432
  %v4434 = vmul.f32 %v4429, %v4433
  %vm4435 = vweird.f32 %v3688
  %vm4436 = vweird.f32 %v4429
  %vm4437 = vmor %vm4435, %vm4436
  %v4438 = vsel %vm4437, %v4429, %v4434
  %v4439 = vrsqrt.pop %v3689
  %v4440 = vmul.f32 %v4439, %v3689
  %v4441 = vmul.f32 %v4440, %v4439
  %v4442 = vmul.f32 0.5, %v4441
  %v4443 = vsub.f32 1.5, %v4442
  %v4444 = vmul.f32 %v4439, %v4443
  %vm4445 = vweird.f32 %v3689
  %vm4446 = vweird.f32 %v4439
  %vm4447 = vmor %vm4445, %vm4446
  %v4448 = vsel %vm4447, %v4439, %v4444
  %v4449 = vrsqrt.pop %v3690
  %v4450 = vmul.f32 %v4449, %v3690
  %v4451 = vmul.f32 %v4450, %v4449
  %v4452 = vmul.f32 0.5, %v4451
  %v4453 = vsub.f32 1.5, %v4452
  %v4454 = vmul.f32 %v4449, %v4453
  %vm4455 = vweird.f32 %v3690
  %vm4456 = vweird.f32 %v4449
  %vm4457 = vmor %vm4455, %vm4456
  %v4458 = vsel %vm4457, %v4449, %v4454
  %v4459 = vrsqrt.pop %v3691
  %v4460 = vmul.f32 %v4459, %v3691
  %v4461 = vmul.f32 %v4460, %v4459
  %v4462 = vmul.f32 0.5, %v4461
  %v4463 = vsub.f32 1.5, %v4462
  %v4464 = vmul.f32 %v4459, %v4463
  %vm4465 = vweird.f32 %v3691
  %vm4466 = vweird.f32 %v4459
  %vm4467 = vmor %vm4465, %vm4466
  %v4468 = vsel %vm4467, %v4459, %v4464
  %v4469 = vrsqrt.pop %v3692
  %v4470 = vmul.f32 %v4469, %v3692
  %v4471 = vmul.f32 %v4470, %v4469
  %v4472 = vmul.f32 0.5, %v4471
  %v4473 = vsub.f32 1.5, %v4472
  %v4474 = vmul.f32 %v4469, %v4473
  %vm4475 = vweird.f32 %v3692
  %vm4476 = vweird.f32 %v4469
  %vm4477 = vmor %vm4475, %vm4476
  %v4478 = vsel %vm4477, %v4469, %v4474
  %v4479 = vrsqrt.pop %v3693
  %v4480 = vmul.f32 %v4479, %v3693
  %v4481 = vmul.f32 %v4480, %v4479
  %v4482 = vmul.f32 0.5, %v4481
  %v4483 = vsub.f32 1.5, %v4482
  %v4484 = vmul.f32 %v4479, %v4483
  %vm4485 = vweird.f32 %v3693
  %vm4486 = vweird.f32 %v4479
  %vm4487 = vmor %vm4485, %vm4486
  %v4488 = vsel %vm4487, %v4479, %v4484
  %v4489 = vrsqrt.pop %v3694
  %v4490 = vmul.f32 %v4489, %v3694
  %v4491 = vmul.f32 %v4490, %v4489
  %v4492 = vmul.f32 0.5, %v4491
  %v4493 = vsub.f32 1.5, %v4492
  %v4494 = vmul.f32 %v4489, %v4493
  %vm4495 = vweird.f32 %v3694
  %vm4496 = vweird.f32 %v4489
  %vm4497 = vmor %vm4495, %vm4496
  %v4498 = vsel %vm4497, %v4489, %v4494
  %v4499 = vrsqrt.pop %v3695
  %v4500 = vmul.f32 %v4499, %v3695
  %v4501 = vmul.f32 %v4500, %v4499
  %v4502 = vmul.f32 0.5, %v4501
  %v4503 = vsub.f32 1.5, %v4502
  %v4504 = vmul.f32 %v4499, %v4503
  %vm4505 = vweird.f32 %v3695
  %vm4506 = vweird.f32 %v4499
  %vm4507 = vmor %vm4505, %vm4506
  %v4508 = vsel %vm4507, %v4499, %v4504
  %v4509 = vrsqrt.pop %v3696
  %v4510 = vmul.f32 %v4509, %v3696
  %v4511 = vmul.f32 %v4510, %v4509
  %v4512 = vmul.f32 0.5, %v4511
  %v4513 = vsub.f32 1.5, %v4512
  %v4514 = vmul.f32 %v4509, %v4513
  %vm4515 = vweird.f32 %v3696
  %vm4516 = vweird.f32 %v4509
  %vm4517 = vmor %vm4515, %vm4516
  %v4518 = vsel %vm4517, %v4509, %v4514
  %v4519 = vrsqrt.pop %v3697
  %v4520 = vmul.f32 %v4519, %v3697
  %v4521 = vmul.f32 %v4520, %v4519
  %v4522 = vmul.f32 0.5, %v4521
  %v4523 = vsub.f32 1.5, %v4522
  %v4524 = vmul.f32 %v4519, %v4523
  %vm4525 = vweird.f32 %v3697
  %vm4526 = vweird.f32 %v4519
  %vm4527 = vmor %vm4525, %vm4526
  %v4528 = vsel %vm4527, %v4519, %v4524
  %v4529 = vrsqrt.pop %v3698
  %v4530 = vmul.f32 %v4529, %v3698
  %v4531 = vmul.f32 %v4530, %v4529
  %v4532 = vmul.f32 0.5, %v4531
  %v4533 = vsub.f32 1.5, %v4532
  %v4534 = vmul.f32 %v4529, %v4533
  %vm4535 = vweird.f32 %v3698
  %vm4536 = vweird.f32 %v4529
  %vm4537 = vmor %vm4535, %vm4536
  %v4538 = vsel %vm4537, %v4529, %v4534
  %v4539 = vrsqrt.pop %v3699
  %v4540 = vmul.f32 %v4539, %v3699
  %v4541 = vmul.f32 %v4540, %v4539
  %v4542 = vmul.f32 0.5, %v4541
  %v4543 = vsub.f32 1.5, %v4542
  %v4544 = vmul.f32 %v4539, %v4543
  %vm4545 = vweird.f32 %v3699
  %vm4546 = vweird.f32 %v4539
  %vm4547 = vmor %vm4545, %vm4546
  %v4548 = vsel %vm4547, %v4539, %v4544
  %v4549 = vrsqrt.pop %v3700
  %v4550 = vmul.f32 %v4549, %v3700
  %v4551 = vmul.f32 %v4550, %v4549
  %v4552 = vmul.f32 0.5, %v4551
  %v4553 = vsub.f32 1.5, %v4552
  %v4554 = vmul.f32 %v4549, %v4553
  %vm4555 = vweird.f32 %v3700
  %vm4556 = vweird.f32 %v4549
  %vm4557 = vmor %vm4555, %vm4556
  %v4558 = vsel %vm4557, %v4549, %v4554
  %v4559 = vrsqrt.pop %v3701
  %v4560 = vmul.f32 %v4559, %v3701
  %v4561 = vmul.f32 %v4560, %v4559
  %v4562 = vmul.f32 0.5, %v4561
  %v4563 = vsub.f32 1.5, %v4562
  %v4564 = vmul.f32 %v4559, %v4563
  %vm4565 = vweird.f32 %v3701
  %vm4566 = vweird.f32 %v4559
  %vm4567 = vmor %vm4565, %vm4566
  %v4568 = vsel %vm4567, %v4559, %v4564
  %v4569 = vrsqrt.pop %v3702
  %v4570 = vmul.f32 %v4569, %v3702
  %v4571 = vmul.f32 %v4570, %v4569
  %v4572 = vmul.f32 0.5, %v4571
  %v4573 = vsub.f32 1.5, %v4572
  %v4574 = vmul.f32 %v4569, %v4573
  %vm4575 = vweird.f32 %v3702
  %vm4576 = vweird.f32 %v4569
  %vm4577 = vmor %vm4575, %vm4576
  %v4578 = vsel %vm4577, %v4569, %v4574
  %v4579 = vrsqrt.pop %v3703
  %v4580 = vmul.f32 %v4579, %v3703
  %v4581 = vmul.f32 %v4580, %v4579
  %v4582 = vmul.f32 0.5, %v4581
  %v4583 = vsub.f32 1.5, %v4582
  %v4584 = vmul.f32 %v4579, %v4583
  %vm4585 = vweird.f32 %v3703
  %vm4586 = vweird.f32 %v4579
  %vm4587 = vmor %vm4585, %vm4586
  %v4588 = vsel %vm4587, %v4579, %v4584
  %v4589 = vrsqrt.pop %v3704
  %v4590 = vmul.f32 %v4589, %v3704
  %v4591 = vmul.f32 %v4590, %v4589
  %v4592 = vmul.f32 0.5, %v4591
  %v4593 = vsub.f32 1.5, %v4592
  %v4594 = vmul.f32 %v4589, %v4593
  %vm4595 = vweird.f32 %v3704
  %vm4596 = vweird.f32 %v4589
  %vm4597 = vmor %vm4595, %vm4596
  %v4598 = vsel %vm4597, %v4589, %v4594
  %v4599 = vrsqrt.pop %v3705
  %v4600 = vmul.f32 %v4599, %v3705
  %v4601 = vmul.f32 %v4600, %v4599
  %v4602 = vmul.f32 0.5, %v4601
  %v4603 = vsub.f32 1.5, %v4602
  %v4604 = vmul.f32 %v4599, %v4603
  %vm4605 = vweird.f32 %v3705
  %vm4606 = vweird.f32 %v4599
  %vm4607 = vmor %vm4605, %vm4606
  %v4608 = vsel %vm4607, %v4599, %v4604
  %v4609 = vrsqrt.pop %v3706
  %v4610 = vmul.f32 %v4609, %v3706
  %v4611 = vmul.f32 %v4610, %v4609
  %v4612 = vmul.f32 0.5, %v4611
  %v4613 = vsub.f32 1.5, %v4612
  %v4614 = vmul.f32 %v4609, %v4613
  %vm4615 = vweird.f32 %v3706
  %vm4616 = vweird.f32 %v4609
  %vm4617 = vmor %vm4615, %vm4616
  %v4618 = vsel %vm4617, %v4609, %v4614
  %v4619 = vrsqrt.pop %v3707
  %v4620 = vmul.f32 %v4619, %v3707
  %v4621 = vmul.f32 %v4620, %v4619
  %v4622 = vmul.f32 0.5, %v4621
  %v4623 = vsub.f32 1.5, %v4622
  %v4624 = vmul.f32 %v4619, %v4623
  %vm4625 = vweird.f32 %v3707
  %vm4626 = vweird.f32 %v4619
  %vm4627 = vmor %vm4625, %vm4626
  %v4628 = vsel %vm4627, %v4619, %v4624
  %v4629 = vrsqrt.pop %v3708
  %v4630 = vmul.f32 %v4629, %v3708
  %v4631 = vmul.f32 %v4630, %v4629
  %v4632 = vmul.f32 0.5, %v4631
  %v4633 = vsub.f32 1.5, %v4632
  %v4634 = vmul.f32 %v4629, %v4633
  %vm4635 = vweird.f32 %v3708
  %vm4636 = vweird.f32 %v4629
  %vm4637 = vmor %vm4635, %vm4636
  %v4638 = vsel %vm4637, %v4629, %v4634
  %v4639 = vrsqrt.pop %v3709
  %v4640 = vmul.f32 %v4639, %v3709
  %v4641 = vmul.f32 %v4640, %v4639
  %v4642 = vmul.f32 0.5, %v4641
  %v4643 = vsub.f32 1.5, %v4642
  %v4644 = vmul.f32 %v4639, %v4643
  %vm4645 = vweird.f32 %v3709
  %vm4646 = vweird.f32 %v4639
  %vm4647 = vmor %vm4645, %vm4646
  %v4648 = vsel %vm4647, %v4639, %v4644
  %v4649 = vrsqrt.pop %v3710
  %v4650 = vmul.f32 %v4649, %v3710
  %v4651 = vmul.f32 %v4650, %v4649
  %v4652 = vmul.f32 0.5, %v4651
  %v4653 = vsub.f32 1.5, %v4652
  %v4654 = vmul.f32 %v4649, %v4653
  %vm4655 = vweird.f32 %v3710
  %vm4656 = vweird.f32 %v4649
  %vm4657 = vmor %vm4655, %vm4656
  %v4658 = vsel %vm4657, %v4649, %v4654
  %v4659 = vrsqrt.pop %v3711
  %v4660 = vmul.f32 %v4659, %v3711
  %v4661 = vmul.f32 %v4660, %v4659
  %v4662 = vmul.f32 0.5, %v4661
  %v4663 = vsub.f32 1.5, %v4662
  %v4664 = vmul.f32 %v4659, %v4663
  %vm4665 = vweird.f32 %v3711
  %vm4666 = vweird.f32 %v4659
  %vm4667 = vmor %vm4665, %vm4666
  %v4668 = vsel %vm4667, %v4659, %v4664
  %v4669 = vrsqrt.pop %v3712
  %v4670 = vmul.f32 %v4669, %v3712
  %v4671 = vmul.f32 %v4670, %v4669
  %v4672 = vmul.f32 0.5, %v4671
  %v4673 = vsub.f32 1.5, %v4672
  %v4674 = vmul.f32 %v4669, %v4673
  %vm4675 = vweird.f32 %v3712
  %vm4676 = vweird.f32 %v4669
  %vm4677 = vmor %vm4675, %vm4676
  %v4678 = vsel %vm4677, %v4669, %v4674
  %v4679 = vrsqrt.pop %v3713
  %v4680 = vmul.f32 %v4679, %v3713
  %v4681 = vmul.f32 %v4680, %v4679
  %v4682 = vmul.f32 0.5, %v4681
  %v4683 = vsub.f32 1.5, %v4682
  %v4684 = vmul.f32 %v4679, %v4683
  %vm4685 = vweird.f32 %v3713
  %vm4686 = vweird.f32 %v4679
  %vm4687 = vmor %vm4685, %vm4686
  %v4688 = vsel %vm4687, %v4679, %v4684
  %v4689 = vrsqrt.pop %v3714
  %v4690 = vmul.f32 %v4689, %v3714
  %v4691 = vmul.f32 %v4690, %v4689
  %v4692 = vmul.f32 0.5, %v4691
  %v4693 = vsub.f32 1.5, %v4692
  %v4694 = vmul.f32 %v4689, %v4693
  %vm4695 = vweird.f32 %v3714
  %vm4696 = vweird.f32 %v4689
  %vm4697 = vmor %vm4695, %vm4696
  %v4698 = vsel %vm4697, %v4689, %v4694
  %v4699 = vrsqrt.pop %v3715
  %v4700 = vmul.f32 %v4699, %v3715
  %v4701 = vmul.f32 %v4700, %v4699
  %v4702 = vmul.f32 0.5, %v4701
  %v4703 = vsub.f32 1.5, %v4702
  %v4704 = vmul.f32 %v4699, %v4703
  %vm4705 = vweird.f32 %v3715
  %vm4706 = vweird.f32 %v4699
  %vm4707 = vmor %vm4705, %vm4706
  %v4708 = vsel %vm4707, %v4699, %v4704
  %v4709 = vrsqrt.pop %v3716
  %v4710 = vmul.f32 %v4709, %v3716
  %v4711 = vmul.f32 %v4710, %v4709
  %v4712 = vmul.f32 0.5, %v4711
  %v4713 = vsub.f32 1.5, %v4712
  %v4714 = vmul.f32 %v4709, %v4713
  %vm4715 = vweird.f32 %v3716
  %vm4716 = vweird.f32 %v4709
  %vm4717 = vmor %vm4715, %vm4716
  %v4718 = vsel %vm4717, %v4709, %v4714
  %v4719 = vrsqrt.pop %v3717
  %v4720 = vmul.f32 %v4719, %v3717
  %v4721 = vmul.f32 %v4720, %v4719
  %v4722 = vmul.f32 0.5, %v4721
  %v4723 = vsub.f32 1.5, %v4722
  %v4724 = vmul.f32 %v4719, %v4723
  %vm4725 = vweird.f32 %v3717
  %vm4726 = vweird.f32 %v4719
  %vm4727 = vmor %vm4725, %vm4726
  %v4728 = vsel %vm4727, %v4719, %v4724
  %v4729 = vrsqrt.pop %v3718
  %v4730 = vmul.f32 %v4729, %v3718
  %v4731 = vmul.f32 %v4730, %v4729
  %v4732 = vmul.f32 0.5, %v4731
  %v4733 = vsub.f32 1.5, %v4732
  %v4734 = vmul.f32 %v4729, %v4733
  %vm4735 = vweird.f32 %v3718
  %vm4736 = vweird.f32 %v4729
  %vm4737 = vmor %vm4735, %vm4736
  %v4738 = vsel %vm4737, %v4729, %v4734
  %v4739 = vrsqrt.pop %v3719
  %v4740 = vmul.f32 %v4739, %v3719
  %v4741 = vmul.f32 %v4740, %v4739
  %v4742 = vmul.f32 0.5, %v4741
  %v4743 = vsub.f32 1.5, %v4742
  %v4744 = vmul.f32 %v4739, %v4743
  %vm4745 = vweird.f32 %v3719
  %vm4746 = vweird.f32 %v4739
  %vm4747 = vmor %vm4745, %vm4746
  %v4748 = vsel %vm4747, %v4739, %v4744
  %v4749 = vrsqrt.pop %v3720
  %v4750 = vmul.f32 %v4749, %v3720
  %v4751 = vmul.f32 %v4750, %v4749
  %v4752 = vmul.f32 0.5, %v4751
  %v4753 = vsub.f32 1.5, %v4752
  %v4754 = vmul.f32 %v4749, %v4753
  %vm4755 = vweird.f32 %v3720
  %vm4756 = vweird.f32 %v4749
  %vm4757 = vmor %vm4755, %vm4756
  %v4758 = vsel %vm4757, %v4749, %v4754
  %v4759 = vrsqrt.pop %v3721
  %v4760 = vmul.f32 %v4759, %v3721
  %v4761 = vmul.f32 %v4760, %v4759
  %v4762 = vmul.f32 0.5, %v4761
  %v4763 = vsub.f32 1.5, %v4762
  %v4764 = vmul.f32 %v4759, %v4763
  %vm4765 = vweird.f32 %v3721
  %vm4766 = vweird.f32 %v4759
  %vm4767 = vmor %vm4765, %vm4766
  %v4768 = vsel %vm4767, %v4759, %v4764
  %v4769 = vrsqrt.pop %v3722
  %v4770 = vmul.f32 %v4769, %v3722
  %v4771 = vmul.f32 %v4770, %v4769
  %v4772 = vmul.f32 0.5, %v4771
  %v4773 = vsub.f32 1.5, %v4772
  %v4774 = vmul.f32 %v4769, %v4773
  %vm4775 = vweird.f32 %v3722
  %vm4776 = vweird.f32 %v4769
  %vm4777 = vmor %vm4775, %vm4776
  %v4778 = vsel %vm4777, %v4769, %v4774
  %v4779 = vrsqrt.pop %v3723
  %v4780 = vmul.f32 %v4779, %v3723
  %v4781 = vmul.f32 %v4780, %v4779
  %v4782 = vmul.f32 0.5, %v4781
  %v4783 = vsub.f32 1.5, %v4782
  %v4784 = vmul.f32 %v4779, %v4783
  %vm4785 = vweird.f32 %v3723
  %vm4786 = vweird.f32 %v4779
  %vm4787 = vmor %vm4785, %vm4786
  %v4788 = vsel %vm4787, %v4779, %v4784
  %v4789 = vrsqrt.pop %v3724
  %v4790 = vmul.f32 %v4789, %v3724
  %v4791 = vmul.f32 %v4790, %v4789
  %v4792 = vmul.f32 0.5, %v4791
  %v4793 = vsub.f32 1.5, %v4792
  %v4794 = vmul.f32 %v4789, %v4793
  %vm4795 = vweird.f32 %v3724
  %vm4796 = vweird.f32 %v4789
  %vm4797 = vmor %vm4795, %vm4796
  %v4798 = vsel %vm4797, %v4789, %v4794
  %v4799 = vrsqrt.pop %v3725
  %v4800 = vmul.f32 %v4799, %v3725
  %v4801 = vmul.f32 %v4800, %v4799
  %v4802 = vmul.f32 0.5, %v4801
  %v4803 = vsub.f32 1.5, %v4802
  %v4804 = vmul.f32 %v4799, %v4803
  %vm4805 = vweird.f32 %v3725
  %vm4806 = vweird.f32 %v4799
  %vm4807 = vmor %vm4805, %vm4806
  %v4808 = vsel %vm4807, %v4799, %v4804
  %v4809 = vrsqrt.pop %v3726
  %v4810 = vmul.f32 %v4809, %v3726
  %v4811 = vmul.f32 %v4810, %v4809
  %v4812 = vmul.f32 0.5, %v4811
  %v4813 = vsub.f32 1.5, %v4812
  %v4814 = vmul.f32 %v4809, %v4813
  %vm4815 = vweird.f32 %v3726
  %vm4816 = vweird.f32 %v4809
  %vm4817 = vmor %vm4815, %vm4816
  %v4818 = vsel %vm4817, %v4809, %v4814
  %v4819 = vrsqrt.pop %v3727
  %v4820 = vmul.f32 %v4819, %v3727
  %v4821 = vmul.f32 %v4820, %v4819
  %v4822 = vmul.f32 0.5, %v4821
  %v4823 = vsub.f32 1.5, %v4822
  %v4824 = vmul.f32 %v4819, %v4823
  %vm4825 = vweird.f32 %v3727
  %vm4826 = vweird.f32 %v4819
  %vm4827 = vmor %vm4825, %vm4826
  %v4828 = vsel %vm4827, %v4819, %v4824
  %v4829 = vrsqrt.pop %v3728
  %v4830 = vmul.f32 %v4829, %v3728
  %v4831 = vmul.f32 %v4830, %v4829
  %v4832 = vmul.f32 0.5, %v4831
  %v4833 = vsub.f32 1.5, %v4832
  %v4834 = vmul.f32 %v4829, %v4833
  %vm4835 = vweird.f32 %v3728
  %vm4836 = vweird.f32 %v4829
  %vm4837 = vmor %vm4835, %vm4836
  %v4838 = vsel %vm4837, %v4829, %v4834
  %v4839 = vrsqrt.pop %v3729
  %v4840 = vmul.f32 %v4839, %v3729
  %v4841 = vmul.f32 %v4840, %v4839
  %v4842 = vmul.f32 0.5, %v4841
  %v4843 = vsub.f32 1.5, %v4842
  %v4844 = vmul.f32 %v4839, %v4843
  %vm4845 = vweird.f32 %v3729
  %vm4846 = vweird.f32 %v4839
  %vm4847 = vmor %vm4845, %vm4846
  %v4848 = vsel %vm4847, %v4839, %v4844
  %v4849 = vrsqrt.pop %v3730
  %v4850 = vmul.f32 %v4849, %v3730
  %v4851 = vmul.f32 %v4850, %v4849
  %v4852 = vmul.f32 0.5, %v4851
  %v4853 = vsub.f32 1.5, %v4852
  %v4854 = vmul.f32 %v4849, %v4853
  %vm4855 = vweird.f32 %v3730
  %vm4856 = vweird.f32 %v4849
  %vm4857 = vmor %vm4855, %vm4856
  %v4858 = vsel %vm4857, %v4849, %v4854
  %v4859 = vrsqrt.pop %v3731
  %v4860 = vmul.f32 %v4859, %v3731
  %v4861 = vmul.f32 %v4860, %v4859
  %v4862 = vmul.f32 0.5, %v4861
  %v4863 = vsub.f32 1.5, %v4862
  %v4864 = vmul.f32 %v4859, %v4863
  %vm4865 = vweird.f32 %v3731
  %vm4866 = vweird.f32 %v4859
  %vm4867 = vmor %vm4865, %vm4866
  %v4868 = vsel %vm4867, %v4859, %v4864
  %v4869 = vrsqrt.pop %v3732
  %v4870 = vmul.f32 %v4869, %v3732
  %v4871 = vmul.f32 %v4870, %v4869
  %v4872 = vmul.f32 0.5, %v4871
  %v4873 = vsub.f32 1.5, %v4872
  %v4874 = vmul.f32 %v4869, %v4873
  %vm4875 = vweird.f32 %v3732
  %vm4876 = vweird.f32 %v4869
  %vm4877 = vmor %vm4875, %vm4876
  %v4878 = vsel %vm4877, %v4869, %v4874
  %v4879 = vrsqrt.pop %v3733
  %v4880 = vmul.f32 %v4879, %v3733
  %v4881 = vmul.f32 %v4880, %v4879
  %v4882 = vmul.f32 0.5, %v4881
  %v4883 = vsub.f32 1.5, %v4882
  %v4884 = vmul.f32 %v4879, %v4883
  %vm4885 = vweird.f32 %v3733
  %vm4886 = vweird.f32 %v4879
  %vm4887 = vmor %vm4885, %vm4886
  %v4888 = vsel %vm4887, %v4879, %v4884
  %v4889 = vrsqrt.pop %v3734
  %v4890 = vmul.f32 %v4889, %v3734
  %v4891 = vmul.f32 %v4890, %v4889
  %v4892 = vmul.f32 0.5, %v4891
  %v4893 = vsub.f32 1.5, %v4892
  %v4894 = vmul.f32 %v4889, %v4893
  %vm4895 = vweird.f32 %v3734
  %vm4896 = vweird.f32 %v4889
  %vm4897 = vmor %vm4895, %vm4896
  %v4898 = vsel %vm4897, %v4889, %v4894
  %v4899 = vrsqrt.pop %v3735
  %v4900 = vmul.f32 %v4899, %v3735
  %v4901 = vmul.f32 %v4900, %v4899
  %v4902 = vmul.f32 0.5, %v4901
  %v4903 = vsub.f32 1.5, %v4902
  %v4904 = vmul.f32 %v4899, %v4903
  %vm4905 = vweird.f32 %v3735
  %vm4906 = vweird.f32 %v4899
  %vm4907 = vmor %vm4905, %vm4906
  %v4908 = vsel %vm4907, %v4899, %v4904
  %v4909 = vrsqrt.pop %v3736
  %v4910 = vmul.f32 %v4909, %v3736
  %v4911 = vmul.f32 %v4910, %v4909
  %v4912 = vmul.f32 0.5, %v4911
  %v4913 = vsub.f32 1.5, %v4912
  %v4914 = vmul.f32 %v4909, %v4913
  %vm4915 = vweird.f32 %v3736
  %vm4916 = vweird.f32 %v4909
  %vm4917 = vmor %vm4915, %vm4916
  %v4918 = vsel %vm4917, %v4909, %v4914
  %v4919 = vrsqrt.pop %v3737
  %v4920 = vmul.f32 %v4919, %v3737
  %v4921 = vmul.f32 %v4920, %v4919
  %v4922 = vmul.f32 0.5, %v4921
  %v4923 = vsub.f32 1.5, %v4922
  %v4924 = vmul.f32 %v4919, %v4923
  %vm4925 = vweird.f32 %v3737
  %vm4926 = vweird.f32 %v4919
  %vm4927 = vmor %vm4925, %vm4926
  %v4928 = vsel %vm4927, %v4919, %v4924
  %v4929 = vrsqrt.pop %v3738
  %v4930 = vmul.f32 %v4929, %v3738
  %v4931 = vmul.f32 %v4930, %v4929
  %v4932 = vmul.f32 0.5, %v4931
  %v4933 = vsub.f32 1.5, %v4932
  %v4934 = vmul.f32 %v4929, %v4933
  %vm4935 = vweird.f32 %v3738
  %vm4936 = vweird.f32 %v4929
  %vm4937 = vmor %vm4935, %vm4936
  %v4938 = vsel %vm4937, %v4929, %v4934
  %v4939 = vld [vmem:[%s3] sm:$0xff]
  %v4940 = vld [vmem:[%s3 + $0x8] sm:$0xff]
  %v4941 = vld [vmem:[%s3 + $0x10] sm:$0xff]
  %v4942 = vld [vmem:[%s3 + $0x18] sm:$0xff]
  %v4943 = vld [vmem:[%s3 + $0x20] sm:$0xff]
  %v4944 = vld [vmem:[%s3 + $0x28] sm:$0xff]
  %v4945 = vld [vmem:[%s3 + $0x30] sm:$0xff]
  %v4946 = vld [vmem:[%s3 + $0x38] sm:$0xff]
  %v4947 = vld [vmem:[%s3 + $0x40] sm:$0xff]
  %v4948 = vld [vmem:[%s3 + $0x48] sm:$0xff]
  %v4949 = vld [vmem:[%s3 + $0x50] sm:$0xff]
  %v4950 = vld [vmem:[%s3 + $0x58] sm:$0xff]
  %v4951 = vld [vmem:[%s3 + $0x60] sm:$0xff]
  %v4952 = vld [vmem:[%s3 + $0x68] sm:$0xff]
  %v4953 = vld [vmem:[%s3 + $0x70] sm:$0xff]
  %v4954 = vld [vmem:[%s3 + $0x78] sm:$0xff]
  %v4955 = vld [vmem:[%s3 + $0x80] sm:$0xff]
  %v4956 = vld [vmem:[%s3 + $0x88] sm:$0xff]
  %v4957 = vld [vmem:[%s3 + $0x90] sm:$0xff]
  %v4958 = vld [vmem:[%s3 + $0x98] sm:$0xff]
  %v4959 = vld [vmem:[%s3 + $0xa0] sm:$0xff]
  %v4960 = vld [vmem:[%s3 + $0xa8] sm:$0xff]
  %v4961 = vld [vmem:[%s3 + $0xb0] sm:$0xff]
  %v4962 = vld [vmem:[%s3 + $0xb8] sm:$0xff]
  %v4963 = vld [vmem:[%s3 + $0xc0] sm:$0xff]
  %v4964 = vld [vmem:[%s3 + $0xc8] sm:$0xff]
  %v4965 = vld [vmem:[%s3 + $0xd0] sm:$0xff]
  %v4966 = vld [vmem:[%s3 + $0xd8] sm:$0xff]
  %v4967 = vld [vmem:[%s3 + $0xe0] sm:$0xff]
  %v4968 = vld [vmem:[%s3 + $0xe8] sm:$0xff]
  %v4969 = vld [vmem:[%s3 + $0xf0] sm:$0xff]
  %v4970 = vld [vmem:[%s3 + $0xf8] sm:$0xff]
  %v4971 = vld [vmem:[%s3 + $0x100] sm:$0xff]
  %v4972 = vld [vmem:[%s3 + $0x108] sm:$0xff]
  %v4973 = vld [vmem:[%s3 + $0x110] sm:$0xff]
  %v4974 = vld [vmem:[%s3 + $0x118] sm:$0xff]
  %v4975 = vld [vmem:[%s3 + $0x120] sm:$0xff]
  %v4976 = vld [vmem:[%s3 + $0x128] sm:$0xff]
  %v4977 = vld [vmem:[%s3 + $0x130] sm:$0xff]
  %v4978 = vld [vmem:[%s3 + $0x138] sm:$0xff]
  %v4979 = vld [vmem:[%s3 + $0x140] sm:$0xff]
  %v4980 = vld [vmem:[%s3 + $0x148] sm:$0xff]
  %v4981 = vld [vmem:[%s3 + $0x150] sm:$0xff]
  %v4982 = vld [vmem:[%s3 + $0x158] sm:$0xff]
  %v4983 = vld [vmem:[%s3 + $0x160] sm:$0xff]
  %v4984 = vld [vmem:[%s3 + $0x168] sm:$0xff]
  %v4985 = vld [vmem:[%s3 + $0x170] sm:$0xff]
  %v4986 = vld [vmem:[%s3 + $0x178] sm:$0xff]
  %v4987 = vld [vmem:[%s3 + $0x180] sm:$0xff]
  %v4988 = vld [vmem:[%s3 + $0x188] sm:$0xff]
  %v4989 = vld [vmem:[%s3 + $0x190] sm:$0xff]
  %v4990 = vld [vmem:[%s3 + $0x198] sm:$0xff]
  %v4991 = vld [vmem:[%s3 + $0x1a0] sm:$0xff]
  %v4992 = vld [vmem:[%s3 + $0x1a8] sm:$0xff]
  %v4993 = vld [vmem:[%s3 + $0x1b0] sm:$0xff]
  %v4994 = vld [vmem:[%s3 + $0x1b8] sm:$0xff]
  %v4995 = vld [vmem:[%s3 + $0x1c0] sm:$0xff]
  %v4996 = vld [vmem:[%s3 + $0x1c8] sm:$0xff]
  %v4997 = vld [vmem:[%s3 + $0x1d0] sm:$0xff]
  %v4998 = vld [vmem:[%s3 + $0x1d8] sm:$0xff]
  %v4999 = vld [vmem:[%s3 + $0x1e0] sm:$0xff]
  %v5000 = vld [vmem:[%s3 + $0x1e8] sm:$0xff]
  %v5001 = vld [vmem:[%s3 + $0x1f0] sm:$0xff]
  %v5002 = vld [vmem:[%s3 + $0x1f8] sm:$0xff]
  %v5003 = vld [vmem:[%s3 + $0x200] sm:$0xff]
  %v5004 = vld [vmem:[%s3 + $0x208] sm:$0xff]
  %v5005 = vld [vmem:[%s3 + $0x210] sm:$0xff]
  %v5006 = vld [vmem:[%s3 + $0x218] sm:$0xff]
  %v5007 = vld [vmem:[%s3 + $0x220] sm:$0xff]
  %v5008 = vld [vmem:[%s3 + $0x228] sm:$0xff]
  %v5009 = vld [vmem:[%s3 + $0x230] sm:$0xff]
  %v5010 = vld [vmem:[%s3 + $0x238] sm:$0xff]
  %v5011 = vld [vmem:[%s3 + $0x240] sm:$0xff]
  %v5012 = vld [vmem:[%s3 + $0x248] sm:$0xff]
  %v5013 = vld [vmem:[%s3 + $0x250] sm:$0xff]
  %v5014 = vld [vmem:[%s3 + $0x258] sm:$0xff]
  %v5015 = vld [vmem:[%s3 + $0x260] sm:$0xff]
  %v5016 = vld [vmem:[%s3 + $0x268] sm:$0xff]
  %v5017 = vld [vmem:[%s3 + $0x270] sm:$0xff]
  %v5018 = vld [vmem:[%s3 + $0x278] sm:$0xff]
  %v5019 = vld [vmem:[%s3 + $0x280] sm:$0xff]
  %v5020 = vld [vmem:[%s3 + $0x288] sm:$0xff]
  %v5021 = vld [vmem:[%s3 + $0x290] sm:$0xff]
  %v5022 = vld [vmem:[%s3 + $0x298] sm:$0xff]
  %v5023 = vld [vmem:[%s3 + $0x2a0] sm:$0xff]
  %v5024 = vld [vmem:[%s3 + $0x2a8] sm:$0xff]
  %v5025 = vld [vmem:[%s3 + $0x2b0] sm:$0xff]
  %v5026 = vld [vmem:[%s3 + $0x2b8] sm:$0xff]
  %v5027 = vld [vmem:[%s3 + $0x2c0] sm:$0xff]
  %v5028 = vld [vmem:[%s3 + $0x2c8] sm:$0xff]
  %v5029 = vld [vmem:[%s3 + $0x2d0] sm:$0xff]
  %v5030 = vld [vmem:[%s3 + $0x2d8] sm:$0xff]
  %v5031 = vld [vmem:[%s3 + $0x2e0] sm:$0xff]
  %v5032 = vld [vmem:[%s3 + $0x2e8] sm:$0xff]
  %v5033 = vld [vmem:[%s3 + $0x2f0] sm:$0xff]
  %v5034 = vld [vmem:[%s3 + $0x2f8] sm:$0xff]
  %v5035 = vld [vmem:[%s3 + $0x300] sm:$0xff]
  %v5036 = vld [vmem:[%s3 + $0x308] sm:$0xff]
  %v5037 = vld [vmem:[%s3 + $0x310] sm:$0xff]
  %v5038 = vld [vmem:[%s3 + $0x318] sm:$0xff]
  %v5039 = vld [vmem:[%s3 + $0x320] sm:$0xff]
  %v5040 = vld [vmem:[%s3 + $0x328] sm:$0xff]
  %v5041 = vld [vmem:[%s3 + $0x330] sm:$0xff]
  %v5042 = vld [vmem:[%s3 + $0x338] sm:$0xff]
  %v5043 = vld [vmem:[%s3 + $0x340] sm:$0xff]
  %v5044 = vld [vmem:[%s3 + $0x348] sm:$0xff]
  %v5045 = vld [vmem:[%s3 + $0x350] sm:$0xff]
  %v5046 = vld [vmem:[%s3 + $0x358] sm:$0xff]
  %v5047 = vld [vmem:[%s3 + $0x360] sm:$0xff]
  %v5048 = vld [vmem:[%s3 + $0x368] sm:$0xff]
  %v5049 = vld [vmem:[%s3 + $0x370] sm:$0xff]
  %v5050 = vld [vmem:[%s3 + $0x378] sm:$0xff]
  %v5051 = vld [vmem:[%s3 + $0x380] sm:$0xff]
  %v5052 = vld [vmem:[%s3 + $0x388] sm:$0xff]
  %v5053 = vld [vmem:[%s3 + $0x390] sm:$0xff]
  %v5054 = vld [vmem:[%s3 + $0x398] sm:$0xff]
  %v5055 = vld [vmem:[%s3 + $0x3a0] sm:$0xff]
  %v5056 = vld [vmem:[%s3 + $0x3a8] sm:$0xff]
  %v5057 = vld [vmem:[%s3 + $0x3b0] sm:$0xff]
  %v5058 = vld [vmem:[%s3 + $0x3b8] sm:$0xff]
  %v5059 = vmul.f32 %v3748, %v4939
  %v5060 = vmul.f32 %v3758, %v4940
  %v5061 = vmul.f32 %v3768, %v4941
  %v5062 = vmul.f32 %v3778, %v4942
  %v5063 = vmul.f32 %v3788, %v4943
  %v5064 = vmul.f32 %v3798, %v4944
  %v5065 = vmul.f32 %v3808, %v4945
  %v5066 = vmul.f32 %v3818, %v4946
  %v5067 = vmul.f32 %v3828, %v4947
  %v5068 = vmul.f32 %v3838, %v4948
  %v5069 = vmul.f32 %v3848, %v4949
  %v5070 = vmul.f32 %v3858, %v4950
  %v5071 = vmul.f32 %v3868, %v4951
  %v5072 = vmul.f32 %v3878, %v4952
  %v5073 = vmul.f32 %v3888, %v4953
  %v5074 = vmul.f32 %v3898, %v4954
  %v5075 = vmul.f32 %v3908, %v4955
  %v5076 = vmul.f32 %v3918, %v4956
  %v5077 = vmul.f32 %v3928, %v4957
  %v5078 = vmul.f32 %v3938, %v4958
  %v5079 = vmul.f32 %v3948, %v4959
  %v5080 = vmul.f32 %v3958, %v4960
  %v5081 = vmul.f32 %v3968, %v4961
  %v5082 = vmul.f32 %v3978, %v4962
  %v5083 = vmul.f32 %v3988, %v4963
  %v5084 = vmul.f32 %v3998, %v4964
  %v5085 = vmul.f32 %v4008, %v4965
  %v5086 = vmul.f32 %v4018, %v4966
  %v5087 = vmul.f32 %v4028, %v4967
  %v5088 = vmul.f32 %v4038, %v4968
  %v5089 = vmul.f32 %v4048, %v4969
  %v5090 = vmul.f32 %v4058, %v4970
  %v5091 = vmul.f32 %v4068, %v4971
  %v5092 = vmul.f32 %v4078, %v4972
  %v5093 = vmul.f32 %v4088, %v4973
  %v5094 = vmul.f32 %v4098, %v4974
  %v5095 = vmul.f32 %v4108, %v4975
  %v5096 = vmul.f32 %v4118, %v4976
  %v5097 = vmul.f32 %v4128, %v4977
  %v5098 = vmul.f32 %v4138, %v4978
  %v5099 = vmul.f32 %v4148, %v4979
  %v5100 = vmul.f32 %v4158, %v4980
  %v5101 = vmul.f32 %v4168, %v4981
  %v5102 = vmul.f32 %v4178, %v4982
  %v5103 = vmul.f32 %v4188, %v4983
  %v5104 = vmul.f32 %v4198, %v4984
  %v5105 = vmul.f32 %v4208, %v4985
  %v5106 = vmul.f32 %v4218, %v4986
  %v5107 = vmul.f32 %v4228, %v4987
  %v5108 = vmul.f32 %v4238, %v4988
  %v5109 = vmul.f32 %v4248, %v4989
  %v5110 = vmul.f32 %v4258, %v4990
  %v5111 = vmul.f32 %v4268, %v4991
  %v5112 = vmul.f32 %v4278, %v4992
  %v5113 = vmul.f32 %v4288, %v4993
  %v5114 = vmul.f32 %v4298, %v4994
  %v5115 = vmul.f32 %v4308, %v4995
  %v5116 = vmul.f32 %v4318, %v4996
  %v5117 = vmul.f32 %v4328, %v4997
  %v5118 = vmul.f32 %v4338, %v4998
  %v5119 = vmul.f32 %v4348, %v4999
  %v5120 = vmul.f32 %v4358, %v5000
  %v5121 = vmul.f32 %v4368, %v5001
  %v5122 = vmul.f32 %v4378, %v5002
  %v5123 = vmul.f32 %v4388, %v5003
  %v5124 = vmul.f32 %v4398, %v5004
  %v5125 = vmul.f32 %v4408, %v5005
  %v5126 = vmul.f32 %v4418, %v5006
  %v5127 = vmul.f32 %v4428, %v5007
  %v5128 = vmul.f32 %v4438, %v5008
  %v5129 = vmul.f32 %v4448, %v5009
  %v5130 = vmul.f32 %v4458, %v5010
  %v5131 = vmul.f32 %v4468, %v5011
  %v5132 = vmul.f32 %v4478, %v5012
  %v5133 = vmul.f32 %v4488, %v5013
  %v5134 = vmul.f32 %v4498, %v5014
  %v5135 = vmul.f32 %v4508, %v5015
  %v5136 = vmul.f32 %v4518, %v5016
  %v5137 = vmul.f32 %v4528, %v5017
  %v5138 = vmul.f32 %v4538, %v5018
  %v5139 = vmul.f32 %v4548, %v5019
  %v5140 = vmul.f32 %v4558, %v5020
  %v5141 = vmul.f32 %v4568, %v5021
  %v5142 = vmul.f32 %v4578, %v5022
  %v5143 = vmul.f32 %v4588, %v5023
  %v5144 = vmul.f32 %v4598, %v5024
  %v5145 = vmul.f32 %v4608, %v5025
  %v5146 = vmul.f32 %v4618, %v5026
  %v5147 = vmul.f32 %v4628, %v5027
  %v5148 = vmul.f32 %v4638, %v5028
  %v5149 = vmul.f32 %v4648, %v5029
  %v5150 = vmul.f32 %v4658, %v5030
  %v5151 = vmul.f32 %v4668, %v5031
  %v5152 = vmul.f32 %v4678, %v5032
  %v5153 = vmul.f32 %v4688, %v5033
  %v5154 = vmul.f32 %v4698, %v5034
  %v5155 = vmul.f32 %v4708, %v5035
  %v5156 = vmul.f32 %v4718, %v5036
  %v5157 = vmul.f32 %v4728, %v5037
  %v5158 = vmul.f32 %v4738, %v5038
  %v5159 = vmul.f32 %v4748, %v5039
  %v5160 = vmul.f32 %v4758, %v5040
  %v5161 = vmul.f32 %v4768, %v5041
  %v5162 = vmul.f32 %v4778, %v5042
  %v5163 = vmul.f32 %v4788, %v5043
  %v5164 = vmul.f32 %v4798, %v5044
  %v5165 = vmul.f32 %v4808, %v5045
  %v5166 = vmul.f32 %v4818, %v5046
  %v5167 = vmul.f32 %v4828, %v5047
  %v5168 = vmul.f32 %v4838, %v5048
  %v5169 = vmul.f32 %v4848, %v5049
  %v5170 = vmul.f32 %v4858, %v5050
  %v5171 = vmul.f32 %v4868, %v5051
  %v5172 = vmul.f32 %v4878, %v5052
  %v5173 = vmul.f32 %v4888, %v5053
  %v5174 = vmul.f32 %v4898, %v5054
  %v5175 = vmul.f32 %v4908, %v5055
  %v5176 = vmul.f32 %v4918, %v5056
  %v5177 = vmul.f32 %v4928, %v5057
  %v5178 = vmul.f32 %v4938, %v5058
  %v5179 = vld [vmem:[%s4] sm:$0xff]
  %v5180 = vld [vmem:[%s4 + $0x8] sm:$0xff]
  %v5181 = vld [vmem:[%s4 + $0x10] sm:$0xff]
  %v5182 = vld [vmem:[%s4 + $0x18] sm:$0xff]
  %v5183 = vld [vmem:[%s4 + $0x20] sm:$0xff]
  %v5184 = vld [vmem:[%s4 + $0x28] sm:$0xff]
  %v5185 = vld [vmem:[%s4 + $0x30] sm:$0xff]
  %v5186 = vld [vmem:[%s4 + $0x38] sm:$0xff]
  %v5187 = vld [vmem:[%s4 + $0x40] sm:$0xff]
  %v5188 = vld [vmem:[%s4 + $0x48] sm:$0xff]
  %v5189 = vld [vmem:[%s4 + $0x50] sm:$0xff]
  %v5190 = vld [vmem:[%s4 + $0x58] sm:$0xff]
  %v5191 = vld [vmem:[%s4 + $0x60] sm:$0xff]
  %v5192 = vld [vmem:[%s4 + $0x68] sm:$0xff]
  %v5193 = vld [vmem:[%s4 + $0x70] sm:$0xff]
  %v5194 = vld [vmem:[%s4 + $0x78] sm:$0xff]
  %v5195 = vld [vmem:[%s4 + $0x80] sm:$0xff]
  %v5196 = vld [vmem:[%s4 + $0x88] sm:$0xff]
  %v5197 = vld [vmem:[%s4 + $0x90] sm:$0xff]
  %v5198 = vld [vmem:[%s4 + $0x98] sm:$0xff]
  %v5199 = vld [vmem:[%s4 + $0xa0] sm:$0xff]
  %v5200 = vld [vmem:[%s4 + $0xa8] sm:$0xff]
  %v5201 = vld [vmem:[%s4 + $0xb0] sm:$0xff]
  %v5202 = vld [vmem:[%s4 + $0xb8] sm:$0xff]
  %v5203 = vld [vmem:[%s4 + $0xc0] sm:$0xff]
  %v5204 = vld [vmem:[%s4 + $0xc8] sm:$0xff]
  %v5205 = vld [vmem:[%s4 + $0xd0] sm:$0xff]
  %v5206 = vld [vmem:[%s4 + $0xd8] sm:$0xff]
  %v5207 = vld [vmem:[%s4 + $0xe0] sm:$0xff]
  %v5208 = vld [vmem:[%s4 + $0xe8] sm:$0xff]
  %v5209 = vld [vmem:[%s4 + $0xf0] sm:$0xff]
  %v5210 = vld [vmem:[%s4 + $0xf8] sm:$0xff]
  %v5211 = vld [vmem:[%s4 + $0x100] sm:$0xff]
  %v5212 = vld [vmem:[%s4 + $0x108] sm:$0xff]
  %v5213 = vld [vmem:[%s4 + $0x110] sm:$0xff]
  %v5214 = vld [vmem:[%s4 + $0x118] sm:$0xff]
  %v5215 = vld [vmem:[%s4 + $0x120] sm:$0xff]
  %v5216 = vld [vmem:[%s4 + $0x128] sm:$0xff]
  %v5217 = vld [vmem:[%s4 + $0x130] sm:$0xff]
  %v5218 = vld [vmem:[%s4 + $0x138] sm:$0xff]
  %v5219 = vld [vmem:[%s4 + $0x140] sm:$0xff]
  %v5220 = vld [vmem:[%s4 + $0x148] sm:$0xff]
  %v5221 = vld [vmem:[%s4 + $0x150] sm:$0xff]
  %v5222 = vld [vmem:[%s4 + $0x158] sm:$0xff]
  %v5223 = vld [vmem:[%s4 + $0x160] sm:$0xff]
  %v5224 = vld [vmem:[%s4 + $0x168] sm:$0xff]
  %v5225 = vld [vmem:[%s4 + $0x170] sm:$0xff]
  %v5226 = vld [vmem:[%s4 + $0x178] sm:$0xff]
  %v5227 = vld [vmem:[%s4 + $0x180] sm:$0xff]
  %v5228 = vld [vmem:[%s4 + $0x188] sm:$0xff]
  %v5229 = vld [vmem:[%s4 + $0x190] sm:$0xff]
  %v5230 = vld [vmem:[%s4 + $0x198] sm:$0xff]
  %v5231 = vld [vmem:[%s4 + $0x1a0] sm:$0xff]
  %v5232 = vld [vmem:[%s4 + $0x1a8] sm:$0xff]
  %v5233 = vld [vmem:[%s4 + $0x1b0] sm:$0xff]
  %v5234 = vld [vmem:[%s4 + $0x1b8] sm:$0xff]
  %v5235 = vld [vmem:[%s4 + $0x1c0] sm:$0xff]
  %v5236 = vld [vmem:[%s4 + $0x1c8] sm:$0xff]
  %v5237 = vld [vmem:[%s4 + $0x1d0] sm:$0xff]
  %v5238 = vld [vmem:[%s4 + $0x1d8] sm:$0xff]
  %v5239 = vld [vmem:[%s4 + $0x1e0] sm:$0xff]
  %v5240 = vld [vmem:[%s4 + $0x1e8] sm:$0xff]
  %v5241 = vld [vmem:[%s4 + $0x1f0] sm:$0xff]
  %v5242 = vld [vmem:[%s4 + $0x1f8] sm:$0xff]
  %v5243 = vld [vmem:[%s4 + $0x200] sm:$0xff]
  %v5244 = vld [vmem:[%s4 + $0x208] sm:$0xff]
  %v5245 = vld [vmem:[%s4 + $0x210] sm:$0xff]
  %v5246 = vld [vmem:[%s4 + $0x218] sm:$0xff]
  %v5247 = vld [vmem:[%s4 + $0x220] sm:$0xff]
  %v5248 = vld [vmem:[%s4 + $0x228] sm:$0xff]
  %v5249 = vld [vmem:[%s4 + $0x230] sm:$0xff]
  %v5250 = vld [vmem:[%s4 + $0x238] sm:$0xff]
  %v5251 = vld [vmem:[%s4 + $0x240] sm:$0xff]
  %v5252 = vld [vmem:[%s4 + $0x248] sm:$0xff]
  %v5253 = vld [vmem:[%s4 + $0x250] sm:$0xff]
  %v5254 = vld [vmem:[%s4 + $0x258] sm:$0xff]
  %v5255 = vld [vmem:[%s4 + $0x260] sm:$0xff]
  %v5256 = vld [vmem:[%s4 + $0x268] sm:$0xff]
  %v5257 = vld [vmem:[%s4 + $0x270] sm:$0xff]
  %v5258 = vld [vmem:[%s4 + $0x278] sm:$0xff]
  %v5259 = vld [vmem:[%s4 + $0x280] sm:$0xff]
  %v5260 = vld [vmem:[%s4 + $0x288] sm:$0xff]
  %v5261 = vld [vmem:[%s4 + $0x290] sm:$0xff]
  %v5262 = vld [vmem:[%s4 + $0x298] sm:$0xff]
  %v5263 = vld [vmem:[%s4 + $0x2a0] sm:$0xff]
  %v5264 = vld [vmem:[%s4 + $0x2a8] sm:$0xff]
  %v5265 = vld [vmem:[%s4 + $0x2b0] sm:$0xff]
  %v5266 = vld [vmem:[%s4 + $0x2b8] sm:$0xff]
  %v5267 = vld [vmem:[%s4 + $0x2c0] sm:$0xff]
  %v5268 = vld [vmem:[%s4 + $0x2c8] sm:$0xff]
  %v5269 = vld [vmem:[%s4 + $0x2d0] sm:$0xff]
  %v5270 = vld [vmem:[%s4 + $0x2d8] sm:$0xff]
  %v5271 = vld [vmem:[%s4 + $0x2e0] sm:$0xff]
  %v5272 = vld [vmem:[%s4 + $0x2e8] sm:$0xff]
  %v5273 = vld [vmem:[%s4 + $0x2f0] sm:$0xff]
  %v5274 = vld [vmem:[%s4 + $0x2f8] sm:$0xff]
  %v5275 = vld [vmem:[%s4 + $0x300] sm:$0xff]
  %v5276 = vld [vmem:[%s4 + $0x308] sm:$0xff]
  %v5277 = vld [vmem:[%s4 + $0x310] sm:$0xff]
  %v5278 = vld [vmem:[%s4 + $0x318] sm:$0xff]
  %v5279 = vld [vmem:[%s4 + $0x320] sm:$0xff]
  %v5280 = vld [vmem:[%s4 + $0x328] sm:$0xff]
  %v5281 = vld [vmem:[%s4 + $0x330] sm:$0xff]
  %v5282 = vld [vmem:[%s4 + $0x338] sm:$0xff]
  %v5283 = vld [vmem:[%s4 + $0x340] sm:$0xff]
  %v5284 = vld [vmem:[%s4 + $0x348] sm:$0xff]
  %v5285 = vld [vmem:[%s4 + $0x350] sm:$0xff]
  %v5286 = vld [vmem:[%s4 + $0x358] sm:$0xff]
  %v5287 = vld [vmem:[%s4 + $0x360] sm:$0xff]
  %v5288 = vld [vmem:[%s4 + $0x368] sm:$0xff]
  %v5289 = vld [vmem:[%s4 + $0x370] sm:$0xff]
  %v5290 = vld [vmem:[%s4 + $0x378] sm:$0xff]
  %v5291 = vld [vmem:[%s4 + $0x380] sm:$0xff]
  %v5292 = vld [vmem:[%s4 + $0x388] sm:$0xff]
  %v5293 = vld [vmem:[%s4 + $0x390] sm:$0xff]
  %v5294 = vld [vmem:[%s4 + $0x398] sm:$0xff]
  %v5295 = vld [vmem:[%s4 + $0x3a0] sm:$0xff]
  %v5296 = vld [vmem:[%s4 + $0x3a8] sm:$0xff]
  %v5297 = vld [vmem:[%s4 + $0x3b0] sm:$0xff]
  %v5298 = vld [vmem:[%s4 + $0x3b8] sm:$0xff]
  %v5299 = vmul.f32 %v3139, %v5059
  %v5300 = vmul.f32 %v3140, %v5060
  %v5301 = vmul.f32 %v3141, %v5061
  %v5302 = vmul.f32 %v3142, %v5062
  %v5303 = vmul.f32 %v3143, %v5063
  %v5304 = vmul.f32 %v3144, %v5064
  %v5305 = vmul.f32 %v3145, %v5065
  %v5306 = vmul.f32 %v3146, %v5066
  %v5307 = vmul.f32 %v3147, %v5067
  %v5308 = vmul.f32 %v3148, %v5068
  %v5309 = vmul.f32 %v3149, %v5069
  %v5310 = vmul.f32 %v3150, %v5070
  %v5311 = vmul.f32 %v3151, %v5071
  %v5312 = vmul.f32 %v3152, %v5072
  %v5313 = vmul.f32 %v3153, %v5073
  %v5314 = vmul.f32 %v3154, %v5074
  %v5315 = vmul.f32 %v3155, %v5075
  %v5316 = vmul.f32 %v3156, %v5076
  %v5317 = vmul.f32 %v3157, %v5077
  %v5318 = vmul.f32 %v3158, %v5078
  %v5319 = vmul.f32 %v3159, %v5079
  %v5320 = vmul.f32 %v3160, %v5080
  %v5321 = vmul.f32 %v3161, %v5081
  %v5322 = vmul.f32 %v3162, %v5082
  %v5323 = vmul.f32 %v3163, %v5083
  %v5324 = vmul.f32 %v3164, %v5084
  %v5325 = vmul.f32 %v3165, %v5085
  %v5326 = vmul.f32 %v3166, %v5086
  %v5327 = vmul.f32 %v3167, %v5087
  %v5328 = vmul.f32 %v3168, %v5088
  %v5329 = vmul.f32 %v3169, %v5089
  %v5330 = vmul.f32 %v3170, %v5090
  %v5331 = vmul.f32 %v3171, %v5091
  %v5332 = vmul.f32 %v3172, %v5092
  %v5333 = vmul.f32 %v3173, %v5093
  %v5334 = vmul.f32 %v3174, %v5094
  %v5335 = vmul.f32 %v3175, %v5095
  %v5336 = vmul.f32 %v3176, %v5096
  %v5337 = vmul.f32 %v3177, %v5097
  %v5338 = vmul.f32 %v3178, %v5098
  %v5339 = vmul.f32 %v3179, %v5099
  %v5340 = vmul.f32 %v3180, %v5100
  %v5341 = vmul.f32 %v3181, %v5101
  %v5342 = vmul.f32 %v3182, %v5102
  %v5343 = vmul.f32 %v3183, %v5103
  %v5344 = vmul.f32 %v3184, %v5104
  %v5345 = vmul.f32 %v3185, %v5105
  %v5346 = vmul.f32 %v3186, %v5106
  %v5347 = vmul.f32 %v3187, %v5107
  %v5348 = vmul.f32 %v3188, %v5108
  %v5349 = vmul.f32 %v3189, %v5109
  %v5350 = vmul.f32 %v3190, %v5110
  %v5351 = vmul.f32 %v3191, %v5111
  %v5352 = vmul.f32 %v3192, %v5112
  %v5353 = vmul.f32 %v3193, %v5113
  %v5354 = vmul.f32 %v3194, %v5114
  %v5355 = vmul.f32 %v3195, %v5115
  %v5356 = vmul.f32 %v3196, %v5116
  %v5357 = vmul.f32 %v3197, %v5117
  %v5358 = vmul.f32 %v3198, %v5118
  %v5359 = vmul.f32 %v3199, %v5119
  %v5360 = vmul.f32 %v3200, %v5120
  %v5361 = vmul.f32 %v3201, %v5121
  %v5362 = vmul.f32 %v3202, %v5122
  %v5363 = vmul.f32 %v3203, %v5123
  %v5364 = vmul.f32 %v3204, %v5124
  %v5365 = vmul.f32 %v3205, %v5125
  %v5366 = vmul.f32 %v3206, %v5126
  %v5367 = vmul.f32 %v3207, %v5127
  %v5368 = vmul.f32 %v3208, %v5128
  %v5369 = vmul.f32 %v3209, %v5129
  %v5370 = vmul.f32 %v3210, %v5130
  %v5371 = vmul.f32 %v3211, %v5131
  %v5372 = vmul.f32 %v3212, %v5132
  %v5373 = vmul.f32 %v3213, %v5133
  %v5374 = vmul.f32 %v3214, %v5134
  %v5375 = vmul.f32 %v3215, %v5135
  %v5376 = vmul.f32 %v3216, %v5136
  %v5377 = vmul.f32 %v3217, %v5137
  %v5378 = vmul.f32 %v3218, %v5138
  %v5379 = vmul.f32 %v3219, %v5139
  %v5380 = vmul.f32 %v3220, %v5140
  %v5381 = vmul.f32 %v3221, %v5141
  %v5382 = vmul.f32 %v3222, %v5142
  %v5383 = vmul.f32 %v3223, %v5143
  %v5384 = vmul.f32 %v3224, %v5144
  %v5385 = vmul.f32 %v3225, %v5145
  %v5386 = vmul.f32 %v3226, %v5146
  %v5387 = vmul.f32 %v3227, %v5147
  %v5388 = vmul.f32 %v3228, %v5148
  %v5389 = vmul.f32 %v3229, %v5149
  %v5390 = vmul.f32 %v3230, %v5150
  %v5391 = vmul.f32 %v3231, %v5151
  %v5392 = vmul.f32 %v3232, %v5152
  %v5393 = vmul.f32 %v3233, %v5153
  %v5394 = vmul.f32 %v3234, %v5154
  %v5395 = vmul.f32 %v3235, %v5155
  %v5396 = vmul.f32 %v3236, %v5156
  %v5397 = vmul.f32 %v3237, %v5157
  %v5398 = vmul.f32 %v3238, %v5158
  %v5399 = vmul.f32 %v3239, %v5159
  %v5400 = vmul.f32 %v3240, %v5160
  %v5401 = vmul.f32 %v3241, %v5161
  %v5402 = vmul.f32 %v3242, %v5162
  %v5403 = vmul.f32 %v3243, %v5163
  %v5404 = vmul.f32 %v3244, %v5164
  %v5405 = vmul.f32 %v3245, %v5165
  %v5406 = vmul.f32 %v3246, %v5166
  %v5407 = vmul.f32 %v3247, %v5167
  %v5408 = vmul.f32 %v3248, %v5168
  %v5409 = vmul.f32 %v3249, %v5169
  %v5410 = vmul.f32 %v3250, %v5170
  %v5411 = vmul.f32 %v3251, %v5171
  %v5412 = vmul.f32 %v3252, %v5172
  %v5413 = vmul.f32 %v3253, %v5173
  %v5414 = vmul.f32 %v3254, %v5174
  %v5415 = vmul.f32 %v3255, %v5175
  %v5416 = vmul.f32 %v3256, %v5176
  %v5417 = vmul.f32 %v3257, %v5177
  %v5418 = vmul.f32 %v3258, %v5178
  %v5419 = vsub.f32 %v5179, %v5299
  %v5420 = vsub.f32 %v5180, %v5300
  %v5421 = vsub.f32 %v5181, %v5301
  %v5422 = vsub.f32 %v5182, %v5302
  %v5423 = vsub.f32 %v5183, %v5303
  %v5424 = vsub.f32 %v5184, %v5304
  %v5425 = vsub.f32 %v5185, %v5305
  %v5426 = vsub.f32 %v5186, %v5306
  %v5427 = vsub.f32 %v5187, %v5307
  %v5428 = vsub.f32 %v5188, %v5308
  %v5429 = vsub.f32 %v5189, %v5309
  %v5430 = vsub.f32 %v5190, %v5310
  %v5431 = vsub.f32 %v5191, %v5311
  %v5432 = vsub.f32 %v5192, %v5312
  %v5433 = vsub.f32 %v5193, %v5313
  %v5434 = vsub.f32 %v5194, %v5314
  %v5435 = vsub.f32 %v5195, %v5315
  %v5436 = vsub.f32 %v5196, %v5316
  %v5437 = vsub.f32 %v5197, %v5317
  %v5438 = vsub.f32 %v5198, %v5318
  %v5439 = vsub.f32 %v5199, %v5319
  %v5440 = vsub.f32 %v5200, %v5320
  %v5441 = vsub.f32 %v5201, %v5321
  %v5442 = vsub.f32 %v5202, %v5322
  %v5443 = vsub.f32 %v5203, %v5323
  %v5444 = vsub.f32 %v5204, %v5324
  %v5445 = vsub.f32 %v5205, %v5325
  %v5446 = vsub.f32 %v5206, %v5326
  %v5447 = vsub.f32 %v5207, %v5327
  %v5448 = vsub.f32 %v5208, %v5328
  %v5449 = vsub.f32 %v5209, %v5329
  %v5450 = vsub.f32 %v5210, %v5330
  %v5451 = vsub.f32 %v5211, %v5331
  %v5452 = vsub.f32 %v5212, %v5332
  %v5453 = vsub.f32 %v5213, %v5333
  %v5454 = vsub.f32 %v5214, %v5334
  %v5455 = vsub.f32 %v5215, %v5335
  %v5456 = vsub.f32 %v5216, %v5336
  %v5457 = vsub.f32 %v5217, %v5337
  %v5458 = vsub.f32 %v5218, %v5338
  %v5459 = vsub.f32 %v5219, %v5339
  %v5460 = vsub.f32 %v5220, %v5340
  %v5461 = vsub.f32 %v5221, %v5341
  %v5462 = vsub.f32 %v5222, %v5342
  %v5463 = vsub.f32 %v5223, %v5343
  %v5464 = vsub.f32 %v5224, %v5344
  %v5465 = vsub.f32 %v5225, %v5345
  %v5466 = vsub.f32 %v5226, %v5346
  %v5467 = vsub.f32 %v5227, %v5347
  %v5468 = vsub.f32 %v5228, %v5348
  %v5469 = vsub.f32 %v5229, %v5349
  %v5470 = vsub.f32 %v5230, %v5350
  %v5471 = vsub.f32 %v5231, %v5351
  %v5472 = vsub.f32 %v5232, %v5352
  %v5473 = vsub.f32 %v5233, %v5353
  %v5474 = vsub.f32 %v5234, %v5354
  %v5475 = vsub.f32 %v5235, %v5355
  %v5476 = vsub.f32 %v5236, %v5356
  %v5477 = vsub.f32 %v5237, %v5357
  %v5478 = vsub.f32 %v5238, %v5358
  %v5479 = vsub.f32 %v5239, %v5359
  %v5480 = vsub.f32 %v5240, %v5360
  %v5481 = vsub.f32 %v5241, %v5361
  %v5482 = vsub.f32 %v5242, %v5362
  %v5483 = vsub.f32 %v5243, %v5363
  %v5484 = vsub.f32 %v5244, %v5364
  %v5485 = vsub.f32 %v5245, %v5365
  %v5486 = vsub.f32 %v5246, %v5366
  %v5487 = vsub.f32 %v5247, %v5367
  %v5488 = vsub.f32 %v5248, %v5368
  %v5489 = vsub.f32 %v5249, %v5369
  %v5490 = vsub.f32 %v5250, %v5370
  %v5491 = vsub.f32 %v5251, %v5371
  %v5492 = vsub.f32 %v5252, %v5372
  %v5493 = vsub.f32 %v5253, %v5373
  %v5494 = vsub.f32 %v5254, %v5374
  %v5495 = vsub.f32 %v5255, %v5375
  %v5496 = vsub.f32 %v5256, %v5376
  %v5497 = vsub.f32 %v5257, %v5377
  %v5498 = vsub.f32 %v5258, %v5378
  %v5499 = vsub.f32 %v5259, %v5379
  %v5500 = vsub.f32 %v5260, %v5380
  %v5501 = vsub.f32 %v5261, %v5381
  %v5502 = vsub.f32 %v5262, %v5382
  %v5503 = vsub.f32 %v5263, %v5383
  %v5504 = vsub.f32 %v5264, %v5384
  %v5505 = vsub.f32 %v5265, %v5385
  %v5506 = vsub.f32 %v5266, %v5386
  %v5507 = vsub.f32 %v5267, %v5387
  %v5508 = vsub.f32 %v5268, %v5388
  %v5509 = vsub.f32 %v5269, %v5389
  %v5510 = vsub.f32 %v5270, %v5390
  %v5511 = vsub.f32 %v5271, %v5391
  %v5512 = vsub.f32 %v5272, %v5392
  %v5513 = vsub.f32 %v5273, %v5393
  %v5514 = vsub.f32 %v5274, %v5394
  %v5515 = vsub.f32 %v5275, %v5395
  %v5516 = vsub.f32 %v5276, %v5396
  %v5517 = vsub.f32 %v5277, %v5397
  %v5518 = vsub.f32 %v5278, %v5398
  %v5519 = vsub.f32 %v5279, %v5399
  %v5520 = vsub.f32 %v5280, %v5400
  %v5521 = vsub.f32 %v5281, %v5401
  %v5522 = vsub.f32 %v5282, %v5402
  %v5523 = vsub.f32 %v5283, %v5403
  %v5524 = vsub.f32 %v5284, %v5404
  %v5525 = vsub.f32 %v5285, %v5405
  %v5526 = vsub.f32 %v5286, %v5406
  %v5527 = vsub.f32 %v5287, %v5407
  %v5528 = vsub.f32 %v5288, %v5408
  %v5529 = vsub.f32 %v5289, %v5409
  %v5530 = vsub.f32 %v5290, %v5410
  %v5531 = vsub.f32 %v5291, %v5411
  %v5532 = vsub.f32 %v5292, %v5412
  %v5533 = vsub.f32 %v5293, %v5413
  %v5534 = vsub.f32 %v5294, %v5414
  %v5535 = vsub.f32 %v5295, %v5415
  %v5536 = vsub.f32 %v5296, %v5416
  %v5537 = vsub.f32 %v5297, %v5417
  %v5538 = vsub.f32 %v5298, %v5418
  %5540 = vset.pattern.permute.xlu0 0
  %5541 = vperm.xlu0 %5540, %v5059
  %v5542 = vpop.permute.xlu0 %5541
  %5545 = vset.pattern.permute.xlu0 0
  %5546 = vperm.xlu0 %5545, %v5060
  %v5547 = vpop.permute.xlu0 %5546
  %5550 = vset.pattern.permute.xlu0 0
  %5551 = vperm.xlu0 %5550, %v5061
  %v5552 = vpop.permute.xlu0 %5551
  %5555 = vset.pattern.permute.xlu0 0
  %5556 = vperm.xlu0 %5555, %v5062
  %v5557 = vpop.permute.xlu0 %5556
  %5560 = vset.pattern.permute.xlu0 0
  %5561 = vperm.xlu0 %5560, %v5063
  %v5562 = vpop.permute.xlu0 %5561
  %5565 = vset.pattern.permute.xlu0 0
  %5566 = vperm.xlu0 %5565, %v5064
  %v5567 = vpop.permute.xlu0 %5566
  %5570 = vset.pattern.permute.xlu0 0
  %5571 = vperm.xlu0 %5570, %v5065
  %v5572 = vpop.permute.xlu0 %5571
  %5575 = vset.pattern.permute.xlu0 0
  %5576 = vperm.xlu0 %5575, %v5066
  %v5577 = vpop.permute.xlu0 %5576
  %5580 = vset.pattern.permute.xlu0 0
  %5581 = vperm.xlu0 %5580, %v5067
  %v5582 = vpop.permute.xlu0 %5581
  %5585 = vset.pattern.permute.xlu0 0
  %5586 = vperm.xlu0 %5585, %v5068
  %v5587 = vpop.permute.xlu0 %5586
  %5590 = vset.pattern.permute.xlu0 0
  %5591 = vperm.xlu0 %5590, %v5069
  %v5592 = vpop.permute.xlu0 %5591
  %5595 = vset.pattern.permute.xlu0 0
  %5596 = vperm.xlu0 %5595, %v5070
  %v5597 = vpop.permute.xlu0 %5596
  %5600 = vset.pattern.permute.xlu0 0
  %5601 = vperm.xlu0 %5600, %v5071
  %v5602 = vpop.permute.xlu0 %5601
  %5605 = vset.pattern.permute.xlu0 0
  %5606 = vperm.xlu0 %5605, %v5072
  %v5607 = vpop.permute.xlu0 %5606
  %5610 = vset.pattern.permute.xlu0 0
  %5611 = vperm.xlu0 %5610, %v5073
  %v5612 = vpop.permute.xlu0 %5611
  %5615 = vset.pattern.permute.xlu0 0
  %5616 = vperm.xlu0 %5615, %v5074
  %v5617 = vpop.permute.xlu0 %5616
  %5620 = vset.pattern.permute.xlu0 0
  %5621 = vperm.xlu0 %5620, %v5075
  %v5622 = vpop.permute.xlu0 %5621
  %5625 = vset.pattern.permute.xlu0 0
  %5626 = vperm.xlu0 %5625, %v5076
  %v5627 = vpop.permute.xlu0 %5626
  %5630 = vset.pattern.permute.xlu0 0
  %5631 = vperm.xlu0 %5630, %v5077
  %v5632 = vpop.permute.xlu0 %5631
  %5635 = vset.pattern.permute.xlu0 0
  %5636 = vperm.xlu0 %5635, %v5078
  %v5637 = vpop.permute.xlu0 %5636
  %5640 = vset.pattern.permute.xlu0 0
  %5641 = vperm.xlu0 %5640, %v5079
  %v5642 = vpop.permute.xlu0 %5641
  %5645 = vset.pattern.permute.xlu0 0
  %5646 = vperm.xlu0 %5645, %v5080
  %v5647 = vpop.permute.xlu0 %5646
  %5650 = vset.pattern.permute.xlu0 0
  %5651 = vperm.xlu0 %5650, %v5081
  %v5652 = vpop.permute.xlu0 %5651
  %5655 = vset.pattern.permute.xlu0 0
  %5656 = vperm.xlu0 %5655, %v5082
  %v5657 = vpop.permute.xlu0 %5656
  %5660 = vset.pattern.permute.xlu0 0
  %5661 = vperm.xlu0 %5660, %v5083
  %v5662 = vpop.permute.xlu0 %5661
  %5665 = vset.pattern.permute.xlu0 0
  %5666 = vperm.xlu0 %5665, %v5084
  %v5667 = vpop.permute.xlu0 %5666
  %5670 = vset.pattern.permute.xlu0 0
  %5671 = vperm.xlu0 %5670, %v5085
  %v5672 = vpop.permute.xlu0 %5671
  %5675 = vset.pattern.permute.xlu0 0
  %5676 = vperm.xlu0 %5675, %v5086
  %v5677 = vpop.permute.xlu0 %5676
  %5680 = vset.pattern.permute.xlu0 0
  %5681 = vperm.xlu0 %5680, %v5087
  %v5682 = vpop.permute.xlu0 %5681
  %5685 = vset.pattern.permute.xlu0 0
  %5686 = vperm.xlu0 %5685, %v5088
  %v5687 = vpop.permute.xlu0 %5686
  %5690 = vset.pattern.permute.xlu0 0
  %5691 = vperm.xlu0 %5690, %v5089
  %v5692 = vpop.permute.xlu0 %5691
  %5695 = vset.pattern.permute.xlu0 0
  %5696 = vperm.xlu0 %5695, %v5090
  %v5697 = vpop.permute.xlu0 %5696
  %5700 = vset.pattern.permute.xlu0 0
  %5701 = vperm.xlu0 %5700, %v5091
  %v5702 = vpop.permute.xlu0 %5701
  %5705 = vset.pattern.permute.xlu0 0
  %5706 = vperm.xlu0 %5705, %v5092
  %v5707 = vpop.permute.xlu0 %5706
  %5710 = vset.pattern.permute.xlu0 0
  %5711 = vperm.xlu0 %5710, %v5093
  %v5712 = vpop.permute.xlu0 %5711
  %5715 = vset.pattern.permute.xlu0 0
  %5716 = vperm.xlu0 %5715, %v5094
  %v5717 = vpop.permute.xlu0 %5716
  %5720 = vset.pattern.permute.xlu0 0
  %5721 = vperm.xlu0 %5720, %v5095
  %v5722 = vpop.permute.xlu0 %5721
  %5725 = vset.pattern.permute.xlu0 0
  %5726 = vperm.xlu0 %5725, %v5096
  %v5727 = vpop.permute.xlu0 %5726
  %5730 = vset.pattern.permute.xlu0 0
  %5731 = vperm.xlu0 %5730, %v5097
  %v5732 = vpop.permute.xlu0 %5731
  %5735 = vset.pattern.permute.xlu0 0
  %5736 = vperm.xlu0 %5735, %v5098
  %v5737 = vpop.permute.xlu0 %5736
  %5740 = vset.pattern.permute.xlu0 0
  %5741 = vperm.xlu0 %5740, %v5099
  %v5742 = vpop.permute.xlu0 %5741
  %5745 = vset.pattern.permute.xlu0 0
  %5746 = vperm.xlu0 %5745, %v5100
  %v5747 = vpop.permute.xlu0 %5746
  %5750 = vset.pattern.permute.xlu0 0
  %5751 = vperm.xlu0 %5750, %v5101
  %v5752 = vpop.permute.xlu0 %5751
  %5755 = vset.pattern.permute.xlu0 0
  %5756 = vperm.xlu0 %5755, %v5102
  %v5757 = vpop.permute.xlu0 %5756
  %5760 = vset.pattern.permute.xlu0 0
  %5761 = vperm.xlu0 %5760, %v5103
  %v5762 = vpop.permute.xlu0 %5761
  %5765 = vset.pattern.permute.xlu0 0
  %5766 = vperm.xlu0 %5765, %v5104
  %v5767 = vpop.permute.xlu0 %5766
  %5770 = vset.pattern.permute.xlu0 0
  %5771 = vperm.xlu0 %5770, %v5105
  %v5772 = vpop.permute.xlu0 %5771
  %5775 = vset.pattern.permute.xlu0 0
  %5776 = vperm.xlu0 %5775, %v5106
  %v5777 = vpop.permute.xlu0 %5776
  %5780 = vset.pattern.permute.xlu0 0
  %5781 = vperm.xlu0 %5780, %v5107
  %v5782 = vpop.permute.xlu0 %5781
  %5785 = vset.pattern.permute.xlu0 0
  %5786 = vperm.xlu0 %5785, %v5108
  %v5787 = vpop.permute.xlu0 %5786
  %5790 = vset.pattern.permute.xlu0 0
  %5791 = vperm.xlu0 %5790, %v5109
  %v5792 = vpop.permute.xlu0 %5791
  %5795 = vset.pattern.permute.xlu0 0
  %5796 = vperm.xlu0 %5795, %v5110
  %v5797 = vpop.permute.xlu0 %5796
  %5800 = vset.pattern.permute.xlu0 0
  %5801 = vperm.xlu0 %5800, %v5111
  %v5802 = vpop.permute.xlu0 %5801
  %5805 = vset.pattern.permute.xlu0 0
  %5806 = vperm.xlu0 %5805, %v5112
  %v5807 = vpop.permute.xlu0 %5806
  %5810 = vset.pattern.permute.xlu0 0
  %5811 = vperm.xlu0 %5810, %v5113
  %v5812 = vpop.permute.xlu0 %5811
  %5815 = vset.pattern.permute.xlu0 0
  %5816 = vperm.xlu0 %5815, %v5114
  %v5817 = vpop.permute.xlu0 %5816
  %5820 = vset.pattern.permute.xlu0 0
  %5821 = vperm.xlu0 %5820, %v5115
  %v5822 = vpop.permute.xlu0 %5821
  %5825 = vset.pattern.permute.xlu0 0
  %5826 = vperm.xlu0 %5825, %v5116
  %v5827 = vpop.permute.xlu0 %5826
  %5830 = vset.pattern.permute.xlu0 0
  %5831 = vperm.xlu0 %5830, %v5117
  %v5832 = vpop.permute.xlu0 %5831
  %5835 = vset.pattern.permute.xlu0 0
  %5836 = vperm.xlu0 %5835, %v5118
  %v5837 = vpop.permute.xlu0 %5836
  %5840 = vset.pattern.permute.xlu0 0
  %5841 = vperm.xlu0 %5840, %v5119
  %v5842 = vpop.permute.xlu0 %5841
  %5845 = vset.pattern.permute.xlu0 0
  %5846 = vperm.xlu0 %5845, %v5120
  %v5847 = vpop.permute.xlu0 %5846
  %5850 = vset.pattern.permute.xlu0 0
  %5851 = vperm.xlu0 %5850, %v5121
  %v5852 = vpop.permute.xlu0 %5851
  %5855 = vset.pattern.permute.xlu0 0
  %5856 = vperm.xlu0 %5855, %v5122
  %v5857 = vpop.permute.xlu0 %5856
  %5860 = vset.pattern.permute.xlu0 0
  %5861 = vperm.xlu0 %5860, %v5123
  %v5862 = vpop.permute.xlu0 %5861
  %5865 = vset.pattern.permute.xlu0 0
  %5866 = vperm.xlu0 %5865, %v5124
  %v5867 = vpop.permute.xlu0 %5866
  %5870 = vset.pattern.permute.xlu0 0
  %5871 = vperm.xlu0 %5870, %v5125
  %v5872 = vpop.permute.xlu0 %5871
  %5875 = vset.pattern.permute.xlu0 0
  %5876 = vperm.xlu0 %5875, %v5126
  %v5877 = vpop.permute.xlu0 %5876
  %5880 = vset.pattern.permute.xlu0 0
  %5881 = vperm.xlu0 %5880, %v5127
  %v5882 = vpop.permute.xlu0 %5881
  %5885 = vset.pattern.permute.xlu0 0
  %5886 = vperm.xlu0 %5885, %v5128
  %v5887 = vpop.permute.xlu0 %5886
  %5890 = vset.pattern.permute.xlu0 0
  %5891 = vperm.xlu0 %5890, %v5129
  %v5892 = vpop.permute.xlu0 %5891
  %5895 = vset.pattern.permute.xlu0 0
  %5896 = vperm.xlu0 %5895, %v5130
  %v5897 = vpop.permute.xlu0 %5896
  %5900 = vset.pattern.permute.xlu0 0
  %5901 = vperm.xlu0 %5900, %v5131
  %v5902 = vpop.permute.xlu0 %5901
  %5905 = vset.pattern.permute.xlu0 0
  %5906 = vperm.xlu0 %5905, %v5132
  %v5907 = vpop.permute.xlu0 %5906
  %5910 = vset.pattern.permute.xlu0 0
  %5911 = vperm.xlu0 %5910, %v5133
  %v5912 = vpop.permute.xlu0 %5911
  %5915 = vset.pattern.permute.xlu0 0
  %5916 = vperm.xlu0 %5915, %v5134
  %v5917 = vpop.permute.xlu0 %5916
  %5920 = vset.pattern.permute.xlu0 0
  %5921 = vperm.xlu0 %5920, %v5135
  %v5922 = vpop.permute.xlu0 %5921
  %5925 = vset.pattern.permute.xlu0 0
  %5926 = vperm.xlu0 %5925, %v5136
  %v5927 = vpop.permute.xlu0 %5926
  %5930 = vset.pattern.permute.xlu0 0
  %5931 = vperm.xlu0 %5930, %v5137
  %v5932 = vpop.permute.xlu0 %5931
  %5935 = vset.pattern.permute.xlu0 0
  %5936 = vperm.xlu0 %5935, %v5138
  %v5937 = vpop.permute.xlu0 %5936
  %5940 = vset.pattern.permute.xlu0 0
  %5941 = vperm.xlu0 %5940, %v5139
  %v5942 = vpop.permute.xlu0 %5941
  %5945 = vset.pattern.permute.xlu0 0
  %5946 = vperm.xlu0 %5945, %v5140
  %v5947 = vpop.permute.xlu0 %5946
  %5950 = vset.pattern.permute.xlu0 0
  %5951 = vperm.xlu0 %5950, %v5141
  %v5952 = vpop.permute.xlu0 %5951
  %5955 = vset.pattern.permute.xlu0 0
  %5956 = vperm.xlu0 %5955, %v5142
  %v5957 = vpop.permute.xlu0 %5956
  %5960 = vset.pattern.permute.xlu0 0
  %5961 = vperm.xlu0 %5960, %v5143
  %v5962 = vpop.permute.xlu0 %5961
  %5965 = vset.pattern.permute.xlu0 0
  %5966 = vperm.xlu0 %5965, %v5144
  %v5967 = vpop.permute.xlu0 %5966
  %5970 = vset.pattern.permute.xlu0 0
  %5971 = vperm.xlu0 %5970, %v5145
  %v5972 = vpop.permute.xlu0 %5971
  %5975 = vset.pattern.permute.xlu0 0
  %5976 = vperm.xlu0 %5975, %v5146
  %v5977 = vpop.permute.xlu0 %5976
  %5980 = vset.pattern.permute.xlu0 0
  %5981 = vperm.xlu0 %5980, %v5147
  %v5982 = vpop.permute.xlu0 %5981
  %5985 = vset.pattern.permute.xlu0 0
  %5986 = vperm.xlu0 %5985, %v5148
  %v5987 = vpop.permute.xlu0 %5986
  %5990 = vset.pattern.permute.xlu0 0
  %5991 = vperm.xlu0 %5990, %v5149
  %v5992 = vpop.permute.xlu0 %5991
  %5995 = vset.pattern.permute.xlu0 0
  %5996 = vperm.xlu0 %5995, %v5150
  %v5997 = vpop.permute.xlu0 %5996
  %6000 = vset.pattern.permute.xlu0 0
  %6001 = vperm.xlu0 %6000, %v5151
  %v6002 = vpop.permute.xlu0 %6001
  %6005 = vset.pattern.permute.xlu0 0
  %6006 = vperm.xlu0 %6005, %v5152
  %v6007 = vpop.permute.xlu0 %6006
  %6010 = vset.pattern.permute.xlu0 0
  %6011 = vperm.xlu0 %6010, %v5153
  %v6012 = vpop.permute.xlu0 %6011
  %6015 = vset.pattern.permute.xlu0 0
  %6016 = vperm.xlu0 %6015, %v5154
  %v6017 = vpop.permute.xlu0 %6016
  %6020 = vset.pattern.permute.xlu0 0
  %6021 = vperm.xlu0 %6020, %v5155
  %v6022 = vpop.permute.xlu0 %6021
  %6025 = vset.pattern.permute.xlu0 0
  %6026 = vperm.xlu0 %6025, %v5156
  %v6027 = vpop.permute.xlu0 %6026
  %6030 = vset.pattern.permute.xlu0 0
  %6031 = vperm.xlu0 %6030, %v5157
  %v6032 = vpop.permute.xlu0 %6031
  %6035 = vset.pattern.permute.xlu0 0
  %6036 = vperm.xlu0 %6035, %v5158
  %v6037 = vpop.permute.xlu0 %6036
  %6040 = vset.pattern.permute.xlu0 0
  %6041 = vperm.xlu0 %6040, %v5159
  %v6042 = vpop.permute.xlu0 %6041
  %6045 = vset.pattern.permute.xlu0 0
  %6046 = vperm.xlu0 %6045, %v5160
  %v6047 = vpop.permute.xlu0 %6046
  %6050 = vset.pattern.permute.xlu0 0
  %6051 = vperm.xlu0 %6050, %v5161
  %v6052 = vpop.permute.xlu0 %6051
  %6055 = vset.pattern.permute.xlu0 0
  %6056 = vperm.xlu0 %6055, %v5162
  %v6057 = vpop.permute.xlu0 %6056
  %6060 = vset.pattern.permute.xlu0 0
  %6061 = vperm.xlu0 %6060, %v5163
  %v6062 = vpop.permute.xlu0 %6061
  %6065 = vset.pattern.permute.xlu0 0
  %6066 = vperm.xlu0 %6065, %v5164
  %v6067 = vpop.permute.xlu0 %6066
  %6070 = vset.pattern.permute.xlu0 0
  %6071 = vperm.xlu0 %6070, %v5165
  %v6072 = vpop.permute.xlu0 %6071
  %6075 = vset.pattern.permute.xlu0 0
  %6076 = vperm.xlu0 %6075, %v5166
  %v6077 = vpop.permute.xlu0 %6076
  %6080 = vset.pattern.permute.xlu0 0
  %6081 = vperm.xlu0 %6080, %v5167
  %v6082 = vpop.permute.xlu0 %6081
  %6085 = vset.pattern.permute.xlu0 0
  %6086 = vperm.xlu0 %6085, %v5168
  %v6087 = vpop.permute.xlu0 %6086
  %6090 = vset.pattern.permute.xlu0 0
  %6091 = vperm.xlu0 %6090, %v5169
  %v6092 = vpop.permute.xlu0 %6091
  %6095 = vset.pattern.permute.xlu0 0
  %6096 = vperm.xlu0 %6095, %v5170
  %v6097 = vpop.permute.xlu0 %6096
  %6100 = vset.pattern.permute.xlu0 0
  %6101 = vperm.xlu0 %6100, %v5171
  %v6102 = vpop.permute.xlu0 %6101
  %6105 = vset.pattern.permute.xlu0 0
  %6106 = vperm.xlu0 %6105, %v5172
  %v6107 = vpop.permute.xlu0 %6106
  %6110 = vset.pattern.permute.xlu0 0
  %6111 = vperm.xlu0 %6110, %v5173
  %v6112 = vpop.permute.xlu0 %6111
  %6115 = vset.pattern.permute.xlu0 0
  %6116 = vperm.xlu0 %6115, %v5174
  %v6117 = vpop.permute.xlu0 %6116
  %6120 = vset.pattern.permute.xlu0 0
  %6121 = vperm.xlu0 %6120, %v5175
  %v6122 = vpop.permute.xlu0 %6121
  %6125 = vset.pattern.permute.xlu0 0
  %6126 = vperm.xlu0 %6125, %v5176
  %v6127 = vpop.permute.xlu0 %6126
  %6130 = vset.pattern.permute.xlu0 0
  %6131 = vperm.xlu0 %6130, %v5177
  %v6132 = vpop.permute.xlu0 %6131
  %6135 = vset.pattern.permute.xlu0 0
  %6136 = vperm.xlu0 %6135, %v5178
  %v6137 = vpop.permute.xlu0 %6136
  %v6139 = vmul.f32 %v1021, %v5542
  %v6140 = vmul.f32 %v1639, %v5542
  %v6141 = vmul.f32 %v1023, %v5547
  %v6142 = vmul.f32 %v1641, %v5547
  %v6143 = vmul.f32 %v1026, %v5552
  %v6144 = vmul.f32 %v1644, %v5552
  %v6145 = vmul.f32 %v1028, %v5557
  %v6146 = vmul.f32 %v1646, %v5557
  %v6147 = vmul.f32 %v1031, %v5562
  %v6148 = vmul.f32 %v1649, %v5562
  %v6149 = vmul.f32 %v1033, %v5567
  %v6150 = vmul.f32 %v1651, %v5567
  %v6151 = vmul.f32 %v1036, %v5572
  %v6152 = vmul.f32 %v1654, %v5572
  %v6153 = vmul.f32 %v1038, %v5577
  %v6154 = vmul.f32 %v1656, %v5577
  %v6155 = vmul.f32 %v1041, %v5582
  %v6156 = vmul.f32 %v1659, %v5582
  %v6157 = vmul.f32 %v1043, %v5587
  %v6158 = vmul.f32 %v1661, %v5587
  %v6159 = vmul.f32 %v1046, %v5592
  %v6160 = vmul.f32 %v1664, %v5592
  %v6161 = vmul.f32 %v1048, %v5597
  %v6162 = vmul.f32 %v1666, %v5597
  %v6163 = vmul.f32 %v1051, %v5602
  %v6164 = vmul.f32 %v1669, %v5602
  %v6165 = vmul.f32 %v1053, %v5607
  %v6166 = vmul.f32 %v1671, %v5607
  %v6167 = vmul.f32 %v1056, %v5612
  %v6168 = vmul.f32 %v1674, %v5612
  %v6169 = vmul.f32 %v1058, %v5617
  %v6170 = vmul.f32 %v1676, %v5617
  %v6171 = vmul.f32 %v1061, %v5622
  %v6172 = vmul.f32 %v1679, %v5622
  %v6173 = vmul.f32 %v1063, %v5627
  %v6174 = vmul.f32 %v1681, %v5627
  %v6175 = vmul.f32 %v1066, %v5632
  %v6176 = vmul.f32 %v1684, %v5632
  %v6177 = vmul.f32 %v1068, %v5637
  %v6178 = vmul.f32 %v1686, %v5637
  %v6179 = vmul.f32 %v1071, %v5642
  %v6180 = vmul.f32 %v1689, %v5642
  %v6181 = vmul.f32 %v1073, %v5647
  %v6182 = vmul.f32 %v1691, %v5647
  %v6183 = vmul.f32 %v1076, %v5652
  %v6184 = vmul.f32 %v1694, %v5652
  %v6185 = vmul.f32 %v1078, %v5657
  %v6186 = vmul.f32 %v1696, %v5657
  %v6187 = vmul.f32 %v1081, %v5662
  %v6188 = vmul.f32 %v1699, %v5662
  %v6189 = vmul.f32 %v1083, %v5667
  %v6190 = vmul.f32 %v1701, %v5667
  %v6191 = vmul.f32 %v1086, %v5672
  %v6192 = vmul.f32 %v1704, %v5672
  %v6193 = vmul.f32 %v1088, %v5677
  %v6194 = vmul.f32 %v1706, %v5677
  %v6195 = vmul.f32 %v1091, %v5682
  %v6196 = vmul.f32 %v1709, %v5682
  %v6197 = vmul.f32 %v1093, %v5687
  %v6198 = vmul.f32 %v1711, %v5687
  %v6199 = vmul.f32 %v1096, %v5692
  %v6200 = vmul.f32 %v1714, %v5692
  %v6201 = vmul.f32 %v1098, %v5697
  %v6202 = vmul.f32 %v1716, %v5697
  %v6203 = vmul.f32 %v1101, %v5702
  %v6204 = vmul.f32 %v1719, %v5702
  %v6205 = vmul.f32 %v1103, %v5707
  %v6206 = vmul.f32 %v1721, %v5707
  %v6207 = vmul.f32 %v1106, %v5712
  %v6208 = vmul.f32 %v1724, %v5712
  %v6209 = vmul.f32 %v1108, %v5717
  %v6210 = vmul.f32 %v1726, %v5717
  %v6211 = vmul.f32 %v1111, %v5722
  %v6212 = vmul.f32 %v1729, %v5722
  %v6213 = vmul.f32 %v1113, %v5727
  %v6214 = vmul.f32 %v1731, %v5727
  %v6215 = vmul.f32 %v1116, %v5732
  %v6216 = vmul.f32 %v1734, %v5732
  %v6217 = vmul.f32 %v1118, %v5737
  %v6218 = vmul.f32 %v1736, %v5737
  %v6219 = vmul.f32 %v1121, %v5742
  %v6220 = vmul.f32 %v1739, %v5742
  %v6221 = vmul.f32 %v1123, %v5747
  %v6222 = vmul.f32 %v1741, %v5747
  %v6223 = vmul.f32 %v1126, %v5752
  %v6224 = vmul.f32 %v1744, %v5752
  %v6225 = vmul.f32 %v1128, %v5757
  %v6226 = vmul.f32 %v1746, %v5757
  %v6227 = vmul.f32 %v1131, %v5762
  %v6228 = vmul.f32 %v1749, %v5762
  %v6229 = vmul.f32 %v1133, %v5767
  %v6230 = vmul.f32 %v1751, %v5767
  %v6231 = vmul.f32 %v1136, %v5772
  %v6232 = vmul.f32 %v1754, %v5772
  %v6233 = vmul.f32 %v1138, %v5777
  %v6234 = vmul.f32 %v1756, %v5777
  %v6235 = vmul.f32 %v1141, %v5782
  %v6236 = vmul.f32 %v1759, %v5782
  %v6237 = vmul.f32 %v1143, %v5787
  %v6238 = vmul.f32 %v1761, %v5787
  %v6239 = vmul.f32 %v1146, %v5792
  %v6240 = vmul.f32 %v1764, %v5792
  %v6241 = vmul.f32 %v1148, %v5797
  %v6242 = vmul.f32 %v1766, %v5797
  %v6243 = vmul.f32 %v1151, %v5802
  %v6244 = vmul.f32 %v1769, %v5802
  %v6245 = vmul.f32 %v1153, %v5807
  %v6246 = vmul.f32 %v1771, %v5807
  %v6247 = vmul.f32 %v1156, %v5812
  %v6248 = vmul.f32 %v1774, %v5812
  %v6249 = vmul.f32 %v1158, %v5817
  %v6250 = vmul.f32 %v1776, %v5817
  %v6251 = vmul.f32 %v1161, %v5822
  %v6252 = vmul.f32 %v1779, %v5822
  %v6253 = vmul.f32 %v1163, %v5827
  %v6254 = vmul.f32 %v1781, %v5827
  %v6255 = vmul.f32 %v1166, %v5832
  %v6256 = vmul.f32 %v1784, %v5832
  %v6257 = vmul.f32 %v1168, %v5837
  %v6258 = vmul.f32 %v1786, %v5837
  %v6259 = vmul.f32 %v1171, %v5842
  %v6260 = vmul.f32 %v1789, %v5842
  %v6261 = vmul.f32 %v1173, %v5847
  %v6262 = vmul.f32 %v1791, %v5847
  %v6263 = vmul.f32 %v1176, %v5852
  %v6264 = vmul.f32 %v1794, %v5852
  %v6265 = vmul.f32 %v1178, %v5857
  %v6266 = vmul.f32 %v1796, %v5857
  %v6267 = vmul.f32 %v1181, %v5862
  %v6268 = vmul.f32 %v1799, %v5862
  %v6269 = vmul.f32 %v1183, %v5867
  %v6270 = vmul.f32 %v1801, %v5867
  %v6271 = vmul.f32 %v1186, %v5872
  %v6272 = vmul.f32 %v1804, %v5872
  %v6273 = vmul.f32 %v1188, %v5877
  %v6274 = vmul.f32 %v1806, %v5877
  %v6275 = vmul.f32 %v1191, %v5882
  %v6276 = vmul.f32 %v1809, %v5882
  %v6277 = vmul.f32 %v1193, %v5887
  %v6278 = vmul.f32 %v1811, %v5887
  %v6279 = vmul.f32 %v1196, %v5892
  %v6280 = vmul.f32 %v1814, %v5892
  %v6281 = vmul.f32 %v1198, %v5897
  %v6282 = vmul.f32 %v1816, %v5897
  %v6283 = vmul.f32 %v1201, %v5902
  %v6284 = vmul.f32 %v1819, %v5902
  %v6285 = vmul.f32 %v1203, %v5907
  %v6286 = vmul.f32 %v1821, %v5907
  %v6287 = vmul.f32 %v1206, %v5912
  %v6288 = vmul.f32 %v1824, %v5912
  %v6289 = vmul.f32 %v1208, %v5917
  %v6290 = vmul.f32 %v1826, %v5917
  %v6291 = vmul.f32 %v1211, %v5922
  %v6292 = vmul.f32 %v1829, %v5922
  %v6293 = vmul.f32 %v1213, %v5927
  %v6294 = vmul.f32 %v1831, %v5927
  %v6295 = vmul.f32 %v1216, %v5932
  %v6296 = vmul.f32 %v1834, %v5932
  %v6297 = vmul.f32 %v1218, %v5937
  %v6298 = vmul.f32 %v1836, %v5937
  %v6299 = vmul.f32 %v1221, %v5942
  %v6300 = vmul.f32 %v1839, %v5942
  %v6301 = vmul.f32 %v1223, %v5947
  %v6302 = vmul.f32 %v1841, %v5947
  %v6303 = vmul.f32 %v1226, %v5952
  %v6304 = vmul.f32 %v1844, %v5952
  %v6305 = vmul.f32 %v1228, %v5957
  %v6306 = vmul.f32 %v1846, %v5957
  %v6307 = vmul.f32 %v1231, %v5962
  %v6308 = vmul.f32 %v1849, %v5962
  %v6309 = vmul.f32 %v1233, %v5967
  %v6310 = vmul.f32 %v1851, %v5967
  %v6311 = vmul.f32 %v1236, %v5972
  %v6312 = vmul.f32 %v1854, %v5972
  %v6313 = vmul.f32 %v1238, %v5977
  %v6314 = vmul.f32 %v1856, %v5977
  %v6315 = vmul.f32 %v1241, %v5982
  %v6316 = vmul.f32 %v1859, %v5982
  %v6317 = vmul.f32 %v1243, %v5987
  %v6318 = vmul.f32 %v1861, %v5987
  %v6319 = vmul.f32 %v1246, %v5992
  %v6320 = vmul.f32 %v1864, %v5992
  %v6321 = vmul.f32 %v1248, %v5997
  %v6322 = vmul.f32 %v1866, %v5997
  %v6323 = vmul.f32 %v1251, %v6002
  %v6324 = vmul.f32 %v1869, %v6002
  %v6325 = vmul.f32 %v1253, %v6007
  %v6326 = vmul.f32 %v1871, %v6007
  %v6327 = vmul.f32 %v1256, %v6012
  %v6328 = vmul.f32 %v1874, %v6012
  %v6329 = vmul.f32 %v1258, %v6017
  %v6330 = vmul.f32 %v1876, %v6017
  %v6331 = vmul.f32 %v1261, %v6022
  %v6332 = vmul.f32 %v1879, %v6022
  %v6333 = vmul.f32 %v1263, %v6027
  %v6334 = vmul.f32 %v1881, %v6027
  %v6335 = vmul.f32 %v1266, %v6032
  %v6336 = vmul.f32 %v1884, %v6032
  %v6337 = vmul.f32 %v1268, %v6037
  %v6338 = vmul.f32 %v1886, %v6037
  %v6339 = vmul.f32 %v1271, %v6042
  %v6340 = vmul.f32 %v1889, %v6042
  %v6341 = vmul.f32 %v1273, %v6047
  %v6342 = vmul.f32 %v1891, %v6047
  %v6343 = vmul.f32 %v1276, %v6052
  %v6344 = vmul.f32 %v1894, %v6052
  %v6345 = vmul.f32 %v1278, %v6057
  %v6346 = vmul.f32 %v1896, %v6057
  %v6347 = vmul.f32 %v1281, %v6062
  %v6348 = vmul.f32 %v1899, %v6062
  %v6349 = vmul.f32 %v1283, %v6067
  %v6350 = vmul.f32 %v1901, %v6067
  %v6351 = vmul.f32 %v1286, %v6072
  %v6352 = vmul.f32 %v1904, %v6072
  %v6353 = vmul.f32 %v1288, %v6077
  %v6354 = vmul.f32 %v1906, %v6077
  %v6355 = vmul.f32 %v1291, %v6082
  %v6356 = vmul.f32 %v1909, %v6082
  %v6357 = vmul.f32 %v1293, %v6087
  %v6358 = vmul.f32 %v1911, %v6087
  %v6359 = vmul.f32 %v1296, %v6092
  %v6360 = vmul.f32 %v1914, %v6092
  %v6361 = vmul.f32 %v1298, %v6097
  %v6362 = vmul.f32 %v1916, %v6097
  %v6363 = vmul.f32 %v1301, %v6102
  %v6364 = vmul.f32 %v1919, %v6102
  %v6365 = vmul.f32 %v1303, %v6107
  %v6366 = vmul.f32 %v1921, %v6107
  %v6367 = vmul.f32 %v1306, %v6112
  %v6368 = vmul.f32 %v1924, %v6112
  %v6369 = vmul.f32 %v1308, %v6117
  %v6370 = vmul.f32 %v1926, %v6117
  %v6371 = vmul.f32 %v1311, %v6122
  %v6372 = vmul.f32 %v1929, %v6122
  %v6373 = vmul.f32 %v1313, %v6127
  %v6374 = vmul.f32 %v1931, %v6127
  %v6375 = vmul.f32 %v1316, %v6132
  %v6376 = vmul.f32 %v1934, %v6132
  %v6377 = vmul.f32 %v1318, %v6137
  %v6378 = vmul.f32 %v1936, %v6137
  %6380 = vset.pattern.permute.xlu0 0
  %6381 = vperm.xlu0 %6380, %v5419
  %v6382 = vpop.permute.xlu0 %6381
  %6385 = vset.pattern.permute.xlu0 0
  %6386 = vperm.xlu0 %6385, %v5420
  %v6387 = vpop.permute.xlu0 %6386
  %6390 = vset.pattern.permute.xlu0 0
  %6391 = vperm.xlu0 %6390, %v5421
  %v6392 = vpop.permute.xlu0 %6391
  %6395 = vset.pattern.permute.xlu0 0
  %6396 = vperm.xlu0 %6395, %v5422
  %v6397 = vpop.permute.xlu0 %6396
  %6400 = vset.pattern.permute.xlu0 0
  %6401 = vperm.xlu0 %6400, %v5423
  %v6402 = vpop.permute.xlu0 %6401
  %6405 = vset.pattern.permute.xlu0 0
  %6406 = vperm.xlu0 %6405, %v5424
  %v6407 = vpop.permute.xlu0 %6406
  %6410 = vset.pattern.permute.xlu0 0
  %6411 = vperm.xlu0 %6410, %v5425
  %v6412 = vpop.permute.xlu0 %6411
  %6415 = vset.pattern.permute.xlu0 0
  %6416 = vperm.xlu0 %6415, %v5426
  %v6417 = vpop.permute.xlu0 %6416
  %6420 = vset.pattern.permute.xlu0 0
  %6421 = vperm.xlu0 %6420, %v5427
  %v6422 = vpop.permute.xlu0 %6421
  %6425 = vset.pattern.permute.xlu0 0
  %6426 = vperm.xlu0 %6425, %v5428
  %v6427 = vpop.permute.xlu0 %6426
  %6430 = vset.pattern.permute.xlu0 0
  %6431 = vperm.xlu0 %6430, %v5429
  %v6432 = vpop.permute.xlu0 %6431
  %6435 = vset.pattern.permute.xlu0 0
  %6436 = vperm.xlu0 %6435, %v5430
  %v6437 = vpop.permute.xlu0 %6436
  %6440 = vset.pattern.permute.xlu0 0
  %6441 = vperm.xlu0 %6440, %v5431
  %v6442 = vpop.permute.xlu0 %6441
  %6445 = vset.pattern.permute.xlu0 0
  %6446 = vperm.xlu0 %6445, %v5432
  %v6447 = vpop.permute.xlu0 %6446
  %6450 = vset.pattern.permute.xlu0 0
  %6451 = vperm.xlu0 %6450, %v5433
  %v6452 = vpop.permute.xlu0 %6451
  %6455 = vset.pattern.permute.xlu0 0
  %6456 = vperm.xlu0 %6455, %v5434
  %v6457 = vpop.permute.xlu0 %6456
  %6460 = vset.pattern.permute.xlu0 0
  %6461 = vperm.xlu0 %6460, %v5435
  %v6462 = vpop.permute.xlu0 %6461
  %6465 = vset.pattern.permute.xlu0 0
  %6466 = vperm.xlu0 %6465, %v5436
  %v6467 = vpop.permute.xlu0 %6466
  %6470 = vset.pattern.permute.xlu0 0
  %6471 = vperm.xlu0 %6470, %v5437
  %v6472 = vpop.permute.xlu0 %6471
  %6475 = vset.pattern.permute.xlu0 0
  %6476 = vperm.xlu0 %6475, %v5438
  %v6477 = vpop.permute.xlu0 %6476
  %6480 = vset.pattern.permute.xlu0 0
  %6481 = vperm.xlu0 %6480, %v5439
  %v6482 = vpop.permute.xlu0 %6481
  %6485 = vset.pattern.permute.xlu0 0
  %6486 = vperm.xlu0 %6485, %v5440
  %v6487 = vpop.permute.xlu0 %6486
  %6490 = vset.pattern.permute.xlu0 0
  %6491 = vperm.xlu0 %6490, %v5441
  %v6492 = vpop.permute.xlu0 %6491
  %6495 = vset.pattern.permute.xlu0 0
  %6496 = vperm.xlu0 %6495, %v5442
  %v6497 = vpop.permute.xlu0 %6496
  %6500 = vset.pattern.permute.xlu0 0
  %6501 = vperm.xlu0 %6500, %v5443
  %v6502 = vpop.permute.xlu0 %6501
  %6505 = vset.pattern.permute.xlu0 0
  %6506 = vperm.xlu0 %6505, %v5444
  %v6507 = vpop.permute.xlu0 %6506
  %6510 = vset.pattern.permute.xlu0 0
  %6511 = vperm.xlu0 %6510, %v5445
  %v6512 = vpop.permute.xlu0 %6511
  %6515 = vset.pattern.permute.xlu0 0
  %6516 = vperm.xlu0 %6515, %v5446
  %v6517 = vpop.permute.xlu0 %6516
  %6520 = vset.pattern.permute.xlu0 0
  %6521 = vperm.xlu0 %6520, %v5447
  %v6522 = vpop.permute.xlu0 %6521
  %6525 = vset.pattern.permute.xlu0 0
  %6526 = vperm.xlu0 %6525, %v5448
  %v6527 = vpop.permute.xlu0 %6526
  %6530 = vset.pattern.permute.xlu0 0
  %6531 = vperm.xlu0 %6530, %v5449
  %v6532 = vpop.permute.xlu0 %6531
  %6535 = vset.pattern.permute.xlu0 0
  %6536 = vperm.xlu0 %6535, %v5450
  %v6537 = vpop.permute.xlu0 %6536
  %6540 = vset.pattern.permute.xlu0 0
  %6541 = vperm.xlu0 %6540, %v5451
  %v6542 = vpop.permute.xlu0 %6541
  %6545 = vset.pattern.permute.xlu0 0
  %6546 = vperm.xlu0 %6545, %v5452
  %v6547 = vpop.permute.xlu0 %6546
  %6550 = vset.pattern.permute.xlu0 0
  %6551 = vperm.xlu0 %6550, %v5453
  %v6552 = vpop.permute.xlu0 %6551
  %6555 = vset.pattern.permute.xlu0 0
  %6556 = vperm.xlu0 %6555, %v5454
  %v6557 = vpop.permute.xlu0 %6556
  %6560 = vset.pattern.permute.xlu0 0
  %6561 = vperm.xlu0 %6560, %v5455
  %v6562 = vpop.permute.xlu0 %6561
  %6565 = vset.pattern.permute.xlu0 0
  %6566 = vperm.xlu0 %6565, %v5456
  %v6567 = vpop.permute.xlu0 %6566
  %6570 = vset.pattern.permute.xlu0 0
  %6571 = vperm.xlu0 %6570, %v5457
  %v6572 = vpop.permute.xlu0 %6571
  %6575 = vset.pattern.permute.xlu0 0
  %6576 = vperm.xlu0 %6575, %v5458
  %v6577 = vpop.permute.xlu0 %6576
  %6580 = vset.pattern.permute.xlu0 0
  %6581 = vperm.xlu0 %6580, %v5459
  %v6582 = vpop.permute.xlu0 %6581
  %6585 = vset.pattern.permute.xlu0 0
  %6586 = vperm.xlu0 %6585, %v5460
  %v6587 = vpop.permute.xlu0 %6586
  %6590 = vset.pattern.permute.xlu0 0
  %6591 = vperm.xlu0 %6590, %v5461
  %v6592 = vpop.permute.xlu0 %6591
  %6595 = vset.pattern.permute.xlu0 0
  %6596 = vperm.xlu0 %6595, %v5462
  %v6597 = vpop.permute.xlu0 %6596
  %6600 = vset.pattern.permute.xlu0 0
  %6601 = vperm.xlu0 %6600, %v5463
  %v6602 = vpop.permute.xlu0 %6601
  %6605 = vset.pattern.permute.xlu0 0
  %6606 = vperm.xlu0 %6605, %v5464
  %v6607 = vpop.permute.xlu0 %6606
  %6610 = vset.pattern.permute.xlu0 0
  %6611 = vperm.xlu0 %6610, %v5465
  %v6612 = vpop.permute.xlu0 %6611
  %6615 = vset.pattern.permute.xlu0 0
  %6616 = vperm.xlu0 %6615, %v5466
  %v6617 = vpop.permute.xlu0 %6616
  %6620 = vset.pattern.permute.xlu0 0
  %6621 = vperm.xlu0 %6620, %v5467
  %v6622 = vpop.permute.xlu0 %6621
  %6625 = vset.pattern.permute.xlu0 0
  %6626 = vperm.xlu0 %6625, %v5468
  %v6627 = vpop.permute.xlu0 %6626
  %6630 = vset.pattern.permute.xlu0 0
  %6631 = vperm.xlu0 %6630, %v5469
  %v6632 = vpop.permute.xlu0 %6631
  %6635 = vset.pattern.permute.xlu0 0
  %6636 = vperm.xlu0 %6635, %v5470
  %v6637 = vpop.permute.xlu0 %6636
  %6640 = vset.pattern.permute.xlu0 0
  %6641 = vperm.xlu0 %6640, %v5471
  %v6642 = vpop.permute.xlu0 %6641
  %6645 = vset.pattern.permute.xlu0 0
  %6646 = vperm.xlu0 %6645, %v5472
  %v6647 = vpop.permute.xlu0 %6646
  %6650 = vset.pattern.permute.xlu0 0
  %6651 = vperm.xlu0 %6650, %v5473
  %v6652 = vpop.permute.xlu0 %6651
  %6655 = vset.pattern.permute.xlu0 0
  %6656 = vperm.xlu0 %6655, %v5474
  %v6657 = vpop.permute.xlu0 %6656
  %6660 = vset.pattern.permute.xlu0 0
  %6661 = vperm.xlu0 %6660, %v5475
  %v6662 = vpop.permute.xlu0 %6661
  %6665 = vset.pattern.permute.xlu0 0
  %6666 = vperm.xlu0 %6665, %v5476
  %v6667 = vpop.permute.xlu0 %6666
  %6670 = vset.pattern.permute.xlu0 0
  %6671 = vperm.xlu0 %6670, %v5477
  %v6672 = vpop.permute.xlu0 %6671
  %6675 = vset.pattern.permute.xlu0 0
  %6676 = vperm.xlu0 %6675, %v5478
  %v6677 = vpop.permute.xlu0 %6676
  %6680 = vset.pattern.permute.xlu0 0
  %6681 = vperm.xlu0 %6680, %v5479
  %v6682 = vpop.permute.xlu0 %6681
  %6685 = vset.pattern.permute.xlu0 0
  %6686 = vperm.xlu0 %6685, %v5480
  %v6687 = vpop.permute.xlu0 %6686
  %6690 = vset.pattern.permute.xlu0 0
  %6691 = vperm.xlu0 %6690, %v5481
  %v6692 = vpop.permute.xlu0 %6691
  %6695 = vset.pattern.permute.xlu0 0
  %6696 = vperm.xlu0 %6695, %v5482
  %v6697 = vpop.permute.xlu0 %6696
  %6700 = vset.pattern.permute.xlu0 0
  %6701 = vperm.xlu0 %6700, %v5483
  %v6702 = vpop.permute.xlu0 %6701
  %6705 = vset.pattern.permute.xlu0 0
  %6706 = vperm.xlu0 %6705, %v5484
  %v6707 = vpop.permute.xlu0 %6706
  %6710 = vset.pattern.permute.xlu0 0
  %6711 = vperm.xlu0 %6710, %v5485
  %v6712 = vpop.permute.xlu0 %6711
  %6715 = vset.pattern.permute.xlu0 0
  %6716 = vperm.xlu0 %6715, %v5486
  %v6717 = vpop.permute.xlu0 %6716
  %6720 = vset.pattern.permute.xlu0 0
  %6721 = vperm.xlu0 %6720, %v5487
  %v6722 = vpop.permute.xlu0 %6721
  %6725 = vset.pattern.permute.xlu0 0
  %6726 = vperm.xlu0 %6725, %v5488
  %v6727 = vpop.permute.xlu0 %6726
  %6730 = vset.pattern.permute.xlu0 0
  %6731 = vperm.xlu0 %6730, %v5489
  %v6732 = vpop.permute.xlu0 %6731
  %6735 = vset.pattern.permute.xlu0 0
  %6736 = vperm.xlu0 %6735, %v5490
  %v6737 = vpop.permute.xlu0 %6736
  %6740 = vset.pattern.permute.xlu0 0
  %6741 = vperm.xlu0 %6740, %v5491
  %v6742 = vpop.permute.xlu0 %6741
  %6745 = vset.pattern.permute.xlu0 0
  %6746 = vperm.xlu0 %6745, %v5492
  %v6747 = vpop.permute.xlu0 %6746
  %6750 = vset.pattern.permute.xlu0 0
  %6751 = vperm.xlu0 %6750, %v5493
  %v6752 = vpop.permute.xlu0 %6751
  %6755 = vset.pattern.permute.xlu0 0
  %6756 = vperm.xlu0 %6755, %v5494
  %v6757 = vpop.permute.xlu0 %6756
  %6760 = vset.pattern.permute.xlu0 0
  %6761 = vperm.xlu0 %6760, %v5495
  %v6762 = vpop.permute.xlu0 %6761
  %6765 = vset.pattern.permute.xlu0 0
  %6766 = vperm.xlu0 %6765, %v5496
  %v6767 = vpop.permute.xlu0 %6766
  %6770 = vset.pattern.permute.xlu0 0
  %6771 = vperm.xlu0 %6770, %v5497
  %v6772 = vpop.permute.xlu0 %6771
  %6775 = vset.pattern.permute.xlu0 0
  %6776 = vperm.xlu0 %6775, %v5498
  %v6777 = vpop.permute.xlu0 %6776
  %6780 = vset.pattern.permute.xlu0 0
  %6781 = vperm.xlu0 %6780, %v5499
  %v6782 = vpop.permute.xlu0 %6781
  %6785 = vset.pattern.permute.xlu0 0
  %6786 = vperm.xlu0 %6785, %v5500
  %v6787 = vpop.permute.xlu0 %6786
  %6790 = vset.pattern.permute.xlu0 0
  %6791 = vperm.xlu0 %6790, %v5501
  %v6792 = vpop.permute.xlu0 %6791
  %6795 = vset.pattern.permute.xlu0 0
  %6796 = vperm.xlu0 %6795, %v5502
  %v6797 = vpop.permute.xlu0 %6796
  %6800 = vset.pattern.permute.xlu0 0
  %6801 = vperm.xlu0 %6800, %v5503
  %v6802 = vpop.permute.xlu0 %6801
  %6805 = vset.pattern.permute.xlu0 0
  %6806 = vperm.xlu0 %6805, %v5504
  %v6807 = vpop.permute.xlu0 %6806
  %6810 = vset.pattern.permute.xlu0 0
  %6811 = vperm.xlu0 %6810, %v5505
  %v6812 = vpop.permute.xlu0 %6811
  %6815 = vset.pattern.permute.xlu0 0
  %6816 = vperm.xlu0 %6815, %v5506
  %v6817 = vpop.permute.xlu0 %6816
  %6820 = vset.pattern.permute.xlu0 0
  %6821 = vperm.xlu0 %6820, %v5507
  %v6822 = vpop.permute.xlu0 %6821
  %6825 = vset.pattern.permute.xlu0 0
  %6826 = vperm.xlu0 %6825, %v5508
  %v6827 = vpop.permute.xlu0 %6826
  %6830 = vset.pattern.permute.xlu0 0
  %6831 = vperm.xlu0 %6830, %v5509
  %v6832 = vpop.permute.xlu0 %6831
  %6835 = vset.pattern.permute.xlu0 0
  %6836 = vperm.xlu0 %6835, %v5510
  %v6837 = vpop.permute.xlu0 %6836
  %6840 = vset.pattern.permute.xlu0 0
  %6841 = vperm.xlu0 %6840, %v5511
  %v6842 = vpop.permute.xlu0 %6841
  %6845 = vset.pattern.permute.xlu0 0
  %6846 = vperm.xlu0 %6845, %v5512
  %v6847 = vpop.permute.xlu0 %6846
  %6850 = vset.pattern.permute.xlu0 0
  %6851 = vperm.xlu0 %6850, %v5513
  %v6852 = vpop.permute.xlu0 %6851
  %6855 = vset.pattern.permute.xlu0 0
  %6856 = vperm.xlu0 %6855, %v5514
  %v6857 = vpop.permute.xlu0 %6856
  %6860 = vset.pattern.permute.xlu0 0
  %6861 = vperm.xlu0 %6860, %v5515
  %v6862 = vpop.permute.xlu0 %6861
  %6865 = vset.pattern.permute.xlu0 0
  %6866 = vperm.xlu0 %6865, %v5516
  %v6867 = vpop.permute.xlu0 %6866
  %6870 = vset.pattern.permute.xlu0 0
  %6871 = vperm.xlu0 %6870, %v5517
  %v6872 = vpop.permute.xlu0 %6871
  %6875 = vset.pattern.permute.xlu0 0
  %6876 = vperm.xlu0 %6875, %v5518
  %v6877 = vpop.permute.xlu0 %6876
  %6880 = vset.pattern.permute.xlu0 0
  %6881 = vperm.xlu0 %6880, %v5519
  %v6882 = vpop.permute.xlu0 %6881
  %6885 = vset.pattern.permute.xlu0 0
  %6886 = vperm.xlu0 %6885, %v5520
  %v6887 = vpop.permute.xlu0 %6886
  %6890 = vset.pattern.permute.xlu0 0
  %6891 = vperm.xlu0 %6890, %v5521
  %v6892 = vpop.permute.xlu0 %6891
  %6895 = vset.pattern.permute.xlu0 0
  %6896 = vperm.xlu0 %6895, %v5522
  %v6897 = vpop.permute.xlu0 %6896
  %6900 = vset.pattern.permute.xlu0 0
  %6901 = vperm.xlu0 %6900, %v5523
  %v6902 = vpop.permute.xlu0 %6901
  %6905 = vset.pattern.permute.xlu0 0
  %6906 = vperm.xlu0 %6905, %v5524
  %v6907 = vpop.permute.xlu0 %6906
  %6910 = vset.pattern.permute.xlu0 0
  %6911 = vperm.xlu0 %6910, %v5525
  %v6912 = vpop.permute.xlu0 %6911
  %6915 = vset.pattern.permute.xlu0 0
  %6916 = vperm.xlu0 %6915, %v5526
  %v6917 = vpop.permute.xlu0 %6916
  %6920 = vset.pattern.permute.xlu0 0
  %6921 = vperm.xlu0 %6920, %v5527
  %v6922 = vpop.permute.xlu0 %6921
  %6925 = vset.pattern.permute.xlu0 0
  %6926 = vperm.xlu0 %6925, %v5528
  %v6927 = vpop.permute.xlu0 %6926
  %6930 = vset.pattern.permute.xlu0 0
  %6931 = vperm.xlu0 %6930, %v5529
  %v6932 = vpop.permute.xlu0 %6931
  %6935 = vset.pattern.permute.xlu0 0
  %6936 = vperm.xlu0 %6935, %v5530
  %v6937 = vpop.permute.xlu0 %6936
  %6940 = vset.pattern.permute.xlu0 0
  %6941 = vperm.xlu0 %6940, %v5531
  %v6942 = vpop.permute.xlu0 %6941
  %6945 = vset.pattern.permute.xlu0 0
  %6946 = vperm.xlu0 %6945, %v5532
  %v6947 = vpop.permute.xlu0 %6946
  %6950 = vset.pattern.permute.xlu0 0
  %6951 = vperm.xlu0 %6950, %v5533
  %v6952 = vpop.permute.xlu0 %6951
  %6955 = vset.pattern.permute.xlu0 0
  %6956 = vperm.xlu0 %6955, %v5534
  %v6957 = vpop.permute.xlu0 %6956
  %6960 = vset.pattern.permute.xlu0 0
  %6961 = vperm.xlu0 %6960, %v5535
  %v6962 = vpop.permute.xlu0 %6961
  %6965 = vset.pattern.permute.xlu0 0
  %6966 = vperm.xlu0 %6965, %v5536
  %v6967 = vpop.permute.xlu0 %6966
  %6970 = vset.pattern.permute.xlu0 0
  %6971 = vperm.xlu0 %6970, %v5537
  %v6972 = vpop.permute.xlu0 %6971
  %6975 = vset.pattern.permute.xlu0 0
  %6976 = vperm.xlu0 %6975, %v5538
  %v6977 = vpop.permute.xlu0 %6976
  %v6979 = vadd.f32 %v6139, %v6382
  %v6980 = vadd.f32 %v6140, %v6382
  %v6981 = vadd.f32 %v6141, %v6387
  %v6982 = vadd.f32 %v6142, %v6387
  %v6983 = vadd.f32 %v6143, %v6392
  %v6984 = vadd.f32 %v6144, %v6392
  %v6985 = vadd.f32 %v6145, %v6397
  %v6986 = vadd.f32 %v6146, %v6397
  %v6987 = vadd.f32 %v6147, %v6402
  %v6988 = vadd.f32 %v6148, %v6402
  %v6989 = vadd.f32 %v6149, %v6407
  %v6990 = vadd.f32 %v6150, %v6407
  %v6991 = vadd.f32 %v6151, %v6412
  %v6992 = vadd.f32 %v6152, %v6412
  %v6993 = vadd.f32 %v6153, %v6417
  %v6994 = vadd.f32 %v6154, %v6417
  %v6995 = vadd.f32 %v6155, %v6422
  %v6996 = vadd.f32 %v6156, %v6422
  %v6997 = vadd.f32 %v6157, %v6427
  %v6998 = vadd.f32 %v6158, %v6427
  %v6999 = vadd.f32 %v6159, %v6432
  %v7000 = vadd.f32 %v6160, %v6432
  %v7001 = vadd.f32 %v6161, %v6437
  %v7002 = vadd.f32 %v6162, %v6437
  %v7003 = vadd.f32 %v6163, %v6442
  %v7004 = vadd.f32 %v6164, %v6442
  %v7005 = vadd.f32 %v6165, %v6447
  %v7006 = vadd.f32 %v6166, %v6447
  %v7007 = vadd.f32 %v6167, %v6452
  %v7008 = vadd.f32 %v6168, %v6452
  %v7009 = vadd.f32 %v6169, %v6457
  %v7010 = vadd.f32 %v6170, %v6457
  %v7011 = vadd.f32 %v6171, %v6462
  %v7012 = vadd.f32 %v6172, %v6462
  %v7013 = vadd.f32 %v6173, %v6467
  %v7014 = vadd.f32 %v6174, %v6467
  %v7015 = vadd.f32 %v6175, %v6472
  %v7016 = vadd.f32 %v6176, %v6472
  %v7017 = vadd.f32 %v6177, %v6477
  %v7018 = vadd.f32 %v6178, %v6477
  %v7019 = vadd.f32 %v6179, %v6482
  %v7020 = vadd.f32 %v6180, %v6482
  %v7021 = vadd.f32 %v6181, %v6487
  %v7022 = vadd.f32 %v6182, %v6487
  %v7023 = vadd.f32 %v6183, %v6492
  %v7024 = vadd.f32 %v6184, %v6492
  %v7025 = vadd.f32 %v6185, %v6497
  %v7026 = vadd.f32 %v6186, %v6497
  %v7027 = vadd.f32 %v6187, %v6502
  %v7028 = vadd.f32 %v6188, %v6502
  %v7029 = vadd.f32 %v6189, %v6507
  %v7030 = vadd.f32 %v6190, %v6507
  %v7031 = vadd.f32 %v6191, %v6512
  %v7032 = vadd.f32 %v6192, %v6512
  %v7033 = vadd.f32 %v6193, %v6517
  %v7034 = vadd.f32 %v6194, %v6517
  %v7035 = vadd.f32 %v6195, %v6522
  %v7036 = vadd.f32 %v6196, %v6522
  %v7037 = vadd.f32 %v6197, %v6527
  %v7038 = vadd.f32 %v6198, %v6527
  %v7039 = vadd.f32 %v6199, %v6532
  %v7040 = vadd.f32 %v6200, %v6532
  %v7041 = vadd.f32 %v6201, %v6537
  %v7042 = vadd.f32 %v6202, %v6537
  %v7043 = vadd.f32 %v6203, %v6542
  %v7044 = vadd.f32 %v6204, %v6542
  %v7045 = vadd.f32 %v6205, %v6547
  %v7046 = vadd.f32 %v6206, %v6547
  %v7047 = vadd.f32 %v6207, %v6552
  %v7048 = vadd.f32 %v6208, %v6552
  %v7049 = vadd.f32 %v6209, %v6557
  %v7050 = vadd.f32 %v6210, %v6557
  %v7051 = vadd.f32 %v6211, %v6562
  %v7052 = vadd.f32 %v6212, %v6562
  %v7053 = vadd.f32 %v6213, %v6567
  %v7054 = vadd.f32 %v6214, %v6567
  %v7055 = vadd.f32 %v6215, %v6572
  %v7056 = vadd.f32 %v6216, %v6572
  %v7057 = vadd.f32 %v6217, %v6577
  %v7058 = vadd.f32 %v6218, %v6577
  %v7059 = vadd.f32 %v6219, %v6582
  %v7060 = vadd.f32 %v6220, %v6582
  %v7061 = vadd.f32 %v6221, %v6587
  %v7062 = vadd.f32 %v6222, %v6587
  %v7063 = vadd.f32 %v6223, %v6592
  %v7064 = vadd.f32 %v6224, %v6592
  %v7065 = vadd.f32 %v6225, %v6597
  %v7066 = vadd.f32 %v6226, %v6597
  %v7067 = vadd.f32 %v6227, %v6602
  %v7068 = vadd.f32 %v6228, %v6602
  %v7069 = vadd.f32 %v6229, %v6607
  %v7070 = vadd.f32 %v6230, %v6607
  %v7071 = vadd.f32 %v6231, %v6612
  %v7072 = vadd.f32 %v6232, %v6612
  %v7073 = vadd.f32 %v6233, %v6617
  %v7074 = vadd.f32 %v6234, %v6617
  %v7075 = vadd.f32 %v6235, %v6622
  %v7076 = vadd.f32 %v6236, %v6622
  %v7077 = vadd.f32 %v6237, %v6627
  %v7078 = vadd.f32 %v6238, %v6627
  %v7079 = vadd.f32 %v6239, %v6632
  %v7080 = vadd.f32 %v6240, %v6632
  %v7081 = vadd.f32 %v6241, %v6637
  %v7082 = vadd.f32 %v6242, %v6637
  %v7083 = vadd.f32 %v6243, %v6642
  %v7084 = vadd.f32 %v6244, %v6642
  %v7085 = vadd.f32 %v6245, %v6647
  %v7086 = vadd.f32 %v6246, %v6647
  %v7087 = vadd.f32 %v6247, %v6652
  %v7088 = vadd.f32 %v6248, %v6652
  %v7089 = vadd.f32 %v6249, %v6657
  %v7090 = vadd.f32 %v6250, %v6657
  %v7091 = vadd.f32 %v6251, %v6662
  %v7092 = vadd.f32 %v6252, %v6662
  %v7093 = vadd.f32 %v6253, %v6667
  %v7094 = vadd.f32 %v6254, %v6667
  %v7095 = vadd.f32 %v6255, %v6672
  %v7096 = vadd.f32 %v6256, %v6672
  %v7097 = vadd.f32 %v6257, %v6677
  %v7098 = vadd.f32 %v6258, %v6677
  %v7099 = vadd.f32 %v6259, %v6682
  %v7100 = vadd.f32 %v6260, %v6682
  %v7101 = vadd.f32 %v6261, %v6687
  %v7102 = vadd.f32 %v6262, %v6687
  %v7103 = vadd.f32 %v6263, %v6692
  %v7104 = vadd.f32 %v6264, %v6692
  %v7105 = vadd.f32 %v6265, %v6697
  %v7106 = vadd.f32 %v6266, %v6697
  %v7107 = vadd.f32 %v6267, %v6702
  %v7108 = vadd.f32 %v6268, %v6702
  %v7109 = vadd.f32 %v6269, %v6707
  %v7110 = vadd.f32 %v6270, %v6707
  %v7111 = vadd.f32 %v6271, %v6712
  %v7112 = vadd.f32 %v6272, %v6712
  %v7113 = vadd.f32 %v6273, %v6717
  %v7114 = vadd.f32 %v6274, %v6717
  %v7115 = vadd.f32 %v6275, %v6722
  %v7116 = vadd.f32 %v6276, %v6722
  %v7117 = vadd.f32 %v6277, %v6727
  %v7118 = vadd.f32 %v6278, %v6727
  %v7119 = vadd.f32 %v6279, %v6732
  %v7120 = vadd.f32 %v6280, %v6732
  %v7121 = vadd.f32 %v6281, %v6737
  %v7122 = vadd.f32 %v6282, %v6737
  %v7123 = vadd.f32 %v6283, %v6742
  %v7124 = vadd.f32 %v6284, %v6742
  %v7125 = vadd.f32 %v6285, %v6747
  %v7126 = vadd.f32 %v6286, %v6747
  %v7127 = vadd.f32 %v6287, %v6752
  %v7128 = vadd.f32 %v6288, %v6752
  %v7129 = vadd.f32 %v6289, %v6757
  %v7130 = vadd.f32 %v6290, %v6757
  %v7131 = vadd.f32 %v6291, %v6762
  %v7132 = vadd.f32 %v6292, %v6762
  %v7133 = vadd.f32 %v6293, %v6767
  %v7134 = vadd.f32 %v6294, %v6767
  %v7135 = vadd.f32 %v6295, %v6772
  %v7136 = vadd.f32 %v6296, %v6772
  %v7137 = vadd.f32 %v6297, %v6777
  %v7138 = vadd.f32 %v6298, %v6777
  %v7139 = vadd.f32 %v6299, %v6782
  %v7140 = vadd.f32 %v6300, %v6782
  %v7141 = vadd.f32 %v6301, %v6787
  %v7142 = vadd.f32 %v6302, %v6787
  %v7143 = vadd.f32 %v6303, %v6792
  %v7144 = vadd.f32 %v6304, %v6792
  %v7145 = vadd.f32 %v6305, %v6797
  %v7146 = vadd.f32 %v6306, %v6797
  %v7147 = vadd.f32 %v6307, %v6802
  %v7148 = vadd.f32 %v6308, %v6802
  %v7149 = vadd.f32 %v6309, %v6807
  %v7150 = vadd.f32 %v6310, %v6807
  %v7151 = vadd.f32 %v6311, %v6812
  %v7152 = vadd.f32 %v6312, %v6812
  %v7153 = vadd.f32 %v6313, %v6817
  %v7154 = vadd.f32 %v6314, %v6817
  %v7155 = vadd.f32 %v6315, %v6822
  %v7156 = vadd.f32 %v6316, %v6822
  %v7157 = vadd.f32 %v6317, %v6827
  %v7158 = vadd.f32 %v6318, %v6827
  %v7159 = vadd.f32 %v6319, %v6832
  %v7160 = vadd.f32 %v6320, %v6832
  %v7161 = vadd.f32 %v6321, %v6837
  %v7162 = vadd.f32 %v6322, %v6837
  %v7163 = vadd.f32 %v6323, %v6842
  %v7164 = vadd.f32 %v6324, %v6842
  %v7165 = vadd.f32 %v6325, %v6847
  %v7166 = vadd.f32 %v6326, %v6847
  %v7167 = vadd.f32 %v6327, %v6852
  %v7168 = vadd.f32 %v6328, %v6852
  %v7169 = vadd.f32 %v6329, %v6857
  %v7170 = vadd.f32 %v6330, %v6857
  %v7171 = vadd.f32 %v6331, %v6862
  %v7172 = vadd.f32 %v6332, %v6862
  %v7173 = vadd.f32 %v6333, %v6867
  %v7174 = vadd.f32 %v6334, %v6867
  %v7175 = vadd.f32 %v6335, %v6872
  %v7176 = vadd.f32 %v6336, %v6872
  %v7177 = vadd.f32 %v6337, %v6877
  %v7178 = vadd.f32 %v6338, %v6877
  %v7179 = vadd.f32 %v6339, %v6882
  %v7180 = vadd.f32 %v6340, %v6882
  %v7181 = vadd.f32 %v6341, %v6887
  %v7182 = vadd.f32 %v6342, %v6887
  %v7183 = vadd.f32 %v6343, %v6892
  %v7184 = vadd.f32 %v6344, %v6892
  %v7185 = vadd.f32 %v6345, %v6897
  %v7186 = vadd.f32 %v6346, %v6897
  %v7187 = vadd.f32 %v6347, %v6902
  %v7188 = vadd.f32 %v6348, %v6902
  %v7189 = vadd.f32 %v6349, %v6907
  %v7190 = vadd.f32 %v6350, %v6907
  %v7191 = vadd.f32 %v6351, %v6912
  %v7192 = vadd.f32 %v6352, %v6912
  %v7193 = vadd.f32 %v6353, %v6917
  %v7194 = vadd.f32 %v6354, %v6917
  %v7195 = vadd.f32 %v6355, %v6922
  %v7196 = vadd.f32 %v6356, %v6922
  %v7197 = vadd.f32 %v6357, %v6927
  %v7198 = vadd.f32 %v6358, %v6927
  %v7199 = vadd.f32 %v6359, %v6932
  %v7200 = vadd.f32 %v6360, %v6932
  %v7201 = vadd.f32 %v6361, %v6937
  %v7202 = vadd.f32 %v6362, %v6937
  %v7203 = vadd.f32 %v6363, %v6942
  %v7204 = vadd.f32 %v6364, %v6942
  %v7205 = vadd.f32 %v6365, %v6947
  %v7206 = vadd.f32 %v6366, %v6947
  %v7207 = vadd.f32 %v6367, %v6952
  %v7208 = vadd.f32 %v6368, %v6952
  %v7209 = vadd.f32 %v6369, %v6957
  %v7210 = vadd.f32 %v6370, %v6957
  %v7211 = vadd.f32 %v6371, %v6962
  %v7212 = vadd.f32 %v6372, %v6962
  %v7213 = vadd.f32 %v6373, %v6967
  %v7214 = vadd.f32 %v6374, %v6967
  %v7215 = vadd.f32 %v6375, %v6972
  %v7216 = vadd.f32 %v6376, %v6972
  %v7217 = vadd.f32 %v6377, %v6977
  %v7218 = vadd.f32 %v6378, %v6977
  %7219 = vst [vmem:[%s5] sm:$0xff] %v6979
  %7220 = vst.msk [vmem:[%s5 + $0x8] sm:$0xff] %vm1938, %v6980
  %7221 = vst [vmem:[%s5 + $0x10] sm:$0xff] %v6981
  %7222 = vst.msk [vmem:[%s5 + $0x18] sm:$0xff] %vm1938, %v6982
  %7223 = vst [vmem:[%s5 + $0x20] sm:$0xff] %v6983
  %7224 = vst.msk [vmem:[%s5 + $0x28] sm:$0xff] %vm1938, %v6984
  %7225 = vst [vmem:[%s5 + $0x30] sm:$0xff] %v6985
  %7226 = vst.msk [vmem:[%s5 + $0x38] sm:$0xff] %vm1938, %v6986
  %7227 = vst [vmem:[%s5 + $0x40] sm:$0xff] %v6987
  %7228 = vst.msk [vmem:[%s5 + $0x48] sm:$0xff] %vm1938, %v6988
  %7229 = vst [vmem:[%s5 + $0x50] sm:$0xff] %v6989
  %7230 = vst.msk [vmem:[%s5 + $0x58] sm:$0xff] %vm1938, %v6990
  %7231 = vst [vmem:[%s5 + $0x60] sm:$0xff] %v6991
  %7232 = vst.msk [vmem:[%s5 + $0x68] sm:$0xff] %vm1938, %v6992
  %7233 = vst [vmem:[%s5 + $0x70] sm:$0xff] %v6993
  %7234 = vst.msk [vmem:[%s5 + $0x78] sm:$0xff] %vm1938, %v6994
  %7235 = vst [vmem:[%s5 + $0x80] sm:$0xff] %v6995
  %7236 = vst.msk [vmem:[%s5 + $0x88] sm:$0xff] %vm1938, %v6996
  %7237 = vst [vmem:[%s5 + $0x90] sm:$0xff] %v6997
  %7238 = vst.msk [vmem:[%s5 + $0x98] sm:$0xff] %vm1938, %v6998
  %7239 = vst [vmem:[%s5 + $0xa0] sm:$0xff] %v6999
  %7240 = vst.msk [vmem:[%s5 + $0xa8] sm:$0xff] %vm1938, %v7000
  %7241 = vst [vmem:[%s5 + $0xb0] sm:$0xff] %v7001
  %7242 = vst.msk [vmem:[%s5 + $0xb8] sm:$0xff] %vm1938, %v7002
  %7243 = vst [vmem:[%s5 + $0xc0] sm:$0xff] %v7003
  %7244 = vst.msk [vmem:[%s5 + $0xc8] sm:$0xff] %vm1938, %v7004
  %7245 = vst [vmem:[%s5 + $0xd0] sm:$0xff] %v7005
  %7246 = vst.msk [vmem:[%s5 + $0xd8] sm:$0xff] %vm1938, %v7006
  %7247 = vst [vmem:[%s5 + $0xe0] sm:$0xff] %v7007
  %7248 = vst.msk [vmem:[%s5 + $0xe8] sm:$0xff] %vm1938, %v7008
  %7249 = vst [vmem:[%s5 + $0xf0] sm:$0xff] %v7009
  %7250 = vst.msk [vmem:[%s5 + $0xf8] sm:$0xff] %vm1938, %v7010
  %7251 = vst [vmem:[%s5 + $0x100] sm:$0xff] %v7011
  %7252 = vst.msk [vmem:[%s5 + $0x108] sm:$0xff] %vm1938, %v7012
  %7253 = vst [vmem:[%s5 + $0x110] sm:$0xff] %v7013
  %7254 = vst.msk [vmem:[%s5 + $0x118] sm:$0xff] %vm1938, %v7014
  %7255 = vst [vmem:[%s5 + $0x120] sm:$0xff] %v7015
  %7256 = vst.msk [vmem:[%s5 + $0x128] sm:$0xff] %vm1938, %v7016
  %7257 = vst [vmem:[%s5 + $0x130] sm:$0xff] %v7017
  %7258 = vst.msk [vmem:[%s5 + $0x138] sm:$0xff] %vm1938, %v7018
  %7259 = vst [vmem:[%s5 + $0x140] sm:$0xff] %v7019
  %7260 = vst.msk [vmem:[%s5 + $0x148] sm:$0xff] %vm1938, %v7020
  %7261 = vst [vmem:[%s5 + $0x150] sm:$0xff] %v7021
  %7262 = vst.msk [vmem:[%s5 + $0x158] sm:$0xff] %vm1938, %v7022
  %7263 = vst [vmem:[%s5 + $0x160] sm:$0xff] %v7023
  %7264 = vst.msk [vmem:[%s5 + $0x168] sm:$0xff] %vm1938, %v7024
  %7265 = vst [vmem:[%s5 + $0x170] sm:$0xff] %v7025
  %7266 = vst.msk [vmem:[%s5 + $0x178] sm:$0xff] %vm1938, %v7026
  %7267 = vst [vmem:[%s5 + $0x180] sm:$0xff] %v7027
  %7268 = vst.msk [vmem:[%s5 + $0x188] sm:$0xff] %vm1938, %v7028
  %7269 = vst [vmem:[%s5 + $0x190] sm:$0xff] %v7029
  %7270 = vst.msk [vmem:[%s5 + $0x198] sm:$0xff] %vm1938, %v7030
  %7271 = vst [vmem:[%s5 + $0x1a0] sm:$0xff] %v7031
  %7272 = vst.msk [vmem:[%s5 + $0x1a8] sm:$0xff] %vm1938, %v7032
  %7273 = vst [vmem:[%s5 + $0x1b0] sm:$0xff] %v7033
  %7274 = vst.msk [vmem:[%s5 + $0x1b8] sm:$0xff] %vm1938, %v7034
  %7275 = vst [vmem:[%s5 + $0x1c0] sm:$0xff] %v7035
  %7276 = vst.msk [vmem:[%s5 + $0x1c8] sm:$0xff] %vm1938, %v7036
  %7277 = vst [vmem:[%s5 + $0x1d0] sm:$0xff] %v7037
  %7278 = vst.msk [vmem:[%s5 + $0x1d8] sm:$0xff] %vm1938, %v7038
  %7279 = vst [vmem:[%s5 + $0x1e0] sm:$0xff] %v7039
  %7280 = vst.msk [vmem:[%s5 + $0x1e8] sm:$0xff] %vm1938, %v7040
  %7281 = vst [vmem:[%s5 + $0x1f0] sm:$0xff] %v7041
  %7282 = vst.msk [vmem:[%s5 + $0x1f8] sm:$0xff] %vm1938, %v7042
  %7283 = vst [vmem:[%s5 + $0x200] sm:$0xff] %v7043
  %7284 = vst.msk [vmem:[%s5 + $0x208] sm:$0xff] %vm1938, %v7044
  %7285 = vst [vmem:[%s5 + $0x210] sm:$0xff] %v7045
  %7286 = vst.msk [vmem:[%s5 + $0x218] sm:$0xff] %vm1938, %v7046
  %7287 = vst [vmem:[%s5 + $0x220] sm:$0xff] %v7047
  %7288 = vst.msk [vmem:[%s5 + $0x228] sm:$0xff] %vm1938, %v7048
  %7289 = vst [vmem:[%s5 + $0x230] sm:$0xff] %v7049
  %7290 = vst.msk [vmem:[%s5 + $0x238] sm:$0xff] %vm1938, %v7050
  %7291 = vst [vmem:[%s5 + $0x240] sm:$0xff] %v7051
  %7292 = vst.msk [vmem:[%s5 + $0x248] sm:$0xff] %vm1938, %v7052
  %7293 = vst [vmem:[%s5 + $0x250] sm:$0xff] %v7053
  %7294 = vst.msk [vmem:[%s5 + $0x258] sm:$0xff] %vm1938, %v7054
  %7295 = vst [vmem:[%s5 + $0x260] sm:$0xff] %v7055
  %7296 = vst.msk [vmem:[%s5 + $0x268] sm:$0xff] %vm1938, %v7056
  %7297 = vst [vmem:[%s5 + $0x270] sm:$0xff] %v7057
  %7298 = vst.msk [vmem:[%s5 + $0x278] sm:$0xff] %vm1938, %v7058
  %7299 = vst [vmem:[%s5 + $0x280] sm:$0xff] %v7059
  %7300 = vst.msk [vmem:[%s5 + $0x288] sm:$0xff] %vm1938, %v7060
  %7301 = vst [vmem:[%s5 + $0x290] sm:$0xff] %v7061
  %7302 = vst.msk [vmem:[%s5 + $0x298] sm:$0xff] %vm1938, %v7062
  %7303 = vst [vmem:[%s5 + $0x2a0] sm:$0xff] %v7063
  %7304 = vst.msk [vmem:[%s5 + $0x2a8] sm:$0xff] %vm1938, %v7064
  %7305 = vst [vmem:[%s5 + $0x2b0] sm:$0xff] %v7065
  %7306 = vst.msk [vmem:[%s5 + $0x2b8] sm:$0xff] %vm1938, %v7066
  %7307 = vst [vmem:[%s5 + $0x2c0] sm:$0xff] %v7067
  %7308 = vst.msk [vmem:[%s5 + $0x2c8] sm:$0xff] %vm1938, %v7068
  %7309 = vst [vmem:[%s5 + $0x2d0] sm:$0xff] %v7069
  %7310 = vst.msk [vmem:[%s5 + $0x2d8] sm:$0xff] %vm1938, %v7070
  %7311 = vst [vmem:[%s5 + $0x2e0] sm:$0xff] %v7071
  %7312 = vst.msk [vmem:[%s5 + $0x2e8] sm:$0xff] %vm1938, %v7072
  %7313 = vst [vmem:[%s5 + $0x2f0] sm:$0xff] %v7073
  %7314 = vst.msk [vmem:[%s5 + $0x2f8] sm:$0xff] %vm1938, %v7074
  %7315 = vst [vmem:[%s5 + $0x300] sm:$0xff] %v7075
  %7316 = vst.msk [vmem:[%s5 + $0x308] sm:$0xff] %vm1938, %v7076
  %7317 = vst [vmem:[%s5 + $0x310] sm:$0xff] %v7077
  %7318 = vst.msk [vmem:[%s5 + $0x318] sm:$0xff] %vm1938, %v7078
  %7319 = vst [vmem:[%s5 + $0x320] sm:$0xff] %v7079
  %7320 = vst.msk [vmem:[%s5 + $0x328] sm:$0xff] %vm1938, %v7080
  %7321 = vst [vmem:[%s5 + $0x330] sm:$0xff] %v7081
  %7322 = vst.msk [vmem:[%s5 + $0x338] sm:$0xff] %vm1938, %v7082
  %7323 = vst [vmem:[%s5 + $0x340] sm:$0xff] %v7083
  %7324 = vst.msk [vmem:[%s5 + $0x348] sm:$0xff] %vm1938, %v7084
  %7325 = vst [vmem:[%s5 + $0x350] sm:$0xff] %v7085
  %7326 = vst.msk [vmem:[%s5 + $0x358] sm:$0xff] %vm1938, %v7086
  %7327 = vst [vmem:[%s5 + $0x360] sm:$0xff] %v7087
  %7328 = vst.msk [vmem:[%s5 + $0x368] sm:$0xff] %vm1938, %v7088
  %7329 = vst [vmem:[%s5 + $0x370] sm:$0xff] %v7089
  %7330 = vst.msk [vmem:[%s5 + $0x378] sm:$0xff] %vm1938, %v7090
  %7331 = vst [vmem:[%s5 + $0x380] sm:$0xff] %v7091
  %7332 = vst.msk [vmem:[%s5 + $0x388] sm:$0xff] %vm1938, %v7092
  %7333 = vst [vmem:[%s5 + $0x390] sm:$0xff] %v7093
  %7334 = vst.msk [vmem:[%s5 + $0x398] sm:$0xff] %vm1938, %v7094
  %7335 = vst [vmem:[%s5 + $0x3a0] sm:$0xff] %v7095
  %7336 = vst.msk [vmem:[%s5 + $0x3a8] sm:$0xff] %vm1938, %v7096
  %7337 = vst [vmem:[%s5 + $0x3b0] sm:$0xff] %v7097
  %7338 = vst.msk [vmem:[%s5 + $0x3b8] sm:$0xff] %vm1938, %v7098
  %7339 = vst [vmem:[%s5 + $0x3c0] sm:$0xff] %v7099
  %7340 = vst.msk [vmem:[%s5 + $0x3c8] sm:$0xff] %vm1938, %v7100
  %7341 = vst [vmem:[%s5 + $0x3d0] sm:$0xff] %v7101
  %7342 = vst.msk [vmem:[%s5 + $0x3d8] sm:$0xff] %vm1938, %v7102
  %7343 = vst [vmem:[%s5 + $0x3e0] sm:$0xff] %v7103
  %7344 = vst.msk [vmem:[%s5 + $0x3e8] sm:$0xff] %vm1938, %v7104
  %7345 = vst [vmem:[%s5 + $0x3f0] sm:$0xff] %v7105
  %7346 = vst.msk [vmem:[%s5 + $0x3f8] sm:$0xff] %vm1938, %v7106
  %7347 = vst [vmem:[%s5 + $0x400] sm:$0xff] %v7107
  %7348 = vst.msk [vmem:[%s5 + $0x408] sm:$0xff] %vm1938, %v7108
  %7349 = vst [vmem:[%s5 + $0x410] sm:$0xff] %v7109
  %7350 = vst.msk [vmem:[%s5 + $0x418] sm:$0xff] %vm1938, %v7110
  %7351 = vst [vmem:[%s5 + $0x420] sm:$0xff] %v7111
  %7352 = vst.msk [vmem:[%s5 + $0x428] sm:$0xff] %vm1938, %v7112
  %7353 = vst [vmem:[%s5 + $0x430] sm:$0xff] %v7113
  %7354 = vst.msk [vmem:[%s5 + $0x438] sm:$0xff] %vm1938, %v7114
  %7355 = vst [vmem:[%s5 + $0x440] sm:$0xff] %v7115
  %7356 = vst.msk [vmem:[%s5 + $0x448] sm:$0xff] %vm1938, %v7116
  %7357 = vst [vmem:[%s5 + $0x450] sm:$0xff] %v7117
  %7358 = vst.msk [vmem:[%s5 + $0x458] sm:$0xff] %vm1938, %v7118
  %7359 = vst [vmem:[%s5 + $0x460] sm:$0xff] %v7119
  %7360 = vst.msk [vmem:[%s5 + $0x468] sm:$0xff] %vm1938, %v7120
  %7361 = vst [vmem:[%s5 + $0x470] sm:$0xff] %v7121
  %7362 = vst.msk [vmem:[%s5 + $0x478] sm:$0xff] %vm1938, %v7122
  %7363 = vst [vmem:[%s5 + $0x480] sm:$0xff] %v7123
  %7364 = vst.msk [vmem:[%s5 + $0x488] sm:$0xff] %vm1938, %v7124
  %7365 = vst [vmem:[%s5 + $0x490] sm:$0xff] %v7125
  %7366 = vst.msk [vmem:[%s5 + $0x498] sm:$0xff] %vm1938, %v7126
  %7367 = vst [vmem:[%s5 + $0x4a0] sm:$0xff] %v7127
  %7368 = vst.msk [vmem:[%s5 + $0x4a8] sm:$0xff] %vm1938, %v7128
  %7369 = vst [vmem:[%s5 + $0x4b0] sm:$0xff] %v7129
  %7370 = vst.msk [vmem:[%s5 + $0x4b8] sm:$0xff] %vm1938, %v7130
  %7371 = vst [vmem:[%s5 + $0x4c0] sm:$0xff] %v7131
  %7372 = vst.msk [vmem:[%s5 + $0x4c8] sm:$0xff] %vm1938, %v7132
  %7373 = vst [vmem:[%s5 + $0x4d0] sm:$0xff] %v7133
  %7374 = vst.msk [vmem:[%s5 + $0x4d8] sm:$0xff] %vm1938, %v7134
  %7375 = vst [vmem:[%s5 + $0x4e0] sm:$0xff] %v7135
  %7376 = vst.msk [vmem:[%s5 + $0x4e8] sm:$0xff] %vm1938, %v7136
  %7377 = vst [vmem:[%s5 + $0x4f0] sm:$0xff] %v7137
  %7378 = vst.msk [vmem:[%s5 + $0x4f8] sm:$0xff] %vm1938, %v7138
  %7379 = vst [vmem:[%s5 + $0x500] sm:$0xff] %v7139
  %7380 = vst.msk [vmem:[%s5 + $0x508] sm:$0xff] %vm1938, %v7140
  %7381 = vst [vmem:[%s5 + $0x510] sm:$0xff] %v7141
  %7382 = vst.msk [vmem:[%s5 + $0x518] sm:$0xff] %vm1938, %v7142
  %7383 = vst [vmem:[%s5 + $0x520] sm:$0xff] %v7143
  %7384 = vst.msk [vmem:[%s5 + $0x528] sm:$0xff] %vm1938, %v7144
  %7385 = vst [vmem:[%s5 + $0x530] sm:$0xff] %v7145
  %7386 = vst.msk [vmem:[%s5 + $0x538] sm:$0xff] %vm1938, %v7146
  %7387 = vst [vmem:[%s5 + $0x540] sm:$0xff] %v7147
  %7388 = vst.msk [vmem:[%s5 + $0x548] sm:$0xff] %vm1938, %v7148
  %7389 = vst [vmem:[%s5 + $0x550] sm:$0xff] %v7149
  %7390 = vst.msk [vmem:[%s5 + $0x558] sm:$0xff] %vm1938, %v7150
  %7391 = vst [vmem:[%s5 + $0x560] sm:$0xff] %v7151
  %7392 = vst.msk [vmem:[%s5 + $0x568] sm:$0xff] %vm1938, %v7152
  %7393 = vst [vmem:[%s5 + $0x570] sm:$0xff] %v7153
  %7394 = vst.msk [vmem:[%s5 + $0x578] sm:$0xff] %vm1938, %v7154
  %7395 = vst [vmem:[%s5 + $0x580] sm:$0xff] %v7155
  %7396 = vst.msk [vmem:[%s5 + $0x588] sm:$0xff] %vm1938, %v7156
  %7397 = vst [vmem:[%s5 + $0x590] sm:$0xff] %v7157
  %7398 = vst.msk [vmem:[%s5 + $0x598] sm:$0xff] %vm1938, %v7158
  %7399 = vst [vmem:[%s5 + $0x5a0] sm:$0xff] %v7159
  %7400 = vst.msk [vmem:[%s5 + $0x5a8] sm:$0xff] %vm1938, %v7160
  %7401 = vst [vmem:[%s5 + $0x5b0] sm:$0xff] %v7161
  %7402 = vst.msk [vmem:[%s5 + $0x5b8] sm:$0xff] %vm1938, %v7162
  %7403 = vst [vmem:[%s5 + $0x5c0] sm:$0xff] %v7163
  %7404 = vst.msk [vmem:[%s5 + $0x5c8] sm:$0xff] %vm1938, %v7164
  %7405 = vst [vmem:[%s5 + $0x5d0] sm:$0xff] %v7165
  %7406 = vst.msk [vmem:[%s5 + $0x5d8] sm:$0xff] %vm1938, %v7166
  %7407 = vst [vmem:[%s5 + $0x5e0] sm:$0xff] %v7167
  %7408 = vst.msk [vmem:[%s5 + $0x5e8] sm:$0xff] %vm1938, %v7168
  %7409 = vst [vmem:[%s5 + $0x5f0] sm:$0xff] %v7169
  %7410 = vst.msk [vmem:[%s5 + $0x5f8] sm:$0xff] %vm1938, %v7170
  %7411 = vst [vmem:[%s5 + $0x600] sm:$0xff] %v7171
  %7412 = vst.msk [vmem:[%s5 + $0x608] sm:$0xff] %vm1938, %v7172
  %7413 = vst [vmem:[%s5 + $0x610] sm:$0xff] %v7173
  %7414 = vst.msk [vmem:[%s5 + $0x618] sm:$0xff] %vm1938, %v7174
  %7415 = vst [vmem:[%s5 + $0x620] sm:$0xff] %v7175
  %7416 = vst.msk [vmem:[%s5 + $0x628] sm:$0xff] %vm1938, %v7176
  %7417 = vst [vmem:[%s5 + $0x630] sm:$0xff] %v7177
  %7418 = vst.msk [vmem:[%s5 + $0x638] sm:$0xff] %vm1938, %v7178
  %7419 = vst [vmem:[%s5 + $0x640] sm:$0xff] %v7179
  %7420 = vst.msk [vmem:[%s5 + $0x648] sm:$0xff] %vm1938, %v7180
  %7421 = vst [vmem:[%s5 + $0x650] sm:$0xff] %v7181
  %7422 = vst.msk [vmem:[%s5 + $0x658] sm:$0xff] %vm1938, %v7182
  %7423 = vst [vmem:[%s5 + $0x660] sm:$0xff] %v7183
  %7424 = vst.msk [vmem:[%s5 + $0x668] sm:$0xff] %vm1938, %v7184
  %7425 = vst [vmem:[%s5 + $0x670] sm:$0xff] %v7185
  %7426 = vst.msk [vmem:[%s5 + $0x678] sm:$0xff] %vm1938, %v7186
  %7427 = vst [vmem:[%s5 + $0x680] sm:$0xff] %v7187
  %7428 = vst.msk [vmem:[%s5 + $0x688] sm:$0xff] %vm1938, %v7188
  %7429 = vst [vmem:[%s5 + $0x690] sm:$0xff] %v7189
  %7430 = vst.msk [vmem:[%s5 + $0x698] sm:$0xff] %vm1938, %v7190
  %7431 = vst [vmem:[%s5 + $0x6a0] sm:$0xff] %v7191
  %7432 = vst.msk [vmem:[%s5 + $0x6a8] sm:$0xff] %vm1938, %v7192
  %7433 = vst [vmem:[%s5 + $0x6b0] sm:$0xff] %v7193
  %7434 = vst.msk [vmem:[%s5 + $0x6b8] sm:$0xff] %vm1938, %v7194
  %7435 = vst [vmem:[%s5 + $0x6c0] sm:$0xff] %v7195
  %7436 = vst.msk [vmem:[%s5 + $0x6c8] sm:$0xff] %vm1938, %v7196
  %7437 = vst [vmem:[%s5 + $0x6d0] sm:$0xff] %v7197
  %7438 = vst.msk [vmem:[%s5 + $0x6d8] sm:$0xff] %vm1938, %v7198
  %7439 = vst [vmem:[%s5 + $0x6e0] sm:$0xff] %v7199
  %7440 = vst.msk [vmem:[%s5 + $0x6e8] sm:$0xff] %vm1938, %v7200
  %7441 = vst [vmem:[%s5 + $0x6f0] sm:$0xff] %v7201
  %7442 = vst.msk [vmem:[%s5 + $0x6f8] sm:$0xff] %vm1938, %v7202
  %7443 = vst [vmem:[%s5 + $0x700] sm:$0xff] %v7203
  %7444 = vst.msk [vmem:[%s5 + $0x708] sm:$0xff] %vm1938, %v7204
  %7445 = vst [vmem:[%s5 + $0x710] sm:$0xff] %v7205
  %7446 = vst.msk [vmem:[%s5 + $0x718] sm:$0xff] %vm1938, %v7206
  %7447 = vst [vmem:[%s5 + $0x720] sm:$0xff] %v7207
  %7448 = vst.msk [vmem:[%s5 + $0x728] sm:$0xff] %vm1938, %v7208
  %7449 = vst [vmem:[%s5 + $0x730] sm:$0xff] %v7209
  %7450 = vst.msk [vmem:[%s5 + $0x738] sm:$0xff] %vm1938, %v7210
  %7451 = vst [vmem:[%s5 + $0x740] sm:$0xff] %v7211
  %7452 = vst.msk [vmem:[%s5 + $0x748] sm:$0xff] %vm1938, %v7212
  %7453 = vst [vmem:[%s5 + $0x750] sm:$0xff] %v7213
  %7454 = vst.msk [vmem:[%s5 + $0x758] sm:$0xff] %vm1938, %v7214
  %7455 = vst [vmem:[%s5 + $0x760] sm:$0xff] %v7215
  %7456 = vst.msk [vmem:[%s5 + $0x768] sm:$0xff] %vm1938, %v7216
  %7457 = vst [vmem:[%s5 + $0x770] sm:$0xff] %v7217
  %7458 = vst.msk [vmem:[%s5 + $0x778] sm:$0xff] %vm1938, %v7218
  // Predicated region
  $region22: #{tpu_custom_call.1} parent=0 // pred_check
    _
  $region23: #{tpu_custom_call.1} parent=0 // pred_check_branch
    %7460 = sbr.rel (0) target = $region25
  $region24: #{tpu_custom_call.1} parent=0 // pred_region
    _
  $region25: #{tpu_custom_call.1} parent=0 // pred_fallthru
    _
  // Predicated region
  $region26: #{tpu_custom_call.1} parent=0 // pred_check
    _
  $region27: #{tpu_custom_call.1} parent=0 // pred_check_branch
    %7462 = sbr.rel (0) target = $region29
  $region28: #{tpu_custom_call.1} parent=0 // pred_region
    _
  $region29: #{tpu_custom_call.1} parent=0 // pred_fallthru
    _

</llo_original>
